<compile_context>
chip_gen: v7x
topology: tpu7x:2x2x1
jax: 0.10.0
libtpu: 0.0.40
codegen_flags: <defaults>
</compile_context>

<pallas_src>
import jax
import jax.numpy as jnp
from jax import lax
from jax.experimental import pallas as pl
from jax.experimental.pallas import tpu as pltpu

_EPS = 1e-5


def _round_up(x, m):
    return -(-x // m) * m


# ----------------------------------------------------------------------------
# Static parameter layout plan: every per-critic leaf lives at a fixed
# (row_offset, rows, cols) inside ONE packed (ROWS, LANES) fp32 buffer, so a
# critic's parameters arrive in a single DMA and the kernel carves static,
# tile-aligned sub-views out of a single ref.
# ----------------------------------------------------------------------------
def _param_plan(cfg, ci_pad):
    L = cfg["linear_size"]
    HW = L * L
    C = cfg["n_channels"]
    hc_pad = _round_up(cfg["hidden_channels"], 8)
    ph, fh = cfg["pixel_hidden_dim"], cfg["feature_hidden_dim"]

    shapes = [(C, 9 * ci_pad), (C, 1)]                                  # conv0
    for _ in range(cfg["n_layers"] - 1):                                # resconv
        shapes += [(1, HW), (1, HW), (hc_pad, 9 * C), (hc_pad, 1),
                   (C, 9 * hc_pad), (C, 1)]
    for _ in range(cfg["pixel_n_residuals"]):                           # pixel res
        shapes += [(1, HW), (1, HW), (HW, ph), (1, ph), (ph, HW), (1, HW)]
    for _ in range(cfg["feature_n_residuals"]):                         # feature res
        shapes += [(C, 1), (C, 1), (fh, C), (fh, 1), (C, fh), (C, 1)]
    shapes += [(1, C), (1, 1)]                                          # head

    lanes = _round_up(max(s[1] for s in shapes), 128)
    plan, off = [], 0
    for (r, c) in shapes:
        plan.append((off, r, c))
        off += _round_up(r, 8)     # 8-aligned row offsets => tile-aligned views
    rows = _round_up(off, 8)
    return plan, rows, lanes


# ----------------------------------------------------------------------------
# Fused twin-critic kernel
# ----------------------------------------------------------------------------
def _make_twin_kernel(B, C, L, ci_pad, hc_pad, n_resconv, n_pix, n_feat,
                      plan, n_crit):
    HW = L * L
    N = B * HW

    def kernel(state_ref, masks_ref, prm_ref, out_ref, patch_ref):

        def leaf(c, i):
            off, r, cols = plan[i]
            if n_crit == 1:                       # per-critic block (grid=(2,))
                return prm_ref[off:off + r, :cols]
            return prm_ref[c, off:off + r, :cols]

        def build_patches(x, cin):
            # im2col: 9 lane-rotated + masked copies of x, written at static
            # 8-aligned sublane offsets into the shared VMEM scratch.
            for k in range(9):
                dy, dx = k // 3 - 1, k % 3 - 1
                s = dy * L + dx
                sh = x if s == 0 else pltpu.roll(x, (-s) % N, axis=1)
                if k != 4:                        # centre-tap mask is all ones
                    sh = sh * masks_ref[k:k + 1, :]
                patch_ref[k * cin:(k + 1) * cin, :] = sh

        def conv3x3(x, cin, w, b, relu):
            build_patches(x, cin)
            y = jnp.dot(w, patch_ref[:9 * cin, :],
                        preferred_element_type=jnp.float32) + b
            return jnp.maximum(y, 0.0) if relu else y

        def ln_lane_blocks(x, g, bt):
            # LayerNorm((L, L)): stats per (channel row, per-image lane block).
            outs = []
            for bi in range(B):
                xb = x[:, bi * HW:(bi + 1) * HW]
                mu = jnp.mean(xb, axis=-1, keepdims=True)
                xc = xb - mu
                var = jnp.mean(xc * xc, axis=-1, keepdims=True)
                outs.append(xc * lax.rsqrt(var + _EPS) * g + bt)
            return jnp.concatenate(outs, axis=-1)

        def ln_rows(x, g, bt):
            mu = jnp.mean(x, axis=-1, keepdims=True)
            xc = x - mu
            var = jnp.mean(xc * xc, axis=-1, keepdims=True)
            return xc * lax.rsqrt(var + _EPS) * g + bt

        # ---- conv0: input patches built ONCE (input shared by both critics);
        # the critics' first convs are fused into one stacked MXU matmul.
        x0 = jnp.concatenate([state_ref[b] for b in range(B)], axis=-1)   # (ci_pad, N)
        build_patches(x0, ci_pad)
        w0 = jnp.concatenate([leaf(c, 0) for c in range(n_crit)], axis=0)
        b0 = jnp.concatenate([leaf(c, 1) for c in range(n_crit)], axis=0)
        y0 = jnp.maximum(
            jnp.dot(w0, patch_ref[:9 * ci_pad, :],
                    preferred_element_type=jnp.float32) + b0, 0.0)        # (n_crit*C, N)

        for c in range(n_crit):
            idx = 2
            y = y0[c * C:(c + 1) * C, :]                                  # (C, N)

            # ---------------- SpatialFeatures residual conv blocks ----------------
            for _ in range(n_resconv):
                ln_g, ln_b = leaf(c, idx), leaf(c, idx + 1)
                w1, b1 = leaf(c, idx + 2), leaf(c, idx + 3)
                w2, b2 = leaf(c, idx + 4), leaf(c, idx + 5)
                idx += 6
                yn = ln_lane_blocks(y, ln_g, ln_b)
                h = conv3x3(yn, C, w1, b1, relu=True)                     # (hc_pad, N)
                y = y + conv3x3(h, hc_pad, w2, b2, relu=False)            # (C, N)

            # ---------------- NonSpatialFeatures: pixel residual MLPs -------------
            # relayout (C, B*HW) -> (B*C, HW)   (== torch x.view(B, C, L*L) rows)
            z = jnp.concatenate(
                [y[:, bi * HW:(bi + 1) * HW] for bi in range(B)], axis=0)  # (B*C, HW)
            for _ in range(n_pix):
                g, bb = leaf(c, idx), leaf(c, idx + 1)
                w1, b1 = leaf(c, idx + 2), leaf(c, idx + 3)
                w2, b2 = leaf(c, idx + 4), leaf(c, idx + 5)
                idx += 6
                zn = ln_rows(z, g, bb)
                h = jnp.maximum(
                    jnp.dot(zn, w1, preferred_element_type=jnp.float32) + b1, 0.0)
                z = z + jnp.dot(h, w2, preferred_element_type=jnp.float32) + b2

            # featurewise max pool over pixels: one lane reduction, then a single
            # aligned relayout to (C, B) (channels on sublanes, batch on lanes).
            pooled = jnp.max(z, axis=-1, keepdims=True)                   # (B*C, 1)
            fT = jnp.concatenate(
                [pooled[bi * C:(bi + 1) * C, :] for bi in range(B)], axis=-1)  # (C, B)

            # ---------------- feature residual MLPs (transposed) ------------------
            for _ in range(n_feat):
                g, bb = leaf(c, idx), leaf(c, idx + 1)
                w1t, b1 = leaf(c, idx + 2), leaf(c, idx + 3)
                w2t, b2 = leaf(c, idx + 4), leaf(c, idx + 5)
                idx += 6
                mu = jnp.mean(fT, axis=0, keepdims=True)                  # LN over channels
                xc = fT - mu
                var = jnp.mean(xc * xc, axis=0, keepdims=True)
                xn = xc * lax.rsqrt(var + _EPS) * g + bb
                hT = jnp.maximum(
                    jnp.dot(w1t, xn, preferred_element_type=jnp.float32) + b1, 0.0)
                fT = fT + jnp.dot(w2t, hT, preferred_element_type=jnp.float32) + b2

            lin_w, lin_b = leaf(c, idx), leaf(c, idx + 1)
            v = jnp.dot(lin_w, fT, preferred_element_type=jnp.float32) + lin_b  # (1, B)
            if n_crit == 1:
                out_ref[...] = v
            else:
                out_ref[c] = v

    return kernel


# ----------------------------------------------------------------------------
# Parameter packing (torch layout -> one packed (ROWS, LANES) buffer per critic)
# Done ONCE at init, outside the per-step forward.
# ----------------------------------------------------------------------------
def _pack_critic_params(p, cfg, ci_pad, plan, rows, lanes):
    L = cfg["linear_size"]
    HW = L * L
    C = cfg["n_channels"]
    hc_pad = _round_up(cfg["hidden_channels"], 8)

    def conv_w(w, co_pad=None, ci_pad_=None):
        co, ci = w.shape[0], w.shape[1]
        co_p = co if co_pad is None else co_pad
        ci_p = ci if ci_pad_ is None else ci_pad_
        w = jnp.pad(w, ((0, co_p - co), (0, ci_p - ci), (0, 0), (0, 0)))
        # (co, ci, ky, kx) -> (co, ky, kx, ci) -> (co, 9*ci); K = (ky*3+kx)*ci + c
        return jnp.transpose(w, (0, 2, 3, 1)).reshape(co_p, 9 * ci_p)

    def col(v, pad_to=None):
        v = v.reshape(-1, 1)
        if pad_to is not None and pad_to != v.shape[0]:
            v = jnp.pad(v, ((0, pad_to - v.shape[0]), (0, 0)))
        return v

    leaves = [conv_w(p["conv0_w"], ci_pad_=ci_pad), col(p["conv0_b"])]
    for lp in p["resconv"]:
        leaves += [lp["ln_g"].reshape(1, HW), lp["ln_b"].reshape(1, HW),
                   conv_w(lp["w1"], co_pad=hc_pad), col(lp["b1"], pad_to=hc_pad),
                   conv_w(lp["w2"], ci_pad_=hc_pad), col(lp["b2"])]
    for lp in p["pixel_res"]:
        leaves += [lp["g"].reshape(1, HW), lp["b"].reshape(1, HW),
                   lp["w1"], lp["b1"].reshape(1, -1),
                   lp["w2"], lp["b2"].reshape(1, HW)]
    for lp in p["feature_res"]:
        leaves += [lp["g"].reshape(C, 1), lp["b"].reshape(C, 1),
                   lp["w1"].T, col(lp["b1"]),
                   lp["w2"].T, lp["b2"].reshape(C, 1)]
    leaves += [p["lin_w"].reshape(C, 1).T, p["lin_b"].reshape(1, 1)]

    buf = jnp.zeros((rows, lanes), jnp.float32)
    for (off, r, cdim), lf in zip(plan, leaves):
        assert lf.shape == (r, cdim), (lf.shape, (r, cdim))
        buf = buf.at[off:off + r, :cdim].set(lf.astype(jnp.float32))
    return buf


def prepare_spatial_critic_params(params1, params2, cfg, in_channels):
    ci_pad = _round_up(max(in_channels, 8), 8)
    plan, rows, lanes = _param_plan(cfg, ci_pad)
    p1 = _pack_critic_params(params1, cfg, ci_pad, plan, rows, lanes)
    p2 = _pack_critic_params(params2, cfg, ci_pad, plan, rows, lanes)
    return jnp.stack([p1, p2], axis=0)                       # (2, ROWS, LANES)


def make_tap_masks(cfg, batch_size):
    # 9 tap-validity masks (== torch zero padding), tiled over the batch so they
    # match the (C, B*HW) batched-lane layout used inside the kernel.
    L = cfg["linear_size"]
    HW = L * L
    idx = jnp.arange(HW)
    h, w = idx // L, idx % L
    rows = []
    for k in range(9):
        dy, dx = k // 3 - 1, k % 3 - 1
        valid = (h + dy >= 0) & (h + dy < L) & (w + dx >= 0) & (w + dx < L)
        rows.append(valid.astype(jnp.float32))
    m = jnp.stack(rows)                                      # (9, HW)
    return jnp.tile(m, (1, batch_size))                      # (9, B*HW)


def _is_multi_tc_chip():
    # Only v7x-class chips expose two TensorCores per chip to a single Pallas
    # call; keep the 2-way "parallel" critic grid there, fuse both critics into
    # one step on single-TC v5e/v6e.
    try:
        kind = jax.devices()[0].device_kind.lower()
    except Exception:
        return False
    return ("v7" in kind) or ("7x" in kind)


# ----------------------------------------------------------------------------
# SpatialCritic forward (twin): one fused pallas_call for both critics
# ----------------------------------------------------------------------------
def make_spatial_critic_forward(cfg, in_channels, batch_size, *, target=False,
                                multi_tc=None):
    L = cfg["linear_size"]
    HW = L * L
    C = cfg["n_channels"]
    B = batch_size
    N = B * HW
    ci_pad = _round_up(max(in_channels, 8), 8)
    hc_pad = _round_up(cfg["hidden_channels"], 8)
    ph, fh = cfg["pixel_hidden_dim"], cfg["feature_hidden_dim"]
    nrc = cfg["n_layers"] - 1
    npx, nft = cfg["pixel_n_residuals"], cfg["feature_n_residuals"]

    # Tile-alignment assumptions baked into the kernel (see review notes).
    assert C % 8 == 0, "n_channels must be a multiple of 8"
    assert HW % 128 == 0 and N % 128 == 0, "L*L (and B*L*L) must be lane aligned"

    plan, rows, lanes = _param_plan(cfg, ci_pad)
    if multi_tc is None:
        multi_tc = _is_multi_tc_chip()
    n_crit = 1 if multi_tc else 2

    kernel = _make_twin_kernel(B, C, L, ci_pad, hc_pad, nrc, npx, nft,
                               plan, n_crit)
    kmax = 9 * max(ci_pad, C, hc_pad)

    # Advisory cost hint: kernel is tiny / latency-bound.
    conv_flops = 2 * N * (C * 9 * ci_pad + nrc * (hc_pad * 9 * C + C * 9 * hc_pad))
    pix_flops = npx * 2 * (B * C) * 2 * HW * ph
    feat_flops = nft * 2 * B * 2 * C * fh + 2 * B * C
    cost = pl.CostEstimate(
        flops=2 * (conv_flops + pix_flops + feat_flops),
        transcendentals=2 * (nrc * B * C + npx * B * C + nft * B),
        bytes_accessed=4 * (2 * rows * lanes + B * ci_pad * HW + 9 * N + 2 * B))

    if multi_tc:
        grid = (2,)                                           # one critic per TC
        in_specs = [
            pl.BlockSpec((B, ci_pad, HW), lambda i: (0, 0, 0)),
            pl.BlockSpec((9, N), lambda i: (0, 0)),
            pl.BlockSpec((None, rows, lanes), lambda i: (i, 0, 0)),
        ]
        out_specs = pl.BlockSpec((None, 1, B), lambda i: (i, 0, 0))
        dims = ("parallel",)
    else:
        grid = (1,)                                           # both critics, one step
        in_specs = [
            pl.BlockSpec((B, ci_pad, HW), lambda i: (0, 0, 0)),
            pl.BlockSpec((9, N), lambda i: (0, 0)),
            pl.BlockSpec((2, rows, lanes), lambda i: (0, 0, 0)),
        ]
        out_specs = pl.BlockSpec((2, 1, B), lambda i: (0, 0, 0))
        dims = ("arbitrary",)

    call = pl.pallas_call(
        kernel,
        out_shape=jax.ShapeDtypeStruct((2, 1, B), jnp.float32),
        grid=grid,
        in_specs=in_specs,
        out_specs=out_specs,
        scratch_shapes=[pltpu.VMEM((kmax, N), jnp.float32)],   # im2col patch scratch
        compiler_params=pltpu.CompilerParams(dimension_semantics=dims),
        cost_estimate=cost,
    )

    def forward(state_nchw, packed_params, tap_masks):
        # Only per-call state prep lives here; all parameter packing is hoisted.
        s = state_nchw.reshape(B, in_channels, HW).astype(jnp.float32)
        if ci_pad != in_channels:
            s = jnp.pad(s, ((0, 0), (0, ci_pad - in_channels), (0, 0)))
        out = call(s, tap_masks, packed_params)
        v1 = out[0, 0, :, None]                               # (B, 1)
        v2 = out[1, 0, :, None]
        if target:
            return jnp.minimum(v1, v2)
        return v1, v2

    return forward


# ----------------------------------------------------------------------------
# Pure-JAX reference of the same forward pass (numerical cross-check)
# ----------------------------------------------------------------------------
def _reference_basic_critic(state, p, cfg):
    dn = ("NCHW", "OIHW", "NCHW")

    def conv(x, w, b):
        y = lax.conv_general_dilated(x, w, (1, 1), "SAME", dimension_numbers=dn,
                                     precision=lax.Precision.HIGHEST)
        return y + b.reshape(1, -1, 1, 1)

    def ln(x, g, b, axes):
        mean = jnp.mean(x, axis=axes, keepdims=True)
        var = jnp.mean((x - mean) ** 2, axis=axes, keepdims=True)
        return (x - mean) * lax.rsqrt(var + _EPS) * g + b

    def res_layer(t, lp):
        n = ln(t, lp["g"].reshape(-1), lp["b"].reshape(-1), -1)
        h = jax.nn.relu(jnp.dot(n, lp["w1"], precision=lax.Precision.HIGHEST)
                        + lp["b1"])
        return t + jnp.dot(h, lp["w2"], precision=lax.Precision.HIGHEST) + lp["b2"]

    x = jax.nn.relu(conv(state, p["conv0_w"], p["conv0_b"]))
    for lp in p["resconv"]:
        y = ln(x, lp["ln_g"], lp["ln_b"], (2, 3))
        y = jax.nn.relu(conv(y, lp["w1"], lp["b1"]))
        y = conv(y, lp["w2"], lp["b2"])
        x = x + y
    B, C, L, _ = x.shape
    z = x.reshape(B, C, L * L)
    for lp in p["pixel_res"]:
        z = res_layer(z, lp)
    f = jnp.max(z, axis=2)
    for lp in p["feature_res"]:
        f = res_layer(f, lp)
    return jnp.dot(f, p["lin_w"], precision=lax.Precision.HIGHEST) + p["lin_b"]


# ----------------------------------------------------------------------------
# Deterministic parameter init (synthetic; torch-layout shapes)
# ----------------------------------------------------------------------------
def _init_basic_critic_params(key, cfg, in_channels):
    L, C = cfg["linear_size"], cfg["n_channels"]
    N = L * L
    hc, ph, fh = cfg["hidden_channels"], cfg["pixel_hidden_dim"], cfg["feature_hidden_dim"]
    kit = iter(jax.random.split(key, 64))

    def w(shape, scale=0.05):
        return (scale * jax.random.normal(next(kit), shape)).astype(jnp.float32)

    p = {"conv0_w": w((C, in_channels, 3, 3)), "conv0_b": w((C,)),
         "resconv": [], "pixel_res": [], "feature_res": [],
         "lin_w": w((C, 1)), "lin_b": w((1, 1))}
    for _ in range(cfg["n_layers"] - 1):
        p["resconv"].append(dict(
            ln_g=jnp.ones((L, L), jnp.float32), ln_b=jnp.zeros((L, L), jnp.float32),
            w1=w((hc, C, 3, 3)), b1=w((hc,)),
            w2=w((C, hc, 3, 3)), b2=w((C,))))
    for _ in range(cfg["pixel_n_residuals"]):
        p["pixel_res"].append(dict(
            g=jnp.ones((1, N), jnp.float32), b=jnp.zeros((1, N), jnp.float32),
            w1=w((N, ph)), b1=w((1, ph)), w2=w((ph, N)), b2=w((1, N))))
    for _ in range(cfg["feature_n_residuals"]):
        p["feature_res"].append(dict(
            g=jnp.ones((1, C), jnp.float32), b=jnp.zeros((1, C), jnp.float32),
            w1=w((C, fh)), b1=w((1, fh)), w2=w((fh, C)), b2=w((1, C))))
    return p


# ----------------------------------------------------------------------------
# main
# ----------------------------------------------------------------------------
if __name__ == "__main__":
    B, in_ch, L = 2, 4, 16            # input state: (B, in_channels, L, L), NCHW
    cfg = dict(n_layers=2, linear_size=L, n_channels=16, hidden_channels=12,
               pixel_hidden_dim=32, pixel_n_residuals=2,
               feature_hidden_dim=32, feature_n_residuals=2)

    key = jax.random.PRNGKey(0)
    k_x, k1, k2 = jax.random.split(key, 3)
    params1 = _init_basic_critic_params(k1, cfg, in_ch)
    params2 = _init_basic_critic_params(k2, cfg, in_ch)
    state = jax.random.normal(k_x, (B, in_ch, L, L), jnp.float32)

    # Hoisted out of the per-step forward: pack params + build masks ONCE.
    packed = prepare_spatial_critic_params(params1, params2, cfg, in_ch)
    masks = make_tap_masks(cfg, B)

    fwd = make_spatial_critic_forward(cfg, in_ch, B, target=False)
    run = jax.jit(fwd)

    # SpatialCritic(twin=True, target=False) -> (v1, v2)
    v1, v2 = run(state, packed, masks)
    jax.block_until_ready((v1, v2))

    assert v1.shape == (B, 1) and v2.shape == (B, 1)
    assert v1.dtype == jnp.float32 and v2.dtype == jnp.float32

    # Numerical cross-check against a plain-JAX reference of the same module.
    v1_ref = _reference_basic_critic(state, params1, cfg)
    v2_ref = _reference_basic_critic(state, params2, cfg)
    err = jnp.maximum(jnp.max(jnp.abs(v1 - v1_ref)), jnp.max(jnp.abs(v2 - v2_ref)))
    assert float(err) < 1e-3, f"mismatch vs reference: {float(err)}"

    print("KERNEL_OK")
</pallas_src>

<mosaic_0001>
module attributes {stable_mosaic.version = 11 : i64} {
  func.func @kernel(%arg0: i32, %arg1: memref<2x8x256xf32, #tpu.memory_space<vmem>>, %arg2: memref<9x512xf32, #tpu.memory_space<vmem>>, %arg3: memref<2x1024x256xf32, #tpu.memory_space<vmem>>, %arg4: memref<2x1x2xf32, #tpu.memory_space<vmem>>, %arg5: memref<144x512xf32, #tpu.memory_space<vmem>>) attributes {dimension_semantics = [#tpu.dimension_semantics<arbitrary>], iteration_bounds = array<i64: 1>, scalar_prefetch = 0 : i64, scratch_operands = 1 : i64, tpu.core_type = #tpu.core_type<tc>, window_params = [{pipeline_mode = #tpu.pipeline_mode<synchronous>, transform_indices = @transform_0, window_bounds = array<i64: 2, 8, 256>}, {pipeline_mode = #tpu.pipeline_mode<synchronous>, transform_indices = @transform_1, window_bounds = array<i64: 9, 512>}, {pipeline_mode = #tpu.pipeline_mode<synchronous>, transform_indices = @transform_2, window_bounds = array<i64: 2, 1024, 256>}, {pipeline_mode = #tpu.pipeline_mode<synchronous>, transform_indices = @transform_3, window_bounds = array<i64: 2, 1, 2>}]} {
    %c0 = arith.constant 0 : index
    %c0_0 = arith.constant 0 : index
    %c0_1 = arith.constant 0 : index
    %0 = vector.load %arg1[%c0, %c0_0, %c0_1] : memref<2x8x256xf32, #tpu.memory_space<vmem>>, vector<1x8x256xf32>
    %1 = vector.shape_cast %0 : vector<1x8x256xf32> to vector<8x256xf32>
    %c1 = arith.constant 1 : index
    %c0_2 = arith.constant 0 : index
    %c0_3 = arith.constant 0 : index
    %2 = vector.load %arg1[%c1, %c0_2, %c0_3] : memref<2x8x256xf32, #tpu.memory_space<vmem>>, vector<1x8x256xf32>
    %3 = vector.shape_cast %2 : vector<1x8x256xf32> to vector<8x256xf32>
    %4 = tpu.concatenate %1, %3 in 1 : vector<8x256xf32>, vector<8x256xf32> -> vector<8x512xf32>
    %c17_i32 = arith.constant 17 : i32
    %5 = tpu.dynamic_rotate %4 by %c17_i32 dim 1 : vector<8x512xf32>, i32 -> vector<8x512xf32>
    %c0_4 = arith.constant 0 : index
    %c0_5 = arith.constant 0 : index
    %6 = vector.load %arg2[%c0_4, %c0_5] : memref<9x512xf32, #tpu.memory_space<vmem>>, vector<1x512xf32>
    %7 = vector.broadcast %6 : vector<1x512xf32> to vector<8x512xf32>
    %8 = arith.mulf %5, %7 : vector<8x512xf32>
    %c0_6 = arith.constant 0 : index
    %c0_7 = arith.constant 0 : index
    %9 = vector.load %arg5[%c0_6, %c0_7] : memref<144x512xf32, #tpu.memory_space<vmem>>, vector<8x512xf32>
    tpu.vector_store %arg5[%c0_6, %c0_7], %8 {strides = array<i32>} : memref<144x512xf32, #tpu.memory_space<vmem>>, vector<8x512xf32>,
    %c16_i32 = arith.constant 16 : i32
    %10 = tpu.dynamic_rotate %4 by %c16_i32 dim 1 : vector<8x512xf32>, i32 -> vector<8x512xf32>
    %c1_8 = arith.constant 1 : index
    %c0_9 = arith.constant 0 : index
    %11 = vector.load %arg2[%c1_8, %c0_9] : memref<9x512xf32, #tpu.memory_space<vmem>>, vector<1x512xf32>
    %12 = vector.broadcast %11 : vector<1x512xf32> to vector<8x512xf32>
    %13 = arith.mulf %10, %12 : vector<8x512xf32>
    %c8 = arith.constant 8 : index
    %c0_10 = arith.constant 0 : index
    %14 = vector.load %arg5[%c8, %c0_10] : memref<144x512xf32, #tpu.memory_space<vmem>>, vector<8x512xf32>
    tpu.vector_store %arg5[%c8, %c0_10], %13 {strides = array<i32>} : memref<144x512xf32, #tpu.memory_space<vmem>>, vector<8x512xf32>,
    %c15_i32 = arith.constant 15 : i32
    %15 = tpu.dynamic_rotate %4 by %c15_i32 dim 1 : vector<8x512xf32>, i32 -> vector<8x512xf32>
    %c2 = arith.constant 2 : index
    %c0_11 = arith.constant 0 : index
    %16 = vector.load %arg2[%c2, %c0_11] : memref<9x512xf32, #tpu.memory_space<vmem>>, vector<1x512xf32>
    %17 = vector.broadcast %16 : vector<1x512xf32> to vector<8x512xf32>
    %18 = arith.mulf %15, %17 : vector<8x512xf32>
    %c16 = arith.constant 16 : index
    %c0_12 = arith.constant 0 : index
    %19 = vector.load %arg5[%c16, %c0_12] : memref<144x512xf32, #tpu.memory_space<vmem>>, vector<8x512xf32>
    tpu.vector_store %arg5[%c16, %c0_12], %18 {strides = array<i32>} : memref<144x512xf32, #tpu.memory_space<vmem>>, vector<8x512xf32>,
    %c1_i32 = arith.constant 1 : i32
    %20 = tpu.dynamic_rotate %4 by %c1_i32 dim 1 : vector<8x512xf32>, i32 -> vector<8x512xf32>
    %c3 = arith.constant 3 : index
    %c0_13 = arith.constant 0 : index
    %21 = vector.load %arg2[%c3, %c0_13] : memref<9x512xf32, #tpu.memory_space<vmem>>, vector<1x512xf32>
    %22 = vector.broadcast %21 : vector<1x512xf32> to vector<8x512xf32>
    %23 = arith.mulf %20, %22 : vector<8x512xf32>
    %c24 = arith.constant 24 : index
    %c0_14 = arith.constant 0 : index
    %24 = vector.load %arg5[%c24, %c0_14] : memref<144x512xf32, #tpu.memory_space<vmem>>, vector<8x512xf32>
    tpu.vector_store %arg5[%c24, %c0_14], %23 {strides = array<i32>} : memref<144x512xf32, #tpu.memory_space<vmem>>, vector<8x512xf32>,
    %c32 = arith.constant 32 : index
    %c0_15 = arith.constant 0 : index
    %25 = vector.load %arg5[%c32, %c0_15] : memref<144x512xf32, #tpu.memory_space<vmem>>, vector<8x512xf32>
    tpu.vector_store %arg5[%c32, %c0_15], %4 {strides = array<i32>} : memref<144x512xf32, #tpu.memory_space<vmem>>, vector<8x512xf32>,
    %c511_i32 = arith.constant 511 : i32
    %26 = tpu.dynamic_rotate %4 by %c511_i32 dim 1 : vector<8x512xf32>, i32 -> vector<8x512xf32>
    %c5 = arith.constant 5 : index
    %c0_16 = arith.constant 0 : index
    %27 = vector.load %arg2[%c5, %c0_16] : memref<9x512xf32, #tpu.memory_space<vmem>>, vector<1x512xf32>
    %28 = vector.broadcast %27 : vector<1x512xf32> to vector<8x512xf32>
    %29 = arith.mulf %26, %28 : vector<8x512xf32>
    %c40 = arith.constant 40 : index
    %c0_17 = arith.constant 0 : index
    %30 = vector.load %arg5[%c40, %c0_17] : memref<144x512xf32, #tpu.memory_space<vmem>>, vector<8x512xf32>
    tpu.vector_store %arg5[%c40, %c0_17], %29 {strides = array<i32>} : memref<144x512xf32, #tpu.memory_space<vmem>>, vector<8x512xf32>,
    %c497_i32 = arith.constant 497 : i32
    %31 = tpu.dynamic_rotate %4 by %c497_i32 dim 1 : vector<8x512xf32>, i32 -> vector<8x512xf32>
    %c6 = arith.constant 6 : index
    %c0_18 = arith.constant 0 : index
    %32 = vector.load %arg2[%c6, %c0_18] : memref<9x512xf32, #tpu.memory_space<vmem>>, vector<1x512xf32>
    %33 = vector.broadcast %32 : vector<1x512xf32> to vector<8x512xf32>
    %34 = arith.mulf %31, %33 : vector<8x512xf32>
    %c48 = arith.constant 48 : index
    %c0_19 = arith.constant 0 : index
    %35 = vector.load %arg5[%c48, %c0_19] : memref<144x512xf32, #tpu.memory_space<vmem>>, vector<8x512xf32>
    tpu.vector_store %arg5[%c48, %c0_19], %34 {strides = array<i32>} : memref<144x512xf32, #tpu.memory_space<vmem>>, vector<8x512xf32>,
    %c496_i32 = arith.constant 496 : i32
    %36 = tpu.dynamic_rotate %4 by %c496_i32 dim 1 : vector<8x512xf32>, i32 -> vector<8x512xf32>
    %c7 = arith.constant 7 : index
    %c0_20 = arith.constant 0 : index
    %37 = vector.load %arg2[%c7, %c0_20] : memref<9x512xf32, #tpu.memory_space<vmem>>, vector<1x512xf32>
    %38 = vector.broadcast %37 : vector<1x512xf32> to vector<8x512xf32>
    %39 = arith.mulf %36, %38 : vector<8x512xf32>
    %c56 = arith.constant 56 : index
    %c0_21 = arith.constant 0 : index
    %40 = vector.load %arg5[%c56, %c0_21] : memref<144x512xf32, #tpu.memory_space<vmem>>, vector<8x512xf32>
    tpu.vector_store %arg5[%c56, %c0_21], %39 {strides = array<i32>} : memref<144x512xf32, #tpu.memory_space<vmem>>, vector<8x512xf32>,
    %c495_i32 = arith.constant 495 : i32
    %41 = tpu.dynamic_rotate %4 by %c495_i32 dim 1 : vector<8x512xf32>, i32 -> vector<8x512xf32>
    %c8_22 = arith.constant 8 : index
    %c0_23 = arith.constant 0 : index
    %42 = vector.load %arg2[%c8_22, %c0_23] : memref<9x512xf32, #tpu.memory_space<vmem>>, vector<1x512xf32>
    %43 = vector.broadcast %42 : vector<1x512xf32> to vector<8x512xf32>
    %44 = arith.mulf %41, %43 : vector<8x512xf32>
    %c64 = arith.constant 64 : index
    %c0_24 = arith.constant 0 : index
    %45 = vector.load %arg5[%c64, %c0_24] : memref<144x512xf32, #tpu.memory_space<vmem>>, vector<8x512xf32>
    tpu.vector_store %arg5[%c64, %c0_24], %44 {strides = array<i32>} : memref<144x512xf32, #tpu.memory_space<vmem>>, vector<8x512xf32>,
    %c0_25 = arith.constant 0 : index
    %c0_26 = arith.constant 0 : index
    %c0_27 = arith.constant 0 : index
    %46 = vector.load %arg3[%c0_25, %c0_26, %c0_27] : memref<2x1024x256xf32, #tpu.memory_space<vmem>>, vector<1x16x72xf32>
    %47 = vector.shape_cast %46 : vector<1x16x72xf32> to vector<16x72xf32>
    %c1_28 = arith.constant 1 : index
    %c0_29 = arith.constant 0 : index
    %c0_30 = arith.constant 0 : index
    %48 = vector.load %arg3[%c1_28, %c0_29, %c0_30] : memref<2x1024x256xf32, #tpu.memory_space<vmem>>, vector<1x16x72xf32>
    %49 = vector.shape_cast %48 : vector<1x16x72xf32> to vector<16x72xf32>
    %50 = tpu.concatenate %47, %49 in 0 : vector<16x72xf32>, vector<16x72xf32> -> vector<32x72xf32>
    %c0_31 = arith.constant 0 : index
    %c16_32 = arith.constant 16 : index
    %c0_33 = arith.constant 0 : index
    %51 = vector.load %arg3[%c0_31, %c16_32, %c0_33] : memref<2x1024x256xf32, #tpu.memory_space<vmem>>, vector<1x16x1xf32>
    %52 = vector.shape_cast %51 : vector<1x16x1xf32> to vector<16x1xf32>
    %c1_34 = arith.constant 1 : index
    %c16_35 = arith.constant 16 : index
    %c0_36 = arith.constant 0 : index
    %53 = vector.load %arg3[%c1_34, %c16_35, %c0_36] : memref<2x1024x256xf32, #tpu.memory_space<vmem>>, vector<1x16x1xf32>
    %54 = vector.shape_cast %53 : vector<1x16x1xf32> to vector<16x1xf32>
    %55 = tpu.concatenate %52, %54 in 0 : vector<16x1xf32>, vector<16x1xf32> -> vector<32x1xf32>
    %c0_37 = arith.constant 0 : index
    %c0_38 = arith.constant 0 : index
    %56 = vector.load %arg5[%c0_37, %c0_38] : memref<144x512xf32, #tpu.memory_space<vmem>>, vector<72x512xf32>
    %cst = arith.constant dense<0.000000e+00> : vector<32x512xf32>
    %57 = tpu.matmul %50, %56, %cst {dimension_numbers = #tpu.dot_dimension_numbers<[1], [0], [0], [1], [0, 0, 1, 1], [], []>} : vector<32x72xf32>, vector<72x512xf32>, vector<32x512xf32> -> vector<32x512xf32>
    %58 = vector.broadcast %55 : vector<32x1xf32> to vector<32x512xf32>
    %59 = arith.addf %57, %58 : vector<32x512xf32>
    %cst_39 = arith.constant 0.000000e+00 : f32
    %60 = vector.broadcast %cst_39 : f32 to vector<32x512xf32>
    %61 = arith.maximumf %59, %60 : vector<32x512xf32>
    %62 = vector.extract_strided_slice %61 {offsets = [0, 0], sizes = [16, 512], strides = [1, 1]} : vector<32x512xf32> to vector<16x512xf32>
    %c0_40 = arith.constant 0 : index
    %c32_41 = arith.constant 32 : index
    %c0_42 = arith.constant 0 : index
    %63 = vector.load %arg3[%c0_40, %c32_41, %c0_42] : memref<2x1024x256xf32, #tpu.memory_space<vmem>>, vector<1x1x256xf32>
    %64 = vector.shape_cast %63 : vector<1x1x256xf32> to vector<1x256xf32>
    %c0_43 = arith.constant 0 : index
    %c40_44 = arith.constant 40 : index
    %c0_45 = arith.constant 0 : index
    %65 = vector.load %arg3[%c0_43, %c40_44, %c0_45] : memref<2x1024x256xf32, #tpu.memory_space<vmem>>, vector<1x1x256xf32>
    %66 = vector.shape_cast %65 : vector<1x1x256xf32> to vector<1x256xf32>
    %c0_46 = arith.constant 0 : index
    %c48_47 = arith.constant 48 : index
    %c0_48 = arith.constant 0 : index
    %67 = vector.load %arg3[%c0_46, %c48_47, %c0_48] : memref<2x1024x256xf32, #tpu.memory_space<vmem>>, vector<1x16x144xf32>
    %68 = vector.shape_cast %67 : vector<1x16x144xf32> to vector<16x144xf32>
    %c0_49 = arith.constant 0 : index
    %c64_50 = arith.constant 64 : index
    %c0_51 = arith.constant 0 : index
    %69 = vector.load %arg3[%c0_49, %c64_50, %c0_51] : memref<2x1024x256xf32, #tpu.memory_space<vmem>>, vector<1x16x1xf32>
    %70 = vector.shape_cast %69 : vector<1x16x1xf32> to vector<16x1xf32>
    %c0_52 = arith.constant 0 : index
    %c80 = arith.constant 80 : index
    %c0_53 = arith.constant 0 : index
    %71 = vector.load %arg3[%c0_52, %c80, %c0_53] : memref<2x1024x256xf32, #tpu.memory_space<vmem>>, vector<1x16x144xf32>
    %72 = vector.shape_cast %71 : vector<1x16x144xf32> to vector<16x144xf32>
    %c0_54 = arith.constant 0 : index
    %c96 = arith.constant 96 : index
    %c0_55 = arith.constant 0 : index
    %73 = vector.load %arg3[%c0_54, %c96, %c0_55] : memref<2x1024x256xf32, #tpu.memory_space<vmem>>, vector<1x16x1xf32>
    %74 = vector.shape_cast %73 : vector<1x16x1xf32> to vector<16x1xf32>
    %75 = vector.extract_strided_slice %62 {offsets = [0, 0], sizes = [16, 256], strides = [1, 1]} : vector<16x512xf32> to vector<16x256xf32>
    %cst_56 = arith.constant dense<0.000000e+00> : vector<16xf32>
    %76 = vector.multi_reduction <add>, %75, %cst_56 [1] : vector<16x256xf32> to vector<16xf32>
    %77 = vector.shape_cast %76 : vector<16xf32> to vector<16x1xf32>
    %cst_57 = arith.constant 2.560000e+02 : f32
    %78 = vector.broadcast %cst_57 : f32 to vector<16x1xf32>
    %79 = arith.divf %77, %78 : vector<16x1xf32>
    %80 = vector.broadcast %79 : vector<16x1xf32> to vector<16x256xf32>
    %81 = arith.subf %75, %80 : vector<16x256xf32>
    %82 = arith.mulf %81, %81 : vector<16x256xf32>
    %cst_58 = arith.constant dense<0.000000e+00> : vector<16xf32>
    %83 = vector.multi_reduction <add>, %82, %cst_58 [1] : vector<16x256xf32> to vector<16xf32>
    %84 = vector.shape_cast %83 : vector<16xf32> to vector<16x1xf32>
    %cst_59 = arith.constant 2.560000e+02 : f32
    %85 = vector.broadcast %cst_59 : f32 to vector<16x1xf32>
    %86 = arith.divf %84, %85 : vector<16x1xf32>
    %cst_60 = arith.constant 9.99999974E-6 : f32
    %87 = vector.broadcast %cst_60 : f32 to vector<16x1xf32>
    %88 = arith.addf %86, %87 : vector<16x1xf32>
    %89 = math.rsqrt %88 : vector<16x1xf32>
    %90 = vector.broadcast %89 : vector<16x1xf32> to vector<16x256xf32>
    %91 = arith.mulf %81, %90 : vector<16x256xf32>
    %92 = vector.broadcast %64 : vector<1x256xf32> to vector<16x256xf32>
    %93 = arith.mulf %91, %92 : vector<16x256xf32>
    %94 = vector.broadcast %66 : vector<1x256xf32> to vector<16x256xf32>
    %95 = arith.addf %93, %94 : vector<16x256xf32>
    %96 = vector.extract_strided_slice %62 {offsets = [0, 256], sizes = [16, 256], strides = [1, 1]} : vector<16x512xf32> to vector<16x256xf32>
    %cst_61 = arith.constant dense<0.000000e+00> : vector<16xf32>
    %97 = vector.multi_reduction <add>, %96, %cst_61 [1] : vector<16x256xf32> to vector<16xf32>
    %98 = vector.shape_cast %97 : vector<16xf32> to vector<16x1xf32>
    %cst_62 = arith.constant 2.560000e+02 : f32
    %99 = vector.broadcast %cst_62 : f32 to vector<16x1xf32>
    %100 = arith.divf %98, %99 : vector<16x1xf32>
    %101 = vector.broadcast %100 : vector<16x1xf32> to vector<16x256xf32>
    %102 = arith.subf %96, %101 : vector<16x256xf32>
    %103 = arith.mulf %102, %102 : vector<16x256xf32>
    %cst_63 = arith.constant dense<0.000000e+00> : vector<16xf32>
    %104 = vector.multi_reduction <add>, %103, %cst_63 [1] : vector<16x256xf32> to vector<16xf32>
    %105 = vector.shape_cast %104 : vector<16xf32> to vector<16x1xf32>
    %cst_64 = arith.constant 2.560000e+02 : f32
    %106 = vector.broadcast %cst_64 : f32 to vector<16x1xf32>
    %107 = arith.divf %105, %106 : vector<16x1xf32>
    %cst_65 = arith.constant 9.99999974E-6 : f32
    %108 = vector.broadcast %cst_65 : f32 to vector<16x1xf32>
    %109 = arith.addf %107, %108 : vector<16x1xf32>
    %110 = math.rsqrt %109 : vector<16x1xf32>
    %111 = vector.broadcast %110 : vector<16x1xf32> to vector<16x256xf32>
    %112 = arith.mulf %102, %111 : vector<16x256xf32>
    %113 = vector.broadcast %64 : vector<1x256xf32> to vector<16x256xf32>
    %114 = arith.mulf %112, %113 : vector<16x256xf32>
    %115 = vector.broadcast %66 : vector<1x256xf32> to vector<16x256xf32>
    %116 = arith.addf %114, %115 : vector<16x256xf32>
    %117 = tpu.concatenate %95, %116 in 1 : vector<16x256xf32>, vector<16x256xf32> -> vector<16x512xf32>
    %c17_i32_66 = arith.constant 17 : i32
    %118 = tpu.dynamic_rotate %117 by %c17_i32_66 dim 1 : vector<16x512xf32>, i32 -> vector<16x512xf32>
    %c0_67 = arith.constant 0 : index
    %c0_68 = arith.constant 0 : index
    %119 = vector.load %arg2[%c0_67, %c0_68] : memref<9x512xf32, #tpu.memory_space<vmem>>, vector<1x512xf32>
    %120 = vector.broadcast %119 : vector<1x512xf32> to vector<16x512xf32>
    %121 = arith.mulf %118, %120 : vector<16x512xf32>
    %c0_69 = arith.constant 0 : index
    %c0_70 = arith.constant 0 : index
    %122 = vector.load %arg5[%c0_69, %c0_70] : memref<144x512xf32, #tpu.memory_space<vmem>>, vector<16x512xf32>
    tpu.vector_store %arg5[%c0_69, %c0_70], %121 {strides = array<i32>} : memref<144x512xf32, #tpu.memory_space<vmem>>, vector<16x512xf32>,
    %c16_i32_71 = arith.constant 16 : i32
    %123 = tpu.dynamic_rotate %117 by %c16_i32_71 dim 1 : vector<16x512xf32>, i32 -> vector<16x512xf32>
    %c1_72 = arith.constant 1 : index
    %c0_73 = arith.constant 0 : index
    %124 = vector.load %arg2[%c1_72, %c0_73] : memref<9x512xf32, #tpu.memory_space<vmem>>, vector<1x512xf32>
    %125 = vector.broadcast %124 : vector<1x512xf32> to vector<16x512xf32>
    %126 = arith.mulf %123, %125 : vector<16x512xf32>
    %c16_74 = arith.constant 16 : index
    %c0_75 = arith.constant 0 : index
    %127 = vector.load %arg5[%c16_74, %c0_75] : memref<144x512xf32, #tpu.memory_space<vmem>>, vector<16x512xf32>
    tpu.vector_store %arg5[%c16_74, %c0_75], %126 {strides = array<i32>} : memref<144x512xf32, #tpu.memory_space<vmem>>, vector<16x512xf32>,
    %c15_i32_76 = arith.constant 15 : i32
    %128 = tpu.dynamic_rotate %117 by %c15_i32_76 dim 1 : vector<16x512xf32>, i32 -> vector<16x512xf32>
    %c2_77 = arith.constant 2 : index
    %c0_78 = arith.constant 0 : index
    %129 = vector.load %arg2[%c2_77, %c0_78] : memref<9x512xf32, #tpu.memory_space<vmem>>, vector<1x512xf32>
    %130 = vector.broadcast %129 : vector<1x512xf32> to vector<16x512xf32>
    %131 = arith.mulf %128, %130 : vector<16x512xf32>
    %c32_79 = arith.constant 32 : index
    %c0_80 = arith.constant 0 : index
    %132 = vector.load %arg5[%c32_79, %c0_80] : memref<144x512xf32, #tpu.memory_space<vmem>>, vector<16x512xf32>
    tpu.vector_store %arg5[%c32_79, %c0_80], %131 {strides = array<i32>} : memref<144x512xf32, #tpu.memory_space<vmem>>, vector<16x512xf32>,
    %c1_i32_81 = arith.constant 1 : i32
    %133 = tpu.dynamic_rotate %117 by %c1_i32_81 dim 1 : vector<16x512xf32>, i32 -> vector<16x512xf32>
    %c3_82 = arith.constant 3 : index
    %c0_83 = arith.constant 0 : index
    %134 = vector.load %arg2[%c3_82, %c0_83] : memref<9x512xf32, #tpu.memory_space<vmem>>, vector<1x512xf32>
    %135 = vector.broadcast %134 : vector<1x512xf32> to vector<16x512xf32>
    %136 = arith.mulf %133, %135 : vector<16x512xf32>
    %c48_84 = arith.constant 48 : index
    %c0_85 = arith.constant 0 : index
    %137 = vector.load %arg5[%c48_84, %c0_85] : memref<144x512xf32, #tpu.memory_space<vmem>>, vector<16x512xf32>
    tpu.vector_store %arg5[%c48_84, %c0_85], %136 {strides = array<i32>} : memref<144x512xf32, #tpu.memory_space<vmem>>, vector<16x512xf32>,
    %c64_86 = arith.constant 64 : index
    %c0_87 = arith.constant 0 : index
    %138 = vector.load %arg5[%c64_86, %c0_87] : memref<144x512xf32, #tpu.memory_space<vmem>>, vector<16x512xf32>
    tpu.vector_store %arg5[%c64_86, %c0_87], %117 {strides = array<i32>} : memref<144x512xf32, #tpu.memory_space<vmem>>, vector<16x512xf32>,
    %c511_i32_88 = arith.constant 511 : i32
    %139 = tpu.dynamic_rotate %117 by %c511_i32_88 dim 1 : vector<16x512xf32>, i32 -> vector<16x512xf32>
    %c5_89 = arith.constant 5 : index
    %c0_90 = arith.constant 0 : index
    %140 = vector.load %arg2[%c5_89, %c0_90] : memref<9x512xf32, #tpu.memory_space<vmem>>, vector<1x512xf32>
    %141 = vector.broadcast %140 : vector<1x512xf32> to vector<16x512xf32>
    %142 = arith.mulf %139, %141 : vector<16x512xf32>
    %c80_91 = arith.constant 80 : index
    %c0_92 = arith.constant 0 : index
    %143 = vector.load %arg5[%c80_91, %c0_92] : memref<144x512xf32, #tpu.memory_space<vmem>>, vector<16x512xf32>
    tpu.vector_store %arg5[%c80_91, %c0_92], %142 {strides = array<i32>} : memref<144x512xf32, #tpu.memory_space<vmem>>, vector<16x512xf32>,
    %c497_i32_93 = arith.constant 497 : i32
    %144 = tpu.dynamic_rotate %117 by %c497_i32_93 dim 1 : vector<16x512xf32>, i32 -> vector<16x512xf32>
    %c6_94 = arith.constant 6 : index
    %c0_95 = arith.constant 0 : index
    %145 = vector.load %arg2[%c6_94, %c0_95] : memref<9x512xf32, #tpu.memory_space<vmem>>, vector<1x512xf32>
    %146 = vector.broadcast %145 : vector<1x512xf32> to vector<16x512xf32>
    %147 = arith.mulf %144, %146 : vector<16x512xf32>
    %c96_96 = arith.constant 96 : index
    %c0_97 = arith.constant 0 : index
    %148 = vector.load %arg5[%c96_96, %c0_97] : memref<144x512xf32, #tpu.memory_space<vmem>>, vector<16x512xf32>
    tpu.vector_store %arg5[%c96_96, %c0_97], %147 {strides = array<i32>} : memref<144x512xf32, #tpu.memory_space<vmem>>, vector<16x512xf32>,
    %c496_i32_98 = arith.constant 496 : i32
    %149 = tpu.dynamic_rotate %117 by %c496_i32_98 dim 1 : vector<16x512xf32>, i32 -> vector<16x512xf32>
    %c7_99 = arith.constant 7 : index
    %c0_100 = arith.constant 0 : index
    %150 = vector.load %arg2[%c7_99, %c0_100] : memref<9x512xf32, #tpu.memory_space<vmem>>, vector<1x512xf32>
    %151 = vector.broadcast %150 : vector<1x512xf32> to vector<16x512xf32>
    %152 = arith.mulf %149, %151 : vector<16x512xf32>
    %c112 = arith.constant 112 : index
    %c0_101 = arith.constant 0 : index
    %153 = vector.load %arg5[%c112, %c0_101] : memref<144x512xf32, #tpu.memory_space<vmem>>, vector<16x512xf32>
    tpu.vector_store %arg5[%c112, %c0_101], %152 {strides = array<i32>} : memref<144x512xf32, #tpu.memory_space<vmem>>, vector<16x512xf32>,
    %c495_i32_102 = arith.constant 495 : i32
    %154 = tpu.dynamic_rotate %117 by %c495_i32_102 dim 1 : vector<16x512xf32>, i32 -> vector<16x512xf32>
    %c8_103 = arith.constant 8 : index
    %c0_104 = arith.constant 0 : index
    %155 = vector.load %arg2[%c8_103, %c0_104] : memref<9x512xf32, #tpu.memory_space<vmem>>, vector<1x512xf32>
    %156 = vector.broadcast %155 : vector<1x512xf32> to vector<16x512xf32>
    %157 = arith.mulf %154, %156 : vector<16x512xf32>
    %c128 = arith.constant 128 : index
    %c0_105 = arith.constant 0 : index
    %158 = vector.load %arg5[%c128, %c0_105] : memref<144x512xf32, #tpu.memory_space<vmem>>, vector<16x512xf32>
    tpu.vector_store %arg5[%c128, %c0_105], %157 {strides = array<i32>} : memref<144x512xf32, #tpu.memory_space<vmem>>, vector<16x512xf32>,
    %c0_106 = arith.constant 0 : index
    %c0_107 = arith.constant 0 : index
    %159 = vector.load %arg5[%c0_106, %c0_107] : memref<144x512xf32, #tpu.memory_space<vmem>>, vector<144x512xf32>
    %cst_108 = arith.constant dense<0.000000e+00> : vector<16x512xf32>
    %160 = tpu.matmul %68, %159, %cst_108 {dimension_numbers = #tpu.dot_dimension_numbers<[1], [0], [0], [1], [0, 0, 1, 1], [], []>} : vector<16x144xf32>, vector<144x512xf32>, vector<16x512xf32> -> vector<16x512xf32>
    %161 = vector.broadcast %70 : vector<16x1xf32> to vector<16x512xf32>
    %162 = arith.addf %160, %161 : vector<16x512xf32>
    %cst_109 = arith.constant 0.000000e+00 : f32
    %163 = vector.broadcast %cst_109 : f32 to vector<16x512xf32>
    %164 = arith.maximumf %162, %163 : vector<16x512xf32>
    %c17_i32_110 = arith.constant 17 : i32
    %165 = tpu.dynamic_rotate %164 by %c17_i32_110 dim 1 : vector<16x512xf32>, i32 -> vector<16x512xf32>
    %c0_111 = arith.constant 0 : index
    %c0_112 = arith.constant 0 : index
    %166 = vector.load %arg2[%c0_111, %c0_112] : memref<9x512xf32, #tpu.memory_space<vmem>>, vector<1x512xf32>
    %167 = vector.broadcast %166 : vector<1x512xf32> to vector<16x512xf32>
    %168 = arith.mulf %165, %167 : vector<16x512xf32>
    %c0_113 = arith.constant 0 : index
    %c0_114 = arith.constant 0 : index
    %169 = vector.load %arg5[%c0_113, %c0_114] : memref<144x512xf32, #tpu.memory_space<vmem>>, vector<16x512xf32>
    tpu.vector_store %arg5[%c0_113, %c0_114], %168 {strides = array<i32>} : memref<144x512xf32, #tpu.memory_space<vmem>>, vector<16x512xf32>,
    %c16_i32_115 = arith.constant 16 : i32
    %170 = tpu.dynamic_rotate %164 by %c16_i32_115 dim 1 : vector<16x512xf32>, i32 -> vector<16x512xf32>
    %c1_116 = arith.constant 1 : index
    %c0_117 = arith.constant 0 : index
    %171 = vector.load %arg2[%c1_116, %c0_117] : memref<9x512xf32, #tpu.memory_space<vmem>>, vector<1x512xf32>
    %172 = vector.broadcast %171 : vector<1x512xf32> to vector<16x512xf32>
    %173 = arith.mulf %170, %172 : vector<16x512xf32>
    %c16_118 = arith.constant 16 : index
    %c0_119 = arith.constant 0 : index
    %174 = vector.load %arg5[%c16_118, %c0_119] : memref<144x512xf32, #tpu.memory_space<vmem>>, vector<16x512xf32>
    tpu.vector_store %arg5[%c16_118, %c0_119], %173 {strides = array<i32>} : memref<144x512xf32, #tpu.memory_space<vmem>>, vector<16x512xf32>,
    %c15_i32_120 = arith.constant 15 : i32
    %175 = tpu.dynamic_rotate %164 by %c15_i32_120 dim 1 : vector<16x512xf32>, i32 -> vector<16x512xf32>
    %c2_121 = arith.constant 2 : index
    %c0_122 = arith.constant 0 : index
    %176 = vector.load %arg2[%c2_121, %c0_122] : memref<9x512xf32, #tpu.memory_space<vmem>>, vector<1x512xf32>
    %177 = vector.broadcast %176 : vector<1x512xf32> to vector<16x512xf32>
    %178 = arith.mulf %175, %177 : vector<16x512xf32>
    %c32_123 = arith.constant 32 : index
    %c0_124 = arith.constant 0 : index
    %179 = vector.load %arg5[%c32_123, %c0_124] : memref<144x512xf32, #tpu.memory_space<vmem>>, vector<16x512xf32>
    tpu.vector_store %arg5[%c32_123, %c0_124], %178 {strides = array<i32>} : memref<144x512xf32, #tpu.memory_space<vmem>>, vector<16x512xf32>,
    %c1_i32_125 = arith.constant 1 : i32
    %180 = tpu.dynamic_rotate %164 by %c1_i32_125 dim 1 : vector<16x512xf32>, i32 -> vector<16x512xf32>
    %c3_126 = arith.constant 3 : index
    %c0_127 = arith.constant 0 : index
    %181 = vector.load %arg2[%c3_126, %c0_127] : memref<9x512xf32, #tpu.memory_space<vmem>>, vector<1x512xf32>
    %182 = vector.broadcast %181 : vector<1x512xf32> to vector<16x512xf32>
    %183 = arith.mulf %180, %182 : vector<16x512xf32>
    %c48_128 = arith.constant 48 : index
    %c0_129 = arith.constant 0 : index
    %184 = vector.load %arg5[%c48_128, %c0_129] : memref<144x512xf32, #tpu.memory_space<vmem>>, vector<16x512xf32>
    tpu.vector_store %arg5[%c48_128, %c0_129], %183 {strides = array<i32>} : memref<144x512xf32, #tpu.memory_space<vmem>>, vector<16x512xf32>,
    %c64_130 = arith.constant 64 : index
    %c0_131 = arith.constant 0 : index
    %185 = vector.load %arg5[%c64_130, %c0_131] : memref<144x512xf32, #tpu.memory_space<vmem>>, vector<16x512xf32>
    tpu.vector_store %arg5[%c64_130, %c0_131], %164 {strides = array<i32>} : memref<144x512xf32, #tpu.memory_space<vmem>>, vector<16x512xf32>,
    %c511_i32_132 = arith.constant 511 : i32
    %186 = tpu.dynamic_rotate %164 by %c511_i32_132 dim 1 : vector<16x512xf32>, i32 -> vector<16x512xf32>
    %c5_133 = arith.constant 5 : index
    %c0_134 = arith.constant 0 : index
    %187 = vector.load %arg2[%c5_133, %c0_134] : memref<9x512xf32, #tpu.memory_space<vmem>>, vector<1x512xf32>
    %188 = vector.broadcast %187 : vector<1x512xf32> to vector<16x512xf32>
    %189 = arith.mulf %186, %188 : vector<16x512xf32>
    %c80_135 = arith.constant 80 : index
    %c0_136 = arith.constant 0 : index
    %190 = vector.load %arg5[%c80_135, %c0_136] : memref<144x512xf32, #tpu.memory_space<vmem>>, vector<16x512xf32>
    tpu.vector_store %arg5[%c80_135, %c0_136], %189 {strides = array<i32>} : memref<144x512xf32, #tpu.memory_space<vmem>>, vector<16x512xf32>,
    %c497_i32_137 = arith.constant 497 : i32
    %191 = tpu.dynamic_rotate %164 by %c497_i32_137 dim 1 : vector<16x512xf32>, i32 -> vector<16x512xf32>
    %c6_138 = arith.constant 6 : index
    %c0_139 = arith.constant 0 : index
    %192 = vector.load %arg2[%c6_138, %c0_139] : memref<9x512xf32, #tpu.memory_space<vmem>>, vector<1x512xf32>
    %193 = vector.broadcast %192 : vector<1x512xf32> to vector<16x512xf32>
    %194 = arith.mulf %191, %193 : vector<16x512xf32>
    %c96_140 = arith.constant 96 : index
    %c0_141 = arith.constant 0 : index
    %195 = vector.load %arg5[%c96_140, %c0_141] : memref<144x512xf32, #tpu.memory_space<vmem>>, vector<16x512xf32>
    tpu.vector_store %arg5[%c96_140, %c0_141], %194 {strides = array<i32>} : memref<144x512xf32, #tpu.memory_space<vmem>>, vector<16x512xf32>,
    %c496_i32_142 = arith.constant 496 : i32
    %196 = tpu.dynamic_rotate %164 by %c496_i32_142 dim 1 : vector<16x512xf32>, i32 -> vector<16x512xf32>
    %c7_143 = arith.constant 7 : index
    %c0_144 = arith.constant 0 : index
    %197 = vector.load %arg2[%c7_143, %c0_144] : memref<9x512xf32, #tpu.memory_space<vmem>>, vector<1x512xf32>
    %198 = vector.broadcast %197 : vector<1x512xf32> to vector<16x512xf32>
    %199 = arith.mulf %196, %198 : vector<16x512xf32>
    %c112_145 = arith.constant 112 : index
    %c0_146 = arith.constant 0 : index
    %200 = vector.load %arg5[%c112_145, %c0_146] : memref<144x512xf32, #tpu.memory_space<vmem>>, vector<16x512xf32>
    tpu.vector_store %arg5[%c112_145, %c0_146], %199 {strides = array<i32>} : memref<144x512xf32, #tpu.memory_space<vmem>>, vector<16x512xf32>,
    %c495_i32_147 = arith.constant 495 : i32
    %201 = tpu.dynamic_rotate %164 by %c495_i32_147 dim 1 : vector<16x512xf32>, i32 -> vector<16x512xf32>
    %c8_148 = arith.constant 8 : index
    %c0_149 = arith.constant 0 : index
    %202 = vector.load %arg2[%c8_148, %c0_149] : memref<9x512xf32, #tpu.memory_space<vmem>>, vector<1x512xf32>
    %203 = vector.broadcast %202 : vector<1x512xf32> to vector<16x512xf32>
    %204 = arith.mulf %201, %203 : vector<16x512xf32>
    %c128_150 = arith.constant 128 : index
    %c0_151 = arith.constant 0 : index
    %205 = vector.load %arg5[%c128_150, %c0_151] : memref<144x512xf32, #tpu.memory_space<vmem>>, vector<16x512xf32>
    tpu.vector_store %arg5[%c128_150, %c0_151], %204 {strides = array<i32>} : memref<144x512xf32, #tpu.memory_space<vmem>>, vector<16x512xf32>,
    %c0_152 = arith.constant 0 : index
    %c0_153 = arith.constant 0 : index
    %206 = vector.load %arg5[%c0_152, %c0_153] : memref<144x512xf32, #tpu.memory_space<vmem>>, vector<144x512xf32>
    %cst_154 = arith.constant dense<0.000000e+00> : vector<16x512xf32>
    %207 = tpu.matmul %72, %206, %cst_154 {dimension_numbers = #tpu.dot_dimension_numbers<[1], [0], [0], [1], [0, 0, 1, 1], [], []>} : vector<16x144xf32>, vector<144x512xf32>, vector<16x512xf32> -> vector<16x512xf32>
    %208 = vector.broadcast %74 : vector<16x1xf32> to vector<16x512xf32>
    %209 = arith.addf %207, %208 : vector<16x512xf32>
    %210 = arith.addf %62, %209 : vector<16x512xf32>
    %211 = vector.extract_strided_slice %210 {offsets = [0, 0], sizes = [16, 256], strides = [1, 1]} : vector<16x512xf32> to vector<16x256xf32>
    %212 = vector.extract_strided_slice %210 {offsets = [0, 256], sizes = [16, 256], strides = [1, 1]} : vector<16x512xf32> to vector<16x256xf32>
    %213 = tpu.concatenate %211, %212 in 0 : vector<16x256xf32>, vector<16x256xf32> -> vector<32x256xf32>
    %c0_155 = arith.constant 0 : index
    %c112_156 = arith.constant 112 : index
    %c0_157 = arith.constant 0 : index
    %214 = vector.load %arg3[%c0_155, %c112_156, %c0_157] : memref<2x1024x256xf32, #tpu.memory_space<vmem>>, vector<1x1x256xf32>
    %215 = vector.shape_cast %214 : vector<1x1x256xf32> to vector<1x256xf32>
    %c0_158 = arith.constant 0 : index
    %c120 = arith.constant 120 : index
    %c0_159 = arith.constant 0 : index
    %216 = vector.load %arg3[%c0_158, %c120, %c0_159] : memref<2x1024x256xf32, #tpu.memory_space<vmem>>, vector<1x1x256xf32>
    %217 = vector.shape_cast %216 : vector<1x1x256xf32> to vector<1x256xf32>
    %c0_160 = arith.constant 0 : index
    %c128_161 = arith.constant 128 : index
    %c0_162 = arith.constant 0 : index
    %218 = vector.load %arg3[%c0_160, %c128_161, %c0_162] : memref<2x1024x256xf32, #tpu.memory_space<vmem>>, vector<1x256x32xf32>
    %219 = vector.shape_cast %218 : vector<1x256x32xf32> to vector<256x32xf32>
    %c0_163 = arith.constant 0 : index
    %c384 = arith.constant 384 : index
    %c0_164 = arith.constant 0 : index
    %220 = vector.load %arg3[%c0_163, %c384, %c0_164] : memref<2x1024x256xf32, #tpu.memory_space<vmem>>, vector<1x1x32xf32>
    %221 = vector.shape_cast %220 : vector<1x1x32xf32> to vector<1x32xf32>
    %c0_165 = arith.constant 0 : index
    %c392 = arith.constant 392 : index
    %c0_166 = arith.constant 0 : index
    %222 = vector.load %arg3[%c0_165, %c392, %c0_166] : memref<2x1024x256xf32, #tpu.memory_space<vmem>>, vector<1x32x256xf32>
    %223 = vector.shape_cast %222 : vector<1x32x256xf32> to vector<32x256xf32>
    %c0_167 = arith.constant 0 : index
    %c424 = arith.constant 424 : index
    %c0_168 = arith.constant 0 : index
    %224 = vector.load %arg3[%c0_167, %c424, %c0_168] : memref<2x1024x256xf32, #tpu.memory_space<vmem>>, vector<1x1x256xf32>
    %225 = vector.shape_cast %224 : vector<1x1x256xf32> to vector<1x256xf32>
    %cst_169 = arith.constant dense<0.000000e+00> : vector<32xf32>
    %226 = vector.multi_reduction <add>, %213, %cst_169 [1] : vector<32x256xf32> to vector<32xf32>
    %227 = vector.shape_cast %226 : vector<32xf32> to vector<32x1xf32>
    %cst_170 = arith.constant 2.560000e+02 : f32
    %228 = vector.broadcast %cst_170 : f32 to vector<32x1xf32>
    %229 = arith.divf %227, %228 : vector<32x1xf32>
    %230 = vector.broadcast %229 : vector<32x1xf32> to vector<32x256xf32>
    %231 = arith.subf %213, %230 : vector<32x256xf32>
    %232 = arith.mulf %231, %231 : vector<32x256xf32>
    %cst_171 = arith.constant dense<0.000000e+00> : vector<32xf32>
    %233 = vector.multi_reduction <add>, %232, %cst_171 [1] : vector<32x256xf32> to vector<32xf32>
    %234 = vector.shape_cast %233 : vector<32xf32> to vector<32x1xf32>
    %cst_172 = arith.constant 2.560000e+02 : f32
    %235 = vector.broadcast %cst_172 : f32 to vector<32x1xf32>
    %236 = arith.divf %234, %235 : vector<32x1xf32>
    %cst_173 = arith.constant 9.99999974E-6 : f32
    %237 = vector.broadcast %cst_173 : f32 to vector<32x1xf32>
    %238 = arith.addf %236, %237 : vector<32x1xf32>
    %239 = math.rsqrt %238 : vector<32x1xf32>
    %240 = vector.broadcast %239 : vector<32x1xf32> to vector<32x256xf32>
    %241 = arith.mulf %231, %240 : vector<32x256xf32>
    %242 = vector.broadcast %215 : vector<1x256xf32> to vector<32x256xf32>
    %243 = arith.mulf %241, %242 : vector<32x256xf32>
    %244 = vector.broadcast %217 : vector<1x256xf32> to vector<32x256xf32>
    %245 = arith.addf %243, %244 : vector<32x256xf32>
    %cst_174 = arith.constant dense<0.000000e+00> : vector<32x32xf32>
    %246 = tpu.matmul %245, %219, %cst_174 {dimension_numbers = #tpu.dot_dimension_numbers<[1], [0], [0], [1], [0, 0, 1, 1], [], []>} : vector<32x256xf32>, vector<256x32xf32>, vector<32x32xf32> -> vector<32x32xf32>
    %247 = vector.broadcast %221 : vector<1x32xf32> to vector<32x32xf32>
    %248 = arith.addf %246, %247 : vector<32x32xf32>
    %cst_175 = arith.constant 0.000000e+00 : f32
    %249 = vector.broadcast %cst_175 : f32 to vector<32x32xf32>
    %250 = arith.maximumf %248, %249 : vector<32x32xf32>
    %cst_176 = arith.constant dense<0.000000e+00> : vector<32x256xf32>
    %251 = tpu.matmul %250, %223, %cst_176 {dimension_numbers = #tpu.dot_dimension_numbers<[1], [0], [0], [1], [0, 0, 1, 1], [], []>} : vector<32x32xf32>, vector<32x256xf32>, vector<32x256xf32> -> vector<32x256xf32>
    %252 = arith.addf %213, %251 : vector<32x256xf32>
    %253 = vector.broadcast %225 : vector<1x256xf32> to vector<32x256xf32>
    %254 = arith.addf %252, %253 : vector<32x256xf32>
    %c0_177 = arith.constant 0 : index
    %c432 = arith.constant 432 : index
    %c0_178 = arith.constant 0 : index
    %255 = vector.load %arg3[%c0_177, %c432, %c0_178] : memref<2x1024x256xf32, #tpu.memory_space<vmem>>, vector<1x1x256xf32>
    %256 = vector.shape_cast %255 : vector<1x1x256xf32> to vector<1x256xf32>
    %c0_179 = arith.constant 0 : index
    %c440 = arith.constant 440 : index
    %c0_180 = arith.constant 0 : index
    %257 = vector.load %arg3[%c0_179, %c440, %c0_180] : memref<2x1024x256xf32, #tpu.memory_space<vmem>>, vector<1x1x256xf32>
    %258 = vector.shape_cast %257 : vector<1x1x256xf32> to vector<1x256xf32>
    %c0_181 = arith.constant 0 : index
    %c448 = arith.constant 448 : index
    %c0_182 = arith.constant 0 : index
    %259 = vector.load %arg3[%c0_181, %c448, %c0_182] : memref<2x1024x256xf32, #tpu.memory_space<vmem>>, vector<1x256x32xf32>
    %260 = vector.shape_cast %259 : vector<1x256x32xf32> to vector<256x32xf32>
    %c0_183 = arith.constant 0 : index
    %c704 = arith.constant 704 : index
    %c0_184 = arith.constant 0 : index
    %261 = vector.load %arg3[%c0_183, %c704, %c0_184] : memref<2x1024x256xf32, #tpu.memory_space<vmem>>, vector<1x1x32xf32>
    %262 = vector.shape_cast %261 : vector<1x1x32xf32> to vector<1x32xf32>
    %c0_185 = arith.constant 0 : index
    %c712 = arith.constant 712 : index
    %c0_186 = arith.constant 0 : index
    %263 = vector.load %arg3[%c0_185, %c712, %c0_186] : memref<2x1024x256xf32, #tpu.memory_space<vmem>>, vector<1x32x256xf32>
    %264 = vector.shape_cast %263 : vector<1x32x256xf32> to vector<32x256xf32>
    %c0_187 = arith.constant 0 : index
    %c744 = arith.constant 744 : index
    %c0_188 = arith.constant 0 : index
    %265 = vector.load %arg3[%c0_187, %c744, %c0_188] : memref<2x1024x256xf32, #tpu.memory_space<vmem>>, vector<1x1x256xf32>
    %266 = vector.shape_cast %265 : vector<1x1x256xf32> to vector<1x256xf32>
    %cst_189 = arith.constant dense<0.000000e+00> : vector<32xf32>
    %267 = vector.multi_reduction <add>, %254, %cst_189 [1] : vector<32x256xf32> to vector<32xf32>
    %268 = vector.shape_cast %267 : vector<32xf32> to vector<32x1xf32>
    %cst_190 = arith.constant 2.560000e+02 : f32
    %269 = vector.broadcast %cst_190 : f32 to vector<32x1xf32>
    %270 = arith.divf %268, %269 : vector<32x1xf32>
    %271 = vector.broadcast %270 : vector<32x1xf32> to vector<32x256xf32>
    %272 = arith.subf %254, %271 : vector<32x256xf32>
    %273 = arith.mulf %272, %272 : vector<32x256xf32>
    %cst_191 = arith.constant dense<0.000000e+00> : vector<32xf32>
    %274 = vector.multi_reduction <add>, %273, %cst_191 [1] : vector<32x256xf32> to vector<32xf32>
    %275 = vector.shape_cast %274 : vector<32xf32> to vector<32x1xf32>
    %cst_192 = arith.constant 2.560000e+02 : f32
    %276 = vector.broadcast %cst_192 : f32 to vector<32x1xf32>
    %277 = arith.divf %275, %276 : vector<32x1xf32>
    %cst_193 = arith.constant 9.99999974E-6 : f32
    %278 = vector.broadcast %cst_193 : f32 to vector<32x1xf32>
    %279 = arith.addf %277, %278 : vector<32x1xf32>
    %280 = math.rsqrt %279 : vector<32x1xf32>
    %281 = vector.broadcast %280 : vector<32x1xf32> to vector<32x256xf32>
    %282 = arith.mulf %272, %281 : vector<32x256xf32>
    %283 = vector.broadcast %256 : vector<1x256xf32> to vector<32x256xf32>
    %284 = arith.mulf %282, %283 : vector<32x256xf32>
    %285 = vector.broadcast %258 : vector<1x256xf32> to vector<32x256xf32>
    %286 = arith.addf %284, %285 : vector<32x256xf32>
    %cst_194 = arith.constant dense<0.000000e+00> : vector<32x32xf32>
    %287 = tpu.matmul %286, %260, %cst_194 {dimension_numbers = #tpu.dot_dimension_numbers<[1], [0], [0], [1], [0, 0, 1, 1], [], []>} : vector<32x256xf32>, vector<256x32xf32>, vector<32x32xf32> -> vector<32x32xf32>
    %288 = vector.broadcast %262 : vector<1x32xf32> to vector<32x32xf32>
    %289 = arith.addf %287, %288 : vector<32x32xf32>
    %cst_195 = arith.constant 0.000000e+00 : f32
    %290 = vector.broadcast %cst_195 : f32 to vector<32x32xf32>
    %291 = arith.maximumf %289, %290 : vector<32x32xf32>
    %cst_196 = arith.constant dense<0.000000e+00> : vector<32x256xf32>
    %292 = tpu.matmul %291, %264, %cst_196 {dimension_numbers = #tpu.dot_dimension_numbers<[1], [0], [0], [1], [0, 0, 1, 1], [], []>} : vector<32x32xf32>, vector<32x256xf32>, vector<32x256xf32> -> vector<32x256xf32>
    %293 = arith.addf %254, %292 : vector<32x256xf32>
    %294 = vector.broadcast %266 : vector<1x256xf32> to vector<32x256xf32>
    %295 = arith.addf %293, %294 : vector<32x256xf32>
    %cst_197 = arith.constant dense<0xFF800000> : vector<32xf32>
    %296 = vector.multi_reduction <maximumf>, %295, %cst_197 [1] : vector<32x256xf32> to vector<32xf32>
    %297 = vector.shape_cast %296 : vector<32xf32> to vector<32x1xf32>
    %298 = vector.extract_strided_slice %297 {offsets = [0, 0], sizes = [16, 1], strides = [1, 1]} : vector<32x1xf32> to vector<16x1xf32>
    %299 = vector.extract_strided_slice %297 {offsets = [16, 0], sizes = [16, 1], strides = [1, 1]} : vector<32x1xf32> to vector<16x1xf32>
    %300 = tpu.concatenate %298, %299 in 1 : vector<16x1xf32>, vector<16x1xf32> -> vector<16x2xf32>
    %c0_198 = arith.constant 0 : index
    %c752 = arith.constant 752 : index
    %c0_199 = arith.constant 0 : index
    %301 = vector.load %arg3[%c0_198, %c752, %c0_199] : memref<2x1024x256xf32, #tpu.memory_space<vmem>>, vector<1x16x1xf32>
    %302 = vector.shape_cast %301 : vector<1x16x1xf32> to vector<16x1xf32>
    %c0_200 = arith.constant 0 : index
    %c768 = arith.constant 768 : index
    %c0_201 = arith.constant 0 : index
    %303 = vector.load %arg3[%c0_200, %c768, %c0_201] : memref<2x1024x256xf32, #tpu.memory_space<vmem>>, vector<1x16x1xf32>
    %304 = vector.shape_cast %303 : vector<1x16x1xf32> to vector<16x1xf32>
    %c0_202 = arith.constant 0 : index
    %c784 = arith.constant 784 : index
    %c0_203 = arith.constant 0 : index
    %305 = vector.load %arg3[%c0_202, %c784, %c0_203] : memref<2x1024x256xf32, #tpu.memory_space<vmem>>, vector<1x32x16xf32>
    %306 = vector.shape_cast %305 : vector<1x32x16xf32> to vector<32x16xf32>
    %c0_204 = arith.constant 0 : index
    %c816 = arith.constant 816 : index
    %c0_205 = arith.constant 0 : index
    %307 = vector.load %arg3[%c0_204, %c816, %c0_205] : memref<2x1024x256xf32, #tpu.memory_space<vmem>>, vector<1x32x1xf32>
    %308 = vector.shape_cast %307 : vector<1x32x1xf32> to vector<32x1xf32>
    %c0_206 = arith.constant 0 : index
    %c848 = arith.constant 848 : index
    %c0_207 = arith.constant 0 : index
    %309 = vector.load %arg3[%c0_206, %c848, %c0_207] : memref<2x1024x256xf32, #tpu.memory_space<vmem>>, vector<1x16x32xf32>
    %310 = vector.shape_cast %309 : vector<1x16x32xf32> to vector<16x32xf32>
    %c0_208 = arith.constant 0 : index
    %c864 = arith.constant 864 : index
    %c0_209 = arith.constant 0 : index
    %311 = vector.load %arg3[%c0_208, %c864, %c0_209] : memref<2x1024x256xf32, #tpu.memory_space<vmem>>, vector<1x16x1xf32>
    %312 = vector.shape_cast %311 : vector<1x16x1xf32> to vector<16x1xf32>
    %cst_210 = arith.constant dense<0.000000e+00> : vector<2xf32>
    %313 = vector.multi_reduction <add>, %300, %cst_210 [0] : vector<16x2xf32> to vector<2xf32>
    %314 = vector.shape_cast %313 : vector<2xf32> to vector<1x2xf32>
    %cst_211 = arith.constant 1.600000e+01 : f32
    %315 = vector.broadcast %cst_211 : f32 to vector<1x2xf32>
    %316 = arith.divf %314, %315 : vector<1x2xf32>
    %317 = vector.broadcast %316 : vector<1x2xf32> to vector<16x2xf32>
    %318 = arith.subf %300, %317 : vector<16x2xf32>
    %319 = arith.mulf %318, %318 : vector<16x2xf32>
    %cst_212 = arith.constant dense<0.000000e+00> : vector<2xf32>
    %320 = vector.multi_reduction <add>, %319, %cst_212 [0] : vector<16x2xf32> to vector<2xf32>
    %321 = vector.shape_cast %320 : vector<2xf32> to vector<1x2xf32>
    %cst_213 = arith.constant 1.600000e+01 : f32
    %322 = vector.broadcast %cst_213 : f32 to vector<1x2xf32>
    %323 = arith.divf %321, %322 : vector<1x2xf32>
    %cst_214 = arith.constant 9.99999974E-6 : f32
    %324 = vector.broadcast %cst_214 : f32 to vector<1x2xf32>
    %325 = arith.addf %323, %324 : vector<1x2xf32>
    %326 = math.rsqrt %325 : vector<1x2xf32>
    %327 = vector.broadcast %326 : vector<1x2xf32> to vector<16x2xf32>
    %328 = arith.mulf %318, %327 : vector<16x2xf32>
    %329 = vector.broadcast %302 : vector<16x1xf32> to vector<16x2xf32>
    %330 = arith.mulf %328, %329 : vector<16x2xf32>
    %331 = vector.broadcast %304 : vector<16x1xf32> to vector<16x2xf32>
    %332 = arith.addf %330, %331 : vector<16x2xf32>
    %cst_215 = arith.constant dense<0.000000e+00> : vector<32x2xf32>
    %333 = tpu.matmul %306, %332, %cst_215 {dimension_numbers = #tpu.dot_dimension_numbers<[1], [0], [0], [1], [0, 0, 1, 1], [], []>} : vector<32x16xf32>, vector<16x2xf32>, vector<32x2xf32> -> vector<32x2xf32>
    %334 = vector.broadcast %308 : vector<32x1xf32> to vector<32x2xf32>
    %335 = arith.addf %333, %334 : vector<32x2xf32>
    %cst_216 = arith.constant 0.000000e+00 : f32
    %336 = vector.broadcast %cst_216 : f32 to vector<32x2xf32>
    %337 = arith.maximumf %335, %336 : vector<32x2xf32>
    %cst_217 = arith.constant dense<0.000000e+00> : vector<16x2xf32>
    %338 = tpu.matmul %310, %337, %cst_217 {dimension_numbers = #tpu.dot_dimension_numbers<[1], [0], [0], [1], [0, 0, 1, 1], [], []>} : vector<16x32xf32>, vector<32x2xf32>, vector<16x2xf32> -> vector<16x2xf32>
    %339 = arith.addf %300, %338 : vector<16x2xf32>
    %340 = vector.broadcast %312 : vector<16x1xf32> to vector<16x2xf32>
    %341 = arith.addf %339, %340 : vector<16x2xf32>
    %c0_218 = arith.constant 0 : index
    %c880 = arith.constant 880 : index
    %c0_219 = arith.constant 0 : index
    %342 = vector.load %arg3[%c0_218, %c880, %c0_219] : memref<2x1024x256xf32, #tpu.memory_space<vmem>>, vector<1x16x1xf32>
    %343 = vector.shape_cast %342 : vector<1x16x1xf32> to vector<16x1xf32>
    %c0_220 = arith.constant 0 : index
    %c896 = arith.constant 896 : index
    %c0_221 = arith.constant 0 : index
    %344 = vector.load %arg3[%c0_220, %c896, %c0_221] : memref<2x1024x256xf32, #tpu.memory_space<vmem>>, vector<1x16x1xf32>
    %345 = vector.shape_cast %344 : vector<1x16x1xf32> to vector<16x1xf32>
    %c0_222 = arith.constant 0 : index
    %c912 = arith.constant 912 : index
    %c0_223 = arith.constant 0 : index
    %346 = vector.load %arg3[%c0_222, %c912, %c0_223] : memref<2x1024x256xf32, #tpu.memory_space<vmem>>, vector<1x32x16xf32>
    %347 = vector.shape_cast %346 : vector<1x32x16xf32> to vector<32x16xf32>
    %c0_224 = arith.constant 0 : index
    %c944 = arith.constant 944 : index
    %c0_225 = arith.constant 0 : index
    %348 = vector.load %arg3[%c0_224, %c944, %c0_225] : memref<2x1024x256xf32, #tpu.memory_space<vmem>>, vector<1x32x1xf32>
    %349 = vector.shape_cast %348 : vector<1x32x1xf32> to vector<32x1xf32>
    %c0_226 = arith.constant 0 : index
    %c976 = arith.constant 976 : index
    %c0_227 = arith.constant 0 : index
    %350 = vector.load %arg3[%c0_226, %c976, %c0_227] : memref<2x1024x256xf32, #tpu.memory_space<vmem>>, vector<1x16x32xf32>
    %351 = vector.shape_cast %350 : vector<1x16x32xf32> to vector<16x32xf32>
    %c0_228 = arith.constant 0 : index
    %c992 = arith.constant 992 : index
    %c0_229 = arith.constant 0 : index
    %352 = vector.load %arg3[%c0_228, %c992, %c0_229] : memref<2x1024x256xf32, #tpu.memory_space<vmem>>, vector<1x16x1xf32>
    %353 = vector.shape_cast %352 : vector<1x16x1xf32> to vector<16x1xf32>
    %cst_230 = arith.constant dense<0.000000e+00> : vector<2xf32>
    %354 = vector.multi_reduction <add>, %341, %cst_230 [0] : vector<16x2xf32> to vector<2xf32>
    %355 = vector.shape_cast %354 : vector<2xf32> to vector<1x2xf32>
    %cst_231 = arith.constant 1.600000e+01 : f32
    %356 = vector.broadcast %cst_231 : f32 to vector<1x2xf32>
    %357 = arith.divf %355, %356 : vector<1x2xf32>
    %358 = vector.broadcast %357 : vector<1x2xf32> to vector<16x2xf32>
    %359 = arith.subf %341, %358 : vector<16x2xf32>
    %360 = arith.mulf %359, %359 : vector<16x2xf32>
    %cst_232 = arith.constant dense<0.000000e+00> : vector<2xf32>
    %361 = vector.multi_reduction <add>, %360, %cst_232 [0] : vector<16x2xf32> to vector<2xf32>
    %362 = vector.shape_cast %361 : vector<2xf32> to vector<1x2xf32>
    %cst_233 = arith.constant 1.600000e+01 : f32
    %363 = vector.broadcast %cst_233 : f32 to vector<1x2xf32>
    %364 = arith.divf %362, %363 : vector<1x2xf32>
    %cst_234 = arith.constant 9.99999974E-6 : f32
    %365 = vector.broadcast %cst_234 : f32 to vector<1x2xf32>
    %366 = arith.addf %364, %365 : vector<1x2xf32>
    %367 = math.rsqrt %366 : vector<1x2xf32>
    %368 = vector.broadcast %367 : vector<1x2xf32> to vector<16x2xf32>
    %369 = arith.mulf %359, %368 : vector<16x2xf32>
    %370 = vector.broadcast %343 : vector<16x1xf32> to vector<16x2xf32>
    %371 = arith.mulf %369, %370 : vector<16x2xf32>
    %372 = vector.broadcast %345 : vector<16x1xf32> to vector<16x2xf32>
    %373 = arith.addf %371, %372 : vector<16x2xf32>
    %cst_235 = arith.constant dense<0.000000e+00> : vector<32x2xf32>
    %374 = tpu.matmul %347, %373, %cst_235 {dimension_numbers = #tpu.dot_dimension_numbers<[1], [0], [0], [1], [0, 0, 1, 1], [], []>} : vector<32x16xf32>, vector<16x2xf32>, vector<32x2xf32> -> vector<32x2xf32>
    %375 = vector.broadcast %349 : vector<32x1xf32> to vector<32x2xf32>
    %376 = arith.addf %374, %375 : vector<32x2xf32>
    %cst_236 = arith.constant 0.000000e+00 : f32
    %377 = vector.broadcast %cst_236 : f32 to vector<32x2xf32>
    %378 = arith.maximumf %376, %377 : vector<32x2xf32>
    %cst_237 = arith.constant dense<0.000000e+00> : vector<16x2xf32>
    %379 = tpu.matmul %351, %378, %cst_237 {dimension_numbers = #tpu.dot_dimension_numbers<[1], [0], [0], [1], [0, 0, 1, 1], [], []>} : vector<16x32xf32>, vector<32x2xf32>, vector<16x2xf32> -> vector<16x2xf32>
    %380 = arith.addf %341, %379 : vector<16x2xf32>
    %381 = vector.broadcast %353 : vector<16x1xf32> to vector<16x2xf32>
    %382 = arith.addf %380, %381 : vector<16x2xf32>
    %c0_238 = arith.constant 0 : index
    %c1008 = arith.constant 1008 : index
    %c0_239 = arith.constant 0 : index
    %383 = vector.load %arg3[%c0_238, %c1008, %c0_239] : memref<2x1024x256xf32, #tpu.memory_space<vmem>>, vector<1x1x16xf32>
    %384 = vector.shape_cast %383 : vector<1x1x16xf32> to vector<1x16xf32>
    %c0_240 = arith.constant 0 : index
    %c1016 = arith.constant 1016 : index
    %c0_241 = arith.constant 0 : index
    %385 = vector.load %arg3[%c0_240, %c1016, %c0_241] : memref<2x1024x256xf32, #tpu.memory_space<vmem>>, vector<1x1x1xf32>
    %386 = vector.shape_cast %385 : vector<1x1x1xf32> to vector<1x1xf32>
    %cst_242 = arith.constant dense<0.000000e+00> : vector<1x2xf32>
    %387 = tpu.matmul %384, %382, %cst_242 {dimension_numbers = #tpu.dot_dimension_numbers<[1], [0], [0], [1], [0, 0, 1, 1], [], []>} : vector<1x16xf32>, vector<16x2xf32>, vector<1x2xf32> -> vector<1x2xf32>
    %388 = vector.broadcast %386 : vector<1x1xf32> to vector<1x2xf32>
    %389 = arith.addf %387, %388 : vector<1x2xf32>
    %c0_243 = arith.constant 0 : index
    %c0_244 = arith.constant 0 : index
    %c0_245 = arith.constant 0 : index
    %390 = vector.load %arg4[%c0_243, %c0_244, %c0_245] : memref<2x1x2xf32, #tpu.memory_space<vmem>>, vector<1x1x2xf32>
    %391 = vector.shape_cast %390 : vector<1x1x2xf32> to vector<1x2xf32>
    %392 = vector.shape_cast %389 : vector<1x2xf32> to vector<1x1x2xf32>
    tpu.vector_store %arg4[%c0_243, %c0_244, %c0_245], %392 {strides = array<i32>} : memref<2x1x2xf32, #tpu.memory_space<vmem>>, vector<1x1x2xf32>,
    %393 = vector.extract_strided_slice %61 {offsets = [16, 0], sizes = [16, 512], strides = [1, 1]} : vector<32x512xf32> to vector<16x512xf32>
    %c1_246 = arith.constant 1 : index
    %c32_247 = arith.constant 32 : index
    %c0_248 = arith.constant 0 : index
    %394 = vector.load %arg3[%c1_246, %c32_247, %c0_248] : memref<2x1024x256xf32, #tpu.memory_space<vmem>>, vector<1x1x256xf32>
    %395 = vector.shape_cast %394 : vector<1x1x256xf32> to vector<1x256xf32>
    %c1_249 = arith.constant 1 : index
    %c40_250 = arith.constant 40 : index
    %c0_251 = arith.constant 0 : index
    %396 = vector.load %arg3[%c1_249, %c40_250, %c0_251] : memref<2x1024x256xf32, #tpu.memory_space<vmem>>, vector<1x1x256xf32>
    %397 = vector.shape_cast %396 : vector<1x1x256xf32> to vector<1x256xf32>
    %c1_252 = arith.constant 1 : index
    %c48_253 = arith.constant 48 : index
    %c0_254 = arith.constant 0 : index
    %398 = vector.load %arg3[%c1_252, %c48_253, %c0_254] : memref<2x1024x256xf32, #tpu.memory_space<vmem>>, vector<1x16x144xf32>
    %399 = vector.shape_cast %398 : vector<1x16x144xf32> to vector<16x144xf32>
    %c1_255 = arith.constant 1 : index
    %c64_256 = arith.constant 64 : index
    %c0_257 = arith.constant 0 : index
    %400 = vector.load %arg3[%c1_255, %c64_256, %c0_257] : memref<2x1024x256xf32, #tpu.memory_space<vmem>>, vector<1x16x1xf32>
    %401 = vector.shape_cast %400 : vector<1x16x1xf32> to vector<16x1xf32>
    %c1_258 = arith.constant 1 : index
    %c80_259 = arith.constant 80 : index
    %c0_260 = arith.constant 0 : index
    %402 = vector.load %arg3[%c1_258, %c80_259, %c0_260] : memref<2x1024x256xf32, #tpu.memory_space<vmem>>, vector<1x16x144xf32>
    %403 = vector.shape_cast %402 : vector<1x16x144xf32> to vector<16x144xf32>
    %c1_261 = arith.constant 1 : index
    %c96_262 = arith.constant 96 : index
    %c0_263 = arith.constant 0 : index
    %404 = vector.load %arg3[%c1_261, %c96_262, %c0_263] : memref<2x1024x256xf32, #tpu.memory_space<vmem>>, vector<1x16x1xf32>
    %405 = vector.shape_cast %404 : vector<1x16x1xf32> to vector<16x1xf32>
    %406 = vector.extract_strided_slice %393 {offsets = [0, 0], sizes = [16, 256], strides = [1, 1]} : vector<16x512xf32> to vector<16x256xf32>
    %cst_264 = arith.constant dense<0.000000e+00> : vector<16xf32>
    %407 = vector.multi_reduction <add>, %406, %cst_264 [1] : vector<16x256xf32> to vector<16xf32>
    %408 = vector.shape_cast %407 : vector<16xf32> to vector<16x1xf32>
    %cst_265 = arith.constant 2.560000e+02 : f32
    %409 = vector.broadcast %cst_265 : f32 to vector<16x1xf32>
    %410 = arith.divf %408, %409 : vector<16x1xf32>
    %411 = vector.broadcast %410 : vector<16x1xf32> to vector<16x256xf32>
    %412 = arith.subf %406, %411 : vector<16x256xf32>
    %413 = arith.mulf %412, %412 : vector<16x256xf32>
    %cst_266 = arith.constant dense<0.000000e+00> : vector<16xf32>
    %414 = vector.multi_reduction <add>, %413, %cst_266 [1] : vector<16x256xf32> to vector<16xf32>
    %415 = vector.shape_cast %414 : vector<16xf32> to vector<16x1xf32>
    %cst_267 = arith.constant 2.560000e+02 : f32
    %416 = vector.broadcast %cst_267 : f32 to vector<16x1xf32>
    %417 = arith.divf %415, %416 : vector<16x1xf32>
    %cst_268 = arith.constant 9.99999974E-6 : f32
    %418 = vector.broadcast %cst_268 : f32 to vector<16x1xf32>
    %419 = arith.addf %417, %418 : vector<16x1xf32>
    %420 = math.rsqrt %419 : vector<16x1xf32>
    %421 = vector.broadcast %420 : vector<16x1xf32> to vector<16x256xf32>
    %422 = arith.mulf %412, %421 : vector<16x256xf32>
    %423 = vector.broadcast %395 : vector<1x256xf32> to vector<16x256xf32>
    %424 = arith.mulf %422, %423 : vector<16x256xf32>
    %425 = vector.broadcast %397 : vector<1x256xf32> to vector<16x256xf32>
    %426 = arith.addf %424, %425 : vector<16x256xf32>
    %427 = vector.extract_strided_slice %393 {offsets = [0, 256], sizes = [16, 256], strides = [1, 1]} : vector<16x512xf32> to vector<16x256xf32>
    %cst_269 = arith.constant dense<0.000000e+00> : vector<16xf32>
    %428 = vector.multi_reduction <add>, %427, %cst_269 [1] : vector<16x256xf32> to vector<16xf32>
    %429 = vector.shape_cast %428 : vector<16xf32> to vector<16x1xf32>
    %cst_270 = arith.constant 2.560000e+02 : f32
    %430 = vector.broadcast %cst_270 : f32 to vector<16x1xf32>
    %431 = arith.divf %429, %430 : vector<16x1xf32>
    %432 = vector.broadcast %431 : vector<16x1xf32> to vector<16x256xf32>
    %433 = arith.subf %427, %432 : vector<16x256xf32>
    %434 = arith.mulf %433, %433 : vector<16x256xf32>
    %cst_271 = arith.constant dense<0.000000e+00> : vector<16xf32>
    %435 = vector.multi_reduction <add>, %434, %cst_271 [1] : vector<16x256xf32> to vector<16xf32>
    %436 = vector.shape_cast %435 : vector<16xf32> to vector<16x1xf32>
    %cst_272 = arith.constant 2.560000e+02 : f32
    %437 = vector.broadcast %cst_272 : f32 to vector<16x1xf32>
    %438 = arith.divf %436, %437 : vector<16x1xf32>
    %cst_273 = arith.constant 9.99999974E-6 : f32
    %439 = vector.broadcast %cst_273 : f32 to vector<16x1xf32>
    %440 = arith.addf %438, %439 : vector<16x1xf32>
    %441 = math.rsqrt %440 : vector<16x1xf32>
    %442 = vector.broadcast %441 : vector<16x1xf32> to vector<16x256xf32>
    %443 = arith.mulf %433, %442 : vector<16x256xf32>
    %444 = vector.broadcast %395 : vector<1x256xf32> to vector<16x256xf32>
    %445 = arith.mulf %443, %444 : vector<16x256xf32>
    %446 = vector.broadcast %397 : vector<1x256xf32> to vector<16x256xf32>
    %447 = arith.addf %445, %446 : vector<16x256xf32>
    %448 = tpu.concatenate %426, %447 in 1 : vector<16x256xf32>, vector<16x256xf32> -> vector<16x512xf32>
    %c17_i32_274 = arith.constant 17 : i32
    %449 = tpu.dynamic_rotate %448 by %c17_i32_274 dim 1 : vector<16x512xf32>, i32 -> vector<16x512xf32>
    %c0_275 = arith.constant 0 : index
    %c0_276 = arith.constant 0 : index
    %450 = vector.load %arg2[%c0_275, %c0_276] : memref<9x512xf32, #tpu.memory_space<vmem>>, vector<1x512xf32>
    %451 = vector.broadcast %450 : vector<1x512xf32> to vector<16x512xf32>
    %452 = arith.mulf %449, %451 : vector<16x512xf32>
    %c0_277 = arith.constant 0 : index
    %c0_278 = arith.constant 0 : index
    %453 = vector.load %arg5[%c0_277, %c0_278] : memref<144x512xf32, #tpu.memory_space<vmem>>, vector<16x512xf32>
    tpu.vector_store %arg5[%c0_277, %c0_278], %452 {strides = array<i32>} : memref<144x512xf32, #tpu.memory_space<vmem>>, vector<16x512xf32>,
    %c16_i32_279 = arith.constant 16 : i32
    %454 = tpu.dynamic_rotate %448 by %c16_i32_279 dim 1 : vector<16x512xf32>, i32 -> vector<16x512xf32>
    %c1_280 = arith.constant 1 : index
    %c0_281 = arith.constant 0 : index
    %455 = vector.load %arg2[%c1_280, %c0_281] : memref<9x512xf32, #tpu.memory_space<vmem>>, vector<1x512xf32>
    %456 = vector.broadcast %455 : vector<1x512xf32> to vector<16x512xf32>
    %457 = arith.mulf %454, %456 : vector<16x512xf32>
    %c16_282 = arith.constant 16 : index
    %c0_283 = arith.constant 0 : index
    %458 = vector.load %arg5[%c16_282, %c0_283] : memref<144x512xf32, #tpu.memory_space<vmem>>, vector<16x512xf32>
    tpu.vector_store %arg5[%c16_282, %c0_283], %457 {strides = array<i32>} : memref<144x512xf32, #tpu.memory_space<vmem>>, vector<16x512xf32>,
    %c15_i32_284 = arith.constant 15 : i32
    %459 = tpu.dynamic_rotate %448 by %c15_i32_284 dim 1 : vector<16x512xf32>, i32 -> vector<16x512xf32>
    %c2_285 = arith.constant 2 : index
    %c0_286 = arith.constant 0 : index
    %460 = vector.load %arg2[%c2_285, %c0_286] : memref<9x512xf32, #tpu.memory_space<vmem>>, vector<1x512xf32>
    %461 = vector.broadcast %460 : vector<1x512xf32> to vector<16x512xf32>
    %462 = arith.mulf %459, %461 : vector<16x512xf32>
    %c32_287 = arith.constant 32 : index
    %c0_288 = arith.constant 0 : index
    %463 = vector.load %arg5[%c32_287, %c0_288] : memref<144x512xf32, #tpu.memory_space<vmem>>, vector<16x512xf32>
    tpu.vector_store %arg5[%c32_287, %c0_288], %462 {strides = array<i32>} : memref<144x512xf32, #tpu.memory_space<vmem>>, vector<16x512xf32>,
    %c1_i32_289 = arith.constant 1 : i32
    %464 = tpu.dynamic_rotate %448 by %c1_i32_289 dim 1 : vector<16x512xf32>, i32 -> vector<16x512xf32>
    %c3_290 = arith.constant 3 : index
    %c0_291 = arith.constant 0 : index
    %465 = vector.load %arg2[%c3_290, %c0_291] : memref<9x512xf32, #tpu.memory_space<vmem>>, vector<1x512xf32>
    %466 = vector.broadcast %465 : vector<1x512xf32> to vector<16x512xf32>
    %467 = arith.mulf %464, %466 : vector<16x512xf32>
    %c48_292 = arith.constant 48 : index
    %c0_293 = arith.constant 0 : index
    %468 = vector.load %arg5[%c48_292, %c0_293] : memref<144x512xf32, #tpu.memory_space<vmem>>, vector<16x512xf32>
    tpu.vector_store %arg5[%c48_292, %c0_293], %467 {strides = array<i32>} : memref<144x512xf32, #tpu.memory_space<vmem>>, vector<16x512xf32>,
    %c64_294 = arith.constant 64 : index
    %c0_295 = arith.constant 0 : index
    %469 = vector.load %arg5[%c64_294, %c0_295] : memref<144x512xf32, #tpu.memory_space<vmem>>, vector<16x512xf32>
    tpu.vector_store %arg5[%c64_294, %c0_295], %448 {strides = array<i32>} : memref<144x512xf32, #tpu.memory_space<vmem>>, vector<16x512xf32>,
    %c511_i32_296 = arith.constant 511 : i32
    %470 = tpu.dynamic_rotate %448 by %c511_i32_296 dim 1 : vector<16x512xf32>, i32 -> vector<16x512xf32>
    %c5_297 = arith.constant 5 : index
    %c0_298 = arith.constant 0 : index
    %471 = vector.load %arg2[%c5_297, %c0_298] : memref<9x512xf32, #tpu.memory_space<vmem>>, vector<1x512xf32>
    %472 = vector.broadcast %471 : vector<1x512xf32> to vector<16x512xf32>
    %473 = arith.mulf %470, %472 : vector<16x512xf32>
    %c80_299 = arith.constant 80 : index
    %c0_300 = arith.constant 0 : index
    %474 = vector.load %arg5[%c80_299, %c0_300] : memref<144x512xf32, #tpu.memory_space<vmem>>, vector<16x512xf32>
    tpu.vector_store %arg5[%c80_299, %c0_300], %473 {strides = array<i32>} : memref<144x512xf32, #tpu.memory_space<vmem>>, vector<16x512xf32>,
    %c497_i32_301 = arith.constant 497 : i32
    %475 = tpu.dynamic_rotate %448 by %c497_i32_301 dim 1 : vector<16x512xf32>, i32 -> vector<16x512xf32>
    %c6_302 = arith.constant 6 : index
    %c0_303 = arith.constant 0 : index
    %476 = vector.load %arg2[%c6_302, %c0_303] : memref<9x512xf32, #tpu.memory_space<vmem>>, vector<1x512xf32>
    %477 = vector.broadcast %476 : vector<1x512xf32> to vector<16x512xf32>
    %478 = arith.mulf %475, %477 : vector<16x512xf32>
    %c96_304 = arith.constant 96 : index
    %c0_305 = arith.constant 0 : index
    %479 = vector.load %arg5[%c96_304, %c0_305] : memref<144x512xf32, #tpu.memory_space<vmem>>, vector<16x512xf32>
    tpu.vector_store %arg5[%c96_304, %c0_305], %478 {strides = array<i32>} : memref<144x512xf32, #tpu.memory_space<vmem>>, vector<16x512xf32>,
    %c496_i32_306 = arith.constant 496 : i32
    %480 = tpu.dynamic_rotate %448 by %c496_i32_306 dim 1 : vector<16x512xf32>, i32 -> vector<16x512xf32>
    %c7_307 = arith.constant 7 : index
    %c0_308 = arith.constant 0 : index
    %481 = vector.load %arg2[%c7_307, %c0_308] : memref<9x512xf32, #tpu.memory_space<vmem>>, vector<1x512xf32>
    %482 = vector.broadcast %481 : vector<1x512xf32> to vector<16x512xf32>
    %483 = arith.mulf %480, %482 : vector<16x512xf32>
    %c112_309 = arith.constant 112 : index
    %c0_310 = arith.constant 0 : index
    %484 = vector.load %arg5[%c112_309, %c0_310] : memref<144x512xf32, #tpu.memory_space<vmem>>, vector<16x512xf32>
    tpu.vector_store %arg5[%c112_309, %c0_310], %483 {strides = array<i32>} : memref<144x512xf32, #tpu.memory_space<vmem>>, vector<16x512xf32>,
    %c495_i32_311 = arith.constant 495 : i32
    %485 = tpu.dynamic_rotate %448 by %c495_i32_311 dim 1 : vector<16x512xf32>, i32 -> vector<16x512xf32>
    %c8_312 = arith.constant 8 : index
    %c0_313 = arith.constant 0 : index
    %486 = vector.load %arg2[%c8_312, %c0_313] : memref<9x512xf32, #tpu.memory_space<vmem>>, vector<1x512xf32>
    %487 = vector.broadcast %486 : vector<1x512xf32> to vector<16x512xf32>
    %488 = arith.mulf %485, %487 : vector<16x512xf32>
    %c128_314 = arith.constant 128 : index
    %c0_315 = arith.constant 0 : index
    %489 = vector.load %arg5[%c128_314, %c0_315] : memref<144x512xf32, #tpu.memory_space<vmem>>, vector<16x512xf32>
    tpu.vector_store %arg5[%c128_314, %c0_315], %488 {strides = array<i32>} : memref<144x512xf32, #tpu.memory_space<vmem>>, vector<16x512xf32>,
    %c0_316 = arith.constant 0 : index
    %c0_317 = arith.constant 0 : index
    %490 = vector.load %arg5[%c0_316, %c0_317] : memref<144x512xf32, #tpu.memory_space<vmem>>, vector<144x512xf32>
    %cst_318 = arith.constant dense<0.000000e+00> : vector<16x512xf32>
    %491 = tpu.matmul %399, %490, %cst_318 {dimension_numbers = #tpu.dot_dimension_numbers<[1], [0], [0], [1], [0, 0, 1, 1], [], []>} : vector<16x144xf32>, vector<144x512xf32>, vector<16x512xf32> -> vector<16x512xf32>
    %492 = vector.broadcast %401 : vector<16x1xf32> to vector<16x512xf32>
    %493 = arith.addf %491, %492 : vector<16x512xf32>
    %cst_319 = arith.constant 0.000000e+00 : f32
    %494 = vector.broadcast %cst_319 : f32 to vector<16x512xf32>
    %495 = arith.maximumf %493, %494 : vector<16x512xf32>
    %c17_i32_320 = arith.constant 17 : i32
    %496 = tpu.dynamic_rotate %495 by %c17_i32_320 dim 1 : vector<16x512xf32>, i32 -> vector<16x512xf32>
    %c0_321 = arith.constant 0 : index
    %c0_322 = arith.constant 0 : index
    %497 = vector.load %arg2[%c0_321, %c0_322] : memref<9x512xf32, #tpu.memory_space<vmem>>, vector<1x512xf32>
    %498 = vector.broadcast %497 : vector<1x512xf32> to vector<16x512xf32>
    %499 = arith.mulf %496, %498 : vector<16x512xf32>
    %c0_323 = arith.constant 0 : index
    %c0_324 = arith.constant 0 : index
    %500 = vector.load %arg5[%c0_323, %c0_324] : memref<144x512xf32, #tpu.memory_space<vmem>>, vector<16x512xf32>
    tpu.vector_store %arg5[%c0_323, %c0_324], %499 {strides = array<i32>} : memref<144x512xf32, #tpu.memory_space<vmem>>, vector<16x512xf32>,
    %c16_i32_325 = arith.constant 16 : i32
    %501 = tpu.dynamic_rotate %495 by %c16_i32_325 dim 1 : vector<16x512xf32>, i32 -> vector<16x512xf32>
    %c1_326 = arith.constant 1 : index
    %c0_327 = arith.constant 0 : index
    %502 = vector.load %arg2[%c1_326, %c0_327] : memref<9x512xf32, #tpu.memory_space<vmem>>, vector<1x512xf32>
    %503 = vector.broadcast %502 : vector<1x512xf32> to vector<16x512xf32>
    %504 = arith.mulf %501, %503 : vector<16x512xf32>
    %c16_328 = arith.constant 16 : index
    %c0_329 = arith.constant 0 : index
    %505 = vector.load %arg5[%c16_328, %c0_329] : memref<144x512xf32, #tpu.memory_space<vmem>>, vector<16x512xf32>
    tpu.vector_store %arg5[%c16_328, %c0_329], %504 {strides = array<i32>} : memref<144x512xf32, #tpu.memory_space<vmem>>, vector<16x512xf32>,
    %c15_i32_330 = arith.constant 15 : i32
    %506 = tpu.dynamic_rotate %495 by %c15_i32_330 dim 1 : vector<16x512xf32>, i32 -> vector<16x512xf32>
    %c2_331 = arith.constant 2 : index
    %c0_332 = arith.constant 0 : index
    %507 = vector.load %arg2[%c2_331, %c0_332] : memref<9x512xf32, #tpu.memory_space<vmem>>, vector<1x512xf32>
    %508 = vector.broadcast %507 : vector<1x512xf32> to vector<16x512xf32>
    %509 = arith.mulf %506, %508 : vector<16x512xf32>
    %c32_333 = arith.constant 32 : index
    %c0_334 = arith.constant 0 : index
    %510 = vector.load %arg5[%c32_333, %c0_334] : memref<144x512xf32, #tpu.memory_space<vmem>>, vector<16x512xf32>
    tpu.vector_store %arg5[%c32_333, %c0_334], %509 {strides = array<i32>} : memref<144x512xf32, #tpu.memory_space<vmem>>, vector<16x512xf32>,
    %c1_i32_335 = arith.constant 1 : i32
    %511 = tpu.dynamic_rotate %495 by %c1_i32_335 dim 1 : vector<16x512xf32>, i32 -> vector<16x512xf32>
    %c3_336 = arith.constant 3 : index
    %c0_337 = arith.constant 0 : index
    %512 = vector.load %arg2[%c3_336, %c0_337] : memref<9x512xf32, #tpu.memory_space<vmem>>, vector<1x512xf32>
    %513 = vector.broadcast %512 : vector<1x512xf32> to vector<16x512xf32>
    %514 = arith.mulf %511, %513 : vector<16x512xf32>
    %c48_338 = arith.constant 48 : index
    %c0_339 = arith.constant 0 : index
    %515 = vector.load %arg5[%c48_338, %c0_339] : memref<144x512xf32, #tpu.memory_space<vmem>>, vector<16x512xf32>
    tpu.vector_store %arg5[%c48_338, %c0_339], %514 {strides = array<i32>} : memref<144x512xf32, #tpu.memory_space<vmem>>, vector<16x512xf32>,
    %c64_340 = arith.constant 64 : index
    %c0_341 = arith.constant 0 : index
    %516 = vector.load %arg5[%c64_340, %c0_341] : memref<144x512xf32, #tpu.memory_space<vmem>>, vector<16x512xf32>
    tpu.vector_store %arg5[%c64_340, %c0_341], %495 {strides = array<i32>} : memref<144x512xf32, #tpu.memory_space<vmem>>, vector<16x512xf32>,
    %c511_i32_342 = arith.constant 511 : i32
    %517 = tpu.dynamic_rotate %495 by %c511_i32_342 dim 1 : vector<16x512xf32>, i32 -> vector<16x512xf32>
    %c5_343 = arith.constant 5 : index
    %c0_344 = arith.constant 0 : index
    %518 = vector.load %arg2[%c5_343, %c0_344] : memref<9x512xf32, #tpu.memory_space<vmem>>, vector<1x512xf32>
    %519 = vector.broadcast %518 : vector<1x512xf32> to vector<16x512xf32>
    %520 = arith.mulf %517, %519 : vector<16x512xf32>
    %c80_345 = arith.constant 80 : index
    %c0_346 = arith.constant 0 : index
    %521 = vector.load %arg5[%c80_345, %c0_346] : memref<144x512xf32, #tpu.memory_space<vmem>>, vector<16x512xf32>
    tpu.vector_store %arg5[%c80_345, %c0_346], %520 {strides = array<i32>} : memref<144x512xf32, #tpu.memory_space<vmem>>, vector<16x512xf32>,
    %c497_i32_347 = arith.constant 497 : i32
    %522 = tpu.dynamic_rotate %495 by %c497_i32_347 dim 1 : vector<16x512xf32>, i32 -> vector<16x512xf32>
    %c6_348 = arith.constant 6 : index
    %c0_349 = arith.constant 0 : index
    %523 = vector.load %arg2[%c6_348, %c0_349] : memref<9x512xf32, #tpu.memory_space<vmem>>, vector<1x512xf32>
    %524 = vector.broadcast %523 : vector<1x512xf32> to vector<16x512xf32>
    %525 = arith.mulf %522, %524 : vector<16x512xf32>
    %c96_350 = arith.constant 96 : index
    %c0_351 = arith.constant 0 : index
    %526 = vector.load %arg5[%c96_350, %c0_351] : memref<144x512xf32, #tpu.memory_space<vmem>>, vector<16x512xf32>
    tpu.vector_store %arg5[%c96_350, %c0_351], %525 {strides = array<i32>} : memref<144x512xf32, #tpu.memory_space<vmem>>, vector<16x512xf32>,
    %c496_i32_352 = arith.constant 496 : i32
    %527 = tpu.dynamic_rotate %495 by %c496_i32_352 dim 1 : vector<16x512xf32>, i32 -> vector<16x512xf32>
    %c7_353 = arith.constant 7 : index
    %c0_354 = arith.constant 0 : index
    %528 = vector.load %arg2[%c7_353, %c0_354] : memref<9x512xf32, #tpu.memory_space<vmem>>, vector<1x512xf32>
    %529 = vector.broadcast %528 : vector<1x512xf32> to vector<16x512xf32>
    %530 = arith.mulf %527, %529 : vector<16x512xf32>
    %c112_355 = arith.constant 112 : index
    %c0_356 = arith.constant 0 : index
    %531 = vector.load %arg5[%c112_355, %c0_356] : memref<144x512xf32, #tpu.memory_space<vmem>>, vector<16x512xf32>
    tpu.vector_store %arg5[%c112_355, %c0_356], %530 {strides = array<i32>} : memref<144x512xf32, #tpu.memory_space<vmem>>, vector<16x512xf32>,
    %c495_i32_357 = arith.constant 495 : i32
    %532 = tpu.dynamic_rotate %495 by %c495_i32_357 dim 1 : vector<16x512xf32>, i32 -> vector<16x512xf32>
    %c8_358 = arith.constant 8 : index
    %c0_359 = arith.constant 0 : index
    %533 = vector.load %arg2[%c8_358, %c0_359] : memref<9x512xf32, #tpu.memory_space<vmem>>, vector<1x512xf32>
    %534 = vector.broadcast %533 : vector<1x512xf32> to vector<16x512xf32>
    %535 = arith.mulf %532, %534 : vector<16x512xf32>
    %c128_360 = arith.constant 128 : index
    %c0_361 = arith.constant 0 : index
    %536 = vector.load %arg5[%c128_360, %c0_361] : memref<144x512xf32, #tpu.memory_space<vmem>>, vector<16x512xf32>
    tpu.vector_store %arg5[%c128_360, %c0_361], %535 {strides = array<i32>} : memref<144x512xf32, #tpu.memory_space<vmem>>, vector<16x512xf32>,
    %c0_362 = arith.constant 0 : index
    %c0_363 = arith.constant 0 : index
    %537 = vector.load %arg5[%c0_362, %c0_363] : memref<144x512xf32, #tpu.memory_space<vmem>>, vector<144x512xf32>
    %cst_364 = arith.constant dense<0.000000e+00> : vector<16x512xf32>
    %538 = tpu.matmul %403, %537, %cst_364 {dimension_numbers = #tpu.dot_dimension_numbers<[1], [0], [0], [1], [0, 0, 1, 1], [], []>} : vector<16x144xf32>, vector<144x512xf32>, vector<16x512xf32> -> vector<16x512xf32>
    %539 = vector.broadcast %405 : vector<16x1xf32> to vector<16x512xf32>
    %540 = arith.addf %538, %539 : vector<16x512xf32>
    %541 = arith.addf %393, %540 : vector<16x512xf32>
    %542 = vector.extract_strided_slice %541 {offsets = [0, 0], sizes = [16, 256], strides = [1, 1]} : vector<16x512xf32> to vector<16x256xf32>
    %543 = vector.extract_strided_slice %541 {offsets = [0, 256], sizes = [16, 256], strides = [1, 1]} : vector<16x512xf32> to vector<16x256xf32>
    %544 = tpu.concatenate %542, %543 in 0 : vector<16x256xf32>, vector<16x256xf32> -> vector<32x256xf32>
    %c1_365 = arith.constant 1 : index
    %c112_366 = arith.constant 112 : index
    %c0_367 = arith.constant 0 : index
    %545 = vector.load %arg3[%c1_365, %c112_366, %c0_367] : memref<2x1024x256xf32, #tpu.memory_space<vmem>>, vector<1x1x256xf32>
    %546 = vector.shape_cast %545 : vector<1x1x256xf32> to vector<1x256xf32>
    %c1_368 = arith.constant 1 : index
    %c120_369 = arith.constant 120 : index
    %c0_370 = arith.constant 0 : index
    %547 = vector.load %arg3[%c1_368, %c120_369, %c0_370] : memref<2x1024x256xf32, #tpu.memory_space<vmem>>, vector<1x1x256xf32>
    %548 = vector.shape_cast %547 : vector<1x1x256xf32> to vector<1x256xf32>
    %c1_371 = arith.constant 1 : index
    %c128_372 = arith.constant 128 : index
    %c0_373 = arith.constant 0 : index
    %549 = vector.load %arg3[%c1_371, %c128_372, %c0_373] : memref<2x1024x256xf32, #tpu.memory_space<vmem>>, vector<1x256x32xf32>
    %550 = vector.shape_cast %549 : vector<1x256x32xf32> to vector<256x32xf32>
    %c1_374 = arith.constant 1 : index
    %c384_375 = arith.constant 384 : index
    %c0_376 = arith.constant 0 : index
    %551 = vector.load %arg3[%c1_374, %c384_375, %c0_376] : memref<2x1024x256xf32, #tpu.memory_space<vmem>>, vector<1x1x32xf32>
    %552 = vector.shape_cast %551 : vector<1x1x32xf32> to vector<1x32xf32>
    %c1_377 = arith.constant 1 : index
    %c392_378 = arith.constant 392 : index
    %c0_379 = arith.constant 0 : index
    %553 = vector.load %arg3[%c1_377, %c392_378, %c0_379] : memref<2x1024x256xf32, #tpu.memory_space<vmem>>, vector<1x32x256xf32>
    %554 = vector.shape_cast %553 : vector<1x32x256xf32> to vector<32x256xf32>
    %c1_380 = arith.constant 1 : index
    %c424_381 = arith.constant 424 : index
    %c0_382 = arith.constant 0 : index
    %555 = vector.load %arg3[%c1_380, %c424_381, %c0_382] : memref<2x1024x256xf32, #tpu.memory_space<vmem>>, vector<1x1x256xf32>
    %556 = vector.shape_cast %555 : vector<1x1x256xf32> to vector<1x256xf32>
    %cst_383 = arith.constant dense<0.000000e+00> : vector<32xf32>
    %557 = vector.multi_reduction <add>, %544, %cst_383 [1] : vector<32x256xf32> to vector<32xf32>
    %558 = vector.shape_cast %557 : vector<32xf32> to vector<32x1xf32>
    %cst_384 = arith.constant 2.560000e+02 : f32
    %559 = vector.broadcast %cst_384 : f32 to vector<32x1xf32>
    %560 = arith.divf %558, %559 : vector<32x1xf32>
    %561 = vector.broadcast %560 : vector<32x1xf32> to vector<32x256xf32>
    %562 = arith.subf %544, %561 : vector<32x256xf32>
    %563 = arith.mulf %562, %562 : vector<32x256xf32>
    %cst_385 = arith.constant dense<0.000000e+00> : vector<32xf32>
    %564 = vector.multi_reduction <add>, %563, %cst_385 [1] : vector<32x256xf32> to vector<32xf32>
    %565 = vector.shape_cast %564 : vector<32xf32> to vector<32x1xf32>
    %cst_386 = arith.constant 2.560000e+02 : f32
    %566 = vector.broadcast %cst_386 : f32 to vector<32x1xf32>
    %567 = arith.divf %565, %566 : vector<32x1xf32>
    %cst_387 = arith.constant 9.99999974E-6 : f32
    %568 = vector.broadcast %cst_387 : f32 to vector<32x1xf32>
    %569 = arith.addf %567, %568 : vector<32x1xf32>
    %570 = math.rsqrt %569 : vector<32x1xf32>
    %571 = vector.broadcast %570 : vector<32x1xf32> to vector<32x256xf32>
    %572 = arith.mulf %562, %571 : vector<32x256xf32>
    %573 = vector.broadcast %546 : vector<1x256xf32> to vector<32x256xf32>
    %574 = arith.mulf %572, %573 : vector<32x256xf32>
    %575 = vector.broadcast %548 : vector<1x256xf32> to vector<32x256xf32>
    %576 = arith.addf %574, %575 : vector<32x256xf32>
    %cst_388 = arith.constant dense<0.000000e+00> : vector<32x32xf32>
    %577 = tpu.matmul %576, %550, %cst_388 {dimension_numbers = #tpu.dot_dimension_numbers<[1], [0], [0], [1], [0, 0, 1, 1], [], []>} : vector<32x256xf32>, vector<256x32xf32>, vector<32x32xf32> -> vector<32x32xf32>
    %578 = vector.broadcast %552 : vector<1x32xf32> to vector<32x32xf32>
    %579 = arith.addf %577, %578 : vector<32x32xf32>
    %cst_389 = arith.constant 0.000000e+00 : f32
    %580 = vector.broadcast %cst_389 : f32 to vector<32x32xf32>
    %581 = arith.maximumf %579, %580 : vector<32x32xf32>
    %cst_390 = arith.constant dense<0.000000e+00> : vector<32x256xf32>
    %582 = tpu.matmul %581, %554, %cst_390 {dimension_numbers = #tpu.dot_dimension_numbers<[1], [0], [0], [1], [0, 0, 1, 1], [], []>} : vector<32x32xf32>, vector<32x256xf32>, vector<32x256xf32> -> vector<32x256xf32>
    %583 = arith.addf %544, %582 : vector<32x256xf32>
    %584 = vector.broadcast %556 : vector<1x256xf32> to vector<32x256xf32>
    %585 = arith.addf %583, %584 : vector<32x256xf32>
    %c1_391 = arith.constant 1 : index
    %c432_392 = arith.constant 432 : index
    %c0_393 = arith.constant 0 : index
    %586 = vector.load %arg3[%c1_391, %c432_392, %c0_393] : memref<2x1024x256xf32, #tpu.memory_space<vmem>>, vector<1x1x256xf32>
    %587 = vector.shape_cast %586 : vector<1x1x256xf32> to vector<1x256xf32>
    %c1_394 = arith.constant 1 : index
    %c440_395 = arith.constant 440 : index
    %c0_396 = arith.constant 0 : index
    %588 = vector.load %arg3[%c1_394, %c440_395, %c0_396] : memref<2x1024x256xf32, #tpu.memory_space<vmem>>, vector<1x1x256xf32>
    %589 = vector.shape_cast %588 : vector<1x1x256xf32> to vector<1x256xf32>
    %c1_397 = arith.constant 1 : index
    %c448_398 = arith.constant 448 : index
    %c0_399 = arith.constant 0 : index
    %590 = vector.load %arg3[%c1_397, %c448_398, %c0_399] : memref<2x1024x256xf32, #tpu.memory_space<vmem>>, vector<1x256x32xf32>
    %591 = vector.shape_cast %590 : vector<1x256x32xf32> to vector<256x32xf32>
    %c1_400 = arith.constant 1 : index
    %c704_401 = arith.constant 704 : index
    %c0_402 = arith.constant 0 : index
    %592 = vector.load %arg3[%c1_400, %c704_401, %c0_402] : memref<2x1024x256xf32, #tpu.memory_space<vmem>>, vector<1x1x32xf32>
    %593 = vector.shape_cast %592 : vector<1x1x32xf32> to vector<1x32xf32>
    %c1_403 = arith.constant 1 : index
    %c712_404 = arith.constant 712 : index
    %c0_405 = arith.constant 0 : index
    %594 = vector.load %arg3[%c1_403, %c712_404, %c0_405] : memref<2x1024x256xf32, #tpu.memory_space<vmem>>, vector<1x32x256xf32>
    %595 = vector.shape_cast %594 : vector<1x32x256xf32> to vector<32x256xf32>
    %c1_406 = arith.constant 1 : index
    %c744_407 = arith.constant 744 : index
    %c0_408 = arith.constant 0 : index
    %596 = vector.load %arg3[%c1_406, %c744_407, %c0_408] : memref<2x1024x256xf32, #tpu.memory_space<vmem>>, vector<1x1x256xf32>
    %597 = vector.shape_cast %596 : vector<1x1x256xf32> to vector<1x256xf32>
    %cst_409 = arith.constant dense<0.000000e+00> : vector<32xf32>
    %598 = vector.multi_reduction <add>, %585, %cst_409 [1] : vector<32x256xf32> to vector<32xf32>
    %599 = vector.shape_cast %598 : vector<32xf32> to vector<32x1xf32>
    %cst_410 = arith.constant 2.560000e+02 : f32
    %600 = vector.broadcast %cst_410 : f32 to vector<32x1xf32>
    %601 = arith.divf %599, %600 : vector<32x1xf32>
    %602 = vector.broadcast %601 : vector<32x1xf32> to vector<32x256xf32>
    %603 = arith.subf %585, %602 : vector<32x256xf32>
    %604 = arith.mulf %603, %603 : vector<32x256xf32>
    %cst_411 = arith.constant dense<0.000000e+00> : vector<32xf32>
    %605 = vector.multi_reduction <add>, %604, %cst_411 [1] : vector<32x256xf32> to vector<32xf32>
    %606 = vector.shape_cast %605 : vector<32xf32> to vector<32x1xf32>
    %cst_412 = arith.constant 2.560000e+02 : f32
    %607 = vector.broadcast %cst_412 : f32 to vector<32x1xf32>
    %608 = arith.divf %606, %607 : vector<32x1xf32>
    %cst_413 = arith.constant 9.99999974E-6 : f32
    %609 = vector.broadcast %cst_413 : f32 to vector<32x1xf32>
    %610 = arith.addf %608, %609 : vector<32x1xf32>
    %611 = math.rsqrt %610 : vector<32x1xf32>
    %612 = vector.broadcast %611 : vector<32x1xf32> to vector<32x256xf32>
    %613 = arith.mulf %603, %612 : vector<32x256xf32>
    %614 = vector.broadcast %587 : vector<1x256xf32> to vector<32x256xf32>
    %615 = arith.mulf %613, %614 : vector<32x256xf32>
    %616 = vector.broadcast %589 : vector<1x256xf32> to vector<32x256xf32>
    %617 = arith.addf %615, %616 : vector<32x256xf32>
    %cst_414 = arith.constant dense<0.000000e+00> : vector<32x32xf32>
    %618 = tpu.matmul %617, %591, %cst_414 {dimension_numbers = #tpu.dot_dimension_numbers<[1], [0], [0], [1], [0, 0, 1, 1], [], []>} : vector<32x256xf32>, vector<256x32xf32>, vector<32x32xf32> -> vector<32x32xf32>
    %619 = vector.broadcast %593 : vector<1x32xf32> to vector<32x32xf32>
    %620 = arith.addf %618, %619 : vector<32x32xf32>
    %cst_415 = arith.constant 0.000000e+00 : f32
    %621 = vector.broadcast %cst_415 : f32 to vector<32x32xf32>
    %622 = arith.maximumf %620, %621 : vector<32x32xf32>
    %cst_416 = arith.constant dense<0.000000e+00> : vector<32x256xf32>
    %623 = tpu.matmul %622, %595, %cst_416 {dimension_numbers = #tpu.dot_dimension_numbers<[1], [0], [0], [1], [0, 0, 1, 1], [], []>} : vector<32x32xf32>, vector<32x256xf32>, vector<32x256xf32> -> vector<32x256xf32>
    %624 = arith.addf %585, %623 : vector<32x256xf32>
    %625 = vector.broadcast %597 : vector<1x256xf32> to vector<32x256xf32>
    %626 = arith.addf %624, %625 : vector<32x256xf32>
    %cst_417 = arith.constant dense<0xFF800000> : vector<32xf32>
    %627 = vector.multi_reduction <maximumf>, %626, %cst_417 [1] : vector<32x256xf32> to vector<32xf32>
    %628 = vector.shape_cast %627 : vector<32xf32> to vector<32x1xf32>
    %629 = vector.extract_strided_slice %628 {offsets = [0, 0], sizes = [16, 1], strides = [1, 1]} : vector<32x1xf32> to vector<16x1xf32>
    %630 = vector.extract_strided_slice %628 {offsets = [16, 0], sizes = [16, 1], strides = [1, 1]} : vector<32x1xf32> to vector<16x1xf32>
    %631 = tpu.concatenate %629, %630 in 1 : vector<16x1xf32>, vector<16x1xf32> -> vector<16x2xf32>
    %c1_418 = arith.constant 1 : index
    %c752_419 = arith.constant 752 : index
    %c0_420 = arith.constant 0 : index
    %632 = vector.load %arg3[%c1_418, %c752_419, %c0_420] : memref<2x1024x256xf32, #tpu.memory_space<vmem>>, vector<1x16x1xf32>
    %633 = vector.shape_cast %632 : vector<1x16x1xf32> to vector<16x1xf32>
    %c1_421 = arith.constant 1 : index
    %c768_422 = arith.constant 768 : index
    %c0_423 = arith.constant 0 : index
    %634 = vector.load %arg3[%c1_421, %c768_422, %c0_423] : memref<2x1024x256xf32, #tpu.memory_space<vmem>>, vector<1x16x1xf32>
    %635 = vector.shape_cast %634 : vector<1x16x1xf32> to vector<16x1xf32>
    %c1_424 = arith.constant 1 : index
    %c784_425 = arith.constant 784 : index
    %c0_426 = arith.constant 0 : index
    %636 = vector.load %arg3[%c1_424, %c784_425, %c0_426] : memref<2x1024x256xf32, #tpu.memory_space<vmem>>, vector<1x32x16xf32>
    %637 = vector.shape_cast %636 : vector<1x32x16xf32> to vector<32x16xf32>
    %c1_427 = arith.constant 1 : index
    %c816_428 = arith.constant 816 : index
    %c0_429 = arith.constant 0 : index
    %638 = vector.load %arg3[%c1_427, %c816_428, %c0_429] : memref<2x1024x256xf32, #tpu.memory_space<vmem>>, vector<1x32x1xf32>
    %639 = vector.shape_cast %638 : vector<1x32x1xf32> to vector<32x1xf32>
    %c1_430 = arith.constant 1 : index
    %c848_431 = arith.constant 848 : index
    %c0_432 = arith.constant 0 : index
    %640 = vector.load %arg3[%c1_430, %c848_431, %c0_432] : memref<2x1024x256xf32, #tpu.memory_space<vmem>>, vector<1x16x32xf32>
    %641 = vector.shape_cast %640 : vector<1x16x32xf32> to vector<16x32xf32>
    %c1_433 = arith.constant 1 : index
    %c864_434 = arith.constant 864 : index
    %c0_435 = arith.constant 0 : index
    %642 = vector.load %arg3[%c1_433, %c864_434, %c0_435] : memref<2x1024x256xf32, #tpu.memory_space<vmem>>, vector<1x16x1xf32>
    %643 = vector.shape_cast %642 : vector<1x16x1xf32> to vector<16x1xf32>
    %cst_436 = arith.constant dense<0.000000e+00> : vector<2xf32>
    %644 = vector.multi_reduction <add>, %631, %cst_436 [0] : vector<16x2xf32> to vector<2xf32>
    %645 = vector.shape_cast %644 : vector<2xf32> to vector<1x2xf32>
    %cst_437 = arith.constant 1.600000e+01 : f32
    %646 = vector.broadcast %cst_437 : f32 to vector<1x2xf32>
    %647 = arith.divf %645, %646 : vector<1x2xf32>
    %648 = vector.broadcast %647 : vector<1x2xf32> to vector<16x2xf32>
    %649 = arith.subf %631, %648 : vector<16x2xf32>
    %650 = arith.mulf %649, %649 : vector<16x2xf32>
    %cst_438 = arith.constant dense<0.000000e+00> : vector<2xf32>
    %651 = vector.multi_reduction <add>, %650, %cst_438 [0] : vector<16x2xf32> to vector<2xf32>
    %652 = vector.shape_cast %651 : vector<2xf32> to vector<1x2xf32>
    %cst_439 = arith.constant 1.600000e+01 : f32
    %653 = vector.broadcast %cst_439 : f32 to vector<1x2xf32>
    %654 = arith.divf %652, %653 : vector<1x2xf32>
    %cst_440 = arith.constant 9.99999974E-6 : f32
    %655 = vector.broadcast %cst_440 : f32 to vector<1x2xf32>
    %656 = arith.addf %654, %655 : vector<1x2xf32>
    %657 = math.rsqrt %656 : vector<1x2xf32>
    %658 = vector.broadcast %657 : vector<1x2xf32> to vector<16x2xf32>
    %659 = arith.mulf %649, %658 : vector<16x2xf32>
    %660 = vector.broadcast %633 : vector<16x1xf32> to vector<16x2xf32>
    %661 = arith.mulf %659, %660 : vector<16x2xf32>
    %662 = vector.broadcast %635 : vector<16x1xf32> to vector<16x2xf32>
    %663 = arith.addf %661, %662 : vector<16x2xf32>
    %cst_441 = arith.constant dense<0.000000e+00> : vector<32x2xf32>
    %664 = tpu.matmul %637, %663, %cst_441 {dimension_numbers = #tpu.dot_dimension_numbers<[1], [0], [0], [1], [0, 0, 1, 1], [], []>} : vector<32x16xf32>, vector<16x2xf32>, vector<32x2xf32> -> vector<32x2xf32>
    %665 = vector.broadcast %639 : vector<32x1xf32> to vector<32x2xf32>
    %666 = arith.addf %664, %665 : vector<32x2xf32>
    %cst_442 = arith.constant 0.000000e+00 : f32
    %667 = vector.broadcast %cst_442 : f32 to vector<32x2xf32>
    %668 = arith.maximumf %666, %667 : vector<32x2xf32>
    %cst_443 = arith.constant dense<0.000000e+00> : vector<16x2xf32>
    %669 = tpu.matmul %641, %668, %cst_443 {dimension_numbers = #tpu.dot_dimension_numbers<[1], [0], [0], [1], [0, 0, 1, 1], [], []>} : vector<16x32xf32>, vector<32x2xf32>, vector<16x2xf32> -> vector<16x2xf32>
    %670 = arith.addf %631, %669 : vector<16x2xf32>
    %671 = vector.broadcast %643 : vector<16x1xf32> to vector<16x2xf32>
    %672 = arith.addf %670, %671 : vector<16x2xf32>
    %c1_444 = arith.constant 1 : index
    %c880_445 = arith.constant 880 : index
    %c0_446 = arith.constant 0 : index
    %673 = vector.load %arg3[%c1_444, %c880_445, %c0_446] : memref<2x1024x256xf32, #tpu.memory_space<vmem>>, vector<1x16x1xf32>
    %674 = vector.shape_cast %673 : vector<1x16x1xf32> to vector<16x1xf32>
    %c1_447 = arith.constant 1 : index
    %c896_448 = arith.constant 896 : index
    %c0_449 = arith.constant 0 : index
    %675 = vector.load %arg3[%c1_447, %c896_448, %c0_449] : memref<2x1024x256xf32, #tpu.memory_space<vmem>>, vector<1x16x1xf32>
    %676 = vector.shape_cast %675 : vector<1x16x1xf32> to vector<16x1xf32>
    %c1_450 = arith.constant 1 : index
    %c912_451 = arith.constant 912 : index
    %c0_452 = arith.constant 0 : index
    %677 = vector.load %arg3[%c1_450, %c912_451, %c0_452] : memref<2x1024x256xf32, #tpu.memory_space<vmem>>, vector<1x32x16xf32>
    %678 = vector.shape_cast %677 : vector<1x32x16xf32> to vector<32x16xf32>
    %c1_453 = arith.constant 1 : index
    %c944_454 = arith.constant 944 : index
    %c0_455 = arith.constant 0 : index
    %679 = vector.load %arg3[%c1_453, %c944_454, %c0_455] : memref<2x1024x256xf32, #tpu.memory_space<vmem>>, vector<1x32x1xf32>
    %680 = vector.shape_cast %679 : vector<1x32x1xf32> to vector<32x1xf32>
    %c1_456 = arith.constant 1 : index
    %c976_457 = arith.constant 976 : index
    %c0_458 = arith.constant 0 : index
    %681 = vector.load %arg3[%c1_456, %c976_457, %c0_458] : memref<2x1024x256xf32, #tpu.memory_space<vmem>>, vector<1x16x32xf32>
    %682 = vector.shape_cast %681 : vector<1x16x32xf32> to vector<16x32xf32>
    %c1_459 = arith.constant 1 : index
    %c992_460 = arith.constant 992 : index
    %c0_461 = arith.constant 0 : index
    %683 = vector.load %arg3[%c1_459, %c992_460, %c0_461] : memref<2x1024x256xf32, #tpu.memory_space<vmem>>, vector<1x16x1xf32>
    %684 = vector.shape_cast %683 : vector<1x16x1xf32> to vector<16x1xf32>
    %cst_462 = arith.constant dense<0.000000e+00> : vector<2xf32>
    %685 = vector.multi_reduction <add>, %672, %cst_462 [0] : vector<16x2xf32> to vector<2xf32>
    %686 = vector.shape_cast %685 : vector<2xf32> to vector<1x2xf32>
    %cst_463 = arith.constant 1.600000e+01 : f32
    %687 = vector.broadcast %cst_463 : f32 to vector<1x2xf32>
    %688 = arith.divf %686, %687 : vector<1x2xf32>
    %689 = vector.broadcast %688 : vector<1x2xf32> to vector<16x2xf32>
    %690 = arith.subf %672, %689 : vector<16x2xf32>
    %691 = arith.mulf %690, %690 : vector<16x2xf32>
    %cst_464 = arith.constant dense<0.000000e+00> : vector<2xf32>
    %692 = vector.multi_reduction <add>, %691, %cst_464 [0] : vector<16x2xf32> to vector<2xf32>
    %693 = vector.shape_cast %692 : vector<2xf32> to vector<1x2xf32>
    %cst_465 = arith.constant 1.600000e+01 : f32
    %694 = vector.broadcast %cst_465 : f32 to vector<1x2xf32>
    %695 = arith.divf %693, %694 : vector<1x2xf32>
    %cst_466 = arith.constant 9.99999974E-6 : f32
    %696 = vector.broadcast %cst_466 : f32 to vector<1x2xf32>
    %697 = arith.addf %695, %696 : vector<1x2xf32>
    %698 = math.rsqrt %697 : vector<1x2xf32>
    %699 = vector.broadcast %698 : vector<1x2xf32> to vector<16x2xf32>
    %700 = arith.mulf %690, %699 : vector<16x2xf32>
    %701 = vector.broadcast %674 : vector<16x1xf32> to vector<16x2xf32>
    %702 = arith.mulf %700, %701 : vector<16x2xf32>
    %703 = vector.broadcast %676 : vector<16x1xf32> to vector<16x2xf32>
    %704 = arith.addf %702, %703 : vector<16x2xf32>
    %cst_467 = arith.constant dense<0.000000e+00> : vector<32x2xf32>
    %705 = tpu.matmul %678, %704, %cst_467 {dimension_numbers = #tpu.dot_dimension_numbers<[1], [0], [0], [1], [0, 0, 1, 1], [], []>} : vector<32x16xf32>, vector<16x2xf32>, vector<32x2xf32> -> vector<32x2xf32>
    %706 = vector.broadcast %680 : vector<32x1xf32> to vector<32x2xf32>
    %707 = arith.addf %705, %706 : vector<32x2xf32>
    %cst_468 = arith.constant 0.000000e+00 : f32
    %708 = vector.broadcast %cst_468 : f32 to vector<32x2xf32>
    %709 = arith.maximumf %707, %708 : vector<32x2xf32>
    %cst_469 = arith.constant dense<0.000000e+00> : vector<16x2xf32>
    %710 = tpu.matmul %682, %709, %cst_469 {dimension_numbers = #tpu.dot_dimension_numbers<[1], [0], [0], [1], [0, 0, 1, 1], [], []>} : vector<16x32xf32>, vector<32x2xf32>, vector<16x2xf32> -> vector<16x2xf32>
    %711 = arith.addf %672, %710 : vector<16x2xf32>
    %712 = vector.broadcast %684 : vector<16x1xf32> to vector<16x2xf32>
    %713 = arith.addf %711, %712 : vector<16x2xf32>
    %c1_470 = arith.constant 1 : index
    %c1008_471 = arith.constant 1008 : index
    %c0_472 = arith.constant 0 : index
    %714 = vector.load %arg3[%c1_470, %c1008_471, %c0_472] : memref<2x1024x256xf32, #tpu.memory_space<vmem>>, vector<1x1x16xf32>
    %715 = vector.shape_cast %714 : vector<1x1x16xf32> to vector<1x16xf32>
    %c1_473 = arith.constant 1 : index
    %c1016_474 = arith.constant 1016 : index
    %c0_475 = arith.constant 0 : index
    %716 = vector.load %arg3[%c1_473, %c1016_474, %c0_475] : memref<2x1024x256xf32, #tpu.memory_space<vmem>>, vector<1x1x1xf32>
    %717 = vector.shape_cast %716 : vector<1x1x1xf32> to vector<1x1xf32>
    %cst_476 = arith.constant dense<0.000000e+00> : vector<1x2xf32>
    %718 = tpu.matmul %715, %713, %cst_476 {dimension_numbers = #tpu.dot_dimension_numbers<[1], [0], [0], [1], [0, 0, 1, 1], [], []>} : vector<1x16xf32>, vector<16x2xf32>, vector<1x2xf32> -> vector<1x2xf32>
    %719 = vector.broadcast %717 : vector<1x1xf32> to vector<1x2xf32>
    %720 = arith.addf %718, %719 : vector<1x2xf32>
    %c1_477 = arith.constant 1 : index
    %c0_478 = arith.constant 0 : index
    %c0_479 = arith.constant 0 : index
    %721 = vector.load %arg4[%c1_477, %c0_478, %c0_479] : memref<2x1x2xf32, #tpu.memory_space<vmem>>, vector<1x1x2xf32>
    %722 = vector.shape_cast %721 : vector<1x1x2xf32> to vector<1x2xf32>
    %723 = vector.shape_cast %720 : vector<1x2xf32> to vector<1x1x2xf32>
    tpu.vector_store %arg4[%c1_477, %c0_478, %c0_479], %723 {strides = array<i32>} : memref<2x1x2xf32, #tpu.memory_space<vmem>>, vector<1x1x2xf32>,
    return
  }
  func.func @transform_0(%arg0: i32) -> (i32, i32, i32) {
    %c0_i32 = arith.constant 0 : i32
    %c0_i32_0 = arith.constant 0 : i32
    %c0_i32_1 = arith.constant 0 : i32
    %c0_i32_2 = arith.constant 0 : i32
    return %c0_i32, %c0_i32_0, %c0_i32_1 : i32, i32, i32
  }
  func.func @transform_1(%arg0: i32) -> (i32, i32) {
    %c0_i32 = arith.constant 0 : i32
    %c0_i32_0 = arith.constant 0 : i32
    %c0_i32_1 = arith.constant 0 : i32
    return %c0_i32, %c0_i32_0 : i32, i32
  }
  func.func @transform_2(%arg0: i32) -> (i32, i32, i32) {
    %c0_i32 = arith.constant 0 : i32
    %c0_i32_0 = arith.constant 0 : i32
    %c0_i32_1 = arith.constant 0 : i32
    %c0_i32_2 = arith.constant 0 : i32
    return %c0_i32, %c0_i32_0, %c0_i32_1 : i32, i32, i32
  }
  func.func @transform_3(%arg0: i32) -> (i32, i32, i32) {
    %c0_i32 = arith.constant 0 : i32
    %c0_i32_0 = arith.constant 0 : i32
    %c0_i32_1 = arith.constant 0 : i32
    %c0_i32_2 = arith.constant 0 : i32
    return %c0_i32, %c0_i32_0, %c0_i32_1 : i32, i32, i32
  }
}

</mosaic_0001>

<llo_original>
// kernel: forward.1
$region0: #{forward.1}
  #allocation0 [shape = 'u32[]', space=smem, size = 0x4, offset = 0x4, fixed_abs, tag = 'smem constant byte address 0x4 - core index']
  #allocation1 [shape = 'u32[144,128]{1,0:T(1,128)}', space=vmem, size = 0x12000, scoped, tag = 'internal scratch']
  #allocation2 [shape = 'f32[144,512]{1,0:T(8,128)}', space=vmem, size = 0x48000, scoped, tag = 'scratch operand']
  %s0 = inlined_call_operand.vmem [shape: f32[2,8,256], index: 0, kind: input, shape index: {}]
  %s1 = inlined_call_operand.hbm [shape: f32[9,512], index: 1, kind: input, shape index: {}]
  %s2 = inlined_call_operand.hbm [shape: f32[2,1024,256], index: 2, kind: input, shape index: {}]
  %s3 = inlined_call_operand.vmem [shape: f32[2,1,2], index: 3, kind: output, shape index: {}]
  %s4 = sld [smem:[#allocation0]]
  $region30: #{forward.1} parent=0
    _
  %s6 = ssub.s32 1, %s4
  %s7 = scalar_select 0, %s6, %s4
  $region1: #{forward.1} parent=0
    #allocation3 [shape = 'u8[32768]{0}', space=vmem, size = 0x8000, scoped, tag = 'input window, operand 1, single buffered']
    #allocation4 [shape = 's32[1]{0}', space=sflag, size = 0x4, scoped, tag = 'scoped memory for forward.1']
    #allocation5 [shape = 'u8[2097152]{0}', space=vmem, size = 0x200000, scoped, tag = 'input window, operand 2, single buffered']
    #allocation6 [shape = 's32[1]{0}', space=sflag, size = 0x4, scoped, tag = 'scoped memory for forward.1']
    %8 = vsyncpa [#allocation4], 0
    %9 = vsyncpa [#allocation6], 0
    // Predicated region
    $region2: #{forward.1} parent=1 // pred_check
      _
    $region3: #{forward.1} parent=1 // pred_check_branch
      %11 = sbr.rel (0) target = $region5
    $region4: #{forward.1} parent=1 // pred_region
      _
    $region5: #{forward.1} parent=1 // pred_fallthru
      _
    // Predicated region
    $region6: #{forward.1} parent=1 // pred_check
      _
    $region7: #{forward.1} parent=1 // pred_check_branch
      %13 = sbr.rel (0) target = $region9
    $region8: #{forward.1} parent=1 // pred_region
      %s15 = ssub.s32 1024, 1024
      %16 = vsyncadd [#allocation4], %s15
      %s17 = sshll.u32 [#allocation3], 4
      %s18 = int_to_ptr.vmem [resolvable:$true] %s17
      %23 = dma.hbm_to_vmem [thread:$0]  %s1, 1024, %s18, [#allocation4], 512, 512, 32
    $region9: #{forward.1} parent=1 // pred_fallthru
      _
    // Predicated region
    $region10: #{forward.1} parent=1 // pred_check
      _
    $region11: #{forward.1} parent=1 // pred_check_branch
      %25 = sbr.rel (0) target = $region13
    $region12: #{forward.1} parent=1 // pred_region
      %s27 = ssub.s32 65536, 65536
      %28 = vsyncadd [#allocation6], %s27
      %s29 = sshll.u32 [#allocation5], 4
      %s30 = int_to_ptr.vmem [resolvable:$true] %s29
      %35 = dma.hbm_to_vmem [thread:$0]  %s2, 65536, %s30, [#allocation6], 256, 256, 16
    $region13: #{forward.1} parent=1 // pred_fallthru
      _
    // Predicated region
    $region14: #{forward.1} parent=1 // pred_check
      _
    $region15: #{forward.1} parent=1 // pred_check_branch
      %37 = sbr.rel (0) target = $region17
    $region16: #{forward.1} parent=1 // pred_region
      %38 = dma.done [#allocation4], 1024
    $region17: #{forward.1} parent=1 // pred_fallthru
      _
    // Predicated region
    $region18: #{forward.1} parent=1 // pred_check
      _
    $region19: #{forward.1} parent=1 // pred_check_branch
      %40 = sbr.rel (0) target = $region21
    $region20: #{forward.1} parent=1 // pred_region
      %41 = dma.done [#allocation6], 65536
    $region21: #{forward.1} parent=1 // pred_fallthru
      _
    %v42 = vld [vmem:[%s0] sm:$0xff]
    %v43 = vld [vmem:[%s0 + $0x8] sm:$0xff]
    %s44 = scalar_lea.vmem %s0, 16
    %v45 = vld [vmem:[%s44] sm:$0xff]
    %v46 = vld [vmem:[%s44 + $0x8] sm:$0xff]
    %47 = vrot.lane.b32.xlu0 %v42, 17
    %v48 = vpop.permute.xlu0 %47
    %49 = vrot.lane.b32.xlu0 %v43, 17
    %v50 = vpop.permute.xlu0 %49
    %51 = vrot.lane.b32.xlu0 %v45, 17
    %v52 = vpop.permute.xlu0 %51
    %53 = vrot.lane.b32.xlu0 %v46, 17
    %v54 = vpop.permute.xlu0 %53
    %v55 = vlaneseq
    %v56 = vand.u32 %v55, 127
    %vm57 = vcmp.lt.s32.totalorder %v56, 17
    %v58 = vsel %vm57, %v52, %v54
    %v59 = vsel %vm57, %v50, %v52
    %v60 = vsel %vm57, %v48, %v50
    %v61 = vsel %vm57, %v54, %v48
    %v62 = vld [vmem:[#allocation3] ss:$8 sm:$0xf]
    %v64 = vlaneseq
    %v65 = vshrl.u32 %v64, 7
    %v66 = vsub.s32 0, %v65
    %v67 = vrot.slane %v62, %v66
    %v68 = vlaneseq
    %v69 = vshrl.u32 %v68, 7
    %v70 = vsub.s32 1, %v69
    %v71 = vrot.slane %v62, %v70
    %v72 = vlaneseq
    %v73 = vshrl.u32 %v72, 7
    %v74 = vsub.s32 2, %v73
    %v75 = vrot.slane %v62, %v74
    %v76 = vlaneseq
    %v77 = vshrl.u32 %v76, 7
    %v78 = vsub.s32 3, %v77
    %v79 = vrot.slane %v62, %v78
    %v84 = vmul.f32 %v61, %v67
    %v85 = vmul.f32 %v60, %v71
    %v86 = vmul.f32 %v59, %v75
    %v87 = vmul.f32 %v58, %v79
    %88 = vst [vmem:[#allocation2] sm:$0xff] %v84
    %89 = vst [vmem:[#allocation2 + $0x8] sm:$0xff] %v85
    %90 = vst [vmem:[#allocation2 + $0x10] sm:$0xff] %v86
    %91 = vst [vmem:[#allocation2 + $0x18] sm:$0xff] %v87
    %92 = vrot.lane.b32.xlu0 %v42, 16
    %v93 = vpop.permute.xlu0 %92
    %94 = vrot.lane.b32.xlu0 %v43, 16
    %v95 = vpop.permute.xlu0 %94
    %96 = vrot.lane.b32.xlu0 %v45, 16
    %v97 = vpop.permute.xlu0 %96
    %98 = vrot.lane.b32.xlu0 %v46, 16
    %v99 = vpop.permute.xlu0 %98
    %vm100 = vcmp.lt.s32.totalorder %v56, 16
    %v101 = vsel %vm100, %v97, %v99
    %v102 = vsel %vm100, %v95, %v97
    %v103 = vsel %vm100, %v93, %v95
    %v104 = vsel %vm100, %v99, %v93
    %s105 = scalar_lea.vmem [#allocation3], 1
    %v106 = vld [vmem:[%s105] ss:$8 sm:$0xf]
    %v108 = vlaneseq
    %v109 = vshrl.u32 %v108, 7
    %v110 = vsub.s32 0, %v109
    %v111 = vrot.slane %v106, %v110
    %v112 = vlaneseq
    %v113 = vshrl.u32 %v112, 7
    %v114 = vsub.s32 1, %v113
    %v115 = vrot.slane %v106, %v114
    %v116 = vlaneseq
    %v117 = vshrl.u32 %v116, 7
    %v118 = vsub.s32 2, %v117
    %v119 = vrot.slane %v106, %v118
    %v120 = vlaneseq
    %v121 = vshrl.u32 %v120, 7
    %v122 = vsub.s32 3, %v121
    %v123 = vrot.slane %v106, %v122
    %v128 = vmul.f32 %v104, %v111
    %v129 = vmul.f32 %v103, %v115
    %v130 = vmul.f32 %v102, %v119
    %v131 = vmul.f32 %v101, %v123
    %132 = vst [vmem:[#allocation2 + $0x20] sm:$0xff] %v128
    %133 = vst [vmem:[#allocation2 + $0x28] sm:$0xff] %v129
    %134 = vst [vmem:[#allocation2 + $0x30] sm:$0xff] %v130
    %135 = vst [vmem:[#allocation2 + $0x38] sm:$0xff] %v131
    %136 = vrot.lane.b32.xlu0 %v42, 15
    %v137 = vpop.permute.xlu0 %136
    %138 = vrot.lane.b32.xlu0 %v43, 15
    %v139 = vpop.permute.xlu0 %138
    %140 = vrot.lane.b32.xlu0 %v45, 15
    %v141 = vpop.permute.xlu0 %140
    %142 = vrot.lane.b32.xlu0 %v46, 15
    %v143 = vpop.permute.xlu0 %142
    %vm144 = vcmp.lt.s32.totalorder %v56, 15
    %v145 = vsel %vm144, %v141, %v143
    %v146 = vsel %vm144, %v139, %v141
    %v147 = vsel %vm144, %v137, %v139
    %v148 = vsel %vm144, %v143, %v137
    %s149 = scalar_lea.vmem [#allocation3], 2
    %v150 = vld [vmem:[%s149] ss:$8 sm:$0xf]
    %v152 = vlaneseq
    %v153 = vshrl.u32 %v152, 7
    %v154 = vsub.s32 0, %v153
    %v155 = vrot.slane %v150, %v154
    %v156 = vlaneseq
    %v157 = vshrl.u32 %v156, 7
    %v158 = vsub.s32 1, %v157
    %v159 = vrot.slane %v150, %v158
    %v160 = vlaneseq
    %v161 = vshrl.u32 %v160, 7
    %v162 = vsub.s32 2, %v161
    %v163 = vrot.slane %v150, %v162
    %v164 = vlaneseq
    %v165 = vshrl.u32 %v164, 7
    %v166 = vsub.s32 3, %v165
    %v167 = vrot.slane %v150, %v166
    %v172 = vmul.f32 %v148, %v155
    %v173 = vmul.f32 %v147, %v159
    %v174 = vmul.f32 %v146, %v163
    %v175 = vmul.f32 %v145, %v167
    %176 = vst [vmem:[#allocation2 + $0x40] sm:$0xff] %v172
    %177 = vst [vmem:[#allocation2 + $0x48] sm:$0xff] %v173
    %178 = vst [vmem:[#allocation2 + $0x50] sm:$0xff] %v174
    %179 = vst [vmem:[#allocation2 + $0x58] sm:$0xff] %v175
    %180 = vrot.lane.b32.xlu0 %v42, 1
    %v181 = vpop.permute.xlu0 %180
    %182 = vrot.lane.b32.xlu0 %v43, 1
    %v183 = vpop.permute.xlu0 %182
    %184 = vrot.lane.b32.xlu0 %v45, 1
    %v185 = vpop.permute.xlu0 %184
    %186 = vrot.lane.b32.xlu0 %v46, 1
    %v187 = vpop.permute.xlu0 %186
    %vm188 = vcmp.lt.s32.totalorder %v56, 1
    %v189 = vsel %vm188, %v185, %v187
    %v190 = vsel %vm188, %v183, %v185
    %v191 = vsel %vm188, %v181, %v183
    %v192 = vsel %vm188, %v187, %v181
    %s193 = scalar_lea.vmem [#allocation3], 3
    %v194 = vld [vmem:[%s193] ss:$8 sm:$0xf]
    %v196 = vlaneseq
    %v197 = vshrl.u32 %v196, 7
    %v198 = vsub.s32 0, %v197
    %v199 = vrot.slane %v194, %v198
    %v200 = vlaneseq
    %v201 = vshrl.u32 %v200, 7
    %v202 = vsub.s32 1, %v201
    %v203 = vrot.slane %v194, %v202
    %v204 = vlaneseq
    %v205 = vshrl.u32 %v204, 7
    %v206 = vsub.s32 2, %v205
    %v207 = vrot.slane %v194, %v206
    %v208 = vlaneseq
    %v209 = vshrl.u32 %v208, 7
    %v210 = vsub.s32 3, %v209
    %v211 = vrot.slane %v194, %v210
    %v216 = vmul.f32 %v192, %v199
    %v217 = vmul.f32 %v191, %v203
    %v218 = vmul.f32 %v190, %v207
    %v219 = vmul.f32 %v189, %v211
    %220 = vst [vmem:[#allocation2 + $0x60] sm:$0xff] %v216
    %221 = vst [vmem:[#allocation2 + $0x68] sm:$0xff] %v217
    %222 = vst [vmem:[#allocation2 + $0x70] sm:$0xff] %v218
    %223 = vst [vmem:[#allocation2 + $0x78] sm:$0xff] %v219
    %224 = vst [vmem:[#allocation2 + $0x80] sm:$0xff] %v42
    %225 = vst [vmem:[#allocation2 + $0x88] sm:$0xff] %v43
    %226 = vst [vmem:[#allocation2 + $0x90] sm:$0xff] %v45
    %227 = vst [vmem:[#allocation2 + $0x98] sm:$0xff] %v46
    %228 = vrot.lane.b32.xlu0 %v42, 127
    %v229 = vpop.permute.xlu0 %228
    %230 = vrot.lane.b32.xlu0 %v43, 127
    %v231 = vpop.permute.xlu0 %230
    %232 = vrot.lane.b32.xlu0 %v45, 127
    %v233 = vpop.permute.xlu0 %232
    %234 = vrot.lane.b32.xlu0 %v46, 127
    %v235 = vpop.permute.xlu0 %234
    %vm236 = vcmp.lt.s32.totalorder %v56, 127
    %v237 = vsel %vm236, %v233, %v235
    %v238 = vsel %vm236, %v231, %v233
    %v239 = vsel %vm236, %v229, %v231
    %v240 = vsel %vm236, %v235, %v229
    %s241 = scalar_lea.vmem [#allocation3], 5
    %v242 = vld [vmem:[%s241] ss:$8 sm:$0xf]
    %v244 = vlaneseq
    %v245 = vshrl.u32 %v244, 7
    %v246 = vsub.s32 0, %v245
    %v247 = vrot.slane %v242, %v246
    %v248 = vlaneseq
    %v249 = vshrl.u32 %v248, 7
    %v250 = vsub.s32 1, %v249
    %v251 = vrot.slane %v242, %v250
    %v252 = vlaneseq
    %v253 = vshrl.u32 %v252, 7
    %v254 = vsub.s32 2, %v253
    %v255 = vrot.slane %v242, %v254
    %v256 = vlaneseq
    %v257 = vshrl.u32 %v256, 7
    %v258 = vsub.s32 3, %v257
    %v259 = vrot.slane %v242, %v258
    %v264 = vmul.f32 %v239, %v247
    %v265 = vmul.f32 %v238, %v251
    %v266 = vmul.f32 %v237, %v255
    %v267 = vmul.f32 %v240, %v259
    %268 = vst [vmem:[#allocation2 + $0xa0] sm:$0xff] %v264
    %269 = vst [vmem:[#allocation2 + $0xa8] sm:$0xff] %v265
    %270 = vst [vmem:[#allocation2 + $0xb0] sm:$0xff] %v266
    %271 = vst [vmem:[#allocation2 + $0xb8] sm:$0xff] %v267
    %272 = vrot.lane.b32.xlu0 %v42, 113
    %v273 = vpop.permute.xlu0 %272
    %274 = vrot.lane.b32.xlu0 %v43, 113
    %v275 = vpop.permute.xlu0 %274
    %276 = vrot.lane.b32.xlu0 %v45, 113
    %v277 = vpop.permute.xlu0 %276
    %278 = vrot.lane.b32.xlu0 %v46, 113
    %v279 = vpop.permute.xlu0 %278
    %vm280 = vcmp.lt.s32.totalorder %v56, 113
    %v281 = vsel %vm280, %v277, %v279
    %v282 = vsel %vm280, %v275, %v277
    %v283 = vsel %vm280, %v273, %v275
    %v284 = vsel %vm280, %v279, %v273
    %s285 = scalar_lea.vmem [#allocation3], 6
    %v286 = vld [vmem:[%s285] ss:$8 sm:$0xf]
    %v288 = vlaneseq
    %v289 = vshrl.u32 %v288, 7
    %v290 = vsub.s32 0, %v289
    %v291 = vrot.slane %v286, %v290
    %v292 = vlaneseq
    %v293 = vshrl.u32 %v292, 7
    %v294 = vsub.s32 1, %v293
    %v295 = vrot.slane %v286, %v294
    %v296 = vlaneseq
    %v297 = vshrl.u32 %v296, 7
    %v298 = vsub.s32 2, %v297
    %v299 = vrot.slane %v286, %v298
    %v300 = vlaneseq
    %v301 = vshrl.u32 %v300, 7
    %v302 = vsub.s32 3, %v301
    %v303 = vrot.slane %v286, %v302
    %v308 = vmul.f32 %v283, %v291
    %v309 = vmul.f32 %v282, %v295
    %v310 = vmul.f32 %v281, %v299
    %v311 = vmul.f32 %v284, %v303
    %312 = vst [vmem:[#allocation2 + $0xc0] sm:$0xff] %v308
    %313 = vst [vmem:[#allocation2 + $0xc8] sm:$0xff] %v309
    %314 = vst [vmem:[#allocation2 + $0xd0] sm:$0xff] %v310
    %315 = vst [vmem:[#allocation2 + $0xd8] sm:$0xff] %v311
    %316 = vrot.lane.b32.xlu0 %v42, 112
    %v317 = vpop.permute.xlu0 %316
    %318 = vrot.lane.b32.xlu0 %v43, 112
    %v319 = vpop.permute.xlu0 %318
    %320 = vrot.lane.b32.xlu0 %v45, 112
    %v321 = vpop.permute.xlu0 %320
    %322 = vrot.lane.b32.xlu0 %v46, 112
    %v323 = vpop.permute.xlu0 %322
    %vm324 = vcmp.lt.s32.totalorder %v56, 112
    %v325 = vsel %vm324, %v321, %v323
    %v326 = vsel %vm324, %v319, %v321
    %v327 = vsel %vm324, %v317, %v319
    %v328 = vsel %vm324, %v323, %v317
    %s329 = scalar_lea.vmem [#allocation3], 7
    %v330 = vld [vmem:[%s329] ss:$8 sm:$0xf]
    %v332 = vlaneseq
    %v333 = vshrl.u32 %v332, 7
    %v334 = vsub.s32 0, %v333
    %v335 = vrot.slane %v330, %v334
    %v336 = vlaneseq
    %v337 = vshrl.u32 %v336, 7
    %v338 = vsub.s32 1, %v337
    %v339 = vrot.slane %v330, %v338
    %v340 = vlaneseq
    %v341 = vshrl.u32 %v340, 7
    %v342 = vsub.s32 2, %v341
    %v343 = vrot.slane %v330, %v342
    %v344 = vlaneseq
    %v345 = vshrl.u32 %v344, 7
    %v346 = vsub.s32 3, %v345
    %v347 = vrot.slane %v330, %v346
    %v352 = vmul.f32 %v327, %v335
    %v353 = vmul.f32 %v326, %v339
    %v354 = vmul.f32 %v325, %v343
    %v355 = vmul.f32 %v328, %v347
    %356 = vst [vmem:[#allocation2 + $0xe0] sm:$0xff] %v352
    %357 = vst [vmem:[#allocation2 + $0xe8] sm:$0xff] %v353
    %358 = vst [vmem:[#allocation2 + $0xf0] sm:$0xff] %v354
    %359 = vst [vmem:[#allocation2 + $0xf8] sm:$0xff] %v355
    %360 = vrot.lane.b32.xlu0 %v42, 111
    %v361 = vpop.permute.xlu0 %360
    %362 = vrot.lane.b32.xlu0 %v43, 111
    %v363 = vpop.permute.xlu0 %362
    %364 = vrot.lane.b32.xlu0 %v45, 111
    %v365 = vpop.permute.xlu0 %364
    %366 = vrot.lane.b32.xlu0 %v46, 111
    %v367 = vpop.permute.xlu0 %366
    %vm368 = vcmp.lt.s32.totalorder %v56, 111
    %v369 = vsel %vm368, %v365, %v367
    %v370 = vsel %vm368, %v363, %v365
    %v371 = vsel %vm368, %v361, %v363
    %v372 = vsel %vm368, %v367, %v361
    %s373 = scalar_lea.vmem [#allocation3], 32
    %v374 = vld [vmem:[%s373] ss:$8 sm:$0xf]
    %v376 = vlaneseq
    %v377 = vshrl.u32 %v376, 7
    %v378 = vsub.s32 0, %v377
    %v379 = vrot.slane %v374, %v378
    %v380 = vlaneseq
    %v381 = vshrl.u32 %v380, 7
    %v382 = vsub.s32 1, %v381
    %v383 = vrot.slane %v374, %v382
    %v384 = vlaneseq
    %v385 = vshrl.u32 %v384, 7
    %v386 = vsub.s32 2, %v385
    %v387 = vrot.slane %v374, %v386
    %v388 = vlaneseq
    %v389 = vshrl.u32 %v388, 7
    %v390 = vsub.s32 3, %v389
    %v391 = vrot.slane %v374, %v390
    %v396 = vmul.f32 %v371, %v379
    %v397 = vmul.f32 %v370, %v383
    %v398 = vmul.f32 %v369, %v387
    %v399 = vmul.f32 %v372, %v391
    %400 = vst [vmem:[#allocation2 + $0x100] sm:$0xff] %v396
    %401 = vst [vmem:[#allocation2 + $0x108] sm:$0xff] %v397
    %402 = vst [vmem:[#allocation2 + $0x110] sm:$0xff] %v398
    %403 = vst [vmem:[#allocation2 + $0x118] sm:$0xff] %v399
    %v404 = vld [vmem:[#allocation5] sm:$0xff]
    %v405 = vld [vmem:[#allocation5 + $0x10] sm:$0xff]
    %s406 = scalar_lea.vmem [#allocation5], 2048
    %v407 = vld [vmem:[%s406] sm:$0xff]
    %v408 = vld [vmem:[%s406 + $0x10] sm:$0xff]
    %v409 = vld [vmem:[#allocation5 + $0x20] sm:$0xff]
    %v410 = vld [vmem:[#allocation5 + $0x30] sm:$0xff]
    %v411 = vld [vmem:[%s406 + $0x20] sm:$0xff]
    %v412 = vld [vmem:[%s406 + $0x30] sm:$0xff]
    %v413 = vld [vmem:[#allocation2] sm:$0xff]
    %v414 = vld [vmem:[#allocation2 + $0x8] sm:$0xff]
    %v415 = vld [vmem:[#allocation2 + $0x10] sm:$0xff]
    %v416 = vld [vmem:[#allocation2 + $0x18] sm:$0xff]
    %v417 = vld [vmem:[#allocation2 + $0x20] sm:$0xff]
    %v418 = vld [vmem:[#allocation2 + $0x28] sm:$0xff]
    %v419 = vld [vmem:[#allocation2 + $0x30] sm:$0xff]
    %v420 = vld [vmem:[#allocation2 + $0x38] sm:$0xff]
    %v421 = vld [vmem:[#allocation2 + $0x40] sm:$0xff]
    %v422 = vld [vmem:[#allocation2 + $0x48] sm:$0xff]
    %v423 = vld [vmem:[#allocation2 + $0x50] sm:$0xff]
    %v424 = vld [vmem:[#allocation2 + $0x58] sm:$0xff]
    %v425 = vld [vmem:[#allocation2 + $0x60] sm:$0xff]
    %v426 = vld [vmem:[#allocation2 + $0x68] sm:$0xff]
    %v427 = vld [vmem:[#allocation2 + $0x70] sm:$0xff]
    %v428 = vld [vmem:[#allocation2 + $0x78] sm:$0xff]
    %v429 = vld [vmem:[#allocation2 + $0x80] sm:$0xff]
    %v430 = vld [vmem:[#allocation2 + $0x88] sm:$0xff]
    %v431 = vld [vmem:[#allocation2 + $0x90] sm:$0xff]
    %v432 = vld [vmem:[#allocation2 + $0x98] sm:$0xff]
    %v433 = vld [vmem:[#allocation2 + $0xa0] sm:$0xff]
    %v434 = vld [vmem:[#allocation2 + $0xa8] sm:$0xff]
    %v435 = vld [vmem:[#allocation2 + $0xb0] sm:$0xff]
    %v436 = vld [vmem:[#allocation2 + $0xb8] sm:$0xff]
    %v437 = vld [vmem:[#allocation2 + $0xc0] sm:$0xff]
    %v438 = vld [vmem:[#allocation2 + $0xc8] sm:$0xff]
    %v439 = vld [vmem:[#allocation2 + $0xd0] sm:$0xff]
    %v440 = vld [vmem:[#allocation2 + $0xd8] sm:$0xff]
    %v441 = vld [vmem:[#allocation2 + $0xe0] sm:$0xff]
    %v442 = vld [vmem:[#allocation2 + $0xe8] sm:$0xff]
    %v443 = vld [vmem:[#allocation2 + $0xf0] sm:$0xff]
    %v444 = vld [vmem:[#allocation2 + $0xf8] sm:$0xff]
    %v445 = vld [vmem:[#allocation2 + $0x100] sm:$0xff]
    %v446 = vld [vmem:[#allocation2 + $0x108] sm:$0xff]
    %v447 = vld [vmem:[#allocation2 + $0x110] sm:$0xff]
    %v448 = vld [vmem:[#allocation2 + $0x118] sm:$0xff]
    %450 = vset.pattern.permute.xlu0 0
    %451 = vperm.xlu0 %450, %v409
    %v452 = vpop.permute.xlu0 %451
    %455 = vset.pattern.permute.xlu0 0
    %456 = vperm.xlu0 %455, %v410
    %v457 = vpop.permute.xlu0 %456
    %460 = vset.pattern.permute.xlu0 0
    %461 = vperm.xlu0 %460, %v411
    %v462 = vpop.permute.xlu0 %461
    %465 = vset.pattern.permute.xlu0 0
    %466 = vperm.xlu0 %465, %v412
    %v467 = vpop.permute.xlu0 %466
    %vm469 = vcmask 588800
    %v471 = vsel %vm469, %v404, 0
    %v474 = vsel %vm469, %v405, 0
    %v477 = vsel %vm469, %v407, 0
    %v480 = vsel %vm469, %v408, 0
    %482 = vmatprep.subr.mxu0 %v414
    %483 = vmatpush1.msra.mxu0 %v413
    %484 = vmatprep.subr.mxu0 %v418
    %485 = vmatpush1.msra.mxu0 %v417
    %486 = vmatprep.subr.mxu0 %v422
    %487 = vmatpush1.msra.mxu0 %v421
    %488 = vmatprep.subr.mxu0 %v426
    %489 = vmatpush1.msra.mxu0 %v425
    %490 = vmatprep.subr.mxu0 %v430
    %491 = vmatpush1.msra.mxu0 %v429
    %492 = vmatprep.subr.mxu0 %v434
    %493 = vmatpush1.msra.mxu0 %v433
    %494 = vmatprep.subr.mxu0 %v438
    %495 = vmatpush1.msra.mxu0 %v437
    %496 = vmatprep.subr.mxu0 %v442
    %497 = vmatpush1.msra.mxu0 %v441
    %498 = vmatprep.subr.mxu0 %v446
    %499 = vmatpush1.msra.mxu0 %v445
    %500 = vmatprep.subr.mxu0 0.0
    %501 = vmatpush1.msra.mxu0 0.0
    %502 = vmatprep.subr.mxu0 0.0
    %503 = vmatpush1.msra.mxu0 0.0
    %504 = vmatprep.subr.mxu0 0.0
    %505 = vmatpush1.msra.mxu0 0.0
    %506 = vmatprep.subr.mxu0 0.0
    %507 = vmatpush1.msra.mxu0 0.0
    %508 = vmatprep.subr.mxu0 0.0
    %509 = vmatpush1.msra.mxu0 0.0
    %510 = vmatprep.subr.mxu0 0.0
    %511 = vmatpush1.msra.mxu0 0.0
    %512 = vmatprep.subr.mxu0 0.0
    %513 = vmatpush1.msra.mxu0 0.0
    %514 = vmatprep.subr.mxu0 0.0
    %515 = vmatpush1.msra.mxu0 0.0
    %516 = vmatprep.subr.mxu0 0.0
    %517 = vmatpush1.msra.mxu0 0.0
    %518 = vmatprep.subr.mxu0 0.0
    %519 = vmatpush1.msra.mxu0 0.0
    %520 = vmatprep.subr.mxu0 0.0
    %521 = vmatpush1.msra.mxu0 0.0
    %522 = vmatprep.subr.mxu0 0.0
    %523 = vmatpush1.msra.mxu0 0.0
    %524 = vmatprep.subr.mxu0 0.0
    %525 = vmatpush1.msra.mxu0 0.0
    %526 = vmatprep.subr.mxu0 0.0
    %527 = vmatpush1.msra.mxu0 0.0
    %528 = vmatprep.subr.mxu0 0.0
    %529 = vmatpush1.msra.mxu0 0.0
    %530 = vmatprep.subr.mxu0 0.0
    %531 = vmatpush1.msra.mxu0 0.0
    %532 = vmatprep.subr.mxu0 0.0
    %533 = vmatpush1.msra.mxu0 0.0
    %534 = vmatprep.subr.mxu0 0.0
    %535 = vmatpush1.msra.mxu0 0.0
    %536 = vmatprep.subr.mxu0 0.0
    %537 = vmatpush1.msra.mxu0 0.0
    %538 = vmatprep.subr.mxu0 0.0
    %539 = vmatpush1.msra.mxu0 0.0
    %540 = vmatprep.subr.mxu0 0.0
    %541 = vmatpush1.msra.mxu0 0.0
    %542 = vmatprep.subr.mxu0 0.0
    %543 = vmatpush1.msra.mxu0 0.0
    %544 = vmatprep.subr.mxu0 0.0
    %545 = vmatpush1.msra.mxu0 0.0
    %546 = vmatprep.mubr.f32.mxu0 0.0
    %547 = vmatmul.mubr.f32.gmra.mrb[0].mxu0 %v471
    %v548 = vpop.f32.mrb[0].mxu0
    %v549 = vadd.f32 %v452, %v548
    %v550 = vpop.f32.mrb[0].mxu0
    %v551 = vadd.f32 %v452, %v550
    %552 = vmatprep.mubr.f32.mxu0 0.0
    %553 = vmatmul.mubr.f32.gmra.mrb[0].mxu0 %v474
    %v554 = vpop.f32.mrb[0].mxu0
    %v555 = vadd.f32 %v457, %v554
    %v556 = vpop.f32.mrb[0].mxu0
    %v557 = vadd.f32 %v457, %v556
    %558 = vmatprep.mubr.f32.mxu0 0.0
    %559 = vmatmul.mubr.f32.gmra.mrb[0].mxu0 %v477
    %v560 = vpop.f32.mrb[0].mxu0
    %v561 = vadd.f32 %v462, %v560
    %v562 = vpop.f32.mrb[0].mxu0
    %v563 = vadd.f32 %v462, %v562
    %564 = vmatprep.mubr.f32.mxu0 0.0
    %565 = vmatmul.mubr.f32.gmra.mrb[0].mxu0 %v480
    %v566 = vpop.f32.mrb[0].mxu0
    %v567 = vadd.f32 %v467, %v566
    %v568 = vpop.f32.mrb[0].mxu0
    %v569 = vadd.f32 %v467, %v568
    %570 = vdwg.mxu0
    %571 = vmatprep.subr.mxu0 %v416
    %572 = vmatpush1.msra.mxu0 %v415
    %573 = vmatprep.subr.mxu0 %v420
    %574 = vmatpush1.msra.mxu0 %v419
    %575 = vmatprep.subr.mxu0 %v424
    %576 = vmatpush1.msra.mxu0 %v423
    %577 = vmatprep.subr.mxu0 %v428
    %578 = vmatpush1.msra.mxu0 %v427
    %579 = vmatprep.subr.mxu0 %v432
    %580 = vmatpush1.msra.mxu0 %v431
    %581 = vmatprep.subr.mxu0 %v436
    %582 = vmatpush1.msra.mxu0 %v435
    %583 = vmatprep.subr.mxu0 %v440
    %584 = vmatpush1.msra.mxu0 %v439
    %585 = vmatprep.subr.mxu0 %v444
    %586 = vmatpush1.msra.mxu0 %v443
    %587 = vmatprep.subr.mxu0 %v448
    %588 = vmatpush1.msra.mxu0 %v447
    %589 = vmatprep.subr.mxu0 0.0
    %590 = vmatpush1.msra.mxu0 0.0
    %591 = vmatprep.subr.mxu0 0.0
    %592 = vmatpush1.msra.mxu0 0.0
    %593 = vmatprep.subr.mxu0 0.0
    %594 = vmatpush1.msra.mxu0 0.0
    %595 = vmatprep.subr.mxu0 0.0
    %596 = vmatpush1.msra.mxu0 0.0
    %597 = vmatprep.subr.mxu0 0.0
    %598 = vmatpush1.msra.mxu0 0.0
    %599 = vmatprep.subr.mxu0 0.0
    %600 = vmatpush1.msra.mxu0 0.0
    %601 = vmatprep.subr.mxu0 0.0
    %602 = vmatpush1.msra.mxu0 0.0
    %603 = vmatprep.subr.mxu0 0.0
    %604 = vmatpush1.msra.mxu0 0.0
    %605 = vmatprep.subr.mxu0 0.0
    %606 = vmatpush1.msra.mxu0 0.0
    %607 = vmatprep.subr.mxu0 0.0
    %608 = vmatpush1.msra.mxu0 0.0
    %609 = vmatprep.subr.mxu0 0.0
    %610 = vmatpush1.msra.mxu0 0.0
    %611 = vmatprep.subr.mxu0 0.0
    %612 = vmatpush1.msra.mxu0 0.0
    %613 = vmatprep.subr.mxu0 0.0
    %614 = vmatpush1.msra.mxu0 0.0
    %615 = vmatprep.subr.mxu0 0.0
    %616 = vmatpush1.msra.mxu0 0.0
    %617 = vmatprep.subr.mxu0 0.0
    %618 = vmatpush1.msra.mxu0 0.0
    %619 = vmatprep.subr.mxu0 0.0
    %620 = vmatpush1.msra.mxu0 0.0
    %621 = vmatprep.subr.mxu0 0.0
    %622 = vmatpush1.msra.mxu0 0.0
    %623 = vmatprep.subr.mxu0 0.0
    %624 = vmatpush1.msra.mxu0 0.0
    %625 = vmatprep.subr.mxu0 0.0
    %626 = vmatpush1.msra.mxu0 0.0
    %627 = vmatprep.subr.mxu0 0.0
    %628 = vmatpush1.msra.mxu0 0.0
    %629 = vmatprep.subr.mxu0 0.0
    %630 = vmatpush1.msra.mxu0 0.0
    %631 = vmatprep.subr.mxu0 0.0
    %632 = vmatpush1.msra.mxu0 0.0
    %633 = vmatprep.subr.mxu0 0.0
    %634 = vmatpush1.msra.mxu0 0.0
    %635 = vmatprep.mubr.f32.mxu0 0.0
    %636 = vmatmul.mubr.f32.gmra.mrb[0].mxu0 %v471
    %v637 = vpop.f32.mrb[0].mxu0
    %v638 = vadd.f32 %v452, %v637
    %v639 = vpop.f32.mrb[0].mxu0
    %v640 = vadd.f32 %v452, %v639
    %641 = vmatprep.mubr.f32.mxu0 0.0
    %642 = vmatmul.mubr.f32.gmra.mrb[0].mxu0 %v474
    %v643 = vpop.f32.mrb[0].mxu0
    %v644 = vadd.f32 %v457, %v643
    %v645 = vpop.f32.mrb[0].mxu0
    %v646 = vadd.f32 %v457, %v645
    %647 = vmatprep.mubr.f32.mxu0 0.0
    %648 = vmatmul.mubr.f32.gmra.mrb[0].mxu0 %v477
    %v649 = vpop.f32.mrb[0].mxu0
    %v650 = vadd.f32 %v462, %v649
    %v651 = vpop.f32.mrb[0].mxu0
    %v652 = vadd.f32 %v462, %v651
    %653 = vmatprep.mubr.f32.mxu0 0.0
    %654 = vmatmul.mubr.f32.gmra.mrb[0].mxu0 %v480
    %v655 = vpop.f32.mrb[0].mxu0
    %v656 = vadd.f32 %v467, %v655
    %v657 = vpop.f32.mrb[0].mxu0
    %v658 = vadd.f32 %v467, %v657
    %659 = vdwg.mxu0
    %v660 = vmax.f32 %v549, 0.0
    %v661 = vmax.f32 %v551, 0.0
    %v662 = vmax.f32 %v638, 0.0
    %v663 = vmax.f32 %v640, 0.0
    %v664 = vmax.f32 %v555, 0.0
    %v665 = vmax.f32 %v557, 0.0
    %v666 = vmax.f32 %v644, 0.0
    %v667 = vmax.f32 %v646, 0.0
    %v668 = vmax.f32 %v561, 0.0
    %v669 = vmax.f32 %v563, 0.0
    %v670 = vmax.f32 %v650, 0.0
    %v671 = vmax.f32 %v652, 0.0
    %v672 = vmax.f32 %v567, 0.0
    %v673 = vmax.f32 %v569, 0.0
    %v674 = vmax.f32 %v656, 0.0
    %v675 = vmax.f32 %v658, 0.0
    %s676 = scalar_lea.vmem [#allocation5], 64
    %v677 = vld [vmem:[%s676] ss:$8 sm:$0x3]
    %s678 = scalar_lea.vmem [#allocation5], 80
    %v679 = vld [vmem:[%s678] ss:$8 sm:$0x3]
    %v680 = vld [vmem:[#allocation5 + $0x60] sm:$0xff]
    %v681 = vld [vmem:[#allocation5 + $0x68] sm:$0xff]
    %v682 = vld [vmem:[#allocation5 + $0x70] sm:$0xff]
    %v683 = vld [vmem:[#allocation5 + $0x78] sm:$0xff]
    %v684 = vld [vmem:[#allocation5 + $0x80] sm:$0xff]
    %v685 = vld [vmem:[#allocation5 + $0x90] sm:$0xff]
    %v686 = vld [vmem:[#allocation5 + $0xa0] sm:$0xff]
    %v687 = vld [vmem:[#allocation5 + $0xa8] sm:$0xff]
    %v688 = vld [vmem:[#allocation5 + $0xb0] sm:$0xff]
    %v689 = vld [vmem:[#allocation5 + $0xb8] sm:$0xff]
    %v690 = vld [vmem:[#allocation5 + $0xc0] sm:$0xff]
    %v691 = vld [vmem:[#allocation5 + $0xd0] sm:$0xff]
    %v692 = vadd.f32 %v660, %v661
    %693 = vadd.xlane.f32.xlu0 %v692
    %v694 = vpop.xlane.xlu0 %693
    %v695 = vadd.f32 %v664, %v665
    %696 = vadd.xlane.f32.xlu0 %v695
    %v697 = vpop.xlane.xlu0 %696
    %v698 = vrcp.pop 256.0
    %v699 = vmul.f32 %v694, %v698
    %v700 = vmul.f32 %v697, %v698
    %v701 = vsub.f32 %v660, %v699
    %v702 = vsub.f32 %v661, %v699
    %v703 = vsub.f32 %v664, %v700
    %v704 = vsub.f32 %v665, %v700
    %v705 = vmul.f32 %v701, %v701
    %v706 = vmul.f32 %v702, %v702
    %v707 = vmul.f32 %v703, %v703
    %v708 = vmul.f32 %v704, %v704
    %v709 = vadd.f32 %v705, %v706
    %710 = vadd.xlane.f32.xlu0 %v709
    %v711 = vpop.xlane.xlu0 %710
    %v712 = vadd.f32 %v707, %v708
    %713 = vadd.xlane.f32.xlu0 %v712
    %v714 = vpop.xlane.xlu0 %713
    %v715 = vmul.f32 %v711, %v698
    %v716 = vmul.f32 %v714, %v698
    %v717 = vadd.f32 %v715, 1e-05
    %v718 = vadd.f32 %v716, 1e-05
    %v719 = vrsqrt.pop %v717
    %v720 = vrsqrt.pop %v718
    %v721 = vmul.f32 %v701, %v719
    %v722 = vmul.f32 %v702, %v719
    %v723 = vmul.f32 %v703, %v720
    %v724 = vmul.f32 %v704, %v720
    %v726 = vlaneseq
    %v727 = vshrl.u32 %v726, 7
    %v728 = vsub.s32 0, %v727
    %v729 = vrot.slane %v677, %v728
    %v730 = vlaneseq
    %v731 = vshrl.u32 %v730, 7
    %v732 = vsub.s32 1, %v731
    %v733 = vrot.slane %v677, %v732
    %v736 = vmul.f32 %v721, %v729
    %v737 = vmul.f32 %v722, %v733
    %v738 = vmul.f32 %v723, %v729
    %v739 = vmul.f32 %v724, %v733
    %v741 = vlaneseq
    %v742 = vshrl.u32 %v741, 7
    %v743 = vsub.s32 0, %v742
    %v744 = vrot.slane %v679, %v743
    %v745 = vlaneseq
    %v746 = vshrl.u32 %v745, 7
    %v747 = vsub.s32 1, %v746
    %v748 = vrot.slane %v679, %v747
    %v751 = vadd.f32 %v736, %v744
    %v752 = vadd.f32 %v737, %v748
    %v753 = vadd.f32 %v738, %v744
    %v754 = vadd.f32 %v739, %v748
    %v755 = vadd.f32 %v662, %v663
    %756 = vadd.xlane.f32.xlu0 %v755
    %v757 = vpop.xlane.xlu0 %756
    %v758 = vadd.f32 %v666, %v667
    %759 = vadd.xlane.f32.xlu0 %v758
    %v760 = vpop.xlane.xlu0 %759
    %v761 = vmul.f32 %v757, %v698
    %v762 = vmul.f32 %v760, %v698
    %v763 = vsub.f32 %v662, %v761
    %v764 = vsub.f32 %v663, %v761
    %v765 = vsub.f32 %v666, %v762
    %v766 = vsub.f32 %v667, %v762
    %v767 = vmul.f32 %v763, %v763
    %v768 = vmul.f32 %v764, %v764
    %v769 = vmul.f32 %v765, %v765
    %v770 = vmul.f32 %v766, %v766
    %v771 = vadd.f32 %v767, %v768
    %772 = vadd.xlane.f32.xlu0 %v771
    %v773 = vpop.xlane.xlu0 %772
    %v774 = vadd.f32 %v769, %v770
    %775 = vadd.xlane.f32.xlu0 %v774
    %v776 = vpop.xlane.xlu0 %775
    %v777 = vmul.f32 %v773, %v698
    %v778 = vmul.f32 %v776, %v698
    %v779 = vadd.f32 %v777, 1e-05
    %v780 = vadd.f32 %v778, 1e-05
    %v781 = vrsqrt.pop %v779
    %v782 = vrsqrt.pop %v780
    %v783 = vmul.f32 %v763, %v781
    %v784 = vmul.f32 %v764, %v781
    %v785 = vmul.f32 %v765, %v782
    %v786 = vmul.f32 %v766, %v782
    %v787 = vmul.f32 %v783, %v729
    %v788 = vmul.f32 %v784, %v733
    %v789 = vmul.f32 %v785, %v729
    %v790 = vmul.f32 %v786, %v733
    %v791 = vadd.f32 %v787, %v744
    %v792 = vadd.f32 %v788, %v748
    %v793 = vadd.f32 %v789, %v744
    %v794 = vadd.f32 %v790, %v748
    %795 = vrot.lane.b32.xlu0 %v751, 17
    %v796 = vpop.permute.xlu0 %795
    %797 = vrot.lane.b32.xlu0 %v753, 17
    %v798 = vpop.permute.xlu0 %797
    %799 = vrot.lane.b32.xlu0 %v752, 17
    %v800 = vpop.permute.xlu0 %799
    %801 = vrot.lane.b32.xlu0 %v754, 17
    %v802 = vpop.permute.xlu0 %801
    %803 = vrot.lane.b32.xlu0 %v791, 17
    %v804 = vpop.permute.xlu0 %803
    %805 = vrot.lane.b32.xlu0 %v793, 17
    %v806 = vpop.permute.xlu0 %805
    %807 = vrot.lane.b32.xlu0 %v792, 17
    %v808 = vpop.permute.xlu0 %807
    %809 = vrot.lane.b32.xlu0 %v794, 17
    %v810 = vpop.permute.xlu0 %809
    %v811 = vsel %vm57, %v804, %v808
    %v812 = vsel %vm57, %v806, %v810
    %v813 = vsel %vm57, %v800, %v804
    %v814 = vsel %vm57, %v802, %v806
    %v815 = vsel %vm57, %v796, %v800
    %v816 = vsel %vm57, %v798, %v802
    %v817 = vsel %vm57, %v808, %v796
    %v818 = vsel %vm57, %v810, %v798
    %v819 = vld [vmem:[#allocation3] ss:$8 sm:$0xf]
    %v821 = vlaneseq
    %v822 = vshrl.u32 %v821, 7
    %v823 = vsub.s32 0, %v822
    %v824 = vrot.slane %v819, %v823
    %v825 = vlaneseq
    %v826 = vshrl.u32 %v825, 7
    %v827 = vsub.s32 1, %v826
    %v828 = vrot.slane %v819, %v827
    %v829 = vlaneseq
    %v830 = vshrl.u32 %v829, 7
    %v831 = vsub.s32 2, %v830
    %v832 = vrot.slane %v819, %v831
    %v833 = vlaneseq
    %v834 = vshrl.u32 %v833, 7
    %v835 = vsub.s32 3, %v834
    %v836 = vrot.slane %v819, %v835
    %v841 = vmul.f32 %v817, %v824
    %v842 = vmul.f32 %v815, %v828
    %v843 = vmul.f32 %v813, %v832
    %v844 = vmul.f32 %v811, %v836
    %v845 = vmul.f32 %v818, %v824
    %v846 = vmul.f32 %v816, %v828
    %v847 = vmul.f32 %v814, %v832
    %v848 = vmul.f32 %v812, %v836
    %849 = vst [vmem:[#allocation2] sm:$0xff] %v841
    %850 = vst [vmem:[#allocation2 + $0x8] sm:$0xff] %v842
    %851 = vst [vmem:[#allocation2 + $0x10] sm:$0xff] %v843
    %852 = vst [vmem:[#allocation2 + $0x18] sm:$0xff] %v844
    %853 = vst [vmem:[#allocation2 + $0x20] sm:$0xff] %v845
    %854 = vst [vmem:[#allocation2 + $0x28] sm:$0xff] %v846
    %855 = vst [vmem:[#allocation2 + $0x30] sm:$0xff] %v847
    %856 = vst [vmem:[#allocation2 + $0x38] sm:$0xff] %v848
    %857 = vrot.lane.b32.xlu0 %v751, 16
    %v858 = vpop.permute.xlu0 %857
    %859 = vrot.lane.b32.xlu0 %v753, 16
    %v860 = vpop.permute.xlu0 %859
    %861 = vrot.lane.b32.xlu0 %v752, 16
    %v862 = vpop.permute.xlu0 %861
    %863 = vrot.lane.b32.xlu0 %v754, 16
    %v864 = vpop.permute.xlu0 %863
    %865 = vrot.lane.b32.xlu0 %v791, 16
    %v866 = vpop.permute.xlu0 %865
    %867 = vrot.lane.b32.xlu0 %v793, 16
    %v868 = vpop.permute.xlu0 %867
    %869 = vrot.lane.b32.xlu0 %v792, 16
    %v870 = vpop.permute.xlu0 %869
    %871 = vrot.lane.b32.xlu0 %v794, 16
    %v872 = vpop.permute.xlu0 %871
    %v873 = vsel %vm100, %v866, %v870
    %v874 = vsel %vm100, %v868, %v872
    %v875 = vsel %vm100, %v862, %v866
    %v876 = vsel %vm100, %v864, %v868
    %v877 = vsel %vm100, %v858, %v862
    %v878 = vsel %vm100, %v860, %v864
    %v879 = vsel %vm100, %v870, %v858
    %v880 = vsel %vm100, %v872, %v860
    %v881 = vld [vmem:[%s105] ss:$8 sm:$0xf]
    %v883 = vlaneseq
    %v884 = vshrl.u32 %v883, 7
    %v885 = vsub.s32 0, %v884
    %v886 = vrot.slane %v881, %v885
    %v887 = vlaneseq
    %v888 = vshrl.u32 %v887, 7
    %v889 = vsub.s32 1, %v888
    %v890 = vrot.slane %v881, %v889
    %v891 = vlaneseq
    %v892 = vshrl.u32 %v891, 7
    %v893 = vsub.s32 2, %v892
    %v894 = vrot.slane %v881, %v893
    %v895 = vlaneseq
    %v896 = vshrl.u32 %v895, 7
    %v897 = vsub.s32 3, %v896
    %v898 = vrot.slane %v881, %v897
    %v903 = vmul.f32 %v879, %v886
    %v904 = vmul.f32 %v877, %v890
    %v905 = vmul.f32 %v875, %v894
    %v906 = vmul.f32 %v873, %v898
    %v907 = vmul.f32 %v880, %v886
    %v908 = vmul.f32 %v878, %v890
    %v909 = vmul.f32 %v876, %v894
    %v910 = vmul.f32 %v874, %v898
    %911 = vst [vmem:[#allocation2 + $0x40] sm:$0xff] %v903
    %912 = vst [vmem:[#allocation2 + $0x48] sm:$0xff] %v904
    %913 = vst [vmem:[#allocation2 + $0x50] sm:$0xff] %v905
    %914 = vst [vmem:[#allocation2 + $0x58] sm:$0xff] %v906
    %915 = vst [vmem:[#allocation2 + $0x60] sm:$0xff] %v907
    %916 = vst [vmem:[#allocation2 + $0x68] sm:$0xff] %v908
    %917 = vst [vmem:[#allocation2 + $0x70] sm:$0xff] %v909
    %918 = vst [vmem:[#allocation2 + $0x78] sm:$0xff] %v910
    %919 = vrot.lane.b32.xlu0 %v751, 15
    %v920 = vpop.permute.xlu0 %919
    %921 = vrot.lane.b32.xlu0 %v753, 15
    %v922 = vpop.permute.xlu0 %921
    %923 = vrot.lane.b32.xlu0 %v752, 15
    %v924 = vpop.permute.xlu0 %923
    %925 = vrot.lane.b32.xlu0 %v754, 15
    %v926 = vpop.permute.xlu0 %925
    %927 = vrot.lane.b32.xlu0 %v791, 15
    %v928 = vpop.permute.xlu0 %927
    %929 = vrot.lane.b32.xlu0 %v793, 15
    %v930 = vpop.permute.xlu0 %929
    %931 = vrot.lane.b32.xlu0 %v792, 15
    %v932 = vpop.permute.xlu0 %931
    %933 = vrot.lane.b32.xlu0 %v794, 15
    %v934 = vpop.permute.xlu0 %933
    %v935 = vsel %vm144, %v928, %v932
    %v936 = vsel %vm144, %v930, %v934
    %v937 = vsel %vm144, %v924, %v928
    %v938 = vsel %vm144, %v926, %v930
    %v939 = vsel %vm144, %v920, %v924
    %v940 = vsel %vm144, %v922, %v926
    %v941 = vsel %vm144, %v932, %v920
    %v942 = vsel %vm144, %v934, %v922
    %v943 = vld [vmem:[%s149] ss:$8 sm:$0xf]
    %v945 = vlaneseq
    %v946 = vshrl.u32 %v945, 7
    %v947 = vsub.s32 0, %v946
    %v948 = vrot.slane %v943, %v947
    %v949 = vlaneseq
    %v950 = vshrl.u32 %v949, 7
    %v951 = vsub.s32 1, %v950
    %v952 = vrot.slane %v943, %v951
    %v953 = vlaneseq
    %v954 = vshrl.u32 %v953, 7
    %v955 = vsub.s32 2, %v954
    %v956 = vrot.slane %v943, %v955
    %v957 = vlaneseq
    %v958 = vshrl.u32 %v957, 7
    %v959 = vsub.s32 3, %v958
    %v960 = vrot.slane %v943, %v959
    %v965 = vmul.f32 %v941, %v948
    %v966 = vmul.f32 %v939, %v952
    %v967 = vmul.f32 %v937, %v956
    %v968 = vmul.f32 %v935, %v960
    %v969 = vmul.f32 %v942, %v948
    %v970 = vmul.f32 %v940, %v952
    %v971 = vmul.f32 %v938, %v956
    %v972 = vmul.f32 %v936, %v960
    %973 = vst [vmem:[#allocation2 + $0x80] sm:$0xff] %v965
    %974 = vst [vmem:[#allocation2 + $0x88] sm:$0xff] %v966
    %975 = vst [vmem:[#allocation2 + $0x90] sm:$0xff] %v967
    %976 = vst [vmem:[#allocation2 + $0x98] sm:$0xff] %v968
    %977 = vst [vmem:[#allocation2 + $0xa0] sm:$0xff] %v969
    %978 = vst [vmem:[#allocation2 + $0xa8] sm:$0xff] %v970
    %979 = vst [vmem:[#allocation2 + $0xb0] sm:$0xff] %v971
    %980 = vst [vmem:[#allocation2 + $0xb8] sm:$0xff] %v972
    %981 = vrot.lane.b32.xlu0 %v751, 1
    %v982 = vpop.permute.xlu0 %981
    %983 = vrot.lane.b32.xlu0 %v753, 1
    %v984 = vpop.permute.xlu0 %983
    %985 = vrot.lane.b32.xlu0 %v752, 1
    %v986 = vpop.permute.xlu0 %985
    %987 = vrot.lane.b32.xlu0 %v754, 1
    %v988 = vpop.permute.xlu0 %987
    %989 = vrot.lane.b32.xlu0 %v791, 1
    %v990 = vpop.permute.xlu0 %989
    %991 = vrot.lane.b32.xlu0 %v793, 1
    %v992 = vpop.permute.xlu0 %991
    %993 = vrot.lane.b32.xlu0 %v792, 1
    %v994 = vpop.permute.xlu0 %993
    %995 = vrot.lane.b32.xlu0 %v794, 1
    %v996 = vpop.permute.xlu0 %995
    %v997 = vsel %vm188, %v990, %v994
    %v998 = vsel %vm188, %v992, %v996
    %v999 = vsel %vm188, %v986, %v990
    %v1000 = vsel %vm188, %v988, %v992
    %v1001 = vsel %vm188, %v982, %v986
    %v1002 = vsel %vm188, %v984, %v988
    %v1003 = vsel %vm188, %v994, %v982
    %v1004 = vsel %vm188, %v996, %v984
    %v1005 = vld [vmem:[%s193] ss:$8 sm:$0xf]
    %v1007 = vlaneseq
    %v1008 = vshrl.u32 %v1007, 7
    %v1009 = vsub.s32 0, %v1008
    %v1010 = vrot.slane %v1005, %v1009
    %v1011 = vlaneseq
    %v1012 = vshrl.u32 %v1011, 7
    %v1013 = vsub.s32 1, %v1012
    %v1014 = vrot.slane %v1005, %v1013
    %v1015 = vlaneseq
    %v1016 = vshrl.u32 %v1015, 7
    %v1017 = vsub.s32 2, %v1016
    %v1018 = vrot.slane %v1005, %v1017
    %v1019 = vlaneseq
    %v1020 = vshrl.u32 %v1019, 7
    %v1021 = vsub.s32 3, %v1020
    %v1022 = vrot.slane %v1005, %v1021
    %v1027 = vmul.f32 %v1003, %v1010
    %v1028 = vmul.f32 %v1001, %v1014
    %v1029 = vmul.f32 %v999, %v1018
    %v1030 = vmul.f32 %v997, %v1022
    %v1031 = vmul.f32 %v1004, %v1010
    %v1032 = vmul.f32 %v1002, %v1014
    %v1033 = vmul.f32 %v1000, %v1018
    %v1034 = vmul.f32 %v998, %v1022
    %1035 = vst [vmem:[#allocation2 + $0xc0] sm:$0xff] %v1027
    %1036 = vst [vmem:[#allocation2 + $0xc8] sm:$0xff] %v1028
    %1037 = vst [vmem:[#allocation2 + $0xd0] sm:$0xff] %v1029
    %1038 = vst [vmem:[#allocation2 + $0xd8] sm:$0xff] %v1030
    %1039 = vst [vmem:[#allocation2 + $0xe0] sm:$0xff] %v1031
    %1040 = vst [vmem:[#allocation2 + $0xe8] sm:$0xff] %v1032
    %1041 = vst [vmem:[#allocation2 + $0xf0] sm:$0xff] %v1033
    %1042 = vst [vmem:[#allocation2 + $0xf8] sm:$0xff] %v1034
    %1043 = vst [vmem:[#allocation2 + $0x100] sm:$0xff] %v751
    %1044 = vst [vmem:[#allocation2 + $0x108] sm:$0xff] %v752
    %1045 = vst [vmem:[#allocation2 + $0x110] sm:$0xff] %v791
    %1046 = vst [vmem:[#allocation2 + $0x118] sm:$0xff] %v792
    %1047 = vst [vmem:[#allocation2 + $0x120] sm:$0xff] %v753
    %1048 = vst [vmem:[#allocation2 + $0x128] sm:$0xff] %v754
    %1049 = vst [vmem:[#allocation2 + $0x130] sm:$0xff] %v793
    %1050 = vst [vmem:[#allocation2 + $0x138] sm:$0xff] %v794
    %1051 = vrot.lane.b32.xlu0 %v751, 127
    %v1052 = vpop.permute.xlu0 %1051
    %1053 = vrot.lane.b32.xlu0 %v753, 127
    %v1054 = vpop.permute.xlu0 %1053
    %1055 = vrot.lane.b32.xlu0 %v752, 127
    %v1056 = vpop.permute.xlu0 %1055
    %1057 = vrot.lane.b32.xlu0 %v754, 127
    %v1058 = vpop.permute.xlu0 %1057
    %1059 = vrot.lane.b32.xlu0 %v791, 127
    %v1060 = vpop.permute.xlu0 %1059
    %1061 = vrot.lane.b32.xlu0 %v793, 127
    %v1062 = vpop.permute.xlu0 %1061
    %1063 = vrot.lane.b32.xlu0 %v792, 127
    %v1064 = vpop.permute.xlu0 %1063
    %1065 = vrot.lane.b32.xlu0 %v794, 127
    %v1066 = vpop.permute.xlu0 %1065
    %v1067 = vsel %vm236, %v1060, %v1064
    %v1068 = vsel %vm236, %v1062, %v1066
    %v1069 = vsel %vm236, %v1056, %v1060
    %v1070 = vsel %vm236, %v1058, %v1062
    %v1071 = vsel %vm236, %v1052, %v1056
    %v1072 = vsel %vm236, %v1054, %v1058
    %v1073 = vsel %vm236, %v1064, %v1052
    %v1074 = vsel %vm236, %v1066, %v1054
    %v1075 = vld [vmem:[%s241] ss:$8 sm:$0xf]
    %v1077 = vlaneseq
    %v1078 = vshrl.u32 %v1077, 7
    %v1079 = vsub.s32 0, %v1078
    %v1080 = vrot.slane %v1075, %v1079
    %v1081 = vlaneseq
    %v1082 = vshrl.u32 %v1081, 7
    %v1083 = vsub.s32 1, %v1082
    %v1084 = vrot.slane %v1075, %v1083
    %v1085 = vlaneseq
    %v1086 = vshrl.u32 %v1085, 7
    %v1087 = vsub.s32 2, %v1086
    %v1088 = vrot.slane %v1075, %v1087
    %v1089 = vlaneseq
    %v1090 = vshrl.u32 %v1089, 7
    %v1091 = vsub.s32 3, %v1090
    %v1092 = vrot.slane %v1075, %v1091
    %v1097 = vmul.f32 %v1071, %v1080
    %v1098 = vmul.f32 %v1069, %v1084
    %v1099 = vmul.f32 %v1067, %v1088
    %v1100 = vmul.f32 %v1073, %v1092
    %v1101 = vmul.f32 %v1072, %v1080
    %v1102 = vmul.f32 %v1070, %v1084
    %v1103 = vmul.f32 %v1068, %v1088
    %v1104 = vmul.f32 %v1074, %v1092
    %1105 = vst [vmem:[#allocation2 + $0x140] sm:$0xff] %v1097
    %1106 = vst [vmem:[#allocation2 + $0x148] sm:$0xff] %v1098
    %1107 = vst [vmem:[#allocation2 + $0x150] sm:$0xff] %v1099
    %1108 = vst [vmem:[#allocation2 + $0x158] sm:$0xff] %v1100
    %1109 = vst [vmem:[#allocation2 + $0x160] sm:$0xff] %v1101
    %1110 = vst [vmem:[#allocation2 + $0x168] sm:$0xff] %v1102
    %1111 = vst [vmem:[#allocation2 + $0x170] sm:$0xff] %v1103
    %1112 = vst [vmem:[#allocation2 + $0x178] sm:$0xff] %v1104
    %1113 = vrot.lane.b32.xlu0 %v751, 113
    %v1114 = vpop.permute.xlu0 %1113
    %1115 = vrot.lane.b32.xlu0 %v753, 113
    %v1116 = vpop.permute.xlu0 %1115
    %1117 = vrot.lane.b32.xlu0 %v752, 113
    %v1118 = vpop.permute.xlu0 %1117
    %1119 = vrot.lane.b32.xlu0 %v754, 113
    %v1120 = vpop.permute.xlu0 %1119
    %1121 = vrot.lane.b32.xlu0 %v791, 113
    %v1122 = vpop.permute.xlu0 %1121
    %1123 = vrot.lane.b32.xlu0 %v793, 113
    %v1124 = vpop.permute.xlu0 %1123
    %1125 = vrot.lane.b32.xlu0 %v792, 113
    %v1126 = vpop.permute.xlu0 %1125
    %1127 = vrot.lane.b32.xlu0 %v794, 113
    %v1128 = vpop.permute.xlu0 %1127
    %v1129 = vsel %vm280, %v1122, %v1126
    %v1130 = vsel %vm280, %v1124, %v1128
    %v1131 = vsel %vm280, %v1118, %v1122
    %v1132 = vsel %vm280, %v1120, %v1124
    %v1133 = vsel %vm280, %v1114, %v1118
    %v1134 = vsel %vm280, %v1116, %v1120
    %v1135 = vsel %vm280, %v1126, %v1114
    %v1136 = vsel %vm280, %v1128, %v1116
    %v1137 = vld [vmem:[%s285] ss:$8 sm:$0xf]
    %v1139 = vlaneseq
    %v1140 = vshrl.u32 %v1139, 7
    %v1141 = vsub.s32 0, %v1140
    %v1142 = vrot.slane %v1137, %v1141
    %v1143 = vlaneseq
    %v1144 = vshrl.u32 %v1143, 7
    %v1145 = vsub.s32 1, %v1144
    %v1146 = vrot.slane %v1137, %v1145
    %v1147 = vlaneseq
    %v1148 = vshrl.u32 %v1147, 7
    %v1149 = vsub.s32 2, %v1148
    %v1150 = vrot.slane %v1137, %v1149
    %v1151 = vlaneseq
    %v1152 = vshrl.u32 %v1151, 7
    %v1153 = vsub.s32 3, %v1152
    %v1154 = vrot.slane %v1137, %v1153
    %v1159 = vmul.f32 %v1133, %v1142
    %v1160 = vmul.f32 %v1131, %v1146
    %v1161 = vmul.f32 %v1129, %v1150
    %v1162 = vmul.f32 %v1135, %v1154
    %v1163 = vmul.f32 %v1134, %v1142
    %v1164 = vmul.f32 %v1132, %v1146
    %v1165 = vmul.f32 %v1130, %v1150
    %v1166 = vmul.f32 %v1136, %v1154
    %1167 = vst [vmem:[#allocation2 + $0x180] sm:$0xff] %v1159
    %1168 = vst [vmem:[#allocation2 + $0x188] sm:$0xff] %v1160
    %1169 = vst [vmem:[#allocation2 + $0x190] sm:$0xff] %v1161
    %1170 = vst [vmem:[#allocation2 + $0x198] sm:$0xff] %v1162
    %1171 = vst [vmem:[#allocation2 + $0x1a0] sm:$0xff] %v1163
    %1172 = vst [vmem:[#allocation2 + $0x1a8] sm:$0xff] %v1164
    %1173 = vst [vmem:[#allocation2 + $0x1b0] sm:$0xff] %v1165
    %1174 = vst [vmem:[#allocation2 + $0x1b8] sm:$0xff] %v1166
    %1175 = vrot.lane.b32.xlu0 %v751, 112
    %v1176 = vpop.permute.xlu0 %1175
    %1177 = vrot.lane.b32.xlu0 %v753, 112
    %v1178 = vpop.permute.xlu0 %1177
    %1179 = vrot.lane.b32.xlu0 %v752, 112
    %v1180 = vpop.permute.xlu0 %1179
    %1181 = vrot.lane.b32.xlu0 %v754, 112
    %v1182 = vpop.permute.xlu0 %1181
    %1183 = vrot.lane.b32.xlu0 %v791, 112
    %v1184 = vpop.permute.xlu0 %1183
    %1185 = vrot.lane.b32.xlu0 %v793, 112
    %v1186 = vpop.permute.xlu0 %1185
    %1187 = vrot.lane.b32.xlu0 %v792, 112
    %v1188 = vpop.permute.xlu0 %1187
    %1189 = vrot.lane.b32.xlu0 %v794, 112
    %v1190 = vpop.permute.xlu0 %1189
    %v1191 = vsel %vm324, %v1184, %v1188
    %v1192 = vsel %vm324, %v1186, %v1190
    %v1193 = vsel %vm324, %v1180, %v1184
    %v1194 = vsel %vm324, %v1182, %v1186
    %v1195 = vsel %vm324, %v1176, %v1180
    %v1196 = vsel %vm324, %v1178, %v1182
    %v1197 = vsel %vm324, %v1188, %v1176
    %v1198 = vsel %vm324, %v1190, %v1178
    %v1199 = vld [vmem:[%s329] ss:$8 sm:$0xf]
    %v1201 = vlaneseq
    %v1202 = vshrl.u32 %v1201, 7
    %v1203 = vsub.s32 0, %v1202
    %v1204 = vrot.slane %v1199, %v1203
    %v1205 = vlaneseq
    %v1206 = vshrl.u32 %v1205, 7
    %v1207 = vsub.s32 1, %v1206
    %v1208 = vrot.slane %v1199, %v1207
    %v1209 = vlaneseq
    %v1210 = vshrl.u32 %v1209, 7
    %v1211 = vsub.s32 2, %v1210
    %v1212 = vrot.slane %v1199, %v1211
    %v1213 = vlaneseq
    %v1214 = vshrl.u32 %v1213, 7
    %v1215 = vsub.s32 3, %v1214
    %v1216 = vrot.slane %v1199, %v1215
    %v1221 = vmul.f32 %v1195, %v1204
    %v1222 = vmul.f32 %v1193, %v1208
    %v1223 = vmul.f32 %v1191, %v1212
    %v1224 = vmul.f32 %v1197, %v1216
    %v1225 = vmul.f32 %v1196, %v1204
    %v1226 = vmul.f32 %v1194, %v1208
    %v1227 = vmul.f32 %v1192, %v1212
    %v1228 = vmul.f32 %v1198, %v1216
    %1229 = vst [vmem:[#allocation2 + $0x1c0] sm:$0xff] %v1221
    %1230 = vst [vmem:[#allocation2 + $0x1c8] sm:$0xff] %v1222
    %1231 = vst [vmem:[#allocation2 + $0x1d0] sm:$0xff] %v1223
    %1232 = vst [vmem:[#allocation2 + $0x1d8] sm:$0xff] %v1224
    %1233 = vst [vmem:[#allocation2 + $0x1e0] sm:$0xff] %v1225
    %1234 = vst [vmem:[#allocation2 + $0x1e8] sm:$0xff] %v1226
    %1235 = vst [vmem:[#allocation2 + $0x1f0] sm:$0xff] %v1227
    %1236 = vst [vmem:[#allocation2 + $0x1f8] sm:$0xff] %v1228
    %1237 = vrot.lane.b32.xlu0 %v751, 111
    %v1238 = vpop.permute.xlu0 %1237
    %1239 = vrot.lane.b32.xlu0 %v753, 111
    %v1240 = vpop.permute.xlu0 %1239
    %1241 = vrot.lane.b32.xlu0 %v752, 111
    %v1242 = vpop.permute.xlu0 %1241
    %1243 = vrot.lane.b32.xlu0 %v754, 111
    %v1244 = vpop.permute.xlu0 %1243
    %1245 = vrot.lane.b32.xlu0 %v791, 111
    %v1246 = vpop.permute.xlu0 %1245
    %1247 = vrot.lane.b32.xlu0 %v793, 111
    %v1248 = vpop.permute.xlu0 %1247
    %1249 = vrot.lane.b32.xlu0 %v792, 111
    %v1250 = vpop.permute.xlu0 %1249
    %1251 = vrot.lane.b32.xlu0 %v794, 111
    %v1252 = vpop.permute.xlu0 %1251
    %v1253 = vsel %vm368, %v1246, %v1250
    %v1254 = vsel %vm368, %v1248, %v1252
    %v1255 = vsel %vm368, %v1242, %v1246
    %v1256 = vsel %vm368, %v1244, %v1248
    %v1257 = vsel %vm368, %v1238, %v1242
    %v1258 = vsel %vm368, %v1240, %v1244
    %v1259 = vsel %vm368, %v1250, %v1238
    %v1260 = vsel %vm368, %v1252, %v1240
    %v1261 = vld [vmem:[%s373] ss:$8 sm:$0xf]
    %v1263 = vlaneseq
    %v1264 = vshrl.u32 %v1263, 7
    %v1265 = vsub.s32 0, %v1264
    %v1266 = vrot.slane %v1261, %v1265
    %v1267 = vlaneseq
    %v1268 = vshrl.u32 %v1267, 7
    %v1269 = vsub.s32 1, %v1268
    %v1270 = vrot.slane %v1261, %v1269
    %v1271 = vlaneseq
    %v1272 = vshrl.u32 %v1271, 7
    %v1273 = vsub.s32 2, %v1272
    %v1274 = vrot.slane %v1261, %v1273
    %v1275 = vlaneseq
    %v1276 = vshrl.u32 %v1275, 7
    %v1277 = vsub.s32 3, %v1276
    %v1278 = vrot.slane %v1261, %v1277
    %v1283 = vmul.f32 %v1257, %v1266
    %v1284 = vmul.f32 %v1255, %v1270
    %v1285 = vmul.f32 %v1253, %v1274
    %v1286 = vmul.f32 %v1259, %v1278
    %v1287 = vmul.f32 %v1258, %v1266
    %v1288 = vmul.f32 %v1256, %v1270
    %v1289 = vmul.f32 %v1254, %v1274
    %v1290 = vmul.f32 %v1260, %v1278
    %1291 = vst [vmem:[#allocation2 + $0x200] sm:$0xff] %v1283
    %1292 = vst [vmem:[#allocation2 + $0x208] sm:$0xff] %v1284
    %1293 = vst [vmem:[#allocation2 + $0x210] sm:$0xff] %v1285
    %1294 = vst [vmem:[#allocation2 + $0x218] sm:$0xff] %v1286
    %1295 = vst [vmem:[#allocation2 + $0x220] sm:$0xff] %v1287
    %1296 = vst [vmem:[#allocation2 + $0x228] sm:$0xff] %v1288
    %1297 = vst [vmem:[#allocation2 + $0x230] sm:$0xff] %v1289
    %1298 = vst [vmem:[#allocation2 + $0x238] sm:$0xff] %v1290
    %v1299 = vld [vmem:[#allocation2] sm:$0xff]
    %v1300 = vld [vmem:[#allocation2 + $0x8] sm:$0xff]
    %v1301 = vld [vmem:[#allocation2 + $0x10] sm:$0xff]
    %v1302 = vld [vmem:[#allocation2 + $0x18] sm:$0xff]
    %v1303 = vld [vmem:[#allocation2 + $0x20] sm:$0xff]
    %v1304 = vld [vmem:[#allocation2 + $0x28] sm:$0xff]
    %v1305 = vld [vmem:[#allocation2 + $0x30] sm:$0xff]
    %v1306 = vld [vmem:[#allocation2 + $0x38] sm:$0xff]
    %v1307 = vld [vmem:[#allocation2 + $0x40] sm:$0xff]
    %v1308 = vld [vmem:[#allocation2 + $0x48] sm:$0xff]
    %v1309 = vld [vmem:[#allocation2 + $0x50] sm:$0xff]
    %v1310 = vld [vmem:[#allocation2 + $0x58] sm:$0xff]
    %v1311 = vld [vmem:[#allocation2 + $0x60] sm:$0xff]
    %v1312 = vld [vmem:[#allocation2 + $0x68] sm:$0xff]
    %v1313 = vld [vmem:[#allocation2 + $0x70] sm:$0xff]
    %v1314 = vld [vmem:[#allocation2 + $0x78] sm:$0xff]
    %v1315 = vld [vmem:[#allocation2 + $0x80] sm:$0xff]
    %v1316 = vld [vmem:[#allocation2 + $0x88] sm:$0xff]
    %v1317 = vld [vmem:[#allocation2 + $0x90] sm:$0xff]
    %v1318 = vld [vmem:[#allocation2 + $0x98] sm:$0xff]
    %v1319 = vld [vmem:[#allocation2 + $0xa0] sm:$0xff]
    %v1320 = vld [vmem:[#allocation2 + $0xa8] sm:$0xff]
    %v1321 = vld [vmem:[#allocation2 + $0xb0] sm:$0xff]
    %v1322 = vld [vmem:[#allocation2 + $0xb8] sm:$0xff]
    %v1323 = vld [vmem:[#allocation2 + $0xc0] sm:$0xff]
    %v1324 = vld [vmem:[#allocation2 + $0xc8] sm:$0xff]
    %v1325 = vld [vmem:[#allocation2 + $0xd0] sm:$0xff]
    %v1326 = vld [vmem:[#allocation2 + $0xd8] sm:$0xff]
    %v1327 = vld [vmem:[#allocation2 + $0xe0] sm:$0xff]
    %v1328 = vld [vmem:[#allocation2 + $0xe8] sm:$0xff]
    %v1329 = vld [vmem:[#allocation2 + $0xf0] sm:$0xff]
    %v1330 = vld [vmem:[#allocation2 + $0xf8] sm:$0xff]
    %v1331 = vld [vmem:[#allocation2 + $0x100] sm:$0xff]
    %v1332 = vld [vmem:[#allocation2 + $0x108] sm:$0xff]
    %v1333 = vld [vmem:[#allocation2 + $0x110] sm:$0xff]
    %v1334 = vld [vmem:[#allocation2 + $0x118] sm:$0xff]
    %v1335 = vld [vmem:[#allocation2 + $0x120] sm:$0xff]
    %v1336 = vld [vmem:[#allocation2 + $0x128] sm:$0xff]
    %v1337 = vld [vmem:[#allocation2 + $0x130] sm:$0xff]
    %v1338 = vld [vmem:[#allocation2 + $0x138] sm:$0xff]
    %v1339 = vld [vmem:[#allocation2 + $0x140] sm:$0xff]
    %v1340 = vld [vmem:[#allocation2 + $0x148] sm:$0xff]
    %v1341 = vld [vmem:[#allocation2 + $0x150] sm:$0xff]
    %v1342 = vld [vmem:[#allocation2 + $0x158] sm:$0xff]
    %v1343 = vld [vmem:[#allocation2 + $0x160] sm:$0xff]
    %v1344 = vld [vmem:[#allocation2 + $0x168] sm:$0xff]
    %v1345 = vld [vmem:[#allocation2 + $0x170] sm:$0xff]
    %v1346 = vld [vmem:[#allocation2 + $0x178] sm:$0xff]
    %v1347 = vld [vmem:[#allocation2 + $0x180] sm:$0xff]
    %v1348 = vld [vmem:[#allocation2 + $0x188] sm:$0xff]
    %v1349 = vld [vmem:[#allocation2 + $0x190] sm:$0xff]
    %v1350 = vld [vmem:[#allocation2 + $0x198] sm:$0xff]
    %v1351 = vld [vmem:[#allocation2 + $0x1a0] sm:$0xff]
    %v1352 = vld [vmem:[#allocation2 + $0x1a8] sm:$0xff]
    %v1353 = vld [vmem:[#allocation2 + $0x1b0] sm:$0xff]
    %v1354 = vld [vmem:[#allocation2 + $0x1b8] sm:$0xff]
    %v1355 = vld [vmem:[#allocation2 + $0x1c0] sm:$0xff]
    %v1356 = vld [vmem:[#allocation2 + $0x1c8] sm:$0xff]
    %v1357 = vld [vmem:[#allocation2 + $0x1d0] sm:$0xff]
    %v1358 = vld [vmem:[#allocation2 + $0x1d8] sm:$0xff]
    %v1359 = vld [vmem:[#allocation2 + $0x1e0] sm:$0xff]
    %v1360 = vld [vmem:[#allocation2 + $0x1e8] sm:$0xff]
    %v1361 = vld [vmem:[#allocation2 + $0x1f0] sm:$0xff]
    %v1362 = vld [vmem:[#allocation2 + $0x1f8] sm:$0xff]
    %v1363 = vld [vmem:[#allocation2 + $0x200] sm:$0xff]
    %v1364 = vld [vmem:[#allocation2 + $0x208] sm:$0xff]
    %v1365 = vld [vmem:[#allocation2 + $0x210] sm:$0xff]
    %v1366 = vld [vmem:[#allocation2 + $0x218] sm:$0xff]
    %v1367 = vld [vmem:[#allocation2 + $0x220] sm:$0xff]
    %v1368 = vld [vmem:[#allocation2 + $0x228] sm:$0xff]
    %v1369 = vld [vmem:[#allocation2 + $0x230] sm:$0xff]
    %v1370 = vld [vmem:[#allocation2 + $0x238] sm:$0xff]
    %1372 = vset.pattern.permute.xlu0 0
    %1373 = vperm.xlu0 %1372, %v684
    %v1374 = vpop.permute.xlu0 %1373
    %1377 = vset.pattern.permute.xlu0 0
    %1378 = vperm.xlu0 %1377, %v685
    %v1379 = vpop.permute.xlu0 %1378
    %vm1381 = vcmask 130048
    %v1383 = vsel %vm1381, %v681, 0
    %v1386 = vsel %vm1381, %v683, 0
    %1388 = vmatprep.subr.mxu0 %v1300
    %1389 = vmatpush1.msra.mxu0 %v1299
    %1390 = vmatprep.subr.mxu0 %v1304
    %1391 = vmatpush1.msra.mxu0 %v1303
    %1392 = vmatprep.subr.mxu0 %v1308
    %1393 = vmatpush1.msra.mxu0 %v1307
    %1394 = vmatprep.subr.mxu0 %v1312
    %1395 = vmatpush1.msra.mxu0 %v1311
    %1396 = vmatprep.subr.mxu0 %v1316
    %1397 = vmatpush1.msra.mxu0 %v1315
    %1398 = vmatprep.subr.mxu0 %v1320
    %1399 = vmatpush1.msra.mxu0 %v1319
    %1400 = vmatprep.subr.mxu0 %v1324
    %1401 = vmatpush1.msra.mxu0 %v1323
    %1402 = vmatprep.subr.mxu0 %v1328
    %1403 = vmatpush1.msra.mxu0 %v1327
    %1404 = vmatprep.subr.mxu0 %v1332
    %1405 = vmatpush1.msra.mxu0 %v1331
    %1406 = vmatprep.subr.mxu0 %v1336
    %1407 = vmatpush1.msra.mxu0 %v1335
    %1408 = vmatprep.subr.mxu0 %v1340
    %1409 = vmatpush1.msra.mxu0 %v1339
    %1410 = vmatprep.subr.mxu0 %v1344
    %1411 = vmatpush1.msra.mxu0 %v1343
    %1412 = vmatprep.subr.mxu0 %v1348
    %1413 = vmatpush1.msra.mxu0 %v1347
    %1414 = vmatprep.subr.mxu0 %v1352
    %1415 = vmatpush1.msra.mxu0 %v1351
    %1416 = vmatprep.subr.mxu0 %v1356
    %1417 = vmatpush1.msra.mxu0 %v1355
    %1418 = vmatprep.subr.mxu0 %v1360
    %1419 = vmatpush1.msra.mxu0 %v1359
    %1420 = vmatprep.subr.mxu0 %v1364
    %1421 = vmatpush1.msra.mxu0 %v1363
    %1422 = vmatprep.subr.mxu0 %v1368
    %1423 = vmatpush1.msra.mxu0 %v1367
    %1424 = vmatprep.subr.mxu0 0.0
    %1425 = vmatpush1.msra.mxu0 0.0
    %1426 = vmatprep.subr.mxu0 0.0
    %1427 = vmatpush1.msra.mxu0 0.0
    %1428 = vmatprep.subr.mxu0 0.0
    %1429 = vmatpush1.msra.mxu0 0.0
    %1430 = vmatprep.subr.mxu0 0.0
    %1431 = vmatpush1.msra.mxu0 0.0
    %1432 = vmatprep.subr.mxu0 0.0
    %1433 = vmatpush1.msra.mxu0 0.0
    %1434 = vmatprep.subr.mxu0 0.0
    %1435 = vmatpush1.msra.mxu0 0.0
    %1436 = vmatprep.subr.mxu0 0.0
    %1437 = vmatpush1.msra.mxu0 0.0
    %1438 = vmatprep.subr.mxu0 0.0
    %1439 = vmatpush1.msra.mxu0 0.0
    %1440 = vmatprep.subr.mxu0 0.0
    %1441 = vmatpush1.msra.mxu0 0.0
    %1442 = vmatprep.subr.mxu0 0.0
    %1443 = vmatpush1.msra.mxu0 0.0
    %1444 = vmatprep.subr.mxu0 0.0
    %1445 = vmatpush1.msra.mxu0 0.0
    %1446 = vmatprep.subr.mxu0 0.0
    %1447 = vmatpush1.msra.mxu0 0.0
    %1448 = vmatprep.subr.mxu0 0.0
    %1449 = vmatpush1.msra.mxu0 0.0
    %1450 = vmatprep.subr.mxu0 0.0
    %1451 = vmatpush1.msra.mxu0 0.0
    %1452 = vmatprep.mubr.f32.mxu0 %v1383
    %1453 = vmatmul.mubr.f32.gmra.mrb[0].mxu0 %v680
    %v1454 = vpop.f32.mrb[0].mxu0
    %v1455 = vadd.f32 %v1374, %v1454
    %v1456 = vpop.f32.mrb[0].mxu0
    %v1457 = vadd.f32 %v1374, %v1456
    %1458 = vmatprep.mubr.f32.mxu0 %v1386
    %1459 = vmatmul.mubr.f32.gmra.mrb[0].mxu0 %v682
    %v1460 = vpop.f32.mrb[0].mxu0
    %v1461 = vadd.f32 %v1379, %v1460
    %v1462 = vpop.f32.mrb[0].mxu0
    %v1463 = vadd.f32 %v1379, %v1462
    %1464 = vdwg.mxu0
    %1465 = vmatprep.subr.mxu0 %v1302
    %1466 = vmatpush1.msra.mxu0 %v1301
    %1467 = vmatprep.subr.mxu0 %v1306
    %1468 = vmatpush1.msra.mxu0 %v1305
    %1469 = vmatprep.subr.mxu0 %v1310
    %1470 = vmatpush1.msra.mxu0 %v1309
    %1471 = vmatprep.subr.mxu0 %v1314
    %1472 = vmatpush1.msra.mxu0 %v1313
    %1473 = vmatprep.subr.mxu0 %v1318
    %1474 = vmatpush1.msra.mxu0 %v1317
    %1475 = vmatprep.subr.mxu0 %v1322
    %1476 = vmatpush1.msra.mxu0 %v1321
    %1477 = vmatprep.subr.mxu0 %v1326
    %1478 = vmatpush1.msra.mxu0 %v1325
    %1479 = vmatprep.subr.mxu0 %v1330
    %1480 = vmatpush1.msra.mxu0 %v1329
    %1481 = vmatprep.subr.mxu0 %v1334
    %1482 = vmatpush1.msra.mxu0 %v1333
    %1483 = vmatprep.subr.mxu0 %v1338
    %1484 = vmatpush1.msra.mxu0 %v1337
    %1485 = vmatprep.subr.mxu0 %v1342
    %1486 = vmatpush1.msra.mxu0 %v1341
    %1487 = vmatprep.subr.mxu0 %v1346
    %1488 = vmatpush1.msra.mxu0 %v1345
    %1489 = vmatprep.subr.mxu0 %v1350
    %1490 = vmatpush1.msra.mxu0 %v1349
    %1491 = vmatprep.subr.mxu0 %v1354
    %1492 = vmatpush1.msra.mxu0 %v1353
    %1493 = vmatprep.subr.mxu0 %v1358
    %1494 = vmatpush1.msra.mxu0 %v1357
    %1495 = vmatprep.subr.mxu0 %v1362
    %1496 = vmatpush1.msra.mxu0 %v1361
    %1497 = vmatprep.subr.mxu0 %v1366
    %1498 = vmatpush1.msra.mxu0 %v1365
    %1499 = vmatprep.subr.mxu0 %v1370
    %1500 = vmatpush1.msra.mxu0 %v1369
    %1501 = vmatprep.subr.mxu0 0.0
    %1502 = vmatpush1.msra.mxu0 0.0
    %1503 = vmatprep.subr.mxu0 0.0
    %1504 = vmatpush1.msra.mxu0 0.0
    %1505 = vmatprep.subr.mxu0 0.0
    %1506 = vmatpush1.msra.mxu0 0.0
    %1507 = vmatprep.subr.mxu0 0.0
    %1508 = vmatpush1.msra.mxu0 0.0
    %1509 = vmatprep.subr.mxu0 0.0
    %1510 = vmatpush1.msra.mxu0 0.0
    %1511 = vmatprep.subr.mxu0 0.0
    %1512 = vmatpush1.msra.mxu0 0.0
    %1513 = vmatprep.subr.mxu0 0.0
    %1514 = vmatpush1.msra.mxu0 0.0
    %1515 = vmatprep.subr.mxu0 0.0
    %1516 = vmatpush1.msra.mxu0 0.0
    %1517 = vmatprep.subr.mxu0 0.0
    %1518 = vmatpush1.msra.mxu0 0.0
    %1519 = vmatprep.subr.mxu0 0.0
    %1520 = vmatpush1.msra.mxu0 0.0
    %1521 = vmatprep.subr.mxu0 0.0
    %1522 = vmatpush1.msra.mxu0 0.0
    %1523 = vmatprep.subr.mxu0 0.0
    %1524 = vmatpush1.msra.mxu0 0.0
    %1525 = vmatprep.subr.mxu0 0.0
    %1526 = vmatpush1.msra.mxu0 0.0
    %1527 = vmatprep.subr.mxu0 0.0
    %1528 = vmatpush1.msra.mxu0 0.0
    %1529 = vmatprep.mubr.f32.mxu0 %v1383
    %1530 = vmatmul.mubr.f32.gmra.mrb[0].mxu0 %v680
    %v1531 = vpop.f32.mrb[0].mxu0
    %v1532 = vadd.f32 %v1374, %v1531
    %v1533 = vpop.f32.mrb[0].mxu0
    %v1534 = vadd.f32 %v1374, %v1533
    %1535 = vmatprep.mubr.f32.mxu0 %v1386
    %1536 = vmatmul.mubr.f32.gmra.mrb[0].mxu0 %v682
    %v1537 = vpop.f32.mrb[0].mxu0
    %v1538 = vadd.f32 %v1379, %v1537
    %v1539 = vpop.f32.mrb[0].mxu0
    %v1540 = vadd.f32 %v1379, %v1539
    %1541 = vdwg.mxu0
    %v1542 = vmax.f32 %v1455, 0.0
    %v1543 = vmax.f32 %v1457, 0.0
    %v1544 = vmax.f32 %v1532, 0.0
    %v1545 = vmax.f32 %v1534, 0.0
    %v1546 = vmax.f32 %v1461, 0.0
    %v1547 = vmax.f32 %v1463, 0.0
    %v1548 = vmax.f32 %v1538, 0.0
    %v1549 = vmax.f32 %v1540, 0.0
    %1550 = vrot.lane.b32.xlu0 %v1542, 17
    %v1551 = vpop.permute.xlu0 %1550
    %1552 = vrot.lane.b32.xlu0 %v1546, 17
    %v1553 = vpop.permute.xlu0 %1552
    %1554 = vrot.lane.b32.xlu0 %v1543, 17
    %v1555 = vpop.permute.xlu0 %1554
    %1556 = vrot.lane.b32.xlu0 %v1547, 17
    %v1557 = vpop.permute.xlu0 %1556
    %1558 = vrot.lane.b32.xlu0 %v1544, 17
    %v1559 = vpop.permute.xlu0 %1558
    %1560 = vrot.lane.b32.xlu0 %v1548, 17
    %v1561 = vpop.permute.xlu0 %1560
    %1562 = vrot.lane.b32.xlu0 %v1545, 17
    %v1563 = vpop.permute.xlu0 %1562
    %1564 = vrot.lane.b32.xlu0 %v1549, 17
    %v1565 = vpop.permute.xlu0 %1564
    %v1566 = vsel %vm57, %v1559, %v1563
    %v1567 = vsel %vm57, %v1561, %v1565
    %v1568 = vsel %vm57, %v1555, %v1559
    %v1569 = vsel %vm57, %v1557, %v1561
    %v1570 = vsel %vm57, %v1551, %v1555
    %v1571 = vsel %vm57, %v1553, %v1557
    %v1572 = vsel %vm57, %v1563, %v1551
    %v1573 = vsel %vm57, %v1565, %v1553
    %v1574 = vld [vmem:[#allocation3] ss:$8 sm:$0xf]
    %v1576 = vlaneseq
    %v1577 = vshrl.u32 %v1576, 7
    %v1578 = vsub.s32 0, %v1577
    %v1579 = vrot.slane %v1574, %v1578
    %v1580 = vlaneseq
    %v1581 = vshrl.u32 %v1580, 7
    %v1582 = vsub.s32 1, %v1581
    %v1583 = vrot.slane %v1574, %v1582
    %v1584 = vlaneseq
    %v1585 = vshrl.u32 %v1584, 7
    %v1586 = vsub.s32 2, %v1585
    %v1587 = vrot.slane %v1574, %v1586
    %v1588 = vlaneseq
    %v1589 = vshrl.u32 %v1588, 7
    %v1590 = vsub.s32 3, %v1589
    %v1591 = vrot.slane %v1574, %v1590
    %v1596 = vmul.f32 %v1572, %v1579
    %v1597 = vmul.f32 %v1570, %v1583
    %v1598 = vmul.f32 %v1568, %v1587
    %v1599 = vmul.f32 %v1566, %v1591
    %v1600 = vmul.f32 %v1573, %v1579
    %v1601 = vmul.f32 %v1571, %v1583
    %v1602 = vmul.f32 %v1569, %v1587
    %v1603 = vmul.f32 %v1567, %v1591
    %1604 = vst [vmem:[#allocation2] sm:$0xff] %v1596
    %1605 = vst [vmem:[#allocation2 + $0x8] sm:$0xff] %v1597
    %1606 = vst [vmem:[#allocation2 + $0x10] sm:$0xff] %v1598
    %1607 = vst [vmem:[#allocation2 + $0x18] sm:$0xff] %v1599
    %1608 = vst [vmem:[#allocation2 + $0x20] sm:$0xff] %v1600
    %1609 = vst [vmem:[#allocation2 + $0x28] sm:$0xff] %v1601
    %1610 = vst [vmem:[#allocation2 + $0x30] sm:$0xff] %v1602
    %1611 = vst [vmem:[#allocation2 + $0x38] sm:$0xff] %v1603
    %1612 = vrot.lane.b32.xlu0 %v1542, 16
    %v1613 = vpop.permute.xlu0 %1612
    %1614 = vrot.lane.b32.xlu0 %v1546, 16
    %v1615 = vpop.permute.xlu0 %1614
    %1616 = vrot.lane.b32.xlu0 %v1543, 16
    %v1617 = vpop.permute.xlu0 %1616
    %1618 = vrot.lane.b32.xlu0 %v1547, 16
    %v1619 = vpop.permute.xlu0 %1618
    %1620 = vrot.lane.b32.xlu0 %v1544, 16
    %v1621 = vpop.permute.xlu0 %1620
    %1622 = vrot.lane.b32.xlu0 %v1548, 16
    %v1623 = vpop.permute.xlu0 %1622
    %1624 = vrot.lane.b32.xlu0 %v1545, 16
    %v1625 = vpop.permute.xlu0 %1624
    %1626 = vrot.lane.b32.xlu0 %v1549, 16
    %v1627 = vpop.permute.xlu0 %1626
    %v1628 = vsel %vm100, %v1621, %v1625
    %v1629 = vsel %vm100, %v1623, %v1627
    %v1630 = vsel %vm100, %v1617, %v1621
    %v1631 = vsel %vm100, %v1619, %v1623
    %v1632 = vsel %vm100, %v1613, %v1617
    %v1633 = vsel %vm100, %v1615, %v1619
    %v1634 = vsel %vm100, %v1625, %v1613
    %v1635 = vsel %vm100, %v1627, %v1615
    %v1636 = vld [vmem:[%s105] ss:$8 sm:$0xf]
    %v1638 = vlaneseq
    %v1639 = vshrl.u32 %v1638, 7
    %v1640 = vsub.s32 0, %v1639
    %v1641 = vrot.slane %v1636, %v1640
    %v1642 = vlaneseq
    %v1643 = vshrl.u32 %v1642, 7
    %v1644 = vsub.s32 1, %v1643
    %v1645 = vrot.slane %v1636, %v1644
    %v1646 = vlaneseq
    %v1647 = vshrl.u32 %v1646, 7
    %v1648 = vsub.s32 2, %v1647
    %v1649 = vrot.slane %v1636, %v1648
    %v1650 = vlaneseq
    %v1651 = vshrl.u32 %v1650, 7
    %v1652 = vsub.s32 3, %v1651
    %v1653 = vrot.slane %v1636, %v1652
    %v1658 = vmul.f32 %v1634, %v1641
    %v1659 = vmul.f32 %v1632, %v1645
    %v1660 = vmul.f32 %v1630, %v1649
    %v1661 = vmul.f32 %v1628, %v1653
    %v1662 = vmul.f32 %v1635, %v1641
    %v1663 = vmul.f32 %v1633, %v1645
    %v1664 = vmul.f32 %v1631, %v1649
    %v1665 = vmul.f32 %v1629, %v1653
    %1666 = vst [vmem:[#allocation2 + $0x40] sm:$0xff] %v1658
    %1667 = vst [vmem:[#allocation2 + $0x48] sm:$0xff] %v1659
    %1668 = vst [vmem:[#allocation2 + $0x50] sm:$0xff] %v1660
    %1669 = vst [vmem:[#allocation2 + $0x58] sm:$0xff] %v1661
    %1670 = vst [vmem:[#allocation2 + $0x60] sm:$0xff] %v1662
    %1671 = vst [vmem:[#allocation2 + $0x68] sm:$0xff] %v1663
    %1672 = vst [vmem:[#allocation2 + $0x70] sm:$0xff] %v1664
    %1673 = vst [vmem:[#allocation2 + $0x78] sm:$0xff] %v1665
    %1674 = vrot.lane.b32.xlu0 %v1542, 15
    %v1675 = vpop.permute.xlu0 %1674
    %1676 = vrot.lane.b32.xlu0 %v1546, 15
    %v1677 = vpop.permute.xlu0 %1676
    %1678 = vrot.lane.b32.xlu0 %v1543, 15
    %v1679 = vpop.permute.xlu0 %1678
    %1680 = vrot.lane.b32.xlu0 %v1547, 15
    %v1681 = vpop.permute.xlu0 %1680
    %1682 = vrot.lane.b32.xlu0 %v1544, 15
    %v1683 = vpop.permute.xlu0 %1682
    %1684 = vrot.lane.b32.xlu0 %v1548, 15
    %v1685 = vpop.permute.xlu0 %1684
    %1686 = vrot.lane.b32.xlu0 %v1545, 15
    %v1687 = vpop.permute.xlu0 %1686
    %1688 = vrot.lane.b32.xlu0 %v1549, 15
    %v1689 = vpop.permute.xlu0 %1688
    %v1690 = vsel %vm144, %v1683, %v1687
    %v1691 = vsel %vm144, %v1685, %v1689
    %v1692 = vsel %vm144, %v1679, %v1683
    %v1693 = vsel %vm144, %v1681, %v1685
    %v1694 = vsel %vm144, %v1675, %v1679
    %v1695 = vsel %vm144, %v1677, %v1681
    %v1696 = vsel %vm144, %v1687, %v1675
    %v1697 = vsel %vm144, %v1689, %v1677
    %v1698 = vld [vmem:[%s149] ss:$8 sm:$0xf]
    %v1700 = vlaneseq
    %v1701 = vshrl.u32 %v1700, 7
    %v1702 = vsub.s32 0, %v1701
    %v1703 = vrot.slane %v1698, %v1702
    %v1704 = vlaneseq
    %v1705 = vshrl.u32 %v1704, 7
    %v1706 = vsub.s32 1, %v1705
    %v1707 = vrot.slane %v1698, %v1706
    %v1708 = vlaneseq
    %v1709 = vshrl.u32 %v1708, 7
    %v1710 = vsub.s32 2, %v1709
    %v1711 = vrot.slane %v1698, %v1710
    %v1712 = vlaneseq
    %v1713 = vshrl.u32 %v1712, 7
    %v1714 = vsub.s32 3, %v1713
    %v1715 = vrot.slane %v1698, %v1714
    %v1720 = vmul.f32 %v1696, %v1703
    %v1721 = vmul.f32 %v1694, %v1707
    %v1722 = vmul.f32 %v1692, %v1711
    %v1723 = vmul.f32 %v1690, %v1715
    %v1724 = vmul.f32 %v1697, %v1703
    %v1725 = vmul.f32 %v1695, %v1707
    %v1726 = vmul.f32 %v1693, %v1711
    %v1727 = vmul.f32 %v1691, %v1715
    %1728 = vst [vmem:[#allocation2 + $0x80] sm:$0xff] %v1720
    %1729 = vst [vmem:[#allocation2 + $0x88] sm:$0xff] %v1721
    %1730 = vst [vmem:[#allocation2 + $0x90] sm:$0xff] %v1722
    %1731 = vst [vmem:[#allocation2 + $0x98] sm:$0xff] %v1723
    %1732 = vst [vmem:[#allocation2 + $0xa0] sm:$0xff] %v1724
    %1733 = vst [vmem:[#allocation2 + $0xa8] sm:$0xff] %v1725
    %1734 = vst [vmem:[#allocation2 + $0xb0] sm:$0xff] %v1726
    %1735 = vst [vmem:[#allocation2 + $0xb8] sm:$0xff] %v1727
    %1736 = vrot.lane.b32.xlu0 %v1542, 1
    %v1737 = vpop.permute.xlu0 %1736
    %1738 = vrot.lane.b32.xlu0 %v1546, 1
    %v1739 = vpop.permute.xlu0 %1738
    %1740 = vrot.lane.b32.xlu0 %v1543, 1
    %v1741 = vpop.permute.xlu0 %1740
    %1742 = vrot.lane.b32.xlu0 %v1547, 1
    %v1743 = vpop.permute.xlu0 %1742
    %1744 = vrot.lane.b32.xlu0 %v1544, 1
    %v1745 = vpop.permute.xlu0 %1744
    %1746 = vrot.lane.b32.xlu0 %v1548, 1
    %v1747 = vpop.permute.xlu0 %1746
    %1748 = vrot.lane.b32.xlu0 %v1545, 1
    %v1749 = vpop.permute.xlu0 %1748
    %1750 = vrot.lane.b32.xlu0 %v1549, 1
    %v1751 = vpop.permute.xlu0 %1750
    %v1752 = vsel %vm188, %v1745, %v1749
    %v1753 = vsel %vm188, %v1747, %v1751
    %v1754 = vsel %vm188, %v1741, %v1745
    %v1755 = vsel %vm188, %v1743, %v1747
    %v1756 = vsel %vm188, %v1737, %v1741
    %v1757 = vsel %vm188, %v1739, %v1743
    %v1758 = vsel %vm188, %v1749, %v1737
    %v1759 = vsel %vm188, %v1751, %v1739
    %v1760 = vld [vmem:[%s193] ss:$8 sm:$0xf]
    %v1762 = vlaneseq
    %v1763 = vshrl.u32 %v1762, 7
    %v1764 = vsub.s32 0, %v1763
    %v1765 = vrot.slane %v1760, %v1764
    %v1766 = vlaneseq
    %v1767 = vshrl.u32 %v1766, 7
    %v1768 = vsub.s32 1, %v1767
    %v1769 = vrot.slane %v1760, %v1768
    %v1770 = vlaneseq
    %v1771 = vshrl.u32 %v1770, 7
    %v1772 = vsub.s32 2, %v1771
    %v1773 = vrot.slane %v1760, %v1772
    %v1774 = vlaneseq
    %v1775 = vshrl.u32 %v1774, 7
    %v1776 = vsub.s32 3, %v1775
    %v1777 = vrot.slane %v1760, %v1776
    %v1782 = vmul.f32 %v1758, %v1765
    %v1783 = vmul.f32 %v1756, %v1769
    %v1784 = vmul.f32 %v1754, %v1773
    %v1785 = vmul.f32 %v1752, %v1777
    %v1786 = vmul.f32 %v1759, %v1765
    %v1787 = vmul.f32 %v1757, %v1769
    %v1788 = vmul.f32 %v1755, %v1773
    %v1789 = vmul.f32 %v1753, %v1777
    %1790 = vst [vmem:[#allocation2 + $0xc0] sm:$0xff] %v1782
    %1791 = vst [vmem:[#allocation2 + $0xc8] sm:$0xff] %v1783
    %1792 = vst [vmem:[#allocation2 + $0xd0] sm:$0xff] %v1784
    %1793 = vst [vmem:[#allocation2 + $0xd8] sm:$0xff] %v1785
    %1794 = vst [vmem:[#allocation2 + $0xe0] sm:$0xff] %v1786
    %1795 = vst [vmem:[#allocation2 + $0xe8] sm:$0xff] %v1787
    %1796 = vst [vmem:[#allocation2 + $0xf0] sm:$0xff] %v1788
    %1797 = vst [vmem:[#allocation2 + $0xf8] sm:$0xff] %v1789
    %1798 = vst [vmem:[#allocation2 + $0x100] sm:$0xff] %v1542
    %1799 = vst [vmem:[#allocation2 + $0x108] sm:$0xff] %v1543
    %1800 = vst [vmem:[#allocation2 + $0x110] sm:$0xff] %v1544
    %1801 = vst [vmem:[#allocation2 + $0x118] sm:$0xff] %v1545
    %1802 = vst [vmem:[#allocation2 + $0x120] sm:$0xff] %v1546
    %1803 = vst [vmem:[#allocation2 + $0x128] sm:$0xff] %v1547
    %1804 = vst [vmem:[#allocation2 + $0x130] sm:$0xff] %v1548
    %1805 = vst [vmem:[#allocation2 + $0x138] sm:$0xff] %v1549
    %1806 = vrot.lane.b32.xlu0 %v1542, 127
    %v1807 = vpop.permute.xlu0 %1806
    %1808 = vrot.lane.b32.xlu0 %v1546, 127
    %v1809 = vpop.permute.xlu0 %1808
    %1810 = vrot.lane.b32.xlu0 %v1543, 127
    %v1811 = vpop.permute.xlu0 %1810
    %1812 = vrot.lane.b32.xlu0 %v1547, 127
    %v1813 = vpop.permute.xlu0 %1812
    %1814 = vrot.lane.b32.xlu0 %v1544, 127
    %v1815 = vpop.permute.xlu0 %1814
    %1816 = vrot.lane.b32.xlu0 %v1548, 127
    %v1817 = vpop.permute.xlu0 %1816
    %1818 = vrot.lane.b32.xlu0 %v1545, 127
    %v1819 = vpop.permute.xlu0 %1818
    %1820 = vrot.lane.b32.xlu0 %v1549, 127
    %v1821 = vpop.permute.xlu0 %1820
    %v1822 = vsel %vm236, %v1815, %v1819
    %v1823 = vsel %vm236, %v1817, %v1821
    %v1824 = vsel %vm236, %v1811, %v1815
    %v1825 = vsel %vm236, %v1813, %v1817
    %v1826 = vsel %vm236, %v1807, %v1811
    %v1827 = vsel %vm236, %v1809, %v1813
    %v1828 = vsel %vm236, %v1819, %v1807
    %v1829 = vsel %vm236, %v1821, %v1809
    %v1830 = vld [vmem:[%s241] ss:$8 sm:$0xf]
    %v1832 = vlaneseq
    %v1833 = vshrl.u32 %v1832, 7
    %v1834 = vsub.s32 0, %v1833
    %v1835 = vrot.slane %v1830, %v1834
    %v1836 = vlaneseq
    %v1837 = vshrl.u32 %v1836, 7
    %v1838 = vsub.s32 1, %v1837
    %v1839 = vrot.slane %v1830, %v1838
    %v1840 = vlaneseq
    %v1841 = vshrl.u32 %v1840, 7
    %v1842 = vsub.s32 2, %v1841
    %v1843 = vrot.slane %v1830, %v1842
    %v1844 = vlaneseq
    %v1845 = vshrl.u32 %v1844, 7
    %v1846 = vsub.s32 3, %v1845
    %v1847 = vrot.slane %v1830, %v1846
    %v1852 = vmul.f32 %v1826, %v1835
    %v1853 = vmul.f32 %v1824, %v1839
    %v1854 = vmul.f32 %v1822, %v1843
    %v1855 = vmul.f32 %v1828, %v1847
    %v1856 = vmul.f32 %v1827, %v1835
    %v1857 = vmul.f32 %v1825, %v1839
    %v1858 = vmul.f32 %v1823, %v1843
    %v1859 = vmul.f32 %v1829, %v1847
    %1860 = vst [vmem:[#allocation2 + $0x140] sm:$0xff] %v1852
    %1861 = vst [vmem:[#allocation2 + $0x148] sm:$0xff] %v1853
    %1862 = vst [vmem:[#allocation2 + $0x150] sm:$0xff] %v1854
    %1863 = vst [vmem:[#allocation2 + $0x158] sm:$0xff] %v1855
    %1864 = vst [vmem:[#allocation2 + $0x160] sm:$0xff] %v1856
    %1865 = vst [vmem:[#allocation2 + $0x168] sm:$0xff] %v1857
    %1866 = vst [vmem:[#allocation2 + $0x170] sm:$0xff] %v1858
    %1867 = vst [vmem:[#allocation2 + $0x178] sm:$0xff] %v1859
    %1868 = vrot.lane.b32.xlu0 %v1542, 113
    %v1869 = vpop.permute.xlu0 %1868
    %1870 = vrot.lane.b32.xlu0 %v1546, 113
    %v1871 = vpop.permute.xlu0 %1870
    %1872 = vrot.lane.b32.xlu0 %v1543, 113
    %v1873 = vpop.permute.xlu0 %1872
    %1874 = vrot.lane.b32.xlu0 %v1547, 113
    %v1875 = vpop.permute.xlu0 %1874
    %1876 = vrot.lane.b32.xlu0 %v1544, 113
    %v1877 = vpop.permute.xlu0 %1876
    %1878 = vrot.lane.b32.xlu0 %v1548, 113
    %v1879 = vpop.permute.xlu0 %1878
    %1880 = vrot.lane.b32.xlu0 %v1545, 113
    %v1881 = vpop.permute.xlu0 %1880
    %1882 = vrot.lane.b32.xlu0 %v1549, 113
    %v1883 = vpop.permute.xlu0 %1882
    %v1884 = vsel %vm280, %v1877, %v1881
    %v1885 = vsel %vm280, %v1879, %v1883
    %v1886 = vsel %vm280, %v1873, %v1877
    %v1887 = vsel %vm280, %v1875, %v1879
    %v1888 = vsel %vm280, %v1869, %v1873
    %v1889 = vsel %vm280, %v1871, %v1875
    %v1890 = vsel %vm280, %v1881, %v1869
    %v1891 = vsel %vm280, %v1883, %v1871
    %v1892 = vld [vmem:[%s285] ss:$8 sm:$0xf]
    %v1894 = vlaneseq
    %v1895 = vshrl.u32 %v1894, 7
    %v1896 = vsub.s32 0, %v1895
    %v1897 = vrot.slane %v1892, %v1896
    %v1898 = vlaneseq
    %v1899 = vshrl.u32 %v1898, 7
    %v1900 = vsub.s32 1, %v1899
    %v1901 = vrot.slane %v1892, %v1900
    %v1902 = vlaneseq
    %v1903 = vshrl.u32 %v1902, 7
    %v1904 = vsub.s32 2, %v1903
    %v1905 = vrot.slane %v1892, %v1904
    %v1906 = vlaneseq
    %v1907 = vshrl.u32 %v1906, 7
    %v1908 = vsub.s32 3, %v1907
    %v1909 = vrot.slane %v1892, %v1908
    %v1914 = vmul.f32 %v1888, %v1897
    %v1915 = vmul.f32 %v1886, %v1901
    %v1916 = vmul.f32 %v1884, %v1905
    %v1917 = vmul.f32 %v1890, %v1909
    %v1918 = vmul.f32 %v1889, %v1897
    %v1919 = vmul.f32 %v1887, %v1901
    %v1920 = vmul.f32 %v1885, %v1905
    %v1921 = vmul.f32 %v1891, %v1909
    %1922 = vst [vmem:[#allocation2 + $0x180] sm:$0xff] %v1914
    %1923 = vst [vmem:[#allocation2 + $0x188] sm:$0xff] %v1915
    %1924 = vst [vmem:[#allocation2 + $0x190] sm:$0xff] %v1916
    %1925 = vst [vmem:[#allocation2 + $0x198] sm:$0xff] %v1917
    %1926 = vst [vmem:[#allocation2 + $0x1a0] sm:$0xff] %v1918
    %1927 = vst [vmem:[#allocation2 + $0x1a8] sm:$0xff] %v1919
    %1928 = vst [vmem:[#allocation2 + $0x1b0] sm:$0xff] %v1920
    %1929 = vst [vmem:[#allocation2 + $0x1b8] sm:$0xff] %v1921
    %1930 = vrot.lane.b32.xlu0 %v1542, 112
    %v1931 = vpop.permute.xlu0 %1930
    %1932 = vrot.lane.b32.xlu0 %v1546, 112
    %v1933 = vpop.permute.xlu0 %1932
    %1934 = vrot.lane.b32.xlu0 %v1543, 112
    %v1935 = vpop.permute.xlu0 %1934
    %1936 = vrot.lane.b32.xlu0 %v1547, 112
    %v1937 = vpop.permute.xlu0 %1936
    %1938 = vrot.lane.b32.xlu0 %v1544, 112
    %v1939 = vpop.permute.xlu0 %1938
    %1940 = vrot.lane.b32.xlu0 %v1548, 112
    %v1941 = vpop.permute.xlu0 %1940
    %1942 = vrot.lane.b32.xlu0 %v1545, 112
    %v1943 = vpop.permute.xlu0 %1942
    %1944 = vrot.lane.b32.xlu0 %v1549, 112
    %v1945 = vpop.permute.xlu0 %1944
    %v1946 = vsel %vm324, %v1939, %v1943
    %v1947 = vsel %vm324, %v1941, %v1945
    %v1948 = vsel %vm324, %v1935, %v1939
    %v1949 = vsel %vm324, %v1937, %v1941
    %v1950 = vsel %vm324, %v1931, %v1935
    %v1951 = vsel %vm324, %v1933, %v1937
    %v1952 = vsel %vm324, %v1943, %v1931
    %v1953 = vsel %vm324, %v1945, %v1933
    %v1954 = vld [vmem:[%s329] ss:$8 sm:$0xf]
    %v1956 = vlaneseq
    %v1957 = vshrl.u32 %v1956, 7
    %v1958 = vsub.s32 0, %v1957
    %v1959 = vrot.slane %v1954, %v1958
    %v1960 = vlaneseq
    %v1961 = vshrl.u32 %v1960, 7
    %v1962 = vsub.s32 1, %v1961
    %v1963 = vrot.slane %v1954, %v1962
    %v1964 = vlaneseq
    %v1965 = vshrl.u32 %v1964, 7
    %v1966 = vsub.s32 2, %v1965
    %v1967 = vrot.slane %v1954, %v1966
    %v1968 = vlaneseq
    %v1969 = vshrl.u32 %v1968, 7
    %v1970 = vsub.s32 3, %v1969
    %v1971 = vrot.slane %v1954, %v1970
    %v1976 = vmul.f32 %v1950, %v1959
    %v1977 = vmul.f32 %v1948, %v1963
    %v1978 = vmul.f32 %v1946, %v1967
    %v1979 = vmul.f32 %v1952, %v1971
    %v1980 = vmul.f32 %v1951, %v1959
    %v1981 = vmul.f32 %v1949, %v1963
    %v1982 = vmul.f32 %v1947, %v1967
    %v1983 = vmul.f32 %v1953, %v1971
    %1984 = vst [vmem:[#allocation2 + $0x1c0] sm:$0xff] %v1976
    %1985 = vst [vmem:[#allocation2 + $0x1c8] sm:$0xff] %v1977
    %1986 = vst [vmem:[#allocation2 + $0x1d0] sm:$0xff] %v1978
    %1987 = vst [vmem:[#allocation2 + $0x1d8] sm:$0xff] %v1979
    %1988 = vst [vmem:[#allocation2 + $0x1e0] sm:$0xff] %v1980
    %1989 = vst [vmem:[#allocation2 + $0x1e8] sm:$0xff] %v1981
    %1990 = vst [vmem:[#allocation2 + $0x1f0] sm:$0xff] %v1982
    %1991 = vst [vmem:[#allocation2 + $0x1f8] sm:$0xff] %v1983
    %1992 = vrot.lane.b32.xlu0 %v1542, 111
    %v1993 = vpop.permute.xlu0 %1992
    %1994 = vrot.lane.b32.xlu0 %v1546, 111
    %v1995 = vpop.permute.xlu0 %1994
    %1996 = vrot.lane.b32.xlu0 %v1543, 111
    %v1997 = vpop.permute.xlu0 %1996
    %1998 = vrot.lane.b32.xlu0 %v1547, 111
    %v1999 = vpop.permute.xlu0 %1998
    %2000 = vrot.lane.b32.xlu0 %v1544, 111
    %v2001 = vpop.permute.xlu0 %2000
    %2002 = vrot.lane.b32.xlu0 %v1548, 111
    %v2003 = vpop.permute.xlu0 %2002
    %2004 = vrot.lane.b32.xlu0 %v1545, 111
    %v2005 = vpop.permute.xlu0 %2004
    %2006 = vrot.lane.b32.xlu0 %v1549, 111
    %v2007 = vpop.permute.xlu0 %2006
    %v2008 = vsel %vm368, %v2001, %v2005
    %v2009 = vsel %vm368, %v2003, %v2007
    %v2010 = vsel %vm368, %v1997, %v2001
    %v2011 = vsel %vm368, %v1999, %v2003
    %v2012 = vsel %vm368, %v1993, %v1997
    %v2013 = vsel %vm368, %v1995, %v1999
    %v2014 = vsel %vm368, %v2005, %v1993
    %v2015 = vsel %vm368, %v2007, %v1995
    %v2016 = vld [vmem:[%s373] ss:$8 sm:$0xf]
    %v2018 = vlaneseq
    %v2019 = vshrl.u32 %v2018, 7
    %v2020 = vsub.s32 0, %v2019
    %v2021 = vrot.slane %v2016, %v2020
    %v2022 = vlaneseq
    %v2023 = vshrl.u32 %v2022, 7
    %v2024 = vsub.s32 1, %v2023
    %v2025 = vrot.slane %v2016, %v2024
    %v2026 = vlaneseq
    %v2027 = vshrl.u32 %v2026, 7
    %v2028 = vsub.s32 2, %v2027
    %v2029 = vrot.slane %v2016, %v2028
    %v2030 = vlaneseq
    %v2031 = vshrl.u32 %v2030, 7
    %v2032 = vsub.s32 3, %v2031
    %v2033 = vrot.slane %v2016, %v2032
    %v2038 = vmul.f32 %v2012, %v2021
    %v2039 = vmul.f32 %v2010, %v2025
    %v2040 = vmul.f32 %v2008, %v2029
    %v2041 = vmul.f32 %v2014, %v2033
    %v2042 = vmul.f32 %v2013, %v2021
    %v2043 = vmul.f32 %v2011, %v2025
    %v2044 = vmul.f32 %v2009, %v2029
    %v2045 = vmul.f32 %v2015, %v2033
    %2046 = vst [vmem:[#allocation2 + $0x200] sm:$0xff] %v2038
    %2047 = vst [vmem:[#allocation2 + $0x208] sm:$0xff] %v2039
    %2048 = vst [vmem:[#allocation2 + $0x210] sm:$0xff] %v2040
    %2049 = vst [vmem:[#allocation2 + $0x218] sm:$0xff] %v2041
    %2050 = vst [vmem:[#allocation2 + $0x220] sm:$0xff] %v2042
    %2051 = vst [vmem:[#allocation2 + $0x228] sm:$0xff] %v2043
    %2052 = vst [vmem:[#allocation2 + $0x230] sm:$0xff] %v2044
    %2053 = vst [vmem:[#allocation2 + $0x238] sm:$0xff] %v2045
    %v2054 = vld [vmem:[#allocation2] sm:$0xff]
    %v2055 = vld [vmem:[#allocation2 + $0x8] sm:$0xff]
    %v2056 = vld [vmem:[#allocation2 + $0x10] sm:$0xff]
    %v2057 = vld [vmem:[#allocation2 + $0x18] sm:$0xff]
    %v2058 = vld [vmem:[#allocation2 + $0x20] sm:$0xff]
    %v2059 = vld [vmem:[#allocation2 + $0x28] sm:$0xff]
    %v2060 = vld [vmem:[#allocation2 + $0x30] sm:$0xff]
    %v2061 = vld [vmem:[#allocation2 + $0x38] sm:$0xff]
    %v2062 = vld [vmem:[#allocation2 + $0x40] sm:$0xff]
    %v2063 = vld [vmem:[#allocation2 + $0x48] sm:$0xff]
    %v2064 = vld [vmem:[#allocation2 + $0x50] sm:$0xff]
    %v2065 = vld [vmem:[#allocation2 + $0x58] sm:$0xff]
    %v2066 = vld [vmem:[#allocation2 + $0x60] sm:$0xff]
    %v2067 = vld [vmem:[#allocation2 + $0x68] sm:$0xff]
    %v2068 = vld [vmem:[#allocation2 + $0x70] sm:$0xff]
    %v2069 = vld [vmem:[#allocation2 + $0x78] sm:$0xff]
    %v2070 = vld [vmem:[#allocation2 + $0x80] sm:$0xff]
    %v2071 = vld [vmem:[#allocation2 + $0x88] sm:$0xff]
    %v2072 = vld [vmem:[#allocation2 + $0x90] sm:$0xff]
    %v2073 = vld [vmem:[#allocation2 + $0x98] sm:$0xff]
    %v2074 = vld [vmem:[#allocation2 + $0xa0] sm:$0xff]
    %v2075 = vld [vmem:[#allocation2 + $0xa8] sm:$0xff]
    %v2076 = vld [vmem:[#allocation2 + $0xb0] sm:$0xff]
    %v2077 = vld [vmem:[#allocation2 + $0xb8] sm:$0xff]
    %v2078 = vld [vmem:[#allocation2 + $0xc0] sm:$0xff]
    %v2079 = vld [vmem:[#allocation2 + $0xc8] sm:$0xff]
    %v2080 = vld [vmem:[#allocation2 + $0xd0] sm:$0xff]
    %v2081 = vld [vmem:[#allocation2 + $0xd8] sm:$0xff]
    %v2082 = vld [vmem:[#allocation2 + $0xe0] sm:$0xff]
    %v2083 = vld [vmem:[#allocation2 + $0xe8] sm:$0xff]
    %v2084 = vld [vmem:[#allocation2 + $0xf0] sm:$0xff]
    %v2085 = vld [vmem:[#allocation2 + $0xf8] sm:$0xff]
    %v2086 = vld [vmem:[#allocation2 + $0x100] sm:$0xff]
    %v2087 = vld [vmem:[#allocation2 + $0x108] sm:$0xff]
    %v2088 = vld [vmem:[#allocation2 + $0x110] sm:$0xff]
    %v2089 = vld [vmem:[#allocation2 + $0x118] sm:$0xff]
    %v2090 = vld [vmem:[#allocation2 + $0x120] sm:$0xff]
    %v2091 = vld [vmem:[#allocation2 + $0x128] sm:$0xff]
    %v2092 = vld [vmem:[#allocation2 + $0x130] sm:$0xff]
    %v2093 = vld [vmem:[#allocation2 + $0x138] sm:$0xff]
    %v2094 = vld [vmem:[#allocation2 + $0x140] sm:$0xff]
    %v2095 = vld [vmem:[#allocation2 + $0x148] sm:$0xff]
    %v2096 = vld [vmem:[#allocation2 + $0x150] sm:$0xff]
    %v2097 = vld [vmem:[#allocation2 + $0x158] sm:$0xff]
    %v2098 = vld [vmem:[#allocation2 + $0x160] sm:$0xff]
    %v2099 = vld [vmem:[#allocation2 + $0x168] sm:$0xff]
    %v2100 = vld [vmem:[#allocation2 + $0x170] sm:$0xff]
    %v2101 = vld [vmem:[#allocation2 + $0x178] sm:$0xff]
    %v2102 = vld [vmem:[#allocation2 + $0x180] sm:$0xff]
    %v2103 = vld [vmem:[#allocation2 + $0x188] sm:$0xff]
    %v2104 = vld [vmem:[#allocation2 + $0x190] sm:$0xff]
    %v2105 = vld [vmem:[#allocation2 + $0x198] sm:$0xff]
    %v2106 = vld [vmem:[#allocation2 + $0x1a0] sm:$0xff]
    %v2107 = vld [vmem:[#allocation2 + $0x1a8] sm:$0xff]
    %v2108 = vld [vmem:[#allocation2 + $0x1b0] sm:$0xff]
    %v2109 = vld [vmem:[#allocation2 + $0x1b8] sm:$0xff]
    %v2110 = vld [vmem:[#allocation2 + $0x1c0] sm:$0xff]
    %v2111 = vld [vmem:[#allocation2 + $0x1c8] sm:$0xff]
    %v2112 = vld [vmem:[#allocation2 + $0x1d0] sm:$0xff]
    %v2113 = vld [vmem:[#allocation2 + $0x1d8] sm:$0xff]
    %v2114 = vld [vmem:[#allocation2 + $0x1e0] sm:$0xff]
    %v2115 = vld [vmem:[#allocation2 + $0x1e8] sm:$0xff]
    %v2116 = vld [vmem:[#allocation2 + $0x1f0] sm:$0xff]
    %v2117 = vld [vmem:[#allocation2 + $0x1f8] sm:$0xff]
    %v2118 = vld [vmem:[#allocation2 + $0x200] sm:$0xff]
    %v2119 = vld [vmem:[#allocation2 + $0x208] sm:$0xff]
    %v2120 = vld [vmem:[#allocation2 + $0x210] sm:$0xff]
    %v2121 = vld [vmem:[#allocation2 + $0x218] sm:$0xff]
    %v2122 = vld [vmem:[#allocation2 + $0x220] sm:$0xff]
    %v2123 = vld [vmem:[#allocation2 + $0x228] sm:$0xff]
    %v2124 = vld [vmem:[#allocation2 + $0x230] sm:$0xff]
    %v2125 = vld [vmem:[#allocation2 + $0x238] sm:$0xff]
    %2127 = vset.pattern.permute.xlu0 0
    %2128 = vperm.xlu0 %2127, %v690
    %v2129 = vpop.permute.xlu0 %2128
    %2132 = vset.pattern.permute.xlu0 0
    %2133 = vperm.xlu0 %2132, %v691
    %v2134 = vpop.permute.xlu0 %2133
    %v2137 = vsel %vm1381, %v687, 0
    %v2140 = vsel %vm1381, %v689, 0
    %2142 = vmatprep.subr.mxu0 %v2055
    %2143 = vmatpush1.msra.mxu0 %v2054
    %2144 = vmatprep.subr.mxu0 %v2059
    %2145 = vmatpush1.msra.mxu0 %v2058
    %2146 = vmatprep.subr.mxu0 %v2063
    %2147 = vmatpush1.msra.mxu0 %v2062
    %2148 = vmatprep.subr.mxu0 %v2067
    %2149 = vmatpush1.msra.mxu0 %v2066
    %2150 = vmatprep.subr.mxu0 %v2071
    %2151 = vmatpush1.msra.mxu0 %v2070
    %2152 = vmatprep.subr.mxu0 %v2075
    %2153 = vmatpush1.msra.mxu0 %v2074
    %2154 = vmatprep.subr.mxu0 %v2079
    %2155 = vmatpush1.msra.mxu0 %v2078
    %2156 = vmatprep.subr.mxu0 %v2083
    %2157 = vmatpush1.msra.mxu0 %v2082
    %2158 = vmatprep.subr.mxu0 %v2087
    %2159 = vmatpush1.msra.mxu0 %v2086
    %2160 = vmatprep.subr.mxu0 %v2091
    %2161 = vmatpush1.msra.mxu0 %v2090
    %2162 = vmatprep.subr.mxu0 %v2095
    %2163 = vmatpush1.msra.mxu0 %v2094
    %2164 = vmatprep.subr.mxu0 %v2099
    %2165 = vmatpush1.msra.mxu0 %v2098
    %2166 = vmatprep.subr.mxu0 %v2103
    %2167 = vmatpush1.msra.mxu0 %v2102
    %2168 = vmatprep.subr.mxu0 %v2107
    %2169 = vmatpush1.msra.mxu0 %v2106
    %2170 = vmatprep.subr.mxu0 %v2111
    %2171 = vmatpush1.msra.mxu0 %v2110
    %2172 = vmatprep.subr.mxu0 %v2115
    %2173 = vmatpush1.msra.mxu0 %v2114
    %2174 = vmatprep.subr.mxu0 %v2119
    %2175 = vmatpush1.msra.mxu0 %v2118
    %2176 = vmatprep.subr.mxu0 %v2123
    %2177 = vmatpush1.msra.mxu0 %v2122
    %2178 = vmatprep.subr.mxu0 0.0
    %2179 = vmatpush1.msra.mxu0 0.0
    %2180 = vmatprep.subr.mxu0 0.0
    %2181 = vmatpush1.msra.mxu0 0.0
    %2182 = vmatprep.subr.mxu0 0.0
    %2183 = vmatpush1.msra.mxu0 0.0
    %2184 = vmatprep.subr.mxu0 0.0
    %2185 = vmatpush1.msra.mxu0 0.0
    %2186 = vmatprep.subr.mxu0 0.0
    %2187 = vmatpush1.msra.mxu0 0.0
    %2188 = vmatprep.subr.mxu0 0.0
    %2189 = vmatpush1.msra.mxu0 0.0
    %2190 = vmatprep.subr.mxu0 0.0
    %2191 = vmatpush1.msra.mxu0 0.0
    %2192 = vmatprep.subr.mxu0 0.0
    %2193 = vmatpush1.msra.mxu0 0.0
    %2194 = vmatprep.subr.mxu0 0.0
    %2195 = vmatpush1.msra.mxu0 0.0
    %2196 = vmatprep.subr.mxu0 0.0
    %2197 = vmatpush1.msra.mxu0 0.0
    %2198 = vmatprep.subr.mxu0 0.0
    %2199 = vmatpush1.msra.mxu0 0.0
    %2200 = vmatprep.subr.mxu0 0.0
    %2201 = vmatpush1.msra.mxu0 0.0
    %2202 = vmatprep.subr.mxu0 0.0
    %2203 = vmatpush1.msra.mxu0 0.0
    %2204 = vmatprep.subr.mxu0 0.0
    %2205 = vmatpush1.msra.mxu0 0.0
    %2206 = vmatprep.mubr.f32.mxu0 %v2137
    %2207 = vmatmul.mubr.f32.gmra.mrb[0].mxu0 %v686
    %v2208 = vpop.f32.mrb[0].mxu0
    %v2209 = vadd.f32 %v2129, %v2208
    %v2210 = vpop.f32.mrb[0].mxu0
    %v2211 = vadd.f32 %v2129, %v2210
    %2212 = vmatprep.mubr.f32.mxu0 %v2140
    %2213 = vmatmul.mubr.f32.gmra.mrb[0].mxu0 %v688
    %v2214 = vpop.f32.mrb[0].mxu0
    %v2215 = vadd.f32 %v2134, %v2214
    %v2216 = vpop.f32.mrb[0].mxu0
    %v2217 = vadd.f32 %v2134, %v2216
    %2218 = vdwg.mxu0
    %2219 = vmatprep.subr.mxu0 %v2057
    %2220 = vmatpush1.msra.mxu0 %v2056
    %2221 = vmatprep.subr.mxu0 %v2061
    %2222 = vmatpush1.msra.mxu0 %v2060
    %2223 = vmatprep.subr.mxu0 %v2065
    %2224 = vmatpush1.msra.mxu0 %v2064
    %2225 = vmatprep.subr.mxu0 %v2069
    %2226 = vmatpush1.msra.mxu0 %v2068
    %2227 = vmatprep.subr.mxu0 %v2073
    %2228 = vmatpush1.msra.mxu0 %v2072
    %2229 = vmatprep.subr.mxu0 %v2077
    %2230 = vmatpush1.msra.mxu0 %v2076
    %2231 = vmatprep.subr.mxu0 %v2081
    %2232 = vmatpush1.msra.mxu0 %v2080
    %2233 = vmatprep.subr.mxu0 %v2085
    %2234 = vmatpush1.msra.mxu0 %v2084
    %2235 = vmatprep.subr.mxu0 %v2089
    %2236 = vmatpush1.msra.mxu0 %v2088
    %2237 = vmatprep.subr.mxu0 %v2093
    %2238 = vmatpush1.msra.mxu0 %v2092
    %2239 = vmatprep.subr.mxu0 %v2097
    %2240 = vmatpush1.msra.mxu0 %v2096
    %2241 = vmatprep.subr.mxu0 %v2101
    %2242 = vmatpush1.msra.mxu0 %v2100
    %2243 = vmatprep.subr.mxu0 %v2105
    %2244 = vmatpush1.msra.mxu0 %v2104
    %2245 = vmatprep.subr.mxu0 %v2109
    %2246 = vmatpush1.msra.mxu0 %v2108
    %2247 = vmatprep.subr.mxu0 %v2113
    %2248 = vmatpush1.msra.mxu0 %v2112
    %2249 = vmatprep.subr.mxu0 %v2117
    %2250 = vmatpush1.msra.mxu0 %v2116
    %2251 = vmatprep.subr.mxu0 %v2121
    %2252 = vmatpush1.msra.mxu0 %v2120
    %2253 = vmatprep.subr.mxu0 %v2125
    %2254 = vmatpush1.msra.mxu0 %v2124
    %2255 = vmatprep.subr.mxu0 0.0
    %2256 = vmatpush1.msra.mxu0 0.0
    %2257 = vmatprep.subr.mxu0 0.0
    %2258 = vmatpush1.msra.mxu0 0.0
    %2259 = vmatprep.subr.mxu0 0.0
    %2260 = vmatpush1.msra.mxu0 0.0
    %2261 = vmatprep.subr.mxu0 0.0
    %2262 = vmatpush1.msra.mxu0 0.0
    %2263 = vmatprep.subr.mxu0 0.0
    %2264 = vmatpush1.msra.mxu0 0.0
    %2265 = vmatprep.subr.mxu0 0.0
    %2266 = vmatpush1.msra.mxu0 0.0
    %2267 = vmatprep.subr.mxu0 0.0
    %2268 = vmatpush1.msra.mxu0 0.0
    %2269 = vmatprep.subr.mxu0 0.0
    %2270 = vmatpush1.msra.mxu0 0.0
    %2271 = vmatprep.subr.mxu0 0.0
    %2272 = vmatpush1.msra.mxu0 0.0
    %2273 = vmatprep.subr.mxu0 0.0
    %2274 = vmatpush1.msra.mxu0 0.0
    %2275 = vmatprep.subr.mxu0 0.0
    %2276 = vmatpush1.msra.mxu0 0.0
    %2277 = vmatprep.subr.mxu0 0.0
    %2278 = vmatpush1.msra.mxu0 0.0
    %2279 = vmatprep.subr.mxu0 0.0
    %2280 = vmatpush1.msra.mxu0 0.0
    %2281 = vmatprep.subr.mxu0 0.0
    %2282 = vmatpush1.msra.mxu0 0.0
    %2283 = vmatprep.mubr.f32.mxu0 %v2137
    %2284 = vmatmul.mubr.f32.gmra.mrb[0].mxu0 %v686
    %v2285 = vpop.f32.mrb[0].mxu0
    %v2286 = vadd.f32 %v2129, %v2285
    %v2287 = vpop.f32.mrb[0].mxu0
    %v2288 = vadd.f32 %v2129, %v2287
    %2289 = vmatprep.mubr.f32.mxu0 %v2140
    %2290 = vmatmul.mubr.f32.gmra.mrb[0].mxu0 %v688
    %v2291 = vpop.f32.mrb[0].mxu0
    %v2292 = vadd.f32 %v2134, %v2291
    %v2293 = vpop.f32.mrb[0].mxu0
    %v2294 = vadd.f32 %v2134, %v2293
    %2295 = vdwg.mxu0
    %v2296 = vadd.f32 %v660, %v2209
    %v2297 = vadd.f32 %v661, %v2211
    %v2298 = vadd.f32 %v662, %v2286
    %v2299 = vadd.f32 %v663, %v2288
    %v2300 = vadd.f32 %v664, %v2215
    %v2301 = vadd.f32 %v665, %v2217
    %v2302 = vadd.f32 %v666, %v2292
    %v2303 = vadd.f32 %v667, %v2294
    %s2304 = scalar_lea.vmem [#allocation5], 224
    %v2305 = vld [vmem:[%s2304] ss:$8 sm:$0x3]
    %s2306 = scalar_lea.vmem [#allocation5], 240
    %v2307 = vld [vmem:[%s2306] ss:$8 sm:$0x3]
    %v2308 = vld [vmem:[#allocation5 + $0x100] sm:$0xff]
    %v2309 = vld [vmem:[#allocation5 + $0x110] sm:$0xff]
    %v2310 = vld [vmem:[#allocation5 + $0x120] sm:$0xff]
    %v2311 = vld [vmem:[#allocation5 + $0x130] sm:$0xff]
    %v2312 = vld [vmem:[#allocation5 + $0x140] sm:$0xff]
    %v2313 = vld [vmem:[#allocation5 + $0x150] sm:$0xff]
    %v2314 = vld [vmem:[#allocation5 + $0x160] sm:$0xff]
    %v2315 = vld [vmem:[#allocation5 + $0x170] sm:$0xff]
    %v2316 = vld [vmem:[#allocation5 + $0x180] sm:$0xff]
    %v2317 = vld [vmem:[#allocation5 + $0x190] sm:$0xff]
    %v2318 = vld [vmem:[#allocation5 + $0x1a0] sm:$0xff]
    %v2319 = vld [vmem:[#allocation5 + $0x1b0] sm:$0xff]
    %v2320 = vld [vmem:[#allocation5 + $0x1c0] sm:$0xff]
    %v2321 = vld [vmem:[#allocation5 + $0x1d0] sm:$0xff]
    %v2322 = vld [vmem:[#allocation5 + $0x1e0] sm:$0xff]
    %v2323 = vld [vmem:[#allocation5 + $0x1f0] sm:$0xff]
    %v2324 = vld [vmem:[#allocation5 + $0x200] sm:$0xff]
    %v2325 = vld [vmem:[#allocation5 + $0x210] sm:$0xff]
    %v2326 = vld [vmem:[#allocation5 + $0x220] sm:$0xff]
    %v2327 = vld [vmem:[#allocation5 + $0x230] sm:$0xff]
    %v2328 = vld [vmem:[#allocation5 + $0x240] sm:$0xff]
    %v2329 = vld [vmem:[#allocation5 + $0x250] sm:$0xff]
    %v2330 = vld [vmem:[#allocation5 + $0x260] sm:$0xff]
    %v2331 = vld [vmem:[#allocation5 + $0x270] sm:$0xff]
    %v2332 = vld [vmem:[#allocation5 + $0x280] sm:$0xff]
    %v2333 = vld [vmem:[#allocation5 + $0x290] sm:$0xff]
    %v2334 = vld [vmem:[#allocation5 + $0x2a0] sm:$0xff]
    %v2335 = vld [vmem:[#allocation5 + $0x2b0] sm:$0xff]
    %v2336 = vld [vmem:[#allocation5 + $0x2c0] sm:$0xff]
    %v2337 = vld [vmem:[#allocation5 + $0x2d0] sm:$0xff]
    %v2338 = vld [vmem:[#allocation5 + $0x2e0] sm:$0xff]
    %v2339 = vld [vmem:[#allocation5 + $0x2f0] sm:$0xff]
    %v2340 = vld [vmem:[#allocation5 + $0x300] ss:$0 sm:$0xff]
    %v2341 = vld [vmem:[#allocation5 + $0x310] sm:$0xff]
    %v2342 = vld [vmem:[#allocation5 + $0x318] sm:$0xff]
    %v2343 = vld [vmem:[#allocation5 + $0x320] sm:$0xff]
    %v2344 = vld [vmem:[#allocation5 + $0x328] sm:$0xff]
    %v2345 = vld [vmem:[#allocation5 + $0x330] sm:$0xff]
    %v2346 = vld [vmem:[#allocation5 + $0x338] sm:$0xff]
    %v2347 = vld [vmem:[#allocation5 + $0x340] sm:$0xff]
    %v2348 = vld [vmem:[#allocation5 + $0x348] sm:$0xff]
    %s2349 = scalar_lea.vmem [#allocation5], 848
    %v2350 = vld [vmem:[%s2349] ss:$8 sm:$0x3]
    %v2351 = vadd.f32 %v2296, %v2297
    %2352 = vadd.xlane.f32.xlu0 %v2351
    %v2353 = vpop.xlane.xlu0 %2352
    %v2354 = vadd.f32 %v2300, %v2301
    %2355 = vadd.xlane.f32.xlu0 %v2354
    %v2356 = vpop.xlane.xlu0 %2355
    %v2357 = vadd.f32 %v2298, %v2299
    %2358 = vadd.xlane.f32.xlu0 %v2357
    %v2359 = vpop.xlane.xlu0 %2358
    %v2360 = vadd.f32 %v2302, %v2303
    %2361 = vadd.xlane.f32.xlu0 %v2360
    %v2362 = vpop.xlane.xlu0 %2361
    %v2363 = vmul.f32 %v2353, %v698
    %v2364 = vmul.f32 %v2356, %v698
    %v2365 = vmul.f32 %v2359, %v698
    %v2366 = vmul.f32 %v2362, %v698
    %v2367 = vsub.f32 %v2296, %v2363
    %v2368 = vsub.f32 %v2297, %v2363
    %v2369 = vsub.f32 %v2300, %v2364
    %v2370 = vsub.f32 %v2301, %v2364
    %v2371 = vsub.f32 %v2298, %v2365
    %v2372 = vsub.f32 %v2299, %v2365
    %v2373 = vsub.f32 %v2302, %v2366
    %v2374 = vsub.f32 %v2303, %v2366
    %v2375 = vmul.f32 %v2367, %v2367
    %v2376 = vmul.f32 %v2368, %v2368
    %v2377 = vmul.f32 %v2369, %v2369
    %v2378 = vmul.f32 %v2370, %v2370
    %v2379 = vmul.f32 %v2371, %v2371
    %v2380 = vmul.f32 %v2372, %v2372
    %v2381 = vmul.f32 %v2373, %v2373
    %v2382 = vmul.f32 %v2374, %v2374
    %v2383 = vadd.f32 %v2375, %v2376
    %2384 = vadd.xlane.f32.xlu0 %v2383
    %v2385 = vpop.xlane.xlu0 %2384
    %v2386 = vadd.f32 %v2377, %v2378
    %2387 = vadd.xlane.f32.xlu0 %v2386
    %v2388 = vpop.xlane.xlu0 %2387
    %v2389 = vadd.f32 %v2379, %v2380
    %2390 = vadd.xlane.f32.xlu0 %v2389
    %v2391 = vpop.xlane.xlu0 %2390
    %v2392 = vadd.f32 %v2381, %v2382
    %2393 = vadd.xlane.f32.xlu0 %v2392
    %v2394 = vpop.xlane.xlu0 %2393
    %v2395 = vmul.f32 %v2385, %v698
    %v2396 = vmul.f32 %v2388, %v698
    %v2397 = vmul.f32 %v2391, %v698
    %v2398 = vmul.f32 %v2394, %v698
    %v2399 = vadd.f32 %v2395, 1e-05
    %v2400 = vadd.f32 %v2396, 1e-05
    %v2401 = vadd.f32 %v2397, 1e-05
    %v2402 = vadd.f32 %v2398, 1e-05
    %v2403 = vrsqrt.pop %v2399
    %v2404 = vrsqrt.pop %v2400
    %v2405 = vrsqrt.pop %v2401
    %v2406 = vrsqrt.pop %v2402
    %v2407 = vmul.f32 %v2367, %v2403
    %v2408 = vmul.f32 %v2368, %v2403
    %v2409 = vmul.f32 %v2369, %v2404
    %v2410 = vmul.f32 %v2370, %v2404
    %v2411 = vmul.f32 %v2371, %v2405
    %v2412 = vmul.f32 %v2372, %v2405
    %v2413 = vmul.f32 %v2373, %v2406
    %v2414 = vmul.f32 %v2374, %v2406
    %v2416 = vlaneseq
    %v2417 = vshrl.u32 %v2416, 7
    %v2418 = vsub.s32 0, %v2417
    %v2419 = vrot.slane %v2305, %v2418
    %v2420 = vlaneseq
    %v2421 = vshrl.u32 %v2420, 7
    %v2422 = vsub.s32 1, %v2421
    %v2423 = vrot.slane %v2305, %v2422
    %v2426 = vmul.f32 %v2407, %v2419
    %v2427 = vmul.f32 %v2408, %v2423
    %v2428 = vmul.f32 %v2409, %v2419
    %v2429 = vmul.f32 %v2410, %v2423
    %v2430 = vmul.f32 %v2411, %v2419
    %v2431 = vmul.f32 %v2412, %v2423
    %v2432 = vmul.f32 %v2413, %v2419
    %v2433 = vmul.f32 %v2414, %v2423
    %v2435 = vlaneseq
    %v2436 = vshrl.u32 %v2435, 7
    %v2437 = vsub.s32 0, %v2436
    %v2438 = vrot.slane %v2307, %v2437
    %v2439 = vlaneseq
    %v2440 = vshrl.u32 %v2439, 7
    %v2441 = vsub.s32 1, %v2440
    %v2442 = vrot.slane %v2307, %v2441
    %v2445 = vadd.f32 %v2426, %v2438
    %v2446 = vadd.f32 %v2427, %v2442
    %v2447 = vadd.f32 %v2428, %v2438
    %v2448 = vadd.f32 %v2429, %v2442
    %v2449 = vadd.f32 %v2430, %v2438
    %v2450 = vadd.f32 %v2431, %v2442
    %v2451 = vadd.f32 %v2432, %v2438
    %v2452 = vadd.f32 %v2433, %v2442
    %2453 = vmatprep.subr.mxu0 0.0
    %2454 = vmatpush1.msra.mxu0 %v2308
    %2455 = vmatprep.subr.mxu0 0.0
    %2456 = vmatpush1.msra.mxu0 %v2309
    %2457 = vmatprep.subr.mxu0 0.0
    %2458 = vmatpush1.msra.mxu0 %v2310
    %2459 = vmatprep.subr.mxu0 0.0
    %2460 = vmatpush1.msra.mxu0 %v2311
    %2461 = vmatprep.subr.mxu0 0.0
    %2462 = vmatpush1.msra.mxu0 %v2312
    %2463 = vmatprep.subr.mxu0 0.0
    %2464 = vmatpush1.msra.mxu0 %v2313
    %2465 = vmatprep.subr.mxu0 0.0
    %2466 = vmatpush1.msra.mxu0 %v2314
    %2467 = vmatprep.subr.mxu0 0.0
    %2468 = vmatpush1.msra.mxu0 %v2315
    %2469 = vmatprep.subr.mxu0 0.0
    %2470 = vmatpush1.msra.mxu0 %v2316
    %2471 = vmatprep.subr.mxu0 0.0
    %2472 = vmatpush1.msra.mxu0 %v2317
    %2473 = vmatprep.subr.mxu0 0.0
    %2474 = vmatpush1.msra.mxu0 %v2318
    %2475 = vmatprep.subr.mxu0 0.0
    %2476 = vmatpush1.msra.mxu0 %v2319
    %2477 = vmatprep.subr.mxu0 0.0
    %2478 = vmatpush1.msra.mxu0 %v2320
    %2479 = vmatprep.subr.mxu0 0.0
    %2480 = vmatpush1.msra.mxu0 %v2321
    %2481 = vmatprep.subr.mxu0 0.0
    %2482 = vmatpush1.msra.mxu0 %v2322
    %2483 = vmatprep.subr.mxu0 0.0
    %2484 = vmatpush1.msra.mxu0 %v2323
    %2485 = vmatprep.subr.mxu0 0.0
    %2486 = vmatpush1.msra.mxu0 %v2324
    %2487 = vmatprep.subr.mxu0 0.0
    %2488 = vmatpush1.msra.mxu0 %v2325
    %2489 = vmatprep.subr.mxu0 0.0
    %2490 = vmatpush1.msra.mxu0 %v2326
    %2491 = vmatprep.subr.mxu0 0.0
    %2492 = vmatpush1.msra.mxu0 %v2327
    %2493 = vmatprep.subr.mxu0 0.0
    %2494 = vmatpush1.msra.mxu0 %v2328
    %2495 = vmatprep.subr.mxu0 0.0
    %2496 = vmatpush1.msra.mxu0 %v2329
    %2497 = vmatprep.subr.mxu0 0.0
    %2498 = vmatpush1.msra.mxu0 %v2330
    %2499 = vmatprep.subr.mxu0 0.0
    %2500 = vmatpush1.msra.mxu0 %v2331
    %2501 = vmatprep.subr.mxu0 0.0
    %2502 = vmatpush1.msra.mxu0 %v2332
    %2503 = vmatprep.subr.mxu0 0.0
    %2504 = vmatpush1.msra.mxu0 %v2333
    %2505 = vmatprep.subr.mxu0 0.0
    %2506 = vmatpush1.msra.mxu0 %v2334
    %2507 = vmatprep.subr.mxu0 0.0
    %2508 = vmatpush1.msra.mxu0 %v2335
    %2509 = vmatprep.subr.mxu0 0.0
    %2510 = vmatpush1.msra.mxu0 %v2336
    %2511 = vmatprep.subr.mxu0 0.0
    %2512 = vmatpush1.msra.mxu0 %v2337
    %2513 = vmatprep.subr.mxu0 0.0
    %2514 = vmatpush1.msra.mxu0 %v2338
    %2515 = vmatprep.subr.mxu0 0.0
    %2516 = vmatpush1.msra.mxu0 %v2339
    %2517 = vmatprep.mubr.f32.mxu0 %v2446
    %2518 = vmatmul.mubr.f32.gmra.mrb[0].mxu0 %v2445
    %v2519 = vpop.f32.mrb[0].mxu0
    %v2520 = vadd.f32 %v2340, %v2519
    %v2521 = vpop.f32.mrb[0].mxu0
    %2522 = vmatprep.mubr.f32.mxu0 %v2448
    %2523 = vmatmul.mubr.f32.gmra.mrb[0].mxu0 %v2447
    %v2524 = vpop.f32.mrb[0].mxu0
    %v2525 = vadd.f32 %v2340, %v2524
    %v2526 = vpop.f32.mrb[0].mxu0
    %2527 = vmatprep.mubr.f32.mxu0 %v2450
    %2528 = vmatmul.mubr.f32.gmra.mrb[0].mxu0 %v2449
    %v2529 = vpop.f32.mrb[0].mxu0
    %v2530 = vadd.f32 %v2340, %v2529
    %v2531 = vpop.f32.mrb[0].mxu0
    %2532 = vmatprep.mubr.f32.mxu0 %v2452
    %2533 = vmatmul.mubr.f32.gmra.mrb[0].mxu0 %v2451
    %v2534 = vpop.f32.mrb[0].mxu0
    %v2535 = vadd.f32 %v2340, %v2534
    %v2536 = vpop.f32.mrb[0].mxu0
    %2537 = vdwg.mxu0
    %v2538 = vmax.f32 %v2520, 0.0
    %v2539 = vmax.f32 %v2525, 0.0
    %v2540 = vmax.f32 %v2530, 0.0
    %v2541 = vmax.f32 %v2535, 0.0
    %vm2542 = vcmask 261120
    %v2544 = vsel %vm2542, %v2538, 0
    %v2547 = vsel %vm2542, %v2539, 0
    %v2550 = vsel %vm2542, %v2540, 0
    %v2553 = vsel %vm2542, %v2541, 0
    %2555 = vmatprep.subr.mxu0 %v2342
    %2556 = vmatpush1.msra.mxu0 %v2341
    %2557 = vmatprep.subr.mxu0 %v2344
    %2558 = vmatpush1.msra.mxu0 %v2343
    %2559 = vmatprep.subr.mxu0 %v2346
    %2560 = vmatpush1.msra.mxu0 %v2345
    %2561 = vmatprep.subr.mxu0 %v2348
    %2562 = vmatpush1.msra.mxu0 %v2347
    %2563 = vmatprep.subr.mxu0 0.0
    %2564 = vmatpush1.msra.mxu0 0.0
    %2565 = vmatprep.subr.mxu0 0.0
    %2566 = vmatpush1.msra.mxu0 0.0
    %2567 = vmatprep.subr.mxu0 0.0
    %2568 = vmatpush1.msra.mxu0 0.0
    %2569 = vmatprep.subr.mxu0 0.0
    %2570 = vmatpush1.msra.mxu0 0.0
    %2571 = vmatprep.subr.mxu0 0.0
    %2572 = vmatpush1.msra.mxu0 0.0
    %2573 = vmatprep.subr.mxu0 0.0
    %2574 = vmatpush1.msra.mxu0 0.0
    %2575 = vmatprep.subr.mxu0 0.0
    %2576 = vmatpush1.msra.mxu0 0.0
    %2577 = vmatprep.subr.mxu0 0.0
    %2578 = vmatpush1.msra.mxu0 0.0
    %2579 = vmatprep.subr.mxu0 0.0
    %2580 = vmatpush1.msra.mxu0 0.0
    %2581 = vmatprep.subr.mxu0 0.0
    %2582 = vmatpush1.msra.mxu0 0.0
    %2583 = vmatprep.subr.mxu0 0.0
    %2584 = vmatpush1.msra.mxu0 0.0
    %2585 = vmatprep.subr.mxu0 0.0
    %2586 = vmatpush1.msra.mxu0 0.0
    %2587 = vmatprep.subr.mxu0 0.0
    %2588 = vmatpush1.msra.mxu0 0.0
    %2589 = vmatprep.subr.mxu0 0.0
    %2590 = vmatpush1.msra.mxu0 0.0
    %2591 = vmatprep.subr.mxu0 0.0
    %2592 = vmatpush1.msra.mxu0 0.0
    %2593 = vmatprep.subr.mxu0 0.0
    %2594 = vmatpush1.msra.mxu0 0.0
    %2595 = vmatprep.subr.mxu0 0.0
    %2596 = vmatpush1.msra.mxu0 0.0
    %2597 = vmatprep.subr.mxu0 0.0
    %2598 = vmatpush1.msra.mxu0 0.0
    %2599 = vmatprep.subr.mxu0 0.0
    %2600 = vmatpush1.msra.mxu0 0.0
    %2601 = vmatprep.subr.mxu0 0.0
    %2602 = vmatpush1.msra.mxu0 0.0
    %2603 = vmatprep.subr.mxu0 0.0
    %2604 = vmatpush1.msra.mxu0 0.0
    %2605 = vmatprep.subr.mxu0 0.0
    %2606 = vmatpush1.msra.mxu0 0.0
    %2607 = vmatprep.subr.mxu0 0.0
    %2608 = vmatpush1.msra.mxu0 0.0
    %2609 = vmatprep.subr.mxu0 0.0
    %2610 = vmatpush1.msra.mxu0 0.0
    %2611 = vmatprep.subr.mxu0 0.0
    %2612 = vmatpush1.msra.mxu0 0.0
    %2613 = vmatprep.subr.mxu0 0.0
    %2614 = vmatpush1.msra.mxu0 0.0
    %2615 = vmatprep.subr.mxu0 0.0
    %2616 = vmatpush1.msra.mxu0 0.0
    %2617 = vmatprep.subr.mxu0 0.0
    %2618 = vmatpush1.msra.mxu0 0.0
    %2619 = vmatprep.mubr.f32.mxu0 0.0
    %2620 = vmatmul.mubr.f32.gmra.mrb[0].mxu0 %v2544
    %v2621 = vpop.f32.mrb[0].mxu0
    %v2622 = vadd.f32 0.0, %v2621
    %v2623 = vpop.f32.mrb[0].mxu0
    %v2624 = vadd.f32 0.0, %v2623
    %2625 = vmatprep.mubr.f32.mxu0 0.0
    %2626 = vmatmul.mubr.f32.gmra.mrb[0].mxu0 %v2547
    %v2627 = vpop.f32.mrb[0].mxu0
    %v2628 = vadd.f32 0.0, %v2627
    %v2629 = vpop.f32.mrb[0].mxu0
    %v2630 = vadd.f32 0.0, %v2629
    %2631 = vmatprep.mubr.f32.mxu0 0.0
    %2632 = vmatmul.mubr.f32.gmra.mrb[0].mxu0 %v2550
    %v2633 = vpop.f32.mrb[0].mxu0
    %v2634 = vadd.f32 0.0, %v2633
    %v2635 = vpop.f32.mrb[0].mxu0
    %v2636 = vadd.f32 0.0, %v2635
    %2637 = vmatprep.mubr.f32.mxu0 0.0
    %2638 = vmatmul.mubr.f32.gmra.mrb[0].mxu0 %v2553
    %v2639 = vpop.f32.mrb[0].mxu0
    %v2640 = vadd.f32 0.0, %v2639
    %v2641 = vpop.f32.mrb[0].mxu0
    %v2642 = vadd.f32 0.0, %v2641
    %2643 = vdwg.mxu0
    %v2644 = vadd.f32 %v2296, %v2622
    %v2645 = vadd.f32 %v2297, %v2624
    %v2646 = vadd.f32 %v2300, %v2628
    %v2647 = vadd.f32 %v2301, %v2630
    %v2648 = vadd.f32 %v2298, %v2634
    %v2649 = vadd.f32 %v2299, %v2636
    %v2650 = vadd.f32 %v2302, %v2640
    %v2651 = vadd.f32 %v2303, %v2642
    %v2653 = vlaneseq
    %v2654 = vshrl.u32 %v2653, 7
    %v2655 = vsub.s32 0, %v2654
    %v2656 = vrot.slane %v2350, %v2655
    %v2657 = vlaneseq
    %v2658 = vshrl.u32 %v2657, 7
    %v2659 = vsub.s32 1, %v2658
    %v2660 = vrot.slane %v2350, %v2659
    %v2663 = vadd.f32 %v2644, %v2656
    %v2664 = vadd.f32 %v2645, %v2660
    %v2665 = vadd.f32 %v2646, %v2656
    %v2666 = vadd.f32 %v2647, %v2660
    %v2667 = vadd.f32 %v2648, %v2656
    %v2668 = vadd.f32 %v2649, %v2660
    %v2669 = vadd.f32 %v2650, %v2656
    %v2670 = vadd.f32 %v2651, %v2660
    %s2671 = scalar_lea.vmem [#allocation5], 864
    %v2672 = vld [vmem:[%s2671] ss:$8 sm:$0x3]
    %s2673 = scalar_lea.vmem [#allocation5], 880
    %v2674 = vld [vmem:[%s2673] ss:$8 sm:$0x3]
    %v2675 = vld [vmem:[#allocation5 + $0x380] sm:$0xff]
    %v2676 = vld [vmem:[#allocation5 + $0x390] sm:$0xff]
    %v2677 = vld [vmem:[#allocation5 + $0x3a0] sm:$0xff]
    %v2678 = vld [vmem:[#allocation5 + $0x3b0] sm:$0xff]
    %v2679 = vld [vmem:[#allocation5 + $0x3c0] sm:$0xff]
    %v2680 = vld [vmem:[#allocation5 + $0x3d0] sm:$0xff]
    %v2681 = vld [vmem:[#allocation5 + $0x3e0] sm:$0xff]
    %v2682 = vld [vmem:[#allocation5 + $0x3f0] sm:$0xff]
    %v2683 = vld [vmem:[#allocation5 + $0x400] sm:$0xff]
    %v2684 = vld [vmem:[#allocation5 + $0x410] sm:$0xff]
    %v2685 = vld [vmem:[#allocation5 + $0x420] sm:$0xff]
    %v2686 = vld [vmem:[#allocation5 + $0x430] sm:$0xff]
    %v2687 = vld [vmem:[#allocation5 + $0x440] sm:$0xff]
    %v2688 = vld [vmem:[#allocation5 + $0x450] sm:$0xff]
    %v2689 = vld [vmem:[#allocation5 + $0x460] sm:$0xff]
    %v2690 = vld [vmem:[#allocation5 + $0x470] sm:$0xff]
    %v2691 = vld [vmem:[#allocation5 + $0x480] sm:$0xff]
    %v2692 = vld [vmem:[#allocation5 + $0x490] sm:$0xff]
    %v2693 = vld [vmem:[#allocation5 + $0x4a0] sm:$0xff]
    %v2694 = vld [vmem:[#allocation5 + $0x4b0] sm:$0xff]
    %v2695 = vld [vmem:[#allocation5 + $0x4c0] sm:$0xff]
    %v2696 = vld [vmem:[#allocation5 + $0x4d0] sm:$0xff]
    %v2697 = vld [vmem:[#allocation5 + $0x4e0] sm:$0xff]
    %v2698 = vld [vmem:[#allocation5 + $0x4f0] sm:$0xff]
    %v2699 = vld [vmem:[#allocation5 + $0x500] sm:$0xff]
    %v2700 = vld [vmem:[#allocation5 + $0x510] sm:$0xff]
    %v2701 = vld [vmem:[#allocation5 + $0x520] sm:$0xff]
    %v2702 = vld [vmem:[#allocation5 + $0x530] sm:$0xff]
    %v2703 = vld [vmem:[#allocation5 + $0x540] sm:$0xff]
    %v2704 = vld [vmem:[#allocation5 + $0x550] sm:$0xff]
    %v2705 = vld [vmem:[#allocation5 + $0x560] sm:$0xff]
    %v2706 = vld [vmem:[#allocation5 + $0x570] sm:$0xff]
    %v2707 = vld [vmem:[#allocation5 + $0x580] ss:$0 sm:$0xff]
    %v2708 = vld [vmem:[#allocation5 + $0x590] sm:$0xff]
    %v2709 = vld [vmem:[#allocation5 + $0x598] sm:$0xff]
    %v2710 = vld [vmem:[#allocation5 + $0x5a0] sm:$0xff]
    %v2711 = vld [vmem:[#allocation5 + $0x5a8] sm:$0xff]
    %v2712 = vld [vmem:[#allocation5 + $0x5b0] sm:$0xff]
    %v2713 = vld [vmem:[#allocation5 + $0x5b8] sm:$0xff]
    %v2714 = vld [vmem:[#allocation5 + $0x5c0] sm:$0xff]
    %v2715 = vld [vmem:[#allocation5 + $0x5c8] sm:$0xff]
    %s2716 = scalar_lea.vmem [#allocation5], 1488
    %v2717 = vld [vmem:[%s2716] ss:$8 sm:$0x3]
    %v2718 = vadd.f32 %v2663, %v2664
    %2719 = vadd.xlane.f32.xlu0 %v2718
    %v2720 = vpop.xlane.xlu0 %2719
    %v2721 = vadd.f32 %v2665, %v2666
    %2722 = vadd.xlane.f32.xlu0 %v2721
    %v2723 = vpop.xlane.xlu0 %2722
    %v2724 = vadd.f32 %v2667, %v2668
    %2725 = vadd.xlane.f32.xlu0 %v2724
    %v2726 = vpop.xlane.xlu0 %2725
    %v2727 = vadd.f32 %v2669, %v2670
    %2728 = vadd.xlane.f32.xlu0 %v2727
    %v2729 = vpop.xlane.xlu0 %2728
    %v2730 = vmul.f32 %v2720, %v698
    %v2731 = vmul.f32 %v2723, %v698
    %v2732 = vmul.f32 %v2726, %v698
    %v2733 = vmul.f32 %v2729, %v698
    %v2734 = vsub.f32 %v2663, %v2730
    %v2735 = vsub.f32 %v2664, %v2730
    %v2736 = vsub.f32 %v2665, %v2731
    %v2737 = vsub.f32 %v2666, %v2731
    %v2738 = vsub.f32 %v2667, %v2732
    %v2739 = vsub.f32 %v2668, %v2732
    %v2740 = vsub.f32 %v2669, %v2733
    %v2741 = vsub.f32 %v2670, %v2733
    %v2742 = vmul.f32 %v2734, %v2734
    %v2743 = vmul.f32 %v2735, %v2735
    %v2744 = vmul.f32 %v2736, %v2736
    %v2745 = vmul.f32 %v2737, %v2737
    %v2746 = vmul.f32 %v2738, %v2738
    %v2747 = vmul.f32 %v2739, %v2739
    %v2748 = vmul.f32 %v2740, %v2740
    %v2749 = vmul.f32 %v2741, %v2741
    %v2750 = vadd.f32 %v2742, %v2743
    %2751 = vadd.xlane.f32.xlu0 %v2750
    %v2752 = vpop.xlane.xlu0 %2751
    %v2753 = vadd.f32 %v2744, %v2745
    %2754 = vadd.xlane.f32.xlu0 %v2753
    %v2755 = vpop.xlane.xlu0 %2754
    %v2756 = vadd.f32 %v2746, %v2747
    %2757 = vadd.xlane.f32.xlu0 %v2756
    %v2758 = vpop.xlane.xlu0 %2757
    %v2759 = vadd.f32 %v2748, %v2749
    %2760 = vadd.xlane.f32.xlu0 %v2759
    %v2761 = vpop.xlane.xlu0 %2760
    %v2762 = vmul.f32 %v2752, %v698
    %v2763 = vmul.f32 %v2755, %v698
    %v2764 = vmul.f32 %v2758, %v698
    %v2765 = vmul.f32 %v2761, %v698
    %v2766 = vadd.f32 %v2762, 1e-05
    %v2767 = vadd.f32 %v2763, 1e-05
    %v2768 = vadd.f32 %v2764, 1e-05
    %v2769 = vadd.f32 %v2765, 1e-05
    %v2770 = vrsqrt.pop %v2766
    %v2771 = vrsqrt.pop %v2767
    %v2772 = vrsqrt.pop %v2768
    %v2773 = vrsqrt.pop %v2769
    %v2774 = vmul.f32 %v2734, %v2770
    %v2775 = vmul.f32 %v2735, %v2770
    %v2776 = vmul.f32 %v2736, %v2771
    %v2777 = vmul.f32 %v2737, %v2771
    %v2778 = vmul.f32 %v2738, %v2772
    %v2779 = vmul.f32 %v2739, %v2772
    %v2780 = vmul.f32 %v2740, %v2773
    %v2781 = vmul.f32 %v2741, %v2773
    %v2783 = vlaneseq
    %v2784 = vshrl.u32 %v2783, 7
    %v2785 = vsub.s32 0, %v2784
    %v2786 = vrot.slane %v2672, %v2785
    %v2787 = vlaneseq
    %v2788 = vshrl.u32 %v2787, 7
    %v2789 = vsub.s32 1, %v2788
    %v2790 = vrot.slane %v2672, %v2789
    %v2793 = vmul.f32 %v2774, %v2786
    %v2794 = vmul.f32 %v2775, %v2790
    %v2795 = vmul.f32 %v2776, %v2786
    %v2796 = vmul.f32 %v2777, %v2790
    %v2797 = vmul.f32 %v2778, %v2786
    %v2798 = vmul.f32 %v2779, %v2790
    %v2799 = vmul.f32 %v2780, %v2786
    %v2800 = vmul.f32 %v2781, %v2790
    %v2802 = vlaneseq
    %v2803 = vshrl.u32 %v2802, 7
    %v2804 = vsub.s32 0, %v2803
    %v2805 = vrot.slane %v2674, %v2804
    %v2806 = vlaneseq
    %v2807 = vshrl.u32 %v2806, 7
    %v2808 = vsub.s32 1, %v2807
    %v2809 = vrot.slane %v2674, %v2808
    %v2812 = vadd.f32 %v2793, %v2805
    %v2813 = vadd.f32 %v2794, %v2809
    %v2814 = vadd.f32 %v2795, %v2805
    %v2815 = vadd.f32 %v2796, %v2809
    %v2816 = vadd.f32 %v2797, %v2805
    %v2817 = vadd.f32 %v2798, %v2809
    %v2818 = vadd.f32 %v2799, %v2805
    %v2819 = vadd.f32 %v2800, %v2809
    %2820 = vmatprep.subr.mxu0 0.0
    %2821 = vmatpush1.msra.mxu0 %v2675
    %2822 = vmatprep.subr.mxu0 0.0
    %2823 = vmatpush1.msra.mxu0 %v2676
    %2824 = vmatprep.subr.mxu0 0.0
    %2825 = vmatpush1.msra.mxu0 %v2677
    %2826 = vmatprep.subr.mxu0 0.0
    %2827 = vmatpush1.msra.mxu0 %v2678
    %2828 = vmatprep.subr.mxu0 0.0
    %2829 = vmatpush1.msra.mxu0 %v2679
    %2830 = vmatprep.subr.mxu0 0.0
    %2831 = vmatpush1.msra.mxu0 %v2680
    %2832 = vmatprep.subr.mxu0 0.0
    %2833 = vmatpush1.msra.mxu0 %v2681
    %2834 = vmatprep.subr.mxu0 0.0
    %2835 = vmatpush1.msra.mxu0 %v2682
    %2836 = vmatprep.subr.mxu0 0.0
    %2837 = vmatpush1.msra.mxu0 %v2683
    %2838 = vmatprep.subr.mxu0 0.0
    %2839 = vmatpush1.msra.mxu0 %v2684
    %2840 = vmatprep.subr.mxu0 0.0
    %2841 = vmatpush1.msra.mxu0 %v2685
    %2842 = vmatprep.subr.mxu0 0.0
    %2843 = vmatpush1.msra.mxu0 %v2686
    %2844 = vmatprep.subr.mxu0 0.0
    %2845 = vmatpush1.msra.mxu0 %v2687
    %2846 = vmatprep.subr.mxu0 0.0
    %2847 = vmatpush1.msra.mxu0 %v2688
    %2848 = vmatprep.subr.mxu0 0.0
    %2849 = vmatpush1.msra.mxu0 %v2689
    %2850 = vmatprep.subr.mxu0 0.0
    %2851 = vmatpush1.msra.mxu0 %v2690
    %2852 = vmatprep.subr.mxu0 0.0
    %2853 = vmatpush1.msra.mxu0 %v2691
    %2854 = vmatprep.subr.mxu0 0.0
    %2855 = vmatpush1.msra.mxu0 %v2692
    %2856 = vmatprep.subr.mxu0 0.0
    %2857 = vmatpush1.msra.mxu0 %v2693
    %2858 = vmatprep.subr.mxu0 0.0
    %2859 = vmatpush1.msra.mxu0 %v2694
    %2860 = vmatprep.subr.mxu0 0.0
    %2861 = vmatpush1.msra.mxu0 %v2695
    %2862 = vmatprep.subr.mxu0 0.0
    %2863 = vmatpush1.msra.mxu0 %v2696
    %2864 = vmatprep.subr.mxu0 0.0
    %2865 = vmatpush1.msra.mxu0 %v2697
    %2866 = vmatprep.subr.mxu0 0.0
    %2867 = vmatpush1.msra.mxu0 %v2698
    %2868 = vmatprep.subr.mxu0 0.0
    %2869 = vmatpush1.msra.mxu0 %v2699
    %2870 = vmatprep.subr.mxu0 0.0
    %2871 = vmatpush1.msra.mxu0 %v2700
    %2872 = vmatprep.subr.mxu0 0.0
    %2873 = vmatpush1.msra.mxu0 %v2701
    %2874 = vmatprep.subr.mxu0 0.0
    %2875 = vmatpush1.msra.mxu0 %v2702
    %2876 = vmatprep.subr.mxu0 0.0
    %2877 = vmatpush1.msra.mxu0 %v2703
    %2878 = vmatprep.subr.mxu0 0.0
    %2879 = vmatpush1.msra.mxu0 %v2704
    %2880 = vmatprep.subr.mxu0 0.0
    %2881 = vmatpush1.msra.mxu0 %v2705
    %2882 = vmatprep.subr.mxu0 0.0
    %2883 = vmatpush1.msra.mxu0 %v2706
    %2884 = vmatprep.mubr.f32.mxu0 %v2813
    %2885 = vmatmul.mubr.f32.gmra.mrb[0].mxu0 %v2812
    %v2886 = vpop.f32.mrb[0].mxu0
    %v2887 = vadd.f32 %v2707, %v2886
    %v2888 = vpop.f32.mrb[0].mxu0
    %2889 = vmatprep.mubr.f32.mxu0 %v2815
    %2890 = vmatmul.mubr.f32.gmra.mrb[0].mxu0 %v2814
    %v2891 = vpop.f32.mrb[0].mxu0
    %v2892 = vadd.f32 %v2707, %v2891
    %v2893 = vpop.f32.mrb[0].mxu0
    %2894 = vmatprep.mubr.f32.mxu0 %v2817
    %2895 = vmatmul.mubr.f32.gmra.mrb[0].mxu0 %v2816
    %v2896 = vpop.f32.mrb[0].mxu0
    %v2897 = vadd.f32 %v2707, %v2896
    %v2898 = vpop.f32.mrb[0].mxu0
    %2899 = vmatprep.mubr.f32.mxu0 %v2819
    %2900 = vmatmul.mubr.f32.gmra.mrb[0].mxu0 %v2818
    %v2901 = vpop.f32.mrb[0].mxu0
    %v2902 = vadd.f32 %v2707, %v2901
    %v2903 = vpop.f32.mrb[0].mxu0
    %2904 = vdwg.mxu0
    %v2905 = vmax.f32 %v2887, 0.0
    %v2906 = vmax.f32 %v2892, 0.0
    %v2907 = vmax.f32 %v2897, 0.0
    %v2908 = vmax.f32 %v2902, 0.0
    %v2910 = vsel %vm2542, %v2905, 0
    %v2913 = vsel %vm2542, %v2906, 0
    %v2916 = vsel %vm2542, %v2907, 0
    %v2919 = vsel %vm2542, %v2908, 0
    %2921 = vmatprep.subr.mxu0 %v2709
    %2922 = vmatpush1.msra.mxu0 %v2708
    %2923 = vmatprep.subr.mxu0 %v2711
    %2924 = vmatpush1.msra.mxu0 %v2710
    %2925 = vmatprep.subr.mxu0 %v2713
    %2926 = vmatpush1.msra.mxu0 %v2712
    %2927 = vmatprep.subr.mxu0 %v2715
    %2928 = vmatpush1.msra.mxu0 %v2714
    %2929 = vmatprep.subr.mxu0 0.0
    %2930 = vmatpush1.msra.mxu0 0.0
    %2931 = vmatprep.subr.mxu0 0.0
    %2932 = vmatpush1.msra.mxu0 0.0
    %2933 = vmatprep.subr.mxu0 0.0
    %2934 = vmatpush1.msra.mxu0 0.0
    %2935 = vmatprep.subr.mxu0 0.0
    %2936 = vmatpush1.msra.mxu0 0.0
    %2937 = vmatprep.subr.mxu0 0.0
    %2938 = vmatpush1.msra.mxu0 0.0
    %2939 = vmatprep.subr.mxu0 0.0
    %2940 = vmatpush1.msra.mxu0 0.0
    %2941 = vmatprep.subr.mxu0 0.0
    %2942 = vmatpush1.msra.mxu0 0.0
    %2943 = vmatprep.subr.mxu0 0.0
    %2944 = vmatpush1.msra.mxu0 0.0
    %2945 = vmatprep.subr.mxu0 0.0
    %2946 = vmatpush1.msra.mxu0 0.0
    %2947 = vmatprep.subr.mxu0 0.0
    %2948 = vmatpush1.msra.mxu0 0.0
    %2949 = vmatprep.subr.mxu0 0.0
    %2950 = vmatpush1.msra.mxu0 0.0
    %2951 = vmatprep.subr.mxu0 0.0
    %2952 = vmatpush1.msra.mxu0 0.0
    %2953 = vmatprep.subr.mxu0 0.0
    %2954 = vmatpush1.msra.mxu0 0.0
    %2955 = vmatprep.subr.mxu0 0.0
    %2956 = vmatpush1.msra.mxu0 0.0
    %2957 = vmatprep.subr.mxu0 0.0
    %2958 = vmatpush1.msra.mxu0 0.0
    %2959 = vmatprep.subr.mxu0 0.0
    %2960 = vmatpush1.msra.mxu0 0.0
    %2961 = vmatprep.subr.mxu0 0.0
    %2962 = vmatpush1.msra.mxu0 0.0
    %2963 = vmatprep.subr.mxu0 0.0
    %2964 = vmatpush1.msra.mxu0 0.0
    %2965 = vmatprep.subr.mxu0 0.0
    %2966 = vmatpush1.msra.mxu0 0.0
    %2967 = vmatprep.subr.mxu0 0.0
    %2968 = vmatpush1.msra.mxu0 0.0
    %2969 = vmatprep.subr.mxu0 0.0
    %2970 = vmatpush1.msra.mxu0 0.0
    %2971 = vmatprep.subr.mxu0 0.0
    %2972 = vmatpush1.msra.mxu0 0.0
    %2973 = vmatprep.subr.mxu0 0.0
    %2974 = vmatpush1.msra.mxu0 0.0
    %2975 = vmatprep.subr.mxu0 0.0
    %2976 = vmatpush1.msra.mxu0 0.0
    %2977 = vmatprep.subr.mxu0 0.0
    %2978 = vmatpush1.msra.mxu0 0.0
    %2979 = vmatprep.subr.mxu0 0.0
    %2980 = vmatpush1.msra.mxu0 0.0
    %2981 = vmatprep.subr.mxu0 0.0
    %2982 = vmatpush1.msra.mxu0 0.0
    %2983 = vmatprep.subr.mxu0 0.0
    %2984 = vmatpush1.msra.mxu0 0.0
    %2985 = vmatprep.mubr.f32.mxu0 0.0
    %2986 = vmatmul.mubr.f32.gmra.mrb[0].mxu0 %v2910
    %v2987 = vpop.f32.mrb[0].mxu0
    %v2988 = vadd.f32 0.0, %v2987
    %v2989 = vpop.f32.mrb[0].mxu0
    %v2990 = vadd.f32 0.0, %v2989
    %2991 = vmatprep.mubr.f32.mxu0 0.0
    %2992 = vmatmul.mubr.f32.gmra.mrb[0].mxu0 %v2913
    %v2993 = vpop.f32.mrb[0].mxu0
    %v2994 = vadd.f32 0.0, %v2993
    %v2995 = vpop.f32.mrb[0].mxu0
    %v2996 = vadd.f32 0.0, %v2995
    %2997 = vmatprep.mubr.f32.mxu0 0.0
    %2998 = vmatmul.mubr.f32.gmra.mrb[0].mxu0 %v2916
    %v2999 = vpop.f32.mrb[0].mxu0
    %v3000 = vadd.f32 0.0, %v2999
    %v3001 = vpop.f32.mrb[0].mxu0
    %v3002 = vadd.f32 0.0, %v3001
    %3003 = vmatprep.mubr.f32.mxu0 0.0
    %3004 = vmatmul.mubr.f32.gmra.mrb[0].mxu0 %v2919
    %v3005 = vpop.f32.mrb[0].mxu0
    %v3006 = vadd.f32 0.0, %v3005
    %v3007 = vpop.f32.mrb[0].mxu0
    %v3008 = vadd.f32 0.0, %v3007
    %3009 = vdwg.mxu0
    %v3010 = vadd.f32 %v2663, %v2988
    %v3011 = vadd.f32 %v2664, %v2990
    %v3012 = vadd.f32 %v2665, %v2994
    %v3013 = vadd.f32 %v2666, %v2996
    %v3014 = vadd.f32 %v2667, %v3000
    %v3015 = vadd.f32 %v2668, %v3002
    %v3016 = vadd.f32 %v2669, %v3006
    %v3017 = vadd.f32 %v2670, %v3008
    %v3019 = vlaneseq
    %v3020 = vshrl.u32 %v3019, 7
    %v3021 = vsub.s32 0, %v3020
    %v3022 = vrot.slane %v2717, %v3021
    %v3023 = vlaneseq
    %v3024 = vshrl.u32 %v3023, 7
    %v3025 = vsub.s32 1, %v3024
    %v3026 = vrot.slane %v2717, %v3025
    %v3029 = vadd.f32 %v3010, %v3022
    %v3030 = vadd.f32 %v3011, %v3026
    %v3031 = vadd.f32 %v3012, %v3022
    %v3032 = vadd.f32 %v3013, %v3026
    %v3033 = vadd.f32 %v3014, %v3022
    %v3034 = vadd.f32 %v3015, %v3026
    %v3035 = vadd.f32 %v3016, %v3022
    %v3036 = vadd.f32 %v3017, %v3026
    %v3037 = vmax.f32 %v3029, %v3030
    %3038 = vmax.xlane.f32.xlu0 %v3037
    %v3039 = vpop.xlane.xlu0 %3038
    %v3040 = vmax.f32 %v3031, %v3032
    %3041 = vmax.xlane.f32.xlu0 %v3040
    %v3042 = vpop.xlane.xlu0 %3041
    %v3043 = vmax.f32 %v3033, %v3034
    %3044 = vmax.xlane.f32.xlu0 %v3043
    %v3045 = vpop.xlane.xlu0 %3044
    %v3046 = vmax.f32 %v3035, %v3036
    %3047 = vmax.xlane.f32.xlu0 %v3046
    %v3048 = vpop.xlane.xlu0 %3047
    %vm3049 = vcmask 7168
    %v3050 = vsel %vm3049, %v3039, %v3045
    %v3051 = vsel %vm3049, %v3042, %v3048
    %v3052 = vld [vmem:[#allocation5 + $0x5e0] sm:$0xff]
    %v3053 = vld [vmem:[#allocation5 + $0x5f0] sm:$0xff]
    %v3054 = vld [vmem:[#allocation5 + $0x600] sm:$0xff]
    %v3055 = vld [vmem:[#allocation5 + $0x610] sm:$0xff]
    %v3056 = vld [vmem:[#allocation5 + $0x620] sm:$0xff]
    %v3057 = vld [vmem:[#allocation5 + $0x630] sm:$0xff]
    %v3058 = vld [vmem:[#allocation5 + $0x640] sm:$0xff]
    %v3059 = vld [vmem:[#allocation5 + $0x650] sm:$0xff]
    %v3060 = vld [vmem:[#allocation5 + $0x660] sm:$0xff]
    %v3061 = vld [vmem:[#allocation5 + $0x670] sm:$0xff]
    %v3062 = vld [vmem:[#allocation5 + $0x680] sm:$0xff]
    %v3063 = vld [vmem:[#allocation5 + $0x690] sm:$0xff]
    %v3064 = vld [vmem:[#allocation5 + $0x6a0] sm:$0xff]
    %v3065 = vld [vmem:[#allocation5 + $0x6b0] sm:$0xff]
    %v3066 = vld [vmem:[#allocation5 + $0x6c0] sm:$0xff]
    %v3067 = vld [vmem:[#allocation5 + $0x6d0] sm:$0xff]
    %vm3068 = vcmask 15360
    %v3069 = vsel %vm3068, %v3050, 0.0
    %v3070 = vsel %vm3068, %v3051, 0.0
    %v3071 = vadd.f32 %v3069, %v3070
    %v3072 = vrot.slane %v3071, 4
    %v3073 = vadd.f32 %v3071, %v3072
    %v3074 = vrot.slane %v3073, 2
    %v3075 = vadd.f32 %v3073, %v3074
    %v3076 = vrot.slane %v3075, 1
    %v3077 = vadd.f32 %v3075, %v3076
    %v3078 = vrcp.pop 16.0
    %v3079 = vmul.f32 %v3077, %v3078
    %v3080 = vsub.f32 %v3050, %v3079
    %v3081 = vsub.f32 %v3051, %v3079
    %v3082 = vmul.f32 %v3080, %v3080
    %v3083 = vmul.f32 %v3081, %v3081
    %v3084 = vsel %vm3068, %v3082, 0.0
    %v3085 = vsel %vm3068, %v3083, 0.0
    %v3086 = vadd.f32 %v3084, %v3085
    %v3087 = vrot.slane %v3086, 4
    %v3088 = vadd.f32 %v3086, %v3087
    %v3089 = vrot.slane %v3088, 2
    %v3090 = vadd.f32 %v3088, %v3089
    %v3091 = vrot.slane %v3090, 1
    %v3092 = vadd.f32 %v3090, %v3091
    %v3093 = vmul.f32 %v3092, %v3078
    %v3094 = vadd.f32 %v3093, 1e-05
    %v3095 = vrsqrt.pop %v3094
    %v3096 = vmul.f32 %v3080, %v3095
    %v3097 = vmul.f32 %v3081, %v3095
    %3099 = vset.pattern.permute.xlu0 0
    %3100 = vperm.xlu0 %3099, %v3052
    %v3101 = vpop.permute.xlu0 %3100
    %3104 = vset.pattern.permute.xlu0 0
    %3105 = vperm.xlu0 %3104, %v3053
    %v3106 = vpop.permute.xlu0 %3105
    %v3108 = vmul.f32 %v3096, %v3101
    %v3109 = vmul.f32 %v3097, %v3106
    %3111 = vset.pattern.permute.xlu0 0
    %3112 = vperm.xlu0 %3111, %v3054
    %v3113 = vpop.permute.xlu0 %3112
    %3116 = vset.pattern.permute.xlu0 0
    %3117 = vperm.xlu0 %3116, %v3055
    %v3118 = vpop.permute.xlu0 %3117
    %v3120 = vadd.f32 %v3108, %v3113
    %v3121 = vadd.f32 %v3109, %v3118
    %3123 = vset.pattern.permute.xlu0 0
    %3124 = vperm.xlu0 %3123, %v3060
    %v3125 = vpop.permute.xlu0 %3124
    %3128 = vset.pattern.permute.xlu0 0
    %3129 = vperm.xlu0 %3128, %v3061
    %v3130 = vpop.permute.xlu0 %3129
    %3133 = vset.pattern.permute.xlu0 0
    %3134 = vperm.xlu0 %3133, %v3062
    %v3135 = vpop.permute.xlu0 %3134
    %3138 = vset.pattern.permute.xlu0 0
    %3139 = vperm.xlu0 %3138, %v3063
    %v3140 = vpop.permute.xlu0 %3139
    %v3143 = vsel %vm1381, %v3056, 0
    %v3146 = vsel %vm1381, %v3057, 0
    %v3149 = vsel %vm1381, %v3058, 0
    %v3152 = vsel %vm1381, %v3059, 0
    %3154 = vmatprep.subr.mxu0 0.0
    %3155 = vmatpush1.msra.mxu0 %v3120
    %3156 = vmatprep.subr.mxu0 0.0
    %3157 = vmatpush1.msra.mxu0 %v3121
    %3158 = vmatprep.subr.mxu0 0.0
    %3159 = vmatpush1.msra.mxu0 0.0
    %3160 = vmatprep.subr.mxu0 0.0
    %3161 = vmatpush1.msra.mxu0 0.0
    %3162 = vmatprep.subr.mxu0 0.0
    %3163 = vmatpush1.msra.mxu0 0.0
    %3164 = vmatprep.subr.mxu0 0.0
    %3165 = vmatpush1.msra.mxu0 0.0
    %3166 = vmatprep.subr.mxu0 0.0
    %3167 = vmatpush1.msra.mxu0 0.0
    %3168 = vmatprep.subr.mxu0 0.0
    %3169 = vmatpush1.msra.mxu0 0.0
    %3170 = vmatprep.subr.mxu0 0.0
    %3171 = vmatpush1.msra.mxu0 0.0
    %3172 = vmatprep.subr.mxu0 0.0
    %3173 = vmatpush1.msra.mxu0 0.0
    %3174 = vmatprep.subr.mxu0 0.0
    %3175 = vmatpush1.msra.mxu0 0.0
    %3176 = vmatprep.subr.mxu0 0.0
    %3177 = vmatpush1.msra.mxu0 0.0
    %3178 = vmatprep.subr.mxu0 0.0
    %3179 = vmatpush1.msra.mxu0 0.0
    %3180 = vmatprep.subr.mxu0 0.0
    %3181 = vmatpush1.msra.mxu0 0.0
    %3182 = vmatprep.subr.mxu0 0.0
    %3183 = vmatpush1.msra.mxu0 0.0
    %3184 = vmatprep.subr.mxu0 0.0
    %3185 = vmatpush1.msra.mxu0 0.0
    %3186 = vmatprep.subr.mxu0 0.0
    %3187 = vmatpush1.msra.mxu0 0.0
    %3188 = vmatprep.subr.mxu0 0.0
    %3189 = vmatpush1.msra.mxu0 0.0
    %3190 = vmatprep.subr.mxu0 0.0
    %3191 = vmatpush1.msra.mxu0 0.0
    %3192 = vmatprep.subr.mxu0 0.0
    %3193 = vmatpush1.msra.mxu0 0.0
    %3194 = vmatprep.subr.mxu0 0.0
    %3195 = vmatpush1.msra.mxu0 0.0
    %3196 = vmatprep.subr.mxu0 0.0
    %3197 = vmatpush1.msra.mxu0 0.0
    %3198 = vmatprep.subr.mxu0 0.0
    %3199 = vmatpush1.msra.mxu0 0.0
    %3200 = vmatprep.subr.mxu0 0.0
    %3201 = vmatpush1.msra.mxu0 0.0
    %3202 = vmatprep.subr.mxu0 0.0
    %3203 = vmatpush1.msra.mxu0 0.0
    %3204 = vmatprep.subr.mxu0 0.0
    %3205 = vmatpush1.msra.mxu0 0.0
    %3206 = vmatprep.subr.mxu0 0.0
    %3207 = vmatpush1.msra.mxu0 0.0
    %3208 = vmatprep.subr.mxu0 0.0
    %3209 = vmatpush1.msra.mxu0 0.0
    %3210 = vmatprep.subr.mxu0 0.0
    %3211 = vmatpush1.msra.mxu0 0.0
    %3212 = vmatprep.subr.mxu0 0.0
    %3213 = vmatpush1.msra.mxu0 0.0
    %3214 = vmatprep.subr.mxu0 0.0
    %3215 = vmatpush1.msra.mxu0 0.0
    %3216 = vmatprep.subr.mxu0 0.0
    %3217 = vmatpush1.msra.mxu0 0.0
    %3218 = vmatprep.mubr.f32.mxu0 0.0
    %3219 = vmatmul.mubr.f32.gmra.mrb[0].mxu0 %v3143
    %v3220 = vpop.f32.mrb[0].mxu0
    %v3221 = vadd.f32 %v3125, %v3220
    %v3222 = vpop.f32.mrb[0].mxu0
    %3223 = vmatprep.mubr.f32.mxu0 0.0
    %3224 = vmatmul.mubr.f32.gmra.mrb[0].mxu0 %v3146
    %v3225 = vpop.f32.mrb[0].mxu0
    %v3226 = vadd.f32 %v3130, %v3225
    %v3227 = vpop.f32.mrb[0].mxu0
    %3228 = vmatprep.mubr.f32.mxu0 0.0
    %3229 = vmatmul.mubr.f32.gmra.mrb[0].mxu0 %v3149
    %v3230 = vpop.f32.mrb[0].mxu0
    %v3231 = vadd.f32 %v3135, %v3230
    %v3232 = vpop.f32.mrb[0].mxu0
    %3233 = vmatprep.mubr.f32.mxu0 0.0
    %3234 = vmatmul.mubr.f32.gmra.mrb[0].mxu0 %v3152
    %v3235 = vpop.f32.mrb[0].mxu0
    %v3236 = vadd.f32 %v3140, %v3235
    %v3237 = vpop.f32.mrb[0].mxu0
    %3238 = vdwg.mxu0
    %v3239 = vmax.f32 %v3221, 0.0
    %v3240 = vmax.f32 %v3226, 0.0
    %v3241 = vmax.f32 %v3231, 0.0
    %v3242 = vmax.f32 %v3236, 0.0
    %v3244 = vsel %vm2542, %v3064, 0
    %v3247 = vsel %vm2542, %v3065, 0
    %3249 = vmatprep.subr.mxu0 0.0
    %3250 = vmatpush1.msra.mxu0 %v3239
    %3251 = vmatprep.subr.mxu0 0.0
    %3252 = vmatpush1.msra.mxu0 %v3240
    %3253 = vmatprep.subr.mxu0 0.0
    %3254 = vmatpush1.msra.mxu0 %v3241
    %3255 = vmatprep.subr.mxu0 0.0
    %3256 = vmatpush1.msra.mxu0 %v3242
    %3257 = vmatprep.subr.mxu0 0.0
    %3258 = vmatpush1.msra.mxu0 0.0
    %3259 = vmatprep.subr.mxu0 0.0
    %3260 = vmatpush1.msra.mxu0 0.0
    %3261 = vmatprep.subr.mxu0 0.0
    %3262 = vmatpush1.msra.mxu0 0.0
    %3263 = vmatprep.subr.mxu0 0.0
    %3264 = vmatpush1.msra.mxu0 0.0
    %3265 = vmatprep.subr.mxu0 0.0
    %3266 = vmatpush1.msra.mxu0 0.0
    %3267 = vmatprep.subr.mxu0 0.0
    %3268 = vmatpush1.msra.mxu0 0.0
    %3269 = vmatprep.subr.mxu0 0.0
    %3270 = vmatpush1.msra.mxu0 0.0
    %3271 = vmatprep.subr.mxu0 0.0
    %3272 = vmatpush1.msra.mxu0 0.0
    %3273 = vmatprep.subr.mxu0 0.0
    %3274 = vmatpush1.msra.mxu0 0.0
    %3275 = vmatprep.subr.mxu0 0.0
    %3276 = vmatpush1.msra.mxu0 0.0
    %3277 = vmatprep.subr.mxu0 0.0
    %3278 = vmatpush1.msra.mxu0 0.0
    %3279 = vmatprep.subr.mxu0 0.0
    %3280 = vmatpush1.msra.mxu0 0.0
    %3281 = vmatprep.subr.mxu0 0.0
    %3282 = vmatpush1.msra.mxu0 0.0
    %3283 = vmatprep.subr.mxu0 0.0
    %3284 = vmatpush1.msra.mxu0 0.0
    %3285 = vmatprep.subr.mxu0 0.0
    %3286 = vmatpush1.msra.mxu0 0.0
    %3287 = vmatprep.subr.mxu0 0.0
    %3288 = vmatpush1.msra.mxu0 0.0
    %3289 = vmatprep.subr.mxu0 0.0
    %3290 = vmatpush1.msra.mxu0 0.0
    %3291 = vmatprep.subr.mxu0 0.0
    %3292 = vmatpush1.msra.mxu0 0.0
    %3293 = vmatprep.subr.mxu0 0.0
    %3294 = vmatpush1.msra.mxu0 0.0
    %3295 = vmatprep.subr.mxu0 0.0
    %3296 = vmatpush1.msra.mxu0 0.0
    %3297 = vmatprep.subr.mxu0 0.0
    %3298 = vmatpush1.msra.mxu0 0.0
    %3299 = vmatprep.subr.mxu0 0.0
    %3300 = vmatpush1.msra.mxu0 0.0
    %3301 = vmatprep.subr.mxu0 0.0
    %3302 = vmatpush1.msra.mxu0 0.0
    %3303 = vmatprep.subr.mxu0 0.0
    %3304 = vmatpush1.msra.mxu0 0.0
    %3305 = vmatprep.subr.mxu0 0.0
    %3306 = vmatpush1.msra.mxu0 0.0
    %3307 = vmatprep.subr.mxu0 0.0
    %3308 = vmatpush1.msra.mxu0 0.0
    %3309 = vmatprep.subr.mxu0 0.0
    %3310 = vmatpush1.msra.mxu0 0.0
    %3311 = vmatprep.subr.mxu0 0.0
    %3312 = vmatpush1.msra.mxu0 0.0
    %3313 = vmatprep.mubr.f32.mxu0 0.0
    %3314 = vmatmul.mubr.f32.gmra.mrb[0].mxu0 %v3244
    %v3315 = vpop.f32.mrb[0].mxu0
    %v3316 = vadd.f32 0.0, %v3315
    %v3317 = vpop.f32.mrb[0].mxu0
    %3318 = vmatprep.mubr.f32.mxu0 0.0
    %3319 = vmatmul.mubr.f32.gmra.mrb[0].mxu0 %v3247
    %v3320 = vpop.f32.mrb[0].mxu0
    %v3321 = vadd.f32 0.0, %v3320
    %v3322 = vpop.f32.mrb[0].mxu0
    %3323 = vdwg.mxu0
    %v3324 = vadd.f32 %v3050, %v3316
    %v3325 = vadd.f32 %v3051, %v3321
    %3327 = vset.pattern.permute.xlu0 0
    %3328 = vperm.xlu0 %3327, %v3066
    %v3329 = vpop.permute.xlu0 %3328
    %3332 = vset.pattern.permute.xlu0 0
    %3333 = vperm.xlu0 %3332, %v3067
    %v3334 = vpop.permute.xlu0 %3333
    %v3336 = vadd.f32 %v3324, %v3329
    %v3337 = vadd.f32 %v3325, %v3334
    %v3338 = vld [vmem:[#allocation5 + $0x6e0] sm:$0xff]
    %v3339 = vld [vmem:[#allocation5 + $0x6f0] sm:$0xff]
    %v3340 = vld [vmem:[#allocation5 + $0x700] sm:$0xff]
    %v3341 = vld [vmem:[#allocation5 + $0x710] sm:$0xff]
    %v3342 = vld [vmem:[#allocation5 + $0x720] sm:$0xff]
    %v3343 = vld [vmem:[#allocation5 + $0x730] sm:$0xff]
    %v3344 = vld [vmem:[#allocation5 + $0x740] sm:$0xff]
    %v3345 = vld [vmem:[#allocation5 + $0x750] sm:$0xff]
    %v3346 = vld [vmem:[#allocation5 + $0x760] sm:$0xff]
    %v3347 = vld [vmem:[#allocation5 + $0x770] sm:$0xff]
    %v3348 = vld [vmem:[#allocation5 + $0x780] sm:$0xff]
    %v3349 = vld [vmem:[#allocation5 + $0x790] sm:$0xff]
    %v3350 = vld [vmem:[#allocation5 + $0x7a0] sm:$0xff]
    %v3351 = vld [vmem:[#allocation5 + $0x7b0] sm:$0xff]
    %v3352 = vld [vmem:[#allocation5 + $0x7c0] sm:$0xff]
    %v3353 = vld [vmem:[#allocation5 + $0x7d0] sm:$0xff]
    %v3354 = vsel %vm3068, %v3336, 0.0
    %v3355 = vsel %vm3068, %v3337, 0.0
    %v3356 = vadd.f32 %v3354, %v3355
    %v3357 = vrot.slane %v3356, 4
    %v3358 = vadd.f32 %v3356, %v3357
    %v3359 = vrot.slane %v3358, 2
    %v3360 = vadd.f32 %v3358, %v3359
    %v3361 = vrot.slane %v3360, 1
    %v3362 = vadd.f32 %v3360, %v3361
    %v3363 = vmul.f32 %v3362, %v3078
    %v3364 = vsub.f32 %v3336, %v3363
    %v3365 = vsub.f32 %v3337, %v3363
    %v3366 = vmul.f32 %v3364, %v3364
    %v3367 = vmul.f32 %v3365, %v3365
    %v3368 = vsel %vm3068, %v3366, 0.0
    %v3369 = vsel %vm3068, %v3367, 0.0
    %v3370 = vadd.f32 %v3368, %v3369
    %v3371 = vrot.slane %v3370, 4
    %v3372 = vadd.f32 %v3370, %v3371
    %v3373 = vrot.slane %v3372, 2
    %v3374 = vadd.f32 %v3372, %v3373
    %v3375 = vrot.slane %v3374, 1
    %v3376 = vadd.f32 %v3374, %v3375
    %v3377 = vmul.f32 %v3376, %v3078
    %v3378 = vadd.f32 %v3377, 1e-05
    %v3379 = vrsqrt.pop %v3378
    %v3380 = vmul.f32 %v3364, %v3379
    %v3381 = vmul.f32 %v3365, %v3379
    %3383 = vset.pattern.permute.xlu0 0
    %3384 = vperm.xlu0 %3383, %v3338
    %v3385 = vpop.permute.xlu0 %3384
    %3388 = vset.pattern.permute.xlu0 0
    %3389 = vperm.xlu0 %3388, %v3339
    %v3390 = vpop.permute.xlu0 %3389
    %v3392 = vmul.f32 %v3380, %v3385
    %v3393 = vmul.f32 %v3381, %v3390
    %3395 = vset.pattern.permute.xlu0 0
    %3396 = vperm.xlu0 %3395, %v3340
    %v3397 = vpop.permute.xlu0 %3396
    %3400 = vset.pattern.permute.xlu0 0
    %3401 = vperm.xlu0 %3400, %v3341
    %v3402 = vpop.permute.xlu0 %3401
    %v3404 = vadd.f32 %v3392, %v3397
    %v3405 = vadd.f32 %v3393, %v3402
    %3407 = vset.pattern.permute.xlu0 0
    %3408 = vperm.xlu0 %3407, %v3346
    %v3409 = vpop.permute.xlu0 %3408
    %3412 = vset.pattern.permute.xlu0 0
    %3413 = vperm.xlu0 %3412, %v3347
    %v3414 = vpop.permute.xlu0 %3413
    %3417 = vset.pattern.permute.xlu0 0
    %3418 = vperm.xlu0 %3417, %v3348
    %v3419 = vpop.permute.xlu0 %3418
    %3422 = vset.pattern.permute.xlu0 0
    %3423 = vperm.xlu0 %3422, %v3349
    %v3424 = vpop.permute.xlu0 %3423
    %v3427 = vsel %vm1381, %v3342, 0
    %v3430 = vsel %vm1381, %v3343, 0
    %v3433 = vsel %vm1381, %v3344, 0
    %v3436 = vsel %vm1381, %v3345, 0
    %3438 = vmatprep.subr.mxu0 0.0
    %3439 = vmatpush1.msra.mxu0 %v3404
    %3440 = vmatprep.subr.mxu0 0.0
    %3441 = vmatpush1.msra.mxu0 %v3405
    %3442 = vmatprep.subr.mxu0 0.0
    %3443 = vmatpush1.msra.mxu0 0.0
    %3444 = vmatprep.subr.mxu0 0.0
    %3445 = vmatpush1.msra.mxu0 0.0
    %3446 = vmatprep.subr.mxu0 0.0
    %3447 = vmatpush1.msra.mxu0 0.0
    %3448 = vmatprep.subr.mxu0 0.0
    %3449 = vmatpush1.msra.mxu0 0.0
    %3450 = vmatprep.subr.mxu0 0.0
    %3451 = vmatpush1.msra.mxu0 0.0
    %3452 = vmatprep.subr.mxu0 0.0
    %3453 = vmatpush1.msra.mxu0 0.0
    %3454 = vmatprep.subr.mxu0 0.0
    %3455 = vmatpush1.msra.mxu0 0.0
    %3456 = vmatprep.subr.mxu0 0.0
    %3457 = vmatpush1.msra.mxu0 0.0
    %3458 = vmatprep.subr.mxu0 0.0
    %3459 = vmatpush1.msra.mxu0 0.0
    %3460 = vmatprep.subr.mxu0 0.0
    %3461 = vmatpush1.msra.mxu0 0.0
    %3462 = vmatprep.subr.mxu0 0.0
    %3463 = vmatpush1.msra.mxu0 0.0
    %3464 = vmatprep.subr.mxu0 0.0
    %3465 = vmatpush1.msra.mxu0 0.0
    %3466 = vmatprep.subr.mxu0 0.0
    %3467 = vmatpush1.msra.mxu0 0.0
    %3468 = vmatprep.subr.mxu0 0.0
    %3469 = vmatpush1.msra.mxu0 0.0
    %3470 = vmatprep.subr.mxu0 0.0
    %3471 = vmatpush1.msra.mxu0 0.0
    %3472 = vmatprep.subr.mxu0 0.0
    %3473 = vmatpush1.msra.mxu0 0.0
    %3474 = vmatprep.subr.mxu0 0.0
    %3475 = vmatpush1.msra.mxu0 0.0
    %3476 = vmatprep.subr.mxu0 0.0
    %3477 = vmatpush1.msra.mxu0 0.0
    %3478 = vmatprep.subr.mxu0 0.0
    %3479 = vmatpush1.msra.mxu0 0.0
    %3480 = vmatprep.subr.mxu0 0.0
    %3481 = vmatpush1.msra.mxu0 0.0
    %3482 = vmatprep.subr.mxu0 0.0
    %3483 = vmatpush1.msra.mxu0 0.0
    %3484 = vmatprep.subr.mxu0 0.0
    %3485 = vmatpush1.msra.mxu0 0.0
    %3486 = vmatprep.subr.mxu0 0.0
    %3487 = vmatpush1.msra.mxu0 0.0
    %3488 = vmatprep.subr.mxu0 0.0
    %3489 = vmatpush1.msra.mxu0 0.0
    %3490 = vmatprep.subr.mxu0 0.0
    %3491 = vmatpush1.msra.mxu0 0.0
    %3492 = vmatprep.subr.mxu0 0.0
    %3493 = vmatpush1.msra.mxu0 0.0
    %3494 = vmatprep.subr.mxu0 0.0
    %3495 = vmatpush1.msra.mxu0 0.0
    %3496 = vmatprep.subr.mxu0 0.0
    %3497 = vmatpush1.msra.mxu0 0.0
    %3498 = vmatprep.subr.mxu0 0.0
    %3499 = vmatpush1.msra.mxu0 0.0
    %3500 = vmatprep.subr.mxu0 0.0
    %3501 = vmatpush1.msra.mxu0 0.0
    %3502 = vmatprep.mubr.f32.mxu0 0.0
    %3503 = vmatmul.mubr.f32.gmra.mrb[0].mxu0 %v3427
    %v3504 = vpop.f32.mrb[0].mxu0
    %v3505 = vadd.f32 %v3409, %v3504
    %v3506 = vpop.f32.mrb[0].mxu0
    %3507 = vmatprep.mubr.f32.mxu0 0.0
    %3508 = vmatmul.mubr.f32.gmra.mrb[0].mxu0 %v3430
    %v3509 = vpop.f32.mrb[0].mxu0
    %v3510 = vadd.f32 %v3414, %v3509
    %v3511 = vpop.f32.mrb[0].mxu0
    %3512 = vmatprep.mubr.f32.mxu0 0.0
    %3513 = vmatmul.mubr.f32.gmra.mrb[0].mxu0 %v3433
    %v3514 = vpop.f32.mrb[0].mxu0
    %v3515 = vadd.f32 %v3419, %v3514
    %v3516 = vpop.f32.mrb[0].mxu0
    %3517 = vmatprep.mubr.f32.mxu0 0.0
    %3518 = vmatmul.mubr.f32.gmra.mrb[0].mxu0 %v3436
    %v3519 = vpop.f32.mrb[0].mxu0
    %v3520 = vadd.f32 %v3424, %v3519
    %v3521 = vpop.f32.mrb[0].mxu0
    %3522 = vdwg.mxu0
    %v3523 = vmax.f32 %v3505, 0.0
    %v3524 = vmax.f32 %v3510, 0.0
    %v3525 = vmax.f32 %v3515, 0.0
    %v3526 = vmax.f32 %v3520, 0.0
    %v3528 = vsel %vm2542, %v3350, 0
    %v3531 = vsel %vm2542, %v3351, 0
    %3533 = vmatprep.subr.mxu0 0.0
    %3534 = vmatpush1.msra.mxu0 %v3523
    %3535 = vmatprep.subr.mxu0 0.0
    %3536 = vmatpush1.msra.mxu0 %v3524
    %3537 = vmatprep.subr.mxu0 0.0
    %3538 = vmatpush1.msra.mxu0 %v3525
    %3539 = vmatprep.subr.mxu0 0.0
    %3540 = vmatpush1.msra.mxu0 %v3526
    %3541 = vmatprep.subr.mxu0 0.0
    %3542 = vmatpush1.msra.mxu0 0.0
    %3543 = vmatprep.subr.mxu0 0.0
    %3544 = vmatpush1.msra.mxu0 0.0
    %3545 = vmatprep.subr.mxu0 0.0
    %3546 = vmatpush1.msra.mxu0 0.0
    %3547 = vmatprep.subr.mxu0 0.0
    %3548 = vmatpush1.msra.mxu0 0.0
    %3549 = vmatprep.subr.mxu0 0.0
    %3550 = vmatpush1.msra.mxu0 0.0
    %3551 = vmatprep.subr.mxu0 0.0
    %3552 = vmatpush1.msra.mxu0 0.0
    %3553 = vmatprep.subr.mxu0 0.0
    %3554 = vmatpush1.msra.mxu0 0.0
    %3555 = vmatprep.subr.mxu0 0.0
    %3556 = vmatpush1.msra.mxu0 0.0
    %3557 = vmatprep.subr.mxu0 0.0
    %3558 = vmatpush1.msra.mxu0 0.0
    %3559 = vmatprep.subr.mxu0 0.0
    %3560 = vmatpush1.msra.mxu0 0.0
    %3561 = vmatprep.subr.mxu0 0.0
    %3562 = vmatpush1.msra.mxu0 0.0
    %3563 = vmatprep.subr.mxu0 0.0
    %3564 = vmatpush1.msra.mxu0 0.0
    %3565 = vmatprep.subr.mxu0 0.0
    %3566 = vmatpush1.msra.mxu0 0.0
    %3567 = vmatprep.subr.mxu0 0.0
    %3568 = vmatpush1.msra.mxu0 0.0
    %3569 = vmatprep.subr.mxu0 0.0
    %3570 = vmatpush1.msra.mxu0 0.0
    %3571 = vmatprep.subr.mxu0 0.0
    %3572 = vmatpush1.msra.mxu0 0.0
    %3573 = vmatprep.subr.mxu0 0.0
    %3574 = vmatpush1.msra.mxu0 0.0
    %3575 = vmatprep.subr.mxu0 0.0
    %3576 = vmatpush1.msra.mxu0 0.0
    %3577 = vmatprep.subr.mxu0 0.0
    %3578 = vmatpush1.msra.mxu0 0.0
    %3579 = vmatprep.subr.mxu0 0.0
    %3580 = vmatpush1.msra.mxu0 0.0
    %3581 = vmatprep.subr.mxu0 0.0
    %3582 = vmatpush1.msra.mxu0 0.0
    %3583 = vmatprep.subr.mxu0 0.0
    %3584 = vmatpush1.msra.mxu0 0.0
    %3585 = vmatprep.subr.mxu0 0.0
    %3586 = vmatpush1.msra.mxu0 0.0
    %3587 = vmatprep.subr.mxu0 0.0
    %3588 = vmatpush1.msra.mxu0 0.0
    %3589 = vmatprep.subr.mxu0 0.0
    %3590 = vmatpush1.msra.mxu0 0.0
    %3591 = vmatprep.subr.mxu0 0.0
    %3592 = vmatpush1.msra.mxu0 0.0
    %3593 = vmatprep.subr.mxu0 0.0
    %3594 = vmatpush1.msra.mxu0 0.0
    %3595 = vmatprep.subr.mxu0 0.0
    %3596 = vmatpush1.msra.mxu0 0.0
    %3597 = vmatprep.mubr.f32.mxu0 0.0
    %3598 = vmatmul.mubr.f32.gmra.mrb[0].mxu0 %v3528
    %v3599 = vpop.f32.mrb[0].mxu0
    %v3600 = vadd.f32 0.0, %v3599
    %v3601 = vpop.f32.mrb[0].mxu0
    %3602 = vmatprep.mubr.f32.mxu0 0.0
    %3603 = vmatmul.mubr.f32.gmra.mrb[0].mxu0 %v3531
    %v3604 = vpop.f32.mrb[0].mxu0
    %v3605 = vadd.f32 0.0, %v3604
    %v3606 = vpop.f32.mrb[0].mxu0
    %3607 = vdwg.mxu0
    %v3608 = vadd.f32 %v3336, %v3600
    %v3609 = vadd.f32 %v3337, %v3605
    %3611 = vset.pattern.permute.xlu0 0
    %3612 = vperm.xlu0 %3611, %v3352
    %v3613 = vpop.permute.xlu0 %3612
    %3616 = vset.pattern.permute.xlu0 0
    %3617 = vperm.xlu0 %3616, %v3353
    %v3618 = vpop.permute.xlu0 %3617
    %v3620 = vadd.f32 %v3608, %v3613
    %v3621 = vadd.f32 %v3609, %v3618
    %v3622 = vld [vmem:[#allocation5 + $0x7e0] ss:$0 sm:$0xff]
    %v3623 = vld [vmem:[#allocation5 + $0x7f0] ss:$0 sm:$0xff]
    %3625 = vset.pattern.permute.xlu0 0
    %3626 = vperm.xlu0 %3625, %v3623
    %v3627 = vpop.permute.xlu0 %3626
    %v3630 = vsel %vm1381, %v3622, 0
    %3632 = vmatprep.subr.mxu0 0.0
    %3633 = vmatpush1.msra.mxu0 %v3620
    %3634 = vmatprep.subr.mxu0 0.0
    %3635 = vmatpush1.msra.mxu0 %v3621
    %3636 = vmatprep.subr.mxu0 0.0
    %3637 = vmatpush1.msra.mxu0 0.0
    %3638 = vmatprep.subr.mxu0 0.0
    %3639 = vmatpush1.msra.mxu0 0.0
    %3640 = vmatprep.subr.mxu0 0.0
    %3641 = vmatpush1.msra.mxu0 0.0
    %3642 = vmatprep.subr.mxu0 0.0
    %3643 = vmatpush1.msra.mxu0 0.0
    %3644 = vmatprep.subr.mxu0 0.0
    %3645 = vmatpush1.msra.mxu0 0.0
    %3646 = vmatprep.subr.mxu0 0.0
    %3647 = vmatpush1.msra.mxu0 0.0
    %3648 = vmatprep.subr.mxu0 0.0
    %3649 = vmatpush1.msra.mxu0 0.0
    %3650 = vmatprep.subr.mxu0 0.0
    %3651 = vmatpush1.msra.mxu0 0.0
    %3652 = vmatprep.subr.mxu0 0.0
    %3653 = vmatpush1.msra.mxu0 0.0
    %3654 = vmatprep.subr.mxu0 0.0
    %3655 = vmatpush1.msra.mxu0 0.0
    %3656 = vmatprep.subr.mxu0 0.0
    %3657 = vmatpush1.msra.mxu0 0.0
    %3658 = vmatprep.subr.mxu0 0.0
    %3659 = vmatpush1.msra.mxu0 0.0
    %3660 = vmatprep.subr.mxu0 0.0
    %3661 = vmatpush1.msra.mxu0 0.0
    %3662 = vmatprep.subr.mxu0 0.0
    %3663 = vmatpush1.msra.mxu0 0.0
    %3664 = vmatprep.subr.mxu0 0.0
    %3665 = vmatpush1.msra.mxu0 0.0
    %3666 = vmatprep.subr.mxu0 0.0
    %3667 = vmatpush1.msra.mxu0 0.0
    %3668 = vmatprep.subr.mxu0 0.0
    %3669 = vmatpush1.msra.mxu0 0.0
    %3670 = vmatprep.subr.mxu0 0.0
    %3671 = vmatpush1.msra.mxu0 0.0
    %3672 = vmatprep.subr.mxu0 0.0
    %3673 = vmatpush1.msra.mxu0 0.0
    %3674 = vmatprep.subr.mxu0 0.0
    %3675 = vmatpush1.msra.mxu0 0.0
    %3676 = vmatprep.subr.mxu0 0.0
    %3677 = vmatpush1.msra.mxu0 0.0
    %3678 = vmatprep.subr.mxu0 0.0
    %3679 = vmatpush1.msra.mxu0 0.0
    %3680 = vmatprep.subr.mxu0 0.0
    %3681 = vmatpush1.msra.mxu0 0.0
    %3682 = vmatprep.subr.mxu0 0.0
    %3683 = vmatpush1.msra.mxu0 0.0
    %3684 = vmatprep.subr.mxu0 0.0
    %3685 = vmatpush1.msra.mxu0 0.0
    %3686 = vmatprep.subr.mxu0 0.0
    %3687 = vmatpush1.msra.mxu0 0.0
    %3688 = vmatprep.subr.mxu0 0.0
    %3689 = vmatpush1.msra.mxu0 0.0
    %3690 = vmatprep.subr.mxu0 0.0
    %3691 = vmatpush1.msra.mxu0 0.0
    %3692 = vmatprep.subr.mxu0 0.0
    %3693 = vmatpush1.msra.mxu0 0.0
    %3694 = vmatprep.subr.mxu0 0.0
    %3695 = vmatpush1.msra.mxu0 0.0
    %3696 = vmatprep.mubr.f32.mxu0 0.0
    %3697 = vmatmul.mubr.f32.gmra.mrb[0].mxu0 %v3630
    %v3698 = vpop.f32.mrb[0].mxu0
    %v3699 = vadd.f32 %v3627, %v3698
    %v3700 = vpop.f32.mrb[0].mxu0
    %3701 = vdwg.mxu0
    %vm3702 = vcmask 8192
    %3703 = vst.msk [vmem:[%s3] sm:$0x1] %vm3702, %v3699
    %s3704 = scalar_lea.vmem %s406, 64 [#allocation5]
    %v3705 = vld [vmem:[%s3704] ss:$8 sm:$0x3]
    %s3706 = scalar_lea.vmem %s406, 80 [#allocation5]
    %v3707 = vld [vmem:[%s3706] ss:$8 sm:$0x3]
    %v3708 = vld [vmem:[%s406 + $0x60] sm:$0xff]
    %v3709 = vld [vmem:[%s406 + $0x68] sm:$0xff]
    %v3710 = vld [vmem:[%s406 + $0x70] sm:$0xff]
    %v3711 = vld [vmem:[%s406 + $0x78] sm:$0xff]
    %v3712 = vld [vmem:[%s406 + $0x80] sm:$0xff]
    %v3713 = vld [vmem:[%s406 + $0x90] sm:$0xff]
    %v3714 = vld [vmem:[%s406 + $0xa0] sm:$0xff]
    %v3715 = vld [vmem:[%s406 + $0xa8] sm:$0xff]
    %v3716 = vld [vmem:[%s406 + $0xb0] sm:$0xff]
    %v3717 = vld [vmem:[%s406 + $0xb8] sm:$0xff]
    %v3718 = vld [vmem:[%s406 + $0xc0] sm:$0xff]
    %v3719 = vld [vmem:[%s406 + $0xd0] sm:$0xff]
    %v3720 = vadd.f32 %v668, %v669
    %3721 = vadd.xlane.f32.xlu0 %v3720
    %v3722 = vpop.xlane.xlu0 %3721
    %v3723 = vadd.f32 %v672, %v673
    %3724 = vadd.xlane.f32.xlu0 %v3723
    %v3725 = vpop.xlane.xlu0 %3724
    %v3726 = vmul.f32 %v3722, %v698
    %v3727 = vmul.f32 %v3725, %v698
    %v3728 = vsub.f32 %v668, %v3726
    %v3729 = vsub.f32 %v669, %v3726
    %v3730 = vsub.f32 %v672, %v3727
    %v3731 = vsub.f32 %v673, %v3727
    %v3732 = vmul.f32 %v3728, %v3728
    %v3733 = vmul.f32 %v3729, %v3729
    %v3734 = vmul.f32 %v3730, %v3730
    %v3735 = vmul.f32 %v3731, %v3731
    %v3736 = vadd.f32 %v3732, %v3733
    %3737 = vadd.xlane.f32.xlu0 %v3736
    %v3738 = vpop.xlane.xlu0 %3737
    %v3739 = vadd.f32 %v3734, %v3735
    %3740 = vadd.xlane.f32.xlu0 %v3739
    %v3741 = vpop.xlane.xlu0 %3740
    %v3742 = vmul.f32 %v3738, %v698
    %v3743 = vmul.f32 %v3741, %v698
    %v3744 = vadd.f32 %v3742, 1e-05
    %v3745 = vadd.f32 %v3743, 1e-05
    %v3746 = vrsqrt.pop %v3744
    %v3747 = vrsqrt.pop %v3745
    %v3748 = vmul.f32 %v3728, %v3746
    %v3749 = vmul.f32 %v3729, %v3746
    %v3750 = vmul.f32 %v3730, %v3747
    %v3751 = vmul.f32 %v3731, %v3747
    %v3753 = vlaneseq
    %v3754 = vshrl.u32 %v3753, 7
    %v3755 = vsub.s32 0, %v3754
    %v3756 = vrot.slane %v3705, %v3755
    %v3757 = vlaneseq
    %v3758 = vshrl.u32 %v3757, 7
    %v3759 = vsub.s32 1, %v3758
    %v3760 = vrot.slane %v3705, %v3759
    %v3763 = vmul.f32 %v3748, %v3756
    %v3764 = vmul.f32 %v3749, %v3760
    %v3765 = vmul.f32 %v3750, %v3756
    %v3766 = vmul.f32 %v3751, %v3760
    %v3768 = vlaneseq
    %v3769 = vshrl.u32 %v3768, 7
    %v3770 = vsub.s32 0, %v3769
    %v3771 = vrot.slane %v3707, %v3770
    %v3772 = vlaneseq
    %v3773 = vshrl.u32 %v3772, 7
    %v3774 = vsub.s32 1, %v3773
    %v3775 = vrot.slane %v3707, %v3774
    %v3778 = vadd.f32 %v3763, %v3771
    %v3779 = vadd.f32 %v3764, %v3775
    %v3780 = vadd.f32 %v3765, %v3771
    %v3781 = vadd.f32 %v3766, %v3775
    %v3782 = vadd.f32 %v670, %v671
    %3783 = vadd.xlane.f32.xlu0 %v3782
    %v3784 = vpop.xlane.xlu0 %3783
    %v3785 = vadd.f32 %v674, %v675
    %3786 = vadd.xlane.f32.xlu0 %v3785
    %v3787 = vpop.xlane.xlu0 %3786
    %v3788 = vmul.f32 %v3784, %v698
    %v3789 = vmul.f32 %v3787, %v698
    %v3790 = vsub.f32 %v670, %v3788
    %v3791 = vsub.f32 %v671, %v3788
    %v3792 = vsub.f32 %v674, %v3789
    %v3793 = vsub.f32 %v675, %v3789
    %v3794 = vmul.f32 %v3790, %v3790
    %v3795 = vmul.f32 %v3791, %v3791
    %v3796 = vmul.f32 %v3792, %v3792
    %v3797 = vmul.f32 %v3793, %v3793
    %v3798 = vadd.f32 %v3794, %v3795
    %3799 = vadd.xlane.f32.xlu0 %v3798
    %v3800 = vpop.xlane.xlu0 %3799
    %v3801 = vadd.f32 %v3796, %v3797
    %3802 = vadd.xlane.f32.xlu0 %v3801
    %v3803 = vpop.xlane.xlu0 %3802
    %v3804 = vmul.f32 %v3800, %v698
    %v3805 = vmul.f32 %v3803, %v698
    %v3806 = vadd.f32 %v3804, 1e-05
    %v3807 = vadd.f32 %v3805, 1e-05
    %v3808 = vrsqrt.pop %v3806
    %v3809 = vrsqrt.pop %v3807
    %v3810 = vmul.f32 %v3790, %v3808
    %v3811 = vmul.f32 %v3791, %v3808
    %v3812 = vmul.f32 %v3792, %v3809
    %v3813 = vmul.f32 %v3793, %v3809
    %v3814 = vmul.f32 %v3810, %v3756
    %v3815 = vmul.f32 %v3811, %v3760
    %v3816 = vmul.f32 %v3812, %v3756
    %v3817 = vmul.f32 %v3813, %v3760
    %v3818 = vadd.f32 %v3814, %v3771
    %v3819 = vadd.f32 %v3815, %v3775
    %v3820 = vadd.f32 %v3816, %v3771
    %v3821 = vadd.f32 %v3817, %v3775
    %3822 = vrot.lane.b32.xlu0 %v3778, 17
    %v3823 = vpop.permute.xlu0 %3822
    %3824 = vrot.lane.b32.xlu0 %v3780, 17
    %v3825 = vpop.permute.xlu0 %3824
    %3826 = vrot.lane.b32.xlu0 %v3779, 17
    %v3827 = vpop.permute.xlu0 %3826
    %3828 = vrot.lane.b32.xlu0 %v3781, 17
    %v3829 = vpop.permute.xlu0 %3828
    %3830 = vrot.lane.b32.xlu0 %v3818, 17
    %v3831 = vpop.permute.xlu0 %3830
    %3832 = vrot.lane.b32.xlu0 %v3820, 17
    %v3833 = vpop.permute.xlu0 %3832
    %3834 = vrot.lane.b32.xlu0 %v3819, 17
    %v3835 = vpop.permute.xlu0 %3834
    %3836 = vrot.lane.b32.xlu0 %v3821, 17
    %v3837 = vpop.permute.xlu0 %3836
    %v3838 = vsel %vm57, %v3831, %v3835
    %v3839 = vsel %vm57, %v3833, %v3837
    %v3840 = vsel %vm57, %v3827, %v3831
    %v3841 = vsel %vm57, %v3829, %v3833
    %v3842 = vsel %vm57, %v3823, %v3827
    %v3843 = vsel %vm57, %v3825, %v3829
    %v3844 = vsel %vm57, %v3835, %v3823
    %v3845 = vsel %vm57, %v3837, %v3825
    %v3846 = vld [vmem:[#allocation3] ss:$8 sm:$0xf]
    %v3848 = vlaneseq
    %v3849 = vshrl.u32 %v3848, 7
    %v3850 = vsub.s32 0, %v3849
    %v3851 = vrot.slane %v3846, %v3850
    %v3852 = vlaneseq
    %v3853 = vshrl.u32 %v3852, 7
    %v3854 = vsub.s32 1, %v3853
    %v3855 = vrot.slane %v3846, %v3854
    %v3856 = vlaneseq
    %v3857 = vshrl.u32 %v3856, 7
    %v3858 = vsub.s32 2, %v3857
    %v3859 = vrot.slane %v3846, %v3858
    %v3860 = vlaneseq
    %v3861 = vshrl.u32 %v3860, 7
    %v3862 = vsub.s32 3, %v3861
    %v3863 = vrot.slane %v3846, %v3862
    %v3868 = vmul.f32 %v3844, %v3851
    %v3869 = vmul.f32 %v3842, %v3855
    %v3870 = vmul.f32 %v3840, %v3859
    %v3871 = vmul.f32 %v3838, %v3863
    %v3872 = vmul.f32 %v3845, %v3851
    %v3873 = vmul.f32 %v3843, %v3855
    %v3874 = vmul.f32 %v3841, %v3859
    %v3875 = vmul.f32 %v3839, %v3863
    %3876 = vst [vmem:[#allocation2] sm:$0xff] %v3868
    %3877 = vst [vmem:[#allocation2 + $0x8] sm:$0xff] %v3869
    %3878 = vst [vmem:[#allocation2 + $0x10] sm:$0xff] %v3870
    %3879 = vst [vmem:[#allocation2 + $0x18] sm:$0xff] %v3871
    %3880 = vst [vmem:[#allocation2 + $0x20] sm:$0xff] %v3872
    %3881 = vst [vmem:[#allocation2 + $0x28] sm:$0xff] %v3873
    %3882 = vst [vmem:[#allocation2 + $0x30] sm:$0xff] %v3874
    %3883 = vst [vmem:[#allocation2 + $0x38] sm:$0xff] %v3875
    %3884 = vrot.lane.b32.xlu0 %v3778, 16
    %v3885 = vpop.permute.xlu0 %3884
    %3886 = vrot.lane.b32.xlu0 %v3780, 16
    %v3887 = vpop.permute.xlu0 %3886
    %3888 = vrot.lane.b32.xlu0 %v3779, 16
    %v3889 = vpop.permute.xlu0 %3888
    %3890 = vrot.lane.b32.xlu0 %v3781, 16
    %v3891 = vpop.permute.xlu0 %3890
    %3892 = vrot.lane.b32.xlu0 %v3818, 16
    %v3893 = vpop.permute.xlu0 %3892
    %3894 = vrot.lane.b32.xlu0 %v3820, 16
    %v3895 = vpop.permute.xlu0 %3894
    %3896 = vrot.lane.b32.xlu0 %v3819, 16
    %v3897 = vpop.permute.xlu0 %3896
    %3898 = vrot.lane.b32.xlu0 %v3821, 16
    %v3899 = vpop.permute.xlu0 %3898
    %v3900 = vsel %vm100, %v3893, %v3897
    %v3901 = vsel %vm100, %v3895, %v3899
    %v3902 = vsel %vm100, %v3889, %v3893
    %v3903 = vsel %vm100, %v3891, %v3895
    %v3904 = vsel %vm100, %v3885, %v3889
    %v3905 = vsel %vm100, %v3887, %v3891
    %v3906 = vsel %vm100, %v3897, %v3885
    %v3907 = vsel %vm100, %v3899, %v3887
    %v3908 = vld [vmem:[%s105] ss:$8 sm:$0xf]
    %v3910 = vlaneseq
    %v3911 = vshrl.u32 %v3910, 7
    %v3912 = vsub.s32 0, %v3911
    %v3913 = vrot.slane %v3908, %v3912
    %v3914 = vlaneseq
    %v3915 = vshrl.u32 %v3914, 7
    %v3916 = vsub.s32 1, %v3915
    %v3917 = vrot.slane %v3908, %v3916
    %v3918 = vlaneseq
    %v3919 = vshrl.u32 %v3918, 7
    %v3920 = vsub.s32 2, %v3919
    %v3921 = vrot.slane %v3908, %v3920
    %v3922 = vlaneseq
    %v3923 = vshrl.u32 %v3922, 7
    %v3924 = vsub.s32 3, %v3923
    %v3925 = vrot.slane %v3908, %v3924
    %v3930 = vmul.f32 %v3906, %v3913
    %v3931 = vmul.f32 %v3904, %v3917
    %v3932 = vmul.f32 %v3902, %v3921
    %v3933 = vmul.f32 %v3900, %v3925
    %v3934 = vmul.f32 %v3907, %v3913
    %v3935 = vmul.f32 %v3905, %v3917
    %v3936 = vmul.f32 %v3903, %v3921
    %v3937 = vmul.f32 %v3901, %v3925
    %3938 = vst [vmem:[#allocation2 + $0x40] sm:$0xff] %v3930
    %3939 = vst [vmem:[#allocation2 + $0x48] sm:$0xff] %v3931
    %3940 = vst [vmem:[#allocation2 + $0x50] sm:$0xff] %v3932
    %3941 = vst [vmem:[#allocation2 + $0x58] sm:$0xff] %v3933
    %3942 = vst [vmem:[#allocation2 + $0x60] sm:$0xff] %v3934
    %3943 = vst [vmem:[#allocation2 + $0x68] sm:$0xff] %v3935
    %3944 = vst [vmem:[#allocation2 + $0x70] sm:$0xff] %v3936
    %3945 = vst [vmem:[#allocation2 + $0x78] sm:$0xff] %v3937
    %3946 = vrot.lane.b32.xlu0 %v3778, 15
    %v3947 = vpop.permute.xlu0 %3946
    %3948 = vrot.lane.b32.xlu0 %v3780, 15
    %v3949 = vpop.permute.xlu0 %3948
    %3950 = vrot.lane.b32.xlu0 %v3779, 15
    %v3951 = vpop.permute.xlu0 %3950
    %3952 = vrot.lane.b32.xlu0 %v3781, 15
    %v3953 = vpop.permute.xlu0 %3952
    %3954 = vrot.lane.b32.xlu0 %v3818, 15
    %v3955 = vpop.permute.xlu0 %3954
    %3956 = vrot.lane.b32.xlu0 %v3820, 15
    %v3957 = vpop.permute.xlu0 %3956
    %3958 = vrot.lane.b32.xlu0 %v3819, 15
    %v3959 = vpop.permute.xlu0 %3958
    %3960 = vrot.lane.b32.xlu0 %v3821, 15
    %v3961 = vpop.permute.xlu0 %3960
    %v3962 = vsel %vm144, %v3955, %v3959
    %v3963 = vsel %vm144, %v3957, %v3961
    %v3964 = vsel %vm144, %v3951, %v3955
    %v3965 = vsel %vm144, %v3953, %v3957
    %v3966 = vsel %vm144, %v3947, %v3951
    %v3967 = vsel %vm144, %v3949, %v3953
    %v3968 = vsel %vm144, %v3959, %v3947
    %v3969 = vsel %vm144, %v3961, %v3949
    %v3970 = vld [vmem:[%s149] ss:$8 sm:$0xf]
    %v3972 = vlaneseq
    %v3973 = vshrl.u32 %v3972, 7
    %v3974 = vsub.s32 0, %v3973
    %v3975 = vrot.slane %v3970, %v3974
    %v3976 = vlaneseq
    %v3977 = vshrl.u32 %v3976, 7
    %v3978 = vsub.s32 1, %v3977
    %v3979 = vrot.slane %v3970, %v3978
    %v3980 = vlaneseq
    %v3981 = vshrl.u32 %v3980, 7
    %v3982 = vsub.s32 2, %v3981
    %v3983 = vrot.slane %v3970, %v3982
    %v3984 = vlaneseq
    %v3985 = vshrl.u32 %v3984, 7
    %v3986 = vsub.s32 3, %v3985
    %v3987 = vrot.slane %v3970, %v3986
    %v3992 = vmul.f32 %v3968, %v3975
    %v3993 = vmul.f32 %v3966, %v3979
    %v3994 = vmul.f32 %v3964, %v3983
    %v3995 = vmul.f32 %v3962, %v3987
    %v3996 = vmul.f32 %v3969, %v3975
    %v3997 = vmul.f32 %v3967, %v3979
    %v3998 = vmul.f32 %v3965, %v3983
    %v3999 = vmul.f32 %v3963, %v3987
    %4000 = vst [vmem:[#allocation2 + $0x80] sm:$0xff] %v3992
    %4001 = vst [vmem:[#allocation2 + $0x88] sm:$0xff] %v3993
    %4002 = vst [vmem:[#allocation2 + $0x90] sm:$0xff] %v3994
    %4003 = vst [vmem:[#allocation2 + $0x98] sm:$0xff] %v3995
    %4004 = vst [vmem:[#allocation2 + $0xa0] sm:$0xff] %v3996
    %4005 = vst [vmem:[#allocation2 + $0xa8] sm:$0xff] %v3997
    %4006 = vst [vmem:[#allocation2 + $0xb0] sm:$0xff] %v3998
    %4007 = vst [vmem:[#allocation2 + $0xb8] sm:$0xff] %v3999
    %4008 = vrot.lane.b32.xlu0 %v3778, 1
    %v4009 = vpop.permute.xlu0 %4008
    %4010 = vrot.lane.b32.xlu0 %v3780, 1
    %v4011 = vpop.permute.xlu0 %4010
    %4012 = vrot.lane.b32.xlu0 %v3779, 1
    %v4013 = vpop.permute.xlu0 %4012
    %4014 = vrot.lane.b32.xlu0 %v3781, 1
    %v4015 = vpop.permute.xlu0 %4014
    %4016 = vrot.lane.b32.xlu0 %v3818, 1
    %v4017 = vpop.permute.xlu0 %4016
    %4018 = vrot.lane.b32.xlu0 %v3820, 1
    %v4019 = vpop.permute.xlu0 %4018
    %4020 = vrot.lane.b32.xlu0 %v3819, 1
    %v4021 = vpop.permute.xlu0 %4020
    %4022 = vrot.lane.b32.xlu0 %v3821, 1
    %v4023 = vpop.permute.xlu0 %4022
    %v4024 = vsel %vm188, %v4017, %v4021
    %v4025 = vsel %vm188, %v4019, %v4023
    %v4026 = vsel %vm188, %v4013, %v4017
    %v4027 = vsel %vm188, %v4015, %v4019
    %v4028 = vsel %vm188, %v4009, %v4013
    %v4029 = vsel %vm188, %v4011, %v4015
    %v4030 = vsel %vm188, %v4021, %v4009
    %v4031 = vsel %vm188, %v4023, %v4011
    %v4032 = vld [vmem:[%s193] ss:$8 sm:$0xf]
    %v4034 = vlaneseq
    %v4035 = vshrl.u32 %v4034, 7
    %v4036 = vsub.s32 0, %v4035
    %v4037 = vrot.slane %v4032, %v4036
    %v4038 = vlaneseq
    %v4039 = vshrl.u32 %v4038, 7
    %v4040 = vsub.s32 1, %v4039
    %v4041 = vrot.slane %v4032, %v4040
    %v4042 = vlaneseq
    %v4043 = vshrl.u32 %v4042, 7
    %v4044 = vsub.s32 2, %v4043
    %v4045 = vrot.slane %v4032, %v4044
    %v4046 = vlaneseq
    %v4047 = vshrl.u32 %v4046, 7
    %v4048 = vsub.s32 3, %v4047
    %v4049 = vrot.slane %v4032, %v4048
    %v4054 = vmul.f32 %v4030, %v4037
    %v4055 = vmul.f32 %v4028, %v4041
    %v4056 = vmul.f32 %v4026, %v4045
    %v4057 = vmul.f32 %v4024, %v4049
    %v4058 = vmul.f32 %v4031, %v4037
    %v4059 = vmul.f32 %v4029, %v4041
    %v4060 = vmul.f32 %v4027, %v4045
    %v4061 = vmul.f32 %v4025, %v4049
    %4062 = vst [vmem:[#allocation2 + $0xc0] sm:$0xff] %v4054
    %4063 = vst [vmem:[#allocation2 + $0xc8] sm:$0xff] %v4055
    %4064 = vst [vmem:[#allocation2 + $0xd0] sm:$0xff] %v4056
    %4065 = vst [vmem:[#allocation2 + $0xd8] sm:$0xff] %v4057
    %4066 = vst [vmem:[#allocation2 + $0xe0] sm:$0xff] %v4058
    %4067 = vst [vmem:[#allocation2 + $0xe8] sm:$0xff] %v4059
    %4068 = vst [vmem:[#allocation2 + $0xf0] sm:$0xff] %v4060
    %4069 = vst [vmem:[#allocation2 + $0xf8] sm:$0xff] %v4061
    %4070 = vst [vmem:[#allocation2 + $0x100] sm:$0xff] %v3778
    %4071 = vst [vmem:[#allocation2 + $0x108] sm:$0xff] %v3779
    %4072 = vst [vmem:[#allocation2 + $0x110] sm:$0xff] %v3818
    %4073 = vst [vmem:[#allocation2 + $0x118] sm:$0xff] %v3819
    %4074 = vst [vmem:[#allocation2 + $0x120] sm:$0xff] %v3780
    %4075 = vst [vmem:[#allocation2 + $0x128] sm:$0xff] %v3781
    %4076 = vst [vmem:[#allocation2 + $0x130] sm:$0xff] %v3820
    %4077 = vst [vmem:[#allocation2 + $0x138] sm:$0xff] %v3821
    %4078 = vrot.lane.b32.xlu0 %v3778, 127
    %v4079 = vpop.permute.xlu0 %4078
    %4080 = vrot.lane.b32.xlu0 %v3780, 127
    %v4081 = vpop.permute.xlu0 %4080
    %4082 = vrot.lane.b32.xlu0 %v3779, 127
    %v4083 = vpop.permute.xlu0 %4082
    %4084 = vrot.lane.b32.xlu0 %v3781, 127
    %v4085 = vpop.permute.xlu0 %4084
    %4086 = vrot.lane.b32.xlu0 %v3818, 127
    %v4087 = vpop.permute.xlu0 %4086
    %4088 = vrot.lane.b32.xlu0 %v3820, 127
    %v4089 = vpop.permute.xlu0 %4088
    %4090 = vrot.lane.b32.xlu0 %v3819, 127
    %v4091 = vpop.permute.xlu0 %4090
    %4092 = vrot.lane.b32.xlu0 %v3821, 127
    %v4093 = vpop.permute.xlu0 %4092
    %v4094 = vsel %vm236, %v4087, %v4091
    %v4095 = vsel %vm236, %v4089, %v4093
    %v4096 = vsel %vm236, %v4083, %v4087
    %v4097 = vsel %vm236, %v4085, %v4089
    %v4098 = vsel %vm236, %v4079, %v4083
    %v4099 = vsel %vm236, %v4081, %v4085
    %v4100 = vsel %vm236, %v4091, %v4079
    %v4101 = vsel %vm236, %v4093, %v4081
    %v4102 = vld [vmem:[%s241] ss:$8 sm:$0xf]
    %v4104 = vlaneseq
    %v4105 = vshrl.u32 %v4104, 7
    %v4106 = vsub.s32 0, %v4105
    %v4107 = vrot.slane %v4102, %v4106
    %v4108 = vlaneseq
    %v4109 = vshrl.u32 %v4108, 7
    %v4110 = vsub.s32 1, %v4109
    %v4111 = vrot.slane %v4102, %v4110
    %v4112 = vlaneseq
    %v4113 = vshrl.u32 %v4112, 7
    %v4114 = vsub.s32 2, %v4113
    %v4115 = vrot.slane %v4102, %v4114
    %v4116 = vlaneseq
    %v4117 = vshrl.u32 %v4116, 7
    %v4118 = vsub.s32 3, %v4117
    %v4119 = vrot.slane %v4102, %v4118
    %v4124 = vmul.f32 %v4098, %v4107
    %v4125 = vmul.f32 %v4096, %v4111
    %v4126 = vmul.f32 %v4094, %v4115
    %v4127 = vmul.f32 %v4100, %v4119
    %v4128 = vmul.f32 %v4099, %v4107
    %v4129 = vmul.f32 %v4097, %v4111
    %v4130 = vmul.f32 %v4095, %v4115
    %v4131 = vmul.f32 %v4101, %v4119
    %4132 = vst [vmem:[#allocation2 + $0x140] sm:$0xff] %v4124
    %4133 = vst [vmem:[#allocation2 + $0x148] sm:$0xff] %v4125
    %4134 = vst [vmem:[#allocation2 + $0x150] sm:$0xff] %v4126
    %4135 = vst [vmem:[#allocation2 + $0x158] sm:$0xff] %v4127
    %4136 = vst [vmem:[#allocation2 + $0x160] sm:$0xff] %v4128
    %4137 = vst [vmem:[#allocation2 + $0x168] sm:$0xff] %v4129
    %4138 = vst [vmem:[#allocation2 + $0x170] sm:$0xff] %v4130
    %4139 = vst [vmem:[#allocation2 + $0x178] sm:$0xff] %v4131
    %4140 = vrot.lane.b32.xlu0 %v3778, 113
    %v4141 = vpop.permute.xlu0 %4140
    %4142 = vrot.lane.b32.xlu0 %v3780, 113
    %v4143 = vpop.permute.xlu0 %4142
    %4144 = vrot.lane.b32.xlu0 %v3779, 113
    %v4145 = vpop.permute.xlu0 %4144
    %4146 = vrot.lane.b32.xlu0 %v3781, 113
    %v4147 = vpop.permute.xlu0 %4146
    %4148 = vrot.lane.b32.xlu0 %v3818, 113
    %v4149 = vpop.permute.xlu0 %4148
    %4150 = vrot.lane.b32.xlu0 %v3820, 113
    %v4151 = vpop.permute.xlu0 %4150
    %4152 = vrot.lane.b32.xlu0 %v3819, 113
    %v4153 = vpop.permute.xlu0 %4152
    %4154 = vrot.lane.b32.xlu0 %v3821, 113
    %v4155 = vpop.permute.xlu0 %4154
    %v4156 = vsel %vm280, %v4149, %v4153
    %v4157 = vsel %vm280, %v4151, %v4155
    %v4158 = vsel %vm280, %v4145, %v4149
    %v4159 = vsel %vm280, %v4147, %v4151
    %v4160 = vsel %vm280, %v4141, %v4145
    %v4161 = vsel %vm280, %v4143, %v4147
    %v4162 = vsel %vm280, %v4153, %v4141
    %v4163 = vsel %vm280, %v4155, %v4143
    %v4164 = vld [vmem:[%s285] ss:$8 sm:$0xf]
    %v4166 = vlaneseq
    %v4167 = vshrl.u32 %v4166, 7
    %v4168 = vsub.s32 0, %v4167
    %v4169 = vrot.slane %v4164, %v4168
    %v4170 = vlaneseq
    %v4171 = vshrl.u32 %v4170, 7
    %v4172 = vsub.s32 1, %v4171
    %v4173 = vrot.slane %v4164, %v4172
    %v4174 = vlaneseq
    %v4175 = vshrl.u32 %v4174, 7
    %v4176 = vsub.s32 2, %v4175
    %v4177 = vrot.slane %v4164, %v4176
    %v4178 = vlaneseq
    %v4179 = vshrl.u32 %v4178, 7
    %v4180 = vsub.s32 3, %v4179
    %v4181 = vrot.slane %v4164, %v4180
    %v4186 = vmul.f32 %v4160, %v4169
    %v4187 = vmul.f32 %v4158, %v4173
    %v4188 = vmul.f32 %v4156, %v4177
    %v4189 = vmul.f32 %v4162, %v4181
    %v4190 = vmul.f32 %v4161, %v4169
    %v4191 = vmul.f32 %v4159, %v4173
    %v4192 = vmul.f32 %v4157, %v4177
    %v4193 = vmul.f32 %v4163, %v4181
    %4194 = vst [vmem:[#allocation2 + $0x180] sm:$0xff] %v4186
    %4195 = vst [vmem:[#allocation2 + $0x188] sm:$0xff] %v4187
    %4196 = vst [vmem:[#allocation2 + $0x190] sm:$0xff] %v4188
    %4197 = vst [vmem:[#allocation2 + $0x198] sm:$0xff] %v4189
    %4198 = vst [vmem:[#allocation2 + $0x1a0] sm:$0xff] %v4190
    %4199 = vst [vmem:[#allocation2 + $0x1a8] sm:$0xff] %v4191
    %4200 = vst [vmem:[#allocation2 + $0x1b0] sm:$0xff] %v4192
    %4201 = vst [vmem:[#allocation2 + $0x1b8] sm:$0xff] %v4193
    %4202 = vrot.lane.b32.xlu0 %v3778, 112
    %v4203 = vpop.permute.xlu0 %4202
    %4204 = vrot.lane.b32.xlu0 %v3780, 112
    %v4205 = vpop.permute.xlu0 %4204
    %4206 = vrot.lane.b32.xlu0 %v3779, 112
    %v4207 = vpop.permute.xlu0 %4206
    %4208 = vrot.lane.b32.xlu0 %v3781, 112
    %v4209 = vpop.permute.xlu0 %4208
    %4210 = vrot.lane.b32.xlu0 %v3818, 112
    %v4211 = vpop.permute.xlu0 %4210
    %4212 = vrot.lane.b32.xlu0 %v3820, 112
    %v4213 = vpop.permute.xlu0 %4212
    %4214 = vrot.lane.b32.xlu0 %v3819, 112
    %v4215 = vpop.permute.xlu0 %4214
    %4216 = vrot.lane.b32.xlu0 %v3821, 112
    %v4217 = vpop.permute.xlu0 %4216
    %v4218 = vsel %vm324, %v4211, %v4215
    %v4219 = vsel %vm324, %v4213, %v4217
    %v4220 = vsel %vm324, %v4207, %v4211
    %v4221 = vsel %vm324, %v4209, %v4213
    %v4222 = vsel %vm324, %v4203, %v4207
    %v4223 = vsel %vm324, %v4205, %v4209
    %v4224 = vsel %vm324, %v4215, %v4203
    %v4225 = vsel %vm324, %v4217, %v4205
    %v4226 = vld [vmem:[%s329] ss:$8 sm:$0xf]
    %v4228 = vlaneseq
    %v4229 = vshrl.u32 %v4228, 7
    %v4230 = vsub.s32 0, %v4229
    %v4231 = vrot.slane %v4226, %v4230
    %v4232 = vlaneseq
    %v4233 = vshrl.u32 %v4232, 7
    %v4234 = vsub.s32 1, %v4233
    %v4235 = vrot.slane %v4226, %v4234
    %v4236 = vlaneseq
    %v4237 = vshrl.u32 %v4236, 7
    %v4238 = vsub.s32 2, %v4237
    %v4239 = vrot.slane %v4226, %v4238
    %v4240 = vlaneseq
    %v4241 = vshrl.u32 %v4240, 7
    %v4242 = vsub.s32 3, %v4241
    %v4243 = vrot.slane %v4226, %v4242
    %v4248 = vmul.f32 %v4222, %v4231
    %v4249 = vmul.f32 %v4220, %v4235
    %v4250 = vmul.f32 %v4218, %v4239
    %v4251 = vmul.f32 %v4224, %v4243
    %v4252 = vmul.f32 %v4223, %v4231
    %v4253 = vmul.f32 %v4221, %v4235
    %v4254 = vmul.f32 %v4219, %v4239
    %v4255 = vmul.f32 %v4225, %v4243
    %4256 = vst [vmem:[#allocation2 + $0x1c0] sm:$0xff] %v4248
    %4257 = vst [vmem:[#allocation2 + $0x1c8] sm:$0xff] %v4249
    %4258 = vst [vmem:[#allocation2 + $0x1d0] sm:$0xff] %v4250
    %4259 = vst [vmem:[#allocation2 + $0x1d8] sm:$0xff] %v4251
    %4260 = vst [vmem:[#allocation2 + $0x1e0] sm:$0xff] %v4252
    %4261 = vst [vmem:[#allocation2 + $0x1e8] sm:$0xff] %v4253
    %4262 = vst [vmem:[#allocation2 + $0x1f0] sm:$0xff] %v4254
    %4263 = vst [vmem:[#allocation2 + $0x1f8] sm:$0xff] %v4255
    %4264 = vrot.lane.b32.xlu0 %v3778, 111
    %v4265 = vpop.permute.xlu0 %4264
    %4266 = vrot.lane.b32.xlu0 %v3780, 111
    %v4267 = vpop.permute.xlu0 %4266
    %4268 = vrot.lane.b32.xlu0 %v3779, 111
    %v4269 = vpop.permute.xlu0 %4268
    %4270 = vrot.lane.b32.xlu0 %v3781, 111
    %v4271 = vpop.permute.xlu0 %4270
    %4272 = vrot.lane.b32.xlu0 %v3818, 111
    %v4273 = vpop.permute.xlu0 %4272
    %4274 = vrot.lane.b32.xlu0 %v3820, 111
    %v4275 = vpop.permute.xlu0 %4274
    %4276 = vrot.lane.b32.xlu0 %v3819, 111
    %v4277 = vpop.permute.xlu0 %4276
    %4278 = vrot.lane.b32.xlu0 %v3821, 111
    %v4279 = vpop.permute.xlu0 %4278
    %v4280 = vsel %vm368, %v4273, %v4277
    %v4281 = vsel %vm368, %v4275, %v4279
    %v4282 = vsel %vm368, %v4269, %v4273
    %v4283 = vsel %vm368, %v4271, %v4275
    %v4284 = vsel %vm368, %v4265, %v4269
    %v4285 = vsel %vm368, %v4267, %v4271
    %v4286 = vsel %vm368, %v4277, %v4265
    %v4287 = vsel %vm368, %v4279, %v4267
    %v4288 = vld [vmem:[%s373] ss:$8 sm:$0xf]
    %v4290 = vlaneseq
    %v4291 = vshrl.u32 %v4290, 7
    %v4292 = vsub.s32 0, %v4291
    %v4293 = vrot.slane %v4288, %v4292
    %v4294 = vlaneseq
    %v4295 = vshrl.u32 %v4294, 7
    %v4296 = vsub.s32 1, %v4295
    %v4297 = vrot.slane %v4288, %v4296
    %v4298 = vlaneseq
    %v4299 = vshrl.u32 %v4298, 7
    %v4300 = vsub.s32 2, %v4299
    %v4301 = vrot.slane %v4288, %v4300
    %v4302 = vlaneseq
    %v4303 = vshrl.u32 %v4302, 7
    %v4304 = vsub.s32 3, %v4303
    %v4305 = vrot.slane %v4288, %v4304
    %v4310 = vmul.f32 %v4284, %v4293
    %v4311 = vmul.f32 %v4282, %v4297
    %v4312 = vmul.f32 %v4280, %v4301
    %v4313 = vmul.f32 %v4286, %v4305
    %v4314 = vmul.f32 %v4285, %v4293
    %v4315 = vmul.f32 %v4283, %v4297
    %v4316 = vmul.f32 %v4281, %v4301
    %v4317 = vmul.f32 %v4287, %v4305
    %4318 = vst [vmem:[#allocation2 + $0x200] sm:$0xff] %v4310
    %4319 = vst [vmem:[#allocation2 + $0x208] sm:$0xff] %v4311
    %4320 = vst [vmem:[#allocation2 + $0x210] sm:$0xff] %v4312
    %4321 = vst [vmem:[#allocation2 + $0x218] sm:$0xff] %v4313
    %4322 = vst [vmem:[#allocation2 + $0x220] sm:$0xff] %v4314
    %4323 = vst [vmem:[#allocation2 + $0x228] sm:$0xff] %v4315
    %4324 = vst [vmem:[#allocation2 + $0x230] sm:$0xff] %v4316
    %4325 = vst [vmem:[#allocation2 + $0x238] sm:$0xff] %v4317
    %v4326 = vld [vmem:[#allocation2] sm:$0xff]
    %v4327 = vld [vmem:[#allocation2 + $0x8] sm:$0xff]
    %v4328 = vld [vmem:[#allocation2 + $0x10] sm:$0xff]
    %v4329 = vld [vmem:[#allocation2 + $0x18] sm:$0xff]
    %v4330 = vld [vmem:[#allocation2 + $0x20] sm:$0xff]
    %v4331 = vld [vmem:[#allocation2 + $0x28] sm:$0xff]
    %v4332 = vld [vmem:[#allocation2 + $0x30] sm:$0xff]
    %v4333 = vld [vmem:[#allocation2 + $0x38] sm:$0xff]
    %v4334 = vld [vmem:[#allocation2 + $0x40] sm:$0xff]
    %v4335 = vld [vmem:[#allocation2 + $0x48] sm:$0xff]
    %v4336 = vld [vmem:[#allocation2 + $0x50] sm:$0xff]
    %v4337 = vld [vmem:[#allocation2 + $0x58] sm:$0xff]
    %v4338 = vld [vmem:[#allocation2 + $0x60] sm:$0xff]
    %v4339 = vld [vmem:[#allocation2 + $0x68] sm:$0xff]
    %v4340 = vld [vmem:[#allocation2 + $0x70] sm:$0xff]
    %v4341 = vld [vmem:[#allocation2 + $0x78] sm:$0xff]
    %v4342 = vld [vmem:[#allocation2 + $0x80] sm:$0xff]
    %v4343 = vld [vmem:[#allocation2 + $0x88] sm:$0xff]
    %v4344 = vld [vmem:[#allocation2 + $0x90] sm:$0xff]
    %v4345 = vld [vmem:[#allocation2 + $0x98] sm:$0xff]
    %v4346 = vld [vmem:[#allocation2 + $0xa0] sm:$0xff]
    %v4347 = vld [vmem:[#allocation2 + $0xa8] sm:$0xff]
    %v4348 = vld [vmem:[#allocation2 + $0xb0] sm:$0xff]
    %v4349 = vld [vmem:[#allocation2 + $0xb8] sm:$0xff]
    %v4350 = vld [vmem:[#allocation2 + $0xc0] sm:$0xff]
    %v4351 = vld [vmem:[#allocation2 + $0xc8] sm:$0xff]
    %v4352 = vld [vmem:[#allocation2 + $0xd0] sm:$0xff]
    %v4353 = vld [vmem:[#allocation2 + $0xd8] sm:$0xff]
    %v4354 = vld [vmem:[#allocation2 + $0xe0] sm:$0xff]
    %v4355 = vld [vmem:[#allocation2 + $0xe8] sm:$0xff]
    %v4356 = vld [vmem:[#allocation2 + $0xf0] sm:$0xff]
    %v4357 = vld [vmem:[#allocation2 + $0xf8] sm:$0xff]
    %v4358 = vld [vmem:[#allocation2 + $0x100] sm:$0xff]
    %v4359 = vld [vmem:[#allocation2 + $0x108] sm:$0xff]
    %v4360 = vld [vmem:[#allocation2 + $0x110] sm:$0xff]
    %v4361 = vld [vmem:[#allocation2 + $0x118] sm:$0xff]
    %v4362 = vld [vmem:[#allocation2 + $0x120] sm:$0xff]
    %v4363 = vld [vmem:[#allocation2 + $0x128] sm:$0xff]
    %v4364 = vld [vmem:[#allocation2 + $0x130] sm:$0xff]
    %v4365 = vld [vmem:[#allocation2 + $0x138] sm:$0xff]
    %v4366 = vld [vmem:[#allocation2 + $0x140] sm:$0xff]
    %v4367 = vld [vmem:[#allocation2 + $0x148] sm:$0xff]
    %v4368 = vld [vmem:[#allocation2 + $0x150] sm:$0xff]
    %v4369 = vld [vmem:[#allocation2 + $0x158] sm:$0xff]
    %v4370 = vld [vmem:[#allocation2 + $0x160] sm:$0xff]
    %v4371 = vld [vmem:[#allocation2 + $0x168] sm:$0xff]
    %v4372 = vld [vmem:[#allocation2 + $0x170] sm:$0xff]
    %v4373 = vld [vmem:[#allocation2 + $0x178] sm:$0xff]
    %v4374 = vld [vmem:[#allocation2 + $0x180] sm:$0xff]
    %v4375 = vld [vmem:[#allocation2 + $0x188] sm:$0xff]
    %v4376 = vld [vmem:[#allocation2 + $0x190] sm:$0xff]
    %v4377 = vld [vmem:[#allocation2 + $0x198] sm:$0xff]
    %v4378 = vld [vmem:[#allocation2 + $0x1a0] sm:$0xff]
    %v4379 = vld [vmem:[#allocation2 + $0x1a8] sm:$0xff]
    %v4380 = vld [vmem:[#allocation2 + $0x1b0] sm:$0xff]
    %v4381 = vld [vmem:[#allocation2 + $0x1b8] sm:$0xff]
    %v4382 = vld [vmem:[#allocation2 + $0x1c0] sm:$0xff]
    %v4383 = vld [vmem:[#allocation2 + $0x1c8] sm:$0xff]
    %v4384 = vld [vmem:[#allocation2 + $0x1d0] sm:$0xff]
    %v4385 = vld [vmem:[#allocation2 + $0x1d8] sm:$0xff]
    %v4386 = vld [vmem:[#allocation2 + $0x1e0] sm:$0xff]
    %v4387 = vld [vmem:[#allocation2 + $0x1e8] sm:$0xff]
    %v4388 = vld [vmem:[#allocation2 + $0x1f0] sm:$0xff]
    %v4389 = vld [vmem:[#allocation2 + $0x1f8] sm:$0xff]
    %v4390 = vld [vmem:[#allocation2 + $0x200] sm:$0xff]
    %v4391 = vld [vmem:[#allocation2 + $0x208] sm:$0xff]
    %v4392 = vld [vmem:[#allocation2 + $0x210] sm:$0xff]
    %v4393 = vld [vmem:[#allocation2 + $0x218] sm:$0xff]
    %v4394 = vld [vmem:[#allocation2 + $0x220] sm:$0xff]
    %v4395 = vld [vmem:[#allocation2 + $0x228] sm:$0xff]
    %v4396 = vld [vmem:[#allocation2 + $0x230] sm:$0xff]
    %v4397 = vld [vmem:[#allocation2 + $0x238] sm:$0xff]
    %4399 = vset.pattern.permute.xlu0 0
    %4400 = vperm.xlu0 %4399, %v3712
    %v4401 = vpop.permute.xlu0 %4400
    %4404 = vset.pattern.permute.xlu0 0
    %4405 = vperm.xlu0 %4404, %v3713
    %v4406 = vpop.permute.xlu0 %4405
    %v4409 = vsel %vm1381, %v3709, 0
    %v4412 = vsel %vm1381, %v3711, 0
    %4414 = vmatprep.subr.mxu0 %v4327
    %4415 = vmatpush1.msra.mxu0 %v4326
    %4416 = vmatprep.subr.mxu0 %v4331
    %4417 = vmatpush1.msra.mxu0 %v4330
    %4418 = vmatprep.subr.mxu0 %v4335
    %4419 = vmatpush1.msra.mxu0 %v4334
    %4420 = vmatprep.subr.mxu0 %v4339
    %4421 = vmatpush1.msra.mxu0 %v4338
    %4422 = vmatprep.subr.mxu0 %v4343
    %4423 = vmatpush1.msra.mxu0 %v4342
    %4424 = vmatprep.subr.mxu0 %v4347
    %4425 = vmatpush1.msra.mxu0 %v4346
    %4426 = vmatprep.subr.mxu0 %v4351
    %4427 = vmatpush1.msra.mxu0 %v4350
    %4428 = vmatprep.subr.mxu0 %v4355
    %4429 = vmatpush1.msra.mxu0 %v4354
    %4430 = vmatprep.subr.mxu0 %v4359
    %4431 = vmatpush1.msra.mxu0 %v4358
    %4432 = vmatprep.subr.mxu0 %v4363
    %4433 = vmatpush1.msra.mxu0 %v4362
    %4434 = vmatprep.subr.mxu0 %v4367
    %4435 = vmatpush1.msra.mxu0 %v4366
    %4436 = vmatprep.subr.mxu0 %v4371
    %4437 = vmatpush1.msra.mxu0 %v4370
    %4438 = vmatprep.subr.mxu0 %v4375
    %4439 = vmatpush1.msra.mxu0 %v4374
    %4440 = vmatprep.subr.mxu0 %v4379
    %4441 = vmatpush1.msra.mxu0 %v4378
    %4442 = vmatprep.subr.mxu0 %v4383
    %4443 = vmatpush1.msra.mxu0 %v4382
    %4444 = vmatprep.subr.mxu0 %v4387
    %4445 = vmatpush1.msra.mxu0 %v4386
    %4446 = vmatprep.subr.mxu0 %v4391
    %4447 = vmatpush1.msra.mxu0 %v4390
    %4448 = vmatprep.subr.mxu0 %v4395
    %4449 = vmatpush1.msra.mxu0 %v4394
    %4450 = vmatprep.subr.mxu0 0.0
    %4451 = vmatpush1.msra.mxu0 0.0
    %4452 = vmatprep.subr.mxu0 0.0
    %4453 = vmatpush1.msra.mxu0 0.0
    %4454 = vmatprep.subr.mxu0 0.0
    %4455 = vmatpush1.msra.mxu0 0.0
    %4456 = vmatprep.subr.mxu0 0.0
    %4457 = vmatpush1.msra.mxu0 0.0
    %4458 = vmatprep.subr.mxu0 0.0
    %4459 = vmatpush1.msra.mxu0 0.0
    %4460 = vmatprep.subr.mxu0 0.0
    %4461 = vmatpush1.msra.mxu0 0.0
    %4462 = vmatprep.subr.mxu0 0.0
    %4463 = vmatpush1.msra.mxu0 0.0
    %4464 = vmatprep.subr.mxu0 0.0
    %4465 = vmatpush1.msra.mxu0 0.0
    %4466 = vmatprep.subr.mxu0 0.0
    %4467 = vmatpush1.msra.mxu0 0.0
    %4468 = vmatprep.subr.mxu0 0.0
    %4469 = vmatpush1.msra.mxu0 0.0
    %4470 = vmatprep.subr.mxu0 0.0
    %4471 = vmatpush1.msra.mxu0 0.0
    %4472 = vmatprep.subr.mxu0 0.0
    %4473 = vmatpush1.msra.mxu0 0.0
    %4474 = vmatprep.subr.mxu0 0.0
    %4475 = vmatpush1.msra.mxu0 0.0
    %4476 = vmatprep.subr.mxu0 0.0
    %4477 = vmatpush1.msra.mxu0 0.0
    %4478 = vmatprep.mubr.f32.mxu0 %v4409
    %4479 = vmatmul.mubr.f32.gmra.mrb[0].mxu0 %v3708
    %v4480 = vpop.f32.mrb[0].mxu0
    %v4481 = vadd.f32 %v4401, %v4480
    %v4482 = vpop.f32.mrb[0].mxu0
    %v4483 = vadd.f32 %v4401, %v4482
    %4484 = vmatprep.mubr.f32.mxu0 %v4412
    %4485 = vmatmul.mubr.f32.gmra.mrb[0].mxu0 %v3710
    %v4486 = vpop.f32.mrb[0].mxu0
    %v4487 = vadd.f32 %v4406, %v4486
    %v4488 = vpop.f32.mrb[0].mxu0
    %v4489 = vadd.f32 %v4406, %v4488
    %4490 = vdwg.mxu0
    %4491 = vmatprep.subr.mxu0 %v4329
    %4492 = vmatpush1.msra.mxu0 %v4328
    %4493 = vmatprep.subr.mxu0 %v4333
    %4494 = vmatpush1.msra.mxu0 %v4332
    %4495 = vmatprep.subr.mxu0 %v4337
    %4496 = vmatpush1.msra.mxu0 %v4336
    %4497 = vmatprep.subr.mxu0 %v4341
    %4498 = vmatpush1.msra.mxu0 %v4340
    %4499 = vmatprep.subr.mxu0 %v4345
    %4500 = vmatpush1.msra.mxu0 %v4344
    %4501 = vmatprep.subr.mxu0 %v4349
    %4502 = vmatpush1.msra.mxu0 %v4348
    %4503 = vmatprep.subr.mxu0 %v4353
    %4504 = vmatpush1.msra.mxu0 %v4352
    %4505 = vmatprep.subr.mxu0 %v4357
    %4506 = vmatpush1.msra.mxu0 %v4356
    %4507 = vmatprep.subr.mxu0 %v4361
    %4508 = vmatpush1.msra.mxu0 %v4360
    %4509 = vmatprep.subr.mxu0 %v4365
    %4510 = vmatpush1.msra.mxu0 %v4364
    %4511 = vmatprep.subr.mxu0 %v4369
    %4512 = vmatpush1.msra.mxu0 %v4368
    %4513 = vmatprep.subr.mxu0 %v4373
    %4514 = vmatpush1.msra.mxu0 %v4372
    %4515 = vmatprep.subr.mxu0 %v4377
    %4516 = vmatpush1.msra.mxu0 %v4376
    %4517 = vmatprep.subr.mxu0 %v4381
    %4518 = vmatpush1.msra.mxu0 %v4380
    %4519 = vmatprep.subr.mxu0 %v4385
    %4520 = vmatpush1.msra.mxu0 %v4384
    %4521 = vmatprep.subr.mxu0 %v4389
    %4522 = vmatpush1.msra.mxu0 %v4388
    %4523 = vmatprep.subr.mxu0 %v4393
    %4524 = vmatpush1.msra.mxu0 %v4392
    %4525 = vmatprep.subr.mxu0 %v4397
    %4526 = vmatpush1.msra.mxu0 %v4396
    %4527 = vmatprep.subr.mxu0 0.0
    %4528 = vmatpush1.msra.mxu0 0.0
    %4529 = vmatprep.subr.mxu0 0.0
    %4530 = vmatpush1.msra.mxu0 0.0
    %4531 = vmatprep.subr.mxu0 0.0
    %4532 = vmatpush1.msra.mxu0 0.0
    %4533 = vmatprep.subr.mxu0 0.0
    %4534 = vmatpush1.msra.mxu0 0.0
    %4535 = vmatprep.subr.mxu0 0.0
    %4536 = vmatpush1.msra.mxu0 0.0
    %4537 = vmatprep.subr.mxu0 0.0
    %4538 = vmatpush1.msra.mxu0 0.0
    %4539 = vmatprep.subr.mxu0 0.0
    %4540 = vmatpush1.msra.mxu0 0.0
    %4541 = vmatprep.subr.mxu0 0.0
    %4542 = vmatpush1.msra.mxu0 0.0
    %4543 = vmatprep.subr.mxu0 0.0
    %4544 = vmatpush1.msra.mxu0 0.0
    %4545 = vmatprep.subr.mxu0 0.0
    %4546 = vmatpush1.msra.mxu0 0.0
    %4547 = vmatprep.subr.mxu0 0.0
    %4548 = vmatpush1.msra.mxu0 0.0
    %4549 = vmatprep.subr.mxu0 0.0
    %4550 = vmatpush1.msra.mxu0 0.0
    %4551 = vmatprep.subr.mxu0 0.0
    %4552 = vmatpush1.msra.mxu0 0.0
    %4553 = vmatprep.subr.mxu0 0.0
    %4554 = vmatpush1.msra.mxu0 0.0
    %4555 = vmatprep.mubr.f32.mxu0 %v4409
    %4556 = vmatmul.mubr.f32.gmra.mrb[0].mxu0 %v3708
    %v4557 = vpop.f32.mrb[0].mxu0
    %v4558 = vadd.f32 %v4401, %v4557
    %v4559 = vpop.f32.mrb[0].mxu0
    %v4560 = vadd.f32 %v4401, %v4559
    %4561 = vmatprep.mubr.f32.mxu0 %v4412
    %4562 = vmatmul.mubr.f32.gmra.mrb[0].mxu0 %v3710
    %v4563 = vpop.f32.mrb[0].mxu0
    %v4564 = vadd.f32 %v4406, %v4563
    %v4565 = vpop.f32.mrb[0].mxu0
    %v4566 = vadd.f32 %v4406, %v4565
    %4567 = vdwg.mxu0
    %v4568 = vmax.f32 %v4481, 0.0
    %v4569 = vmax.f32 %v4483, 0.0
    %v4570 = vmax.f32 %v4558, 0.0
    %v4571 = vmax.f32 %v4560, 0.0
    %v4572 = vmax.f32 %v4487, 0.0
    %v4573 = vmax.f32 %v4489, 0.0
    %v4574 = vmax.f32 %v4564, 0.0
    %v4575 = vmax.f32 %v4566, 0.0
    %4576 = vrot.lane.b32.xlu0 %v4568, 17
    %v4577 = vpop.permute.xlu0 %4576
    %4578 = vrot.lane.b32.xlu0 %v4572, 17
    %v4579 = vpop.permute.xlu0 %4578
    %4580 = vrot.lane.b32.xlu0 %v4569, 17
    %v4581 = vpop.permute.xlu0 %4580
    %4582 = vrot.lane.b32.xlu0 %v4573, 17
    %v4583 = vpop.permute.xlu0 %4582
    %4584 = vrot.lane.b32.xlu0 %v4570, 17
    %v4585 = vpop.permute.xlu0 %4584
    %4586 = vrot.lane.b32.xlu0 %v4574, 17
    %v4587 = vpop.permute.xlu0 %4586
    %4588 = vrot.lane.b32.xlu0 %v4571, 17
    %v4589 = vpop.permute.xlu0 %4588
    %4590 = vrot.lane.b32.xlu0 %v4575, 17
    %v4591 = vpop.permute.xlu0 %4590
    %v4592 = vsel %vm57, %v4585, %v4589
    %v4593 = vsel %vm57, %v4587, %v4591
    %v4594 = vsel %vm57, %v4581, %v4585
    %v4595 = vsel %vm57, %v4583, %v4587
    %v4596 = vsel %vm57, %v4577, %v4581
    %v4597 = vsel %vm57, %v4579, %v4583
    %v4598 = vsel %vm57, %v4589, %v4577
    %v4599 = vsel %vm57, %v4591, %v4579
    %v4600 = vld [vmem:[#allocation3] ss:$8 sm:$0xf]
    %v4602 = vlaneseq
    %v4603 = vshrl.u32 %v4602, 7
    %v4604 = vsub.s32 0, %v4603
    %v4605 = vrot.slane %v4600, %v4604
    %v4606 = vlaneseq
    %v4607 = vshrl.u32 %v4606, 7
    %v4608 = vsub.s32 1, %v4607
    %v4609 = vrot.slane %v4600, %v4608
    %v4610 = vlaneseq
    %v4611 = vshrl.u32 %v4610, 7
    %v4612 = vsub.s32 2, %v4611
    %v4613 = vrot.slane %v4600, %v4612
    %v4614 = vlaneseq
    %v4615 = vshrl.u32 %v4614, 7
    %v4616 = vsub.s32 3, %v4615
    %v4617 = vrot.slane %v4600, %v4616
    %v4622 = vmul.f32 %v4598, %v4605
    %v4623 = vmul.f32 %v4596, %v4609
    %v4624 = vmul.f32 %v4594, %v4613
    %v4625 = vmul.f32 %v4592, %v4617
    %v4626 = vmul.f32 %v4599, %v4605
    %v4627 = vmul.f32 %v4597, %v4609
    %v4628 = vmul.f32 %v4595, %v4613
    %v4629 = vmul.f32 %v4593, %v4617
    %4630 = vst [vmem:[#allocation2] sm:$0xff] %v4622
    %4631 = vst [vmem:[#allocation2 + $0x8] sm:$0xff] %v4623
    %4632 = vst [vmem:[#allocation2 + $0x10] sm:$0xff] %v4624
    %4633 = vst [vmem:[#allocation2 + $0x18] sm:$0xff] %v4625
    %4634 = vst [vmem:[#allocation2 + $0x20] sm:$0xff] %v4626
    %4635 = vst [vmem:[#allocation2 + $0x28] sm:$0xff] %v4627
    %4636 = vst [vmem:[#allocation2 + $0x30] sm:$0xff] %v4628
    %4637 = vst [vmem:[#allocation2 + $0x38] sm:$0xff] %v4629
    %4638 = vrot.lane.b32.xlu0 %v4568, 16
    %v4639 = vpop.permute.xlu0 %4638
    %4640 = vrot.lane.b32.xlu0 %v4572, 16
    %v4641 = vpop.permute.xlu0 %4640
    %4642 = vrot.lane.b32.xlu0 %v4569, 16
    %v4643 = vpop.permute.xlu0 %4642
    %4644 = vrot.lane.b32.xlu0 %v4573, 16
    %v4645 = vpop.permute.xlu0 %4644
    %4646 = vrot.lane.b32.xlu0 %v4570, 16
    %v4647 = vpop.permute.xlu0 %4646
    %4648 = vrot.lane.b32.xlu0 %v4574, 16
    %v4649 = vpop.permute.xlu0 %4648
    %4650 = vrot.lane.b32.xlu0 %v4571, 16
    %v4651 = vpop.permute.xlu0 %4650
    %4652 = vrot.lane.b32.xlu0 %v4575, 16
    %v4653 = vpop.permute.xlu0 %4652
    %v4654 = vsel %vm100, %v4647, %v4651
    %v4655 = vsel %vm100, %v4649, %v4653
    %v4656 = vsel %vm100, %v4643, %v4647
    %v4657 = vsel %vm100, %v4645, %v4649
    %v4658 = vsel %vm100, %v4639, %v4643
    %v4659 = vsel %vm100, %v4641, %v4645
    %v4660 = vsel %vm100, %v4651, %v4639
    %v4661 = vsel %vm100, %v4653, %v4641
    %v4662 = vld [vmem:[%s105] ss:$8 sm:$0xf]
    %v4664 = vlaneseq
    %v4665 = vshrl.u32 %v4664, 7
    %v4666 = vsub.s32 0, %v4665
    %v4667 = vrot.slane %v4662, %v4666
    %v4668 = vlaneseq
    %v4669 = vshrl.u32 %v4668, 7
    %v4670 = vsub.s32 1, %v4669
    %v4671 = vrot.slane %v4662, %v4670
    %v4672 = vlaneseq
    %v4673 = vshrl.u32 %v4672, 7
    %v4674 = vsub.s32 2, %v4673
    %v4675 = vrot.slane %v4662, %v4674
    %v4676 = vlaneseq
    %v4677 = vshrl.u32 %v4676, 7
    %v4678 = vsub.s32 3, %v4677
    %v4679 = vrot.slane %v4662, %v4678
    %v4684 = vmul.f32 %v4660, %v4667
    %v4685 = vmul.f32 %v4658, %v4671
    %v4686 = vmul.f32 %v4656, %v4675
    %v4687 = vmul.f32 %v4654, %v4679
    %v4688 = vmul.f32 %v4661, %v4667
    %v4689 = vmul.f32 %v4659, %v4671
    %v4690 = vmul.f32 %v4657, %v4675
    %v4691 = vmul.f32 %v4655, %v4679
    %4692 = vst [vmem:[#allocation2 + $0x40] sm:$0xff] %v4684
    %4693 = vst [vmem:[#allocation2 + $0x48] sm:$0xff] %v4685
    %4694 = vst [vmem:[#allocation2 + $0x50] sm:$0xff] %v4686
    %4695 = vst [vmem:[#allocation2 + $0x58] sm:$0xff] %v4687
    %4696 = vst [vmem:[#allocation2 + $0x60] sm:$0xff] %v4688
    %4697 = vst [vmem:[#allocation2 + $0x68] sm:$0xff] %v4689
    %4698 = vst [vmem:[#allocation2 + $0x70] sm:$0xff] %v4690
    %4699 = vst [vmem:[#allocation2 + $0x78] sm:$0xff] %v4691
    %4700 = vrot.lane.b32.xlu0 %v4568, 15
    %v4701 = vpop.permute.xlu0 %4700
    %4702 = vrot.lane.b32.xlu0 %v4572, 15
    %v4703 = vpop.permute.xlu0 %4702
    %4704 = vrot.lane.b32.xlu0 %v4569, 15
    %v4705 = vpop.permute.xlu0 %4704
    %4706 = vrot.lane.b32.xlu0 %v4573, 15
    %v4707 = vpop.permute.xlu0 %4706
    %4708 = vrot.lane.b32.xlu0 %v4570, 15
    %v4709 = vpop.permute.xlu0 %4708
    %4710 = vrot.lane.b32.xlu0 %v4574, 15
    %v4711 = vpop.permute.xlu0 %4710
    %4712 = vrot.lane.b32.xlu0 %v4571, 15
    %v4713 = vpop.permute.xlu0 %4712
    %4714 = vrot.lane.b32.xlu0 %v4575, 15
    %v4715 = vpop.permute.xlu0 %4714
    %v4716 = vsel %vm144, %v4709, %v4713
    %v4717 = vsel %vm144, %v4711, %v4715
    %v4718 = vsel %vm144, %v4705, %v4709
    %v4719 = vsel %vm144, %v4707, %v4711
    %v4720 = vsel %vm144, %v4701, %v4705
    %v4721 = vsel %vm144, %v4703, %v4707
    %v4722 = vsel %vm144, %v4713, %v4701
    %v4723 = vsel %vm144, %v4715, %v4703
    %v4724 = vld [vmem:[%s149] ss:$8 sm:$0xf]
    %v4726 = vlaneseq
    %v4727 = vshrl.u32 %v4726, 7
    %v4728 = vsub.s32 0, %v4727
    %v4729 = vrot.slane %v4724, %v4728
    %v4730 = vlaneseq
    %v4731 = vshrl.u32 %v4730, 7
    %v4732 = vsub.s32 1, %v4731
    %v4733 = vrot.slane %v4724, %v4732
    %v4734 = vlaneseq
    %v4735 = vshrl.u32 %v4734, 7
    %v4736 = vsub.s32 2, %v4735
    %v4737 = vrot.slane %v4724, %v4736
    %v4738 = vlaneseq
    %v4739 = vshrl.u32 %v4738, 7
    %v4740 = vsub.s32 3, %v4739
    %v4741 = vrot.slane %v4724, %v4740
    %v4746 = vmul.f32 %v4722, %v4729
    %v4747 = vmul.f32 %v4720, %v4733
    %v4748 = vmul.f32 %v4718, %v4737
    %v4749 = vmul.f32 %v4716, %v4741
    %v4750 = vmul.f32 %v4723, %v4729
    %v4751 = vmul.f32 %v4721, %v4733
    %v4752 = vmul.f32 %v4719, %v4737
    %v4753 = vmul.f32 %v4717, %v4741
    %4754 = vst [vmem:[#allocation2 + $0x80] sm:$0xff] %v4746
    %4755 = vst [vmem:[#allocation2 + $0x88] sm:$0xff] %v4747
    %4756 = vst [vmem:[#allocation2 + $0x90] sm:$0xff] %v4748
    %4757 = vst [vmem:[#allocation2 + $0x98] sm:$0xff] %v4749
    %4758 = vst [vmem:[#allocation2 + $0xa0] sm:$0xff] %v4750
    %4759 = vst [vmem:[#allocation2 + $0xa8] sm:$0xff] %v4751
    %4760 = vst [vmem:[#allocation2 + $0xb0] sm:$0xff] %v4752
    %4761 = vst [vmem:[#allocation2 + $0xb8] sm:$0xff] %v4753
    %4762 = vrot.lane.b32.xlu0 %v4568, 1
    %v4763 = vpop.permute.xlu0 %4762
    %4764 = vrot.lane.b32.xlu0 %v4572, 1
    %v4765 = vpop.permute.xlu0 %4764
    %4766 = vrot.lane.b32.xlu0 %v4569, 1
    %v4767 = vpop.permute.xlu0 %4766
    %4768 = vrot.lane.b32.xlu0 %v4573, 1
    %v4769 = vpop.permute.xlu0 %4768
    %4770 = vrot.lane.b32.xlu0 %v4570, 1
    %v4771 = vpop.permute.xlu0 %4770
    %4772 = vrot.lane.b32.xlu0 %v4574, 1
    %v4773 = vpop.permute.xlu0 %4772
    %4774 = vrot.lane.b32.xlu0 %v4571, 1
    %v4775 = vpop.permute.xlu0 %4774
    %4776 = vrot.lane.b32.xlu0 %v4575, 1
    %v4777 = vpop.permute.xlu0 %4776
    %v4778 = vsel %vm188, %v4771, %v4775
    %v4779 = vsel %vm188, %v4773, %v4777
    %v4780 = vsel %vm188, %v4767, %v4771
    %v4781 = vsel %vm188, %v4769, %v4773
    %v4782 = vsel %vm188, %v4763, %v4767
    %v4783 = vsel %vm188, %v4765, %v4769
    %v4784 = vsel %vm188, %v4775, %v4763
    %v4785 = vsel %vm188, %v4777, %v4765
    %v4786 = vld [vmem:[%s193] ss:$8 sm:$0xf]
    %v4788 = vlaneseq
    %v4789 = vshrl.u32 %v4788, 7
    %v4790 = vsub.s32 0, %v4789
    %v4791 = vrot.slane %v4786, %v4790
    %v4792 = vlaneseq
    %v4793 = vshrl.u32 %v4792, 7
    %v4794 = vsub.s32 1, %v4793
    %v4795 = vrot.slane %v4786, %v4794
    %v4796 = vlaneseq
    %v4797 = vshrl.u32 %v4796, 7
    %v4798 = vsub.s32 2, %v4797
    %v4799 = vrot.slane %v4786, %v4798
    %v4800 = vlaneseq
    %v4801 = vshrl.u32 %v4800, 7
    %v4802 = vsub.s32 3, %v4801
    %v4803 = vrot.slane %v4786, %v4802
    %v4808 = vmul.f32 %v4784, %v4791
    %v4809 = vmul.f32 %v4782, %v4795
    %v4810 = vmul.f32 %v4780, %v4799
    %v4811 = vmul.f32 %v4778, %v4803
    %v4812 = vmul.f32 %v4785, %v4791
    %v4813 = vmul.f32 %v4783, %v4795
    %v4814 = vmul.f32 %v4781, %v4799
    %v4815 = vmul.f32 %v4779, %v4803
    %4816 = vst [vmem:[#allocation2 + $0xc0] sm:$0xff] %v4808
    %4817 = vst [vmem:[#allocation2 + $0xc8] sm:$0xff] %v4809
    %4818 = vst [vmem:[#allocation2 + $0xd0] sm:$0xff] %v4810
    %4819 = vst [vmem:[#allocation2 + $0xd8] sm:$0xff] %v4811
    %4820 = vst [vmem:[#allocation2 + $0xe0] sm:$0xff] %v4812
    %4821 = vst [vmem:[#allocation2 + $0xe8] sm:$0xff] %v4813
    %4822 = vst [vmem:[#allocation2 + $0xf0] sm:$0xff] %v4814
    %4823 = vst [vmem:[#allocation2 + $0xf8] sm:$0xff] %v4815
    %4824 = vst [vmem:[#allocation2 + $0x100] sm:$0xff] %v4568
    %4825 = vst [vmem:[#allocation2 + $0x108] sm:$0xff] %v4569
    %4826 = vst [vmem:[#allocation2 + $0x110] sm:$0xff] %v4570
    %4827 = vst [vmem:[#allocation2 + $0x118] sm:$0xff] %v4571
    %4828 = vst [vmem:[#allocation2 + $0x120] sm:$0xff] %v4572
    %4829 = vst [vmem:[#allocation2 + $0x128] sm:$0xff] %v4573
    %4830 = vst [vmem:[#allocation2 + $0x130] sm:$0xff] %v4574
    %4831 = vst [vmem:[#allocation2 + $0x138] sm:$0xff] %v4575
    %4832 = vrot.lane.b32.xlu0 %v4568, 127
    %v4833 = vpop.permute.xlu0 %4832
    %4834 = vrot.lane.b32.xlu0 %v4572, 127
    %v4835 = vpop.permute.xlu0 %4834
    %4836 = vrot.lane.b32.xlu0 %v4569, 127
    %v4837 = vpop.permute.xlu0 %4836
    %4838 = vrot.lane.b32.xlu0 %v4573, 127
    %v4839 = vpop.permute.xlu0 %4838
    %4840 = vrot.lane.b32.xlu0 %v4570, 127
    %v4841 = vpop.permute.xlu0 %4840
    %4842 = vrot.lane.b32.xlu0 %v4574, 127
    %v4843 = vpop.permute.xlu0 %4842
    %4844 = vrot.lane.b32.xlu0 %v4571, 127
    %v4845 = vpop.permute.xlu0 %4844
    %4846 = vrot.lane.b32.xlu0 %v4575, 127
    %v4847 = vpop.permute.xlu0 %4846
    %v4848 = vsel %vm236, %v4841, %v4845
    %v4849 = vsel %vm236, %v4843, %v4847
    %v4850 = vsel %vm236, %v4837, %v4841
    %v4851 = vsel %vm236, %v4839, %v4843
    %v4852 = vsel %vm236, %v4833, %v4837
    %v4853 = vsel %vm236, %v4835, %v4839
    %v4854 = vsel %vm236, %v4845, %v4833
    %v4855 = vsel %vm236, %v4847, %v4835
    %v4856 = vld [vmem:[%s241] ss:$8 sm:$0xf]
    %v4858 = vlaneseq
    %v4859 = vshrl.u32 %v4858, 7
    %v4860 = vsub.s32 0, %v4859
    %v4861 = vrot.slane %v4856, %v4860
    %v4862 = vlaneseq
    %v4863 = vshrl.u32 %v4862, 7
    %v4864 = vsub.s32 1, %v4863
    %v4865 = vrot.slane %v4856, %v4864
    %v4866 = vlaneseq
    %v4867 = vshrl.u32 %v4866, 7
    %v4868 = vsub.s32 2, %v4867
    %v4869 = vrot.slane %v4856, %v4868
    %v4870 = vlaneseq
    %v4871 = vshrl.u32 %v4870, 7
    %v4872 = vsub.s32 3, %v4871
    %v4873 = vrot.slane %v4856, %v4872
    %v4878 = vmul.f32 %v4852, %v4861
    %v4879 = vmul.f32 %v4850, %v4865
    %v4880 = vmul.f32 %v4848, %v4869
    %v4881 = vmul.f32 %v4854, %v4873
    %v4882 = vmul.f32 %v4853, %v4861
    %v4883 = vmul.f32 %v4851, %v4865
    %v4884 = vmul.f32 %v4849, %v4869
    %v4885 = vmul.f32 %v4855, %v4873
    %4886 = vst [vmem:[#allocation2 + $0x140] sm:$0xff] %v4878
    %4887 = vst [vmem:[#allocation2 + $0x148] sm:$0xff] %v4879
    %4888 = vst [vmem:[#allocation2 + $0x150] sm:$0xff] %v4880
    %4889 = vst [vmem:[#allocation2 + $0x158] sm:$0xff] %v4881
    %4890 = vst [vmem:[#allocation2 + $0x160] sm:$0xff] %v4882
    %4891 = vst [vmem:[#allocation2 + $0x168] sm:$0xff] %v4883
    %4892 = vst [vmem:[#allocation2 + $0x170] sm:$0xff] %v4884
    %4893 = vst [vmem:[#allocation2 + $0x178] sm:$0xff] %v4885
    %4894 = vrot.lane.b32.xlu0 %v4568, 113
    %v4895 = vpop.permute.xlu0 %4894
    %4896 = vrot.lane.b32.xlu0 %v4572, 113
    %v4897 = vpop.permute.xlu0 %4896
    %4898 = vrot.lane.b32.xlu0 %v4569, 113
    %v4899 = vpop.permute.xlu0 %4898
    %4900 = vrot.lane.b32.xlu0 %v4573, 113
    %v4901 = vpop.permute.xlu0 %4900
    %4902 = vrot.lane.b32.xlu0 %v4570, 113
    %v4903 = vpop.permute.xlu0 %4902
    %4904 = vrot.lane.b32.xlu0 %v4574, 113
    %v4905 = vpop.permute.xlu0 %4904
    %4906 = vrot.lane.b32.xlu0 %v4571, 113
    %v4907 = vpop.permute.xlu0 %4906
    %4908 = vrot.lane.b32.xlu0 %v4575, 113
    %v4909 = vpop.permute.xlu0 %4908
    %v4910 = vsel %vm280, %v4903, %v4907
    %v4911 = vsel %vm280, %v4905, %v4909
    %v4912 = vsel %vm280, %v4899, %v4903
    %v4913 = vsel %vm280, %v4901, %v4905
    %v4914 = vsel %vm280, %v4895, %v4899
    %v4915 = vsel %vm280, %v4897, %v4901
    %v4916 = vsel %vm280, %v4907, %v4895
    %v4917 = vsel %vm280, %v4909, %v4897
    %v4918 = vld [vmem:[%s285] ss:$8 sm:$0xf]
    %v4920 = vlaneseq
    %v4921 = vshrl.u32 %v4920, 7
    %v4922 = vsub.s32 0, %v4921
    %v4923 = vrot.slane %v4918, %v4922
    %v4924 = vlaneseq
    %v4925 = vshrl.u32 %v4924, 7
    %v4926 = vsub.s32 1, %v4925
    %v4927 = vrot.slane %v4918, %v4926
    %v4928 = vlaneseq
    %v4929 = vshrl.u32 %v4928, 7
    %v4930 = vsub.s32 2, %v4929
    %v4931 = vrot.slane %v4918, %v4930
    %v4932 = vlaneseq
    %v4933 = vshrl.u32 %v4932, 7
    %v4934 = vsub.s32 3, %v4933
    %v4935 = vrot.slane %v4918, %v4934
    %v4940 = vmul.f32 %v4914, %v4923
    %v4941 = vmul.f32 %v4912, %v4927
    %v4942 = vmul.f32 %v4910, %v4931
    %v4943 = vmul.f32 %v4916, %v4935
    %v4944 = vmul.f32 %v4915, %v4923
    %v4945 = vmul.f32 %v4913, %v4927
    %v4946 = vmul.f32 %v4911, %v4931
    %v4947 = vmul.f32 %v4917, %v4935
    %4948 = vst [vmem:[#allocation2 + $0x180] sm:$0xff] %v4940
    %4949 = vst [vmem:[#allocation2 + $0x188] sm:$0xff] %v4941
    %4950 = vst [vmem:[#allocation2 + $0x190] sm:$0xff] %v4942
    %4951 = vst [vmem:[#allocation2 + $0x198] sm:$0xff] %v4943
    %4952 = vst [vmem:[#allocation2 + $0x1a0] sm:$0xff] %v4944
    %4953 = vst [vmem:[#allocation2 + $0x1a8] sm:$0xff] %v4945
    %4954 = vst [vmem:[#allocation2 + $0x1b0] sm:$0xff] %v4946
    %4955 = vst [vmem:[#allocation2 + $0x1b8] sm:$0xff] %v4947
    %4956 = vrot.lane.b32.xlu0 %v4568, 112
    %v4957 = vpop.permute.xlu0 %4956
    %4958 = vrot.lane.b32.xlu0 %v4572, 112
    %v4959 = vpop.permute.xlu0 %4958
    %4960 = vrot.lane.b32.xlu0 %v4569, 112
    %v4961 = vpop.permute.xlu0 %4960
    %4962 = vrot.lane.b32.xlu0 %v4573, 112
    %v4963 = vpop.permute.xlu0 %4962
    %4964 = vrot.lane.b32.xlu0 %v4570, 112
    %v4965 = vpop.permute.xlu0 %4964
    %4966 = vrot.lane.b32.xlu0 %v4574, 112
    %v4967 = vpop.permute.xlu0 %4966
    %4968 = vrot.lane.b32.xlu0 %v4571, 112
    %v4969 = vpop.permute.xlu0 %4968
    %4970 = vrot.lane.b32.xlu0 %v4575, 112
    %v4971 = vpop.permute.xlu0 %4970
    %v4972 = vsel %vm324, %v4965, %v4969
    %v4973 = vsel %vm324, %v4967, %v4971
    %v4974 = vsel %vm324, %v4961, %v4965
    %v4975 = vsel %vm324, %v4963, %v4967
    %v4976 = vsel %vm324, %v4957, %v4961
    %v4977 = vsel %vm324, %v4959, %v4963
    %v4978 = vsel %vm324, %v4969, %v4957
    %v4979 = vsel %vm324, %v4971, %v4959
    %v4980 = vld [vmem:[%s329] ss:$8 sm:$0xf]
    %v4982 = vlaneseq
    %v4983 = vshrl.u32 %v4982, 7
    %v4984 = vsub.s32 0, %v4983
    %v4985 = vrot.slane %v4980, %v4984
    %v4986 = vlaneseq
    %v4987 = vshrl.u32 %v4986, 7
    %v4988 = vsub.s32 1, %v4987
    %v4989 = vrot.slane %v4980, %v4988
    %v4990 = vlaneseq
    %v4991 = vshrl.u32 %v4990, 7
    %v4992 = vsub.s32 2, %v4991
    %v4993 = vrot.slane %v4980, %v4992
    %v4994 = vlaneseq
    %v4995 = vshrl.u32 %v4994, 7
    %v4996 = vsub.s32 3, %v4995
    %v4997 = vrot.slane %v4980, %v4996
    %v5002 = vmul.f32 %v4976, %v4985
    %v5003 = vmul.f32 %v4974, %v4989
    %v5004 = vmul.f32 %v4972, %v4993
    %v5005 = vmul.f32 %v4978, %v4997
    %v5006 = vmul.f32 %v4977, %v4985
    %v5007 = vmul.f32 %v4975, %v4989
    %v5008 = vmul.f32 %v4973, %v4993
    %v5009 = vmul.f32 %v4979, %v4997
    %5010 = vst [vmem:[#allocation2 + $0x1c0] sm:$0xff] %v5002
    %5011 = vst [vmem:[#allocation2 + $0x1c8] sm:$0xff] %v5003
    %5012 = vst [vmem:[#allocation2 + $0x1d0] sm:$0xff] %v5004
    %5013 = vst [vmem:[#allocation2 + $0x1d8] sm:$0xff] %v5005
    %5014 = vst [vmem:[#allocation2 + $0x1e0] sm:$0xff] %v5006
    %5015 = vst [vmem:[#allocation2 + $0x1e8] sm:$0xff] %v5007
    %5016 = vst [vmem:[#allocation2 + $0x1f0] sm:$0xff] %v5008
    %5017 = vst [vmem:[#allocation2 + $0x1f8] sm:$0xff] %v5009
    %5018 = vrot.lane.b32.xlu0 %v4568, 111
    %v5019 = vpop.permute.xlu0 %5018
    %5020 = vrot.lane.b32.xlu0 %v4572, 111
    %v5021 = vpop.permute.xlu0 %5020
    %5022 = vrot.lane.b32.xlu0 %v4569, 111
    %v5023 = vpop.permute.xlu0 %5022
    %5024 = vrot.lane.b32.xlu0 %v4573, 111
    %v5025 = vpop.permute.xlu0 %5024
    %5026 = vrot.lane.b32.xlu0 %v4570, 111
    %v5027 = vpop.permute.xlu0 %5026
    %5028 = vrot.lane.b32.xlu0 %v4574, 111
    %v5029 = vpop.permute.xlu0 %5028
    %5030 = vrot.lane.b32.xlu0 %v4571, 111
    %v5031 = vpop.permute.xlu0 %5030
    %5032 = vrot.lane.b32.xlu0 %v4575, 111
    %v5033 = vpop.permute.xlu0 %5032
    %v5034 = vsel %vm368, %v5027, %v5031
    %v5035 = vsel %vm368, %v5029, %v5033
    %v5036 = vsel %vm368, %v5023, %v5027
    %v5037 = vsel %vm368, %v5025, %v5029
    %v5038 = vsel %vm368, %v5019, %v5023
    %v5039 = vsel %vm368, %v5021, %v5025
    %v5040 = vsel %vm368, %v5031, %v5019
    %v5041 = vsel %vm368, %v5033, %v5021
    %v5042 = vld [vmem:[%s373] ss:$8 sm:$0xf]
    %v5044 = vlaneseq
    %v5045 = vshrl.u32 %v5044, 7
    %v5046 = vsub.s32 0, %v5045
    %v5047 = vrot.slane %v5042, %v5046
    %v5048 = vlaneseq
    %v5049 = vshrl.u32 %v5048, 7
    %v5050 = vsub.s32 1, %v5049
    %v5051 = vrot.slane %v5042, %v5050
    %v5052 = vlaneseq
    %v5053 = vshrl.u32 %v5052, 7
    %v5054 = vsub.s32 2, %v5053
    %v5055 = vrot.slane %v5042, %v5054
    %v5056 = vlaneseq
    %v5057 = vshrl.u32 %v5056, 7
    %v5058 = vsub.s32 3, %v5057
    %v5059 = vrot.slane %v5042, %v5058
    %v5064 = vmul.f32 %v5038, %v5047
    %v5065 = vmul.f32 %v5036, %v5051
    %v5066 = vmul.f32 %v5034, %v5055
    %v5067 = vmul.f32 %v5040, %v5059
    %v5068 = vmul.f32 %v5039, %v5047
    %v5069 = vmul.f32 %v5037, %v5051
    %v5070 = vmul.f32 %v5035, %v5055
    %v5071 = vmul.f32 %v5041, %v5059
    %5072 = vst [vmem:[#allocation2 + $0x200] sm:$0xff] %v5064
    %5073 = vst [vmem:[#allocation2 + $0x208] sm:$0xff] %v5065
    %5074 = vst [vmem:[#allocation2 + $0x210] sm:$0xff] %v5066
    %5075 = vst [vmem:[#allocation2 + $0x218] sm:$0xff] %v5067
    %5076 = vst [vmem:[#allocation2 + $0x220] sm:$0xff] %v5068
    %5077 = vst [vmem:[#allocation2 + $0x228] sm:$0xff] %v5069
    %5078 = vst [vmem:[#allocation2 + $0x230] sm:$0xff] %v5070
    %5079 = vst [vmem:[#allocation2 + $0x238] sm:$0xff] %v5071
    %v5080 = vld [vmem:[#allocation2] sm:$0xff]
    %v5081 = vld [vmem:[#allocation2 + $0x8] sm:$0xff]
    %v5082 = vld [vmem:[#allocation2 + $0x10] sm:$0xff]
    %v5083 = vld [vmem:[#allocation2 + $0x18] sm:$0xff]
    %v5084 = vld [vmem:[#allocation2 + $0x20] sm:$0xff]
    %v5085 = vld [vmem:[#allocation2 + $0x28] sm:$0xff]
    %v5086 = vld [vmem:[#allocation2 + $0x30] sm:$0xff]
    %v5087 = vld [vmem:[#allocation2 + $0x38] sm:$0xff]
    %v5088 = vld [vmem:[#allocation2 + $0x40] sm:$0xff]
    %v5089 = vld [vmem:[#allocation2 + $0x48] sm:$0xff]
    %v5090 = vld [vmem:[#allocation2 + $0x50] sm:$0xff]
    %v5091 = vld [vmem:[#allocation2 + $0x58] sm:$0xff]
    %v5092 = vld [vmem:[#allocation2 + $0x60] sm:$0xff]
    %v5093 = vld [vmem:[#allocation2 + $0x68] sm:$0xff]
    %v5094 = vld [vmem:[#allocation2 + $0x70] sm:$0xff]
    %v5095 = vld [vmem:[#allocation2 + $0x78] sm:$0xff]
    %v5096 = vld [vmem:[#allocation2 + $0x80] sm:$0xff]
    %v5097 = vld [vmem:[#allocation2 + $0x88] sm:$0xff]
    %v5098 = vld [vmem:[#allocation2 + $0x90] sm:$0xff]
    %v5099 = vld [vmem:[#allocation2 + $0x98] sm:$0xff]
    %v5100 = vld [vmem:[#allocation2 + $0xa0] sm:$0xff]
    %v5101 = vld [vmem:[#allocation2 + $0xa8] sm:$0xff]
    %v5102 = vld [vmem:[#allocation2 + $0xb0] sm:$0xff]
    %v5103 = vld [vmem:[#allocation2 + $0xb8] sm:$0xff]
    %v5104 = vld [vmem:[#allocation2 + $0xc0] sm:$0xff]
    %v5105 = vld [vmem:[#allocation2 + $0xc8] sm:$0xff]
    %v5106 = vld [vmem:[#allocation2 + $0xd0] sm:$0xff]
    %v5107 = vld [vmem:[#allocation2 + $0xd8] sm:$0xff]
    %v5108 = vld [vmem:[#allocation2 + $0xe0] sm:$0xff]
    %v5109 = vld [vmem:[#allocation2 + $0xe8] sm:$0xff]
    %v5110 = vld [vmem:[#allocation2 + $0xf0] sm:$0xff]
    %v5111 = vld [vmem:[#allocation2 + $0xf8] sm:$0xff]
    %v5112 = vld [vmem:[#allocation2 + $0x100] sm:$0xff]
    %v5113 = vld [vmem:[#allocation2 + $0x108] sm:$0xff]
    %v5114 = vld [vmem:[#allocation2 + $0x110] sm:$0xff]
    %v5115 = vld [vmem:[#allocation2 + $0x118] sm:$0xff]
    %v5116 = vld [vmem:[#allocation2 + $0x120] sm:$0xff]
    %v5117 = vld [vmem:[#allocation2 + $0x128] sm:$0xff]
    %v5118 = vld [vmem:[#allocation2 + $0x130] sm:$0xff]
    %v5119 = vld [vmem:[#allocation2 + $0x138] sm:$0xff]
    %v5120 = vld [vmem:[#allocation2 + $0x140] sm:$0xff]
    %v5121 = vld [vmem:[#allocation2 + $0x148] sm:$0xff]
    %v5122 = vld [vmem:[#allocation2 + $0x150] sm:$0xff]
    %v5123 = vld [vmem:[#allocation2 + $0x158] sm:$0xff]
    %v5124 = vld [vmem:[#allocation2 + $0x160] sm:$0xff]
    %v5125 = vld [vmem:[#allocation2 + $0x168] sm:$0xff]
    %v5126 = vld [vmem:[#allocation2 + $0x170] sm:$0xff]
    %v5127 = vld [vmem:[#allocation2 + $0x178] sm:$0xff]
    %v5128 = vld [vmem:[#allocation2 + $0x180] sm:$0xff]
    %v5129 = vld [vmem:[#allocation2 + $0x188] sm:$0xff]
    %v5130 = vld [vmem:[#allocation2 + $0x190] sm:$0xff]
    %v5131 = vld [vmem:[#allocation2 + $0x198] sm:$0xff]
    %v5132 = vld [vmem:[#allocation2 + $0x1a0] sm:$0xff]
    %v5133 = vld [vmem:[#allocation2 + $0x1a8] sm:$0xff]
    %v5134 = vld [vmem:[#allocation2 + $0x1b0] sm:$0xff]
    %v5135 = vld [vmem:[#allocation2 + $0x1b8] sm:$0xff]
    %v5136 = vld [vmem:[#allocation2 + $0x1c0] sm:$0xff]
    %v5137 = vld [vmem:[#allocation2 + $0x1c8] sm:$0xff]
    %v5138 = vld [vmem:[#allocation2 + $0x1d0] sm:$0xff]
    %v5139 = vld [vmem:[#allocation2 + $0x1d8] sm:$0xff]
    %v5140 = vld [vmem:[#allocation2 + $0x1e0] sm:$0xff]
    %v5141 = vld [vmem:[#allocation2 + $0x1e8] sm:$0xff]
    %v5142 = vld [vmem:[#allocation2 + $0x1f0] sm:$0xff]
    %v5143 = vld [vmem:[#allocation2 + $0x1f8] sm:$0xff]
    %v5144 = vld [vmem:[#allocation2 + $0x200] sm:$0xff]
    %v5145 = vld [vmem:[#allocation2 + $0x208] sm:$0xff]
    %v5146 = vld [vmem:[#allocation2 + $0x210] sm:$0xff]
    %v5147 = vld [vmem:[#allocation2 + $0x218] sm:$0xff]
    %v5148 = vld [vmem:[#allocation2 + $0x220] sm:$0xff]
    %v5149 = vld [vmem:[#allocation2 + $0x228] sm:$0xff]
    %v5150 = vld [vmem:[#allocation2 + $0x230] sm:$0xff]
    %v5151 = vld [vmem:[#allocation2 + $0x238] sm:$0xff]
    %5153 = vset.pattern.permute.xlu0 0
    %5154 = vperm.xlu0 %5153, %v3718
    %v5155 = vpop.permute.xlu0 %5154
    %5158 = vset.pattern.permute.xlu0 0
    %5159 = vperm.xlu0 %5158, %v3719
    %v5160 = vpop.permute.xlu0 %5159
    %v5163 = vsel %vm1381, %v3715, 0
    %v5166 = vsel %vm1381, %v3717, 0
    %5168 = vmatprep.subr.mxu0 %v5081
    %5169 = vmatpush1.msra.mxu0 %v5080
    %5170 = vmatprep.subr.mxu0 %v5085
    %5171 = vmatpush1.msra.mxu0 %v5084
    %5172 = vmatprep.subr.mxu0 %v5089
    %5173 = vmatpush1.msra.mxu0 %v5088
    %5174 = vmatprep.subr.mxu0 %v5093
    %5175 = vmatpush1.msra.mxu0 %v5092
    %5176 = vmatprep.subr.mxu0 %v5097
    %5177 = vmatpush1.msra.mxu0 %v5096
    %5178 = vmatprep.subr.mxu0 %v5101
    %5179 = vmatpush1.msra.mxu0 %v5100
    %5180 = vmatprep.subr.mxu0 %v5105
    %5181 = vmatpush1.msra.mxu0 %v5104
    %5182 = vmatprep.subr.mxu0 %v5109
    %5183 = vmatpush1.msra.mxu0 %v5108
    %5184 = vmatprep.subr.mxu0 %v5113
    %5185 = vmatpush1.msra.mxu0 %v5112
    %5186 = vmatprep.subr.mxu0 %v5117
    %5187 = vmatpush1.msra.mxu0 %v5116
    %5188 = vmatprep.subr.mxu0 %v5121
    %5189 = vmatpush1.msra.mxu0 %v5120
    %5190 = vmatprep.subr.mxu0 %v5125
    %5191 = vmatpush1.msra.mxu0 %v5124
    %5192 = vmatprep.subr.mxu0 %v5129
    %5193 = vmatpush1.msra.mxu0 %v5128
    %5194 = vmatprep.subr.mxu0 %v5133
    %5195 = vmatpush1.msra.mxu0 %v5132
    %5196 = vmatprep.subr.mxu0 %v5137
    %5197 = vmatpush1.msra.mxu0 %v5136
    %5198 = vmatprep.subr.mxu0 %v5141
    %5199 = vmatpush1.msra.mxu0 %v5140
    %5200 = vmatprep.subr.mxu0 %v5145
    %5201 = vmatpush1.msra.mxu0 %v5144
    %5202 = vmatprep.subr.mxu0 %v5149
    %5203 = vmatpush1.msra.mxu0 %v5148
    %5204 = vmatprep.subr.mxu0 0.0
    %5205 = vmatpush1.msra.mxu0 0.0
    %5206 = vmatprep.subr.mxu0 0.0
    %5207 = vmatpush1.msra.mxu0 0.0
    %5208 = vmatprep.subr.mxu0 0.0
    %5209 = vmatpush1.msra.mxu0 0.0
    %5210 = vmatprep.subr.mxu0 0.0
    %5211 = vmatpush1.msra.mxu0 0.0
    %5212 = vmatprep.subr.mxu0 0.0
    %5213 = vmatpush1.msra.mxu0 0.0
    %5214 = vmatprep.subr.mxu0 0.0
    %5215 = vmatpush1.msra.mxu0 0.0
    %5216 = vmatprep.subr.mxu0 0.0
    %5217 = vmatpush1.msra.mxu0 0.0
    %5218 = vmatprep.subr.mxu0 0.0
    %5219 = vmatpush1.msra.mxu0 0.0
    %5220 = vmatprep.subr.mxu0 0.0
    %5221 = vmatpush1.msra.mxu0 0.0
    %5222 = vmatprep.subr.mxu0 0.0
    %5223 = vmatpush1.msra.mxu0 0.0
    %5224 = vmatprep.subr.mxu0 0.0
    %5225 = vmatpush1.msra.mxu0 0.0
    %5226 = vmatprep.subr.mxu0 0.0
    %5227 = vmatpush1.msra.mxu0 0.0
    %5228 = vmatprep.subr.mxu0 0.0
    %5229 = vmatpush1.msra.mxu0 0.0
    %5230 = vmatprep.subr.mxu0 0.0
    %5231 = vmatpush1.msra.mxu0 0.0
    %5232 = vmatprep.mubr.f32.mxu0 %v5163
    %5233 = vmatmul.mubr.f32.gmra.mrb[0].mxu0 %v3714
    %v5234 = vpop.f32.mrb[0].mxu0
    %v5235 = vadd.f32 %v5155, %v5234
    %v5236 = vpop.f32.mrb[0].mxu0
    %v5237 = vadd.f32 %v5155, %v5236
    %5238 = vmatprep.mubr.f32.mxu0 %v5166
    %5239 = vmatmul.mubr.f32.gmra.mrb[0].mxu0 %v3716
    %v5240 = vpop.f32.mrb[0].mxu0
    %v5241 = vadd.f32 %v5160, %v5240
    %v5242 = vpop.f32.mrb[0].mxu0
    %v5243 = vadd.f32 %v5160, %v5242
    %5244 = vdwg.mxu0
    %5245 = vmatprep.subr.mxu0 %v5083
    %5246 = vmatpush1.msra.mxu0 %v5082
    %5247 = vmatprep.subr.mxu0 %v5087
    %5248 = vmatpush1.msra.mxu0 %v5086
    %5249 = vmatprep.subr.mxu0 %v5091
    %5250 = vmatpush1.msra.mxu0 %v5090
    %5251 = vmatprep.subr.mxu0 %v5095
    %5252 = vmatpush1.msra.mxu0 %v5094
    %5253 = vmatprep.subr.mxu0 %v5099
    %5254 = vmatpush1.msra.mxu0 %v5098
    %5255 = vmatprep.subr.mxu0 %v5103
    %5256 = vmatpush1.msra.mxu0 %v5102
    %5257 = vmatprep.subr.mxu0 %v5107
    %5258 = vmatpush1.msra.mxu0 %v5106
    %5259 = vmatprep.subr.mxu0 %v5111
    %5260 = vmatpush1.msra.mxu0 %v5110
    %5261 = vmatprep.subr.mxu0 %v5115
    %5262 = vmatpush1.msra.mxu0 %v5114
    %5263 = vmatprep.subr.mxu0 %v5119
    %5264 = vmatpush1.msra.mxu0 %v5118
    %5265 = vmatprep.subr.mxu0 %v5123
    %5266 = vmatpush1.msra.mxu0 %v5122
    %5267 = vmatprep.subr.mxu0 %v5127
    %5268 = vmatpush1.msra.mxu0 %v5126
    %5269 = vmatprep.subr.mxu0 %v5131
    %5270 = vmatpush1.msra.mxu0 %v5130
    %5271 = vmatprep.subr.mxu0 %v5135
    %5272 = vmatpush1.msra.mxu0 %v5134
    %5273 = vmatprep.subr.mxu0 %v5139
    %5274 = vmatpush1.msra.mxu0 %v5138
    %5275 = vmatprep.subr.mxu0 %v5143
    %5276 = vmatpush1.msra.mxu0 %v5142
    %5277 = vmatprep.subr.mxu0 %v5147
    %5278 = vmatpush1.msra.mxu0 %v5146
    %5279 = vmatprep.subr.mxu0 %v5151
    %5280 = vmatpush1.msra.mxu0 %v5150
    %5281 = vmatprep.subr.mxu0 0.0
    %5282 = vmatpush1.msra.mxu0 0.0
    %5283 = vmatprep.subr.mxu0 0.0
    %5284 = vmatpush1.msra.mxu0 0.0
    %5285 = vmatprep.subr.mxu0 0.0
    %5286 = vmatpush1.msra.mxu0 0.0
    %5287 = vmatprep.subr.mxu0 0.0
    %5288 = vmatpush1.msra.mxu0 0.0
    %5289 = vmatprep.subr.mxu0 0.0
    %5290 = vmatpush1.msra.mxu0 0.0
    %5291 = vmatprep.subr.mxu0 0.0
    %5292 = vmatpush1.msra.mxu0 0.0
    %5293 = vmatprep.subr.mxu0 0.0
    %5294 = vmatpush1.msra.mxu0 0.0
    %5295 = vmatprep.subr.mxu0 0.0
    %5296 = vmatpush1.msra.mxu0 0.0
    %5297 = vmatprep.subr.mxu0 0.0
    %5298 = vmatpush1.msra.mxu0 0.0
    %5299 = vmatprep.subr.mxu0 0.0
    %5300 = vmatpush1.msra.mxu0 0.0
    %5301 = vmatprep.subr.mxu0 0.0
    %5302 = vmatpush1.msra.mxu0 0.0
    %5303 = vmatprep.subr.mxu0 0.0
    %5304 = vmatpush1.msra.mxu0 0.0
    %5305 = vmatprep.subr.mxu0 0.0
    %5306 = vmatpush1.msra.mxu0 0.0
    %5307 = vmatprep.subr.mxu0 0.0
    %5308 = vmatpush1.msra.mxu0 0.0
    %5309 = vmatprep.mubr.f32.mxu0 %v5163
    %5310 = vmatmul.mubr.f32.gmra.mrb[0].mxu0 %v3714
    %v5311 = vpop.f32.mrb[0].mxu0
    %v5312 = vadd.f32 %v5155, %v5311
    %v5313 = vpop.f32.mrb[0].mxu0
    %v5314 = vadd.f32 %v5155, %v5313
    %5315 = vmatprep.mubr.f32.mxu0 %v5166
    %5316 = vmatmul.mubr.f32.gmra.mrb[0].mxu0 %v3716
    %v5317 = vpop.f32.mrb[0].mxu0
    %v5318 = vadd.f32 %v5160, %v5317
    %v5319 = vpop.f32.mrb[0].mxu0
    %v5320 = vadd.f32 %v5160, %v5319
    %5321 = vdwg.mxu0
    %v5322 = vadd.f32 %v668, %v5235
    %v5323 = vadd.f32 %v669, %v5237
    %v5324 = vadd.f32 %v670, %v5312
    %v5325 = vadd.f32 %v671, %v5314
    %v5326 = vadd.f32 %v672, %v5241
    %v5327 = vadd.f32 %v673, %v5243
    %v5328 = vadd.f32 %v674, %v5318
    %v5329 = vadd.f32 %v675, %v5320
    %s5330 = scalar_lea.vmem %s406, 224 [#allocation5]
    %v5331 = vld [vmem:[%s5330] ss:$8 sm:$0x3]
    %s5332 = scalar_lea.vmem %s406, 240 [#allocation5]
    %v5333 = vld [vmem:[%s5332] ss:$8 sm:$0x3]
    %v5334 = vld [vmem:[%s406 + $0x100] sm:$0xff]
    %v5335 = vld [vmem:[%s406 + $0x110] sm:$0xff]
    %v5336 = vld [vmem:[%s406 + $0x120] sm:$0xff]
    %v5337 = vld [vmem:[%s406 + $0x130] sm:$0xff]
    %v5338 = vld [vmem:[%s406 + $0x140] sm:$0xff]
    %v5339 = vld [vmem:[%s406 + $0x150] sm:$0xff]
    %v5340 = vld [vmem:[%s406 + $0x160] sm:$0xff]
    %v5341 = vld [vmem:[%s406 + $0x170] sm:$0xff]
    %v5342 = vld [vmem:[%s406 + $0x180] sm:$0xff]
    %v5343 = vld [vmem:[%s406 + $0x190] sm:$0xff]
    %v5344 = vld [vmem:[%s406 + $0x1a0] sm:$0xff]
    %v5345 = vld [vmem:[%s406 + $0x1b0] sm:$0xff]
    %v5346 = vld [vmem:[%s406 + $0x1c0] sm:$0xff]
    %v5347 = vld [vmem:[%s406 + $0x1d0] sm:$0xff]
    %v5348 = vld [vmem:[%s406 + $0x1e0] sm:$0xff]
    %v5349 = vld [vmem:[%s406 + $0x1f0] sm:$0xff]
    %v5350 = vld [vmem:[%s406 + $0x200] sm:$0xff]
    %v5351 = vld [vmem:[%s406 + $0x210] sm:$0xff]
    %v5352 = vld [vmem:[%s406 + $0x220] sm:$0xff]
    %v5353 = vld [vmem:[%s406 + $0x230] sm:$0xff]
    %v5354 = vld [vmem:[%s406 + $0x240] sm:$0xff]
    %v5355 = vld [vmem:[%s406 + $0x250] sm:$0xff]
    %v5356 = vld [vmem:[%s406 + $0x260] sm:$0xff]
    %v5357 = vld [vmem:[%s406 + $0x270] sm:$0xff]
    %v5358 = vld [vmem:[%s406 + $0x280] sm:$0xff]
    %v5359 = vld [vmem:[%s406 + $0x290] sm:$0xff]
    %v5360 = vld [vmem:[%s406 + $0x2a0] sm:$0xff]
    %v5361 = vld [vmem:[%s406 + $0x2b0] sm:$0xff]
    %v5362 = vld [vmem:[%s406 + $0x2c0] sm:$0xff]
    %v5363 = vld [vmem:[%s406 + $0x2d0] sm:$0xff]
    %v5364 = vld [vmem:[%s406 + $0x2e0] sm:$0xff]
    %v5365 = vld [vmem:[%s406 + $0x2f0] sm:$0xff]
    %v5366 = vld [vmem:[%s406 + $0x300] ss:$0 sm:$0xff]
    %v5367 = vld [vmem:[%s406 + $0x310] sm:$0xff]
    %v5368 = vld [vmem:[%s406 + $0x318] sm:$0xff]
    %v5369 = vld [vmem:[%s406 + $0x320] sm:$0xff]
    %v5370 = vld [vmem:[%s406 + $0x328] sm:$0xff]
    %v5371 = vld [vmem:[%s406 + $0x330] sm:$0xff]
    %v5372 = vld [vmem:[%s406 + $0x338] sm:$0xff]
    %v5373 = vld [vmem:[%s406 + $0x340] sm:$0xff]
    %v5374 = vld [vmem:[%s406 + $0x348] sm:$0xff]
    %s5375 = scalar_lea.vmem %s406, 848 [#allocation5]
    %v5376 = vld [vmem:[%s5375] ss:$8 sm:$0x3]
    %v5377 = vadd.f32 %v5322, %v5323
    %5378 = vadd.xlane.f32.xlu0 %v5377
    %v5379 = vpop.xlane.xlu0 %5378
    %v5380 = vadd.f32 %v5326, %v5327
    %5381 = vadd.xlane.f32.xlu0 %v5380
    %v5382 = vpop.xlane.xlu0 %5381
    %v5383 = vadd.f32 %v5324, %v5325
    %5384 = vadd.xlane.f32.xlu0 %v5383
    %v5385 = vpop.xlane.xlu0 %5384
    %v5386 = vadd.f32 %v5328, %v5329
    %5387 = vadd.xlane.f32.xlu0 %v5386
    %v5388 = vpop.xlane.xlu0 %5387
    %v5389 = vmul.f32 %v5379, %v698
    %v5390 = vmul.f32 %v5382, %v698
    %v5391 = vmul.f32 %v5385, %v698
    %v5392 = vmul.f32 %v5388, %v698
    %v5393 = vsub.f32 %v5322, %v5389
    %v5394 = vsub.f32 %v5323, %v5389
    %v5395 = vsub.f32 %v5326, %v5390
    %v5396 = vsub.f32 %v5327, %v5390
    %v5397 = vsub.f32 %v5324, %v5391
    %v5398 = vsub.f32 %v5325, %v5391
    %v5399 = vsub.f32 %v5328, %v5392
    %v5400 = vsub.f32 %v5329, %v5392
    %v5401 = vmul.f32 %v5393, %v5393
    %v5402 = vmul.f32 %v5394, %v5394
    %v5403 = vmul.f32 %v5395, %v5395
    %v5404 = vmul.f32 %v5396, %v5396
    %v5405 = vmul.f32 %v5397, %v5397
    %v5406 = vmul.f32 %v5398, %v5398
    %v5407 = vmul.f32 %v5399, %v5399
    %v5408 = vmul.f32 %v5400, %v5400
    %v5409 = vadd.f32 %v5401, %v5402
    %5410 = vadd.xlane.f32.xlu0 %v5409
    %v5411 = vpop.xlane.xlu0 %5410
    %v5412 = vadd.f32 %v5403, %v5404
    %5413 = vadd.xlane.f32.xlu0 %v5412
    %v5414 = vpop.xlane.xlu0 %5413
    %v5415 = vadd.f32 %v5405, %v5406
    %5416 = vadd.xlane.f32.xlu0 %v5415
    %v5417 = vpop.xlane.xlu0 %5416
    %v5418 = vadd.f32 %v5407, %v5408
    %5419 = vadd.xlane.f32.xlu0 %v5418
    %v5420 = vpop.xlane.xlu0 %5419
    %v5421 = vmul.f32 %v5411, %v698
    %v5422 = vmul.f32 %v5414, %v698
    %v5423 = vmul.f32 %v5417, %v698
    %v5424 = vmul.f32 %v5420, %v698
    %v5425 = vadd.f32 %v5421, 1e-05
    %v5426 = vadd.f32 %v5422, 1e-05
    %v5427 = vadd.f32 %v5423, 1e-05
    %v5428 = vadd.f32 %v5424, 1e-05
    %v5429 = vrsqrt.pop %v5425
    %v5430 = vrsqrt.pop %v5426
    %v5431 = vrsqrt.pop %v5427
    %v5432 = vrsqrt.pop %v5428
    %v5433 = vmul.f32 %v5393, %v5429
    %v5434 = vmul.f32 %v5394, %v5429
    %v5435 = vmul.f32 %v5395, %v5430
    %v5436 = vmul.f32 %v5396, %v5430
    %v5437 = vmul.f32 %v5397, %v5431
    %v5438 = vmul.f32 %v5398, %v5431
    %v5439 = vmul.f32 %v5399, %v5432
    %v5440 = vmul.f32 %v5400, %v5432
    %v5442 = vlaneseq
    %v5443 = vshrl.u32 %v5442, 7
    %v5444 = vsub.s32 0, %v5443
    %v5445 = vrot.slane %v5331, %v5444
    %v5446 = vlaneseq
    %v5447 = vshrl.u32 %v5446, 7
    %v5448 = vsub.s32 1, %v5447
    %v5449 = vrot.slane %v5331, %v5448
    %v5452 = vmul.f32 %v5433, %v5445
    %v5453 = vmul.f32 %v5434, %v5449
    %v5454 = vmul.f32 %v5435, %v5445
    %v5455 = vmul.f32 %v5436, %v5449
    %v5456 = vmul.f32 %v5437, %v5445
    %v5457 = vmul.f32 %v5438, %v5449
    %v5458 = vmul.f32 %v5439, %v5445
    %v5459 = vmul.f32 %v5440, %v5449
    %v5461 = vlaneseq
    %v5462 = vshrl.u32 %v5461, 7
    %v5463 = vsub.s32 0, %v5462
    %v5464 = vrot.slane %v5333, %v5463
    %v5465 = vlaneseq
    %v5466 = vshrl.u32 %v5465, 7
    %v5467 = vsub.s32 1, %v5466
    %v5468 = vrot.slane %v5333, %v5467
    %v5471 = vadd.f32 %v5452, %v5464
    %v5472 = vadd.f32 %v5453, %v5468
    %v5473 = vadd.f32 %v5454, %v5464
    %v5474 = vadd.f32 %v5455, %v5468
    %v5475 = vadd.f32 %v5456, %v5464
    %v5476 = vadd.f32 %v5457, %v5468
    %v5477 = vadd.f32 %v5458, %v5464
    %v5478 = vadd.f32 %v5459, %v5468
    %5479 = vmatprep.subr.mxu0 0.0
    %5480 = vmatpush1.msra.mxu0 %v5334
    %5481 = vmatprep.subr.mxu0 0.0
    %5482 = vmatpush1.msra.mxu0 %v5335
    %5483 = vmatprep.subr.mxu0 0.0
    %5484 = vmatpush1.msra.mxu0 %v5336
    %5485 = vmatprep.subr.mxu0 0.0
    %5486 = vmatpush1.msra.mxu0 %v5337
    %5487 = vmatprep.subr.mxu0 0.0
    %5488 = vmatpush1.msra.mxu0 %v5338
    %5489 = vmatprep.subr.mxu0 0.0
    %5490 = vmatpush1.msra.mxu0 %v5339
    %5491 = vmatprep.subr.mxu0 0.0
    %5492 = vmatpush1.msra.mxu0 %v5340
    %5493 = vmatprep.subr.mxu0 0.0
    %5494 = vmatpush1.msra.mxu0 %v5341
    %5495 = vmatprep.subr.mxu0 0.0
    %5496 = vmatpush1.msra.mxu0 %v5342
    %5497 = vmatprep.subr.mxu0 0.0
    %5498 = vmatpush1.msra.mxu0 %v5343
    %5499 = vmatprep.subr.mxu0 0.0
    %5500 = vmatpush1.msra.mxu0 %v5344
    %5501 = vmatprep.subr.mxu0 0.0
    %5502 = vmatpush1.msra.mxu0 %v5345
    %5503 = vmatprep.subr.mxu0 0.0
    %5504 = vmatpush1.msra.mxu0 %v5346
    %5505 = vmatprep.subr.mxu0 0.0
    %5506 = vmatpush1.msra.mxu0 %v5347
    %5507 = vmatprep.subr.mxu0 0.0
    %5508 = vmatpush1.msra.mxu0 %v5348
    %5509 = vmatprep.subr.mxu0 0.0
    %5510 = vmatpush1.msra.mxu0 %v5349
    %5511 = vmatprep.subr.mxu0 0.0
    %5512 = vmatpush1.msra.mxu0 %v5350
    %5513 = vmatprep.subr.mxu0 0.0
    %5514 = vmatpush1.msra.mxu0 %v5351
    %5515 = vmatprep.subr.mxu0 0.0
    %5516 = vmatpush1.msra.mxu0 %v5352
    %5517 = vmatprep.subr.mxu0 0.0
    %5518 = vmatpush1.msra.mxu0 %v5353
    %5519 = vmatprep.subr.mxu0 0.0
    %5520 = vmatpush1.msra.mxu0 %v5354
    %5521 = vmatprep.subr.mxu0 0.0
    %5522 = vmatpush1.msra.mxu0 %v5355
    %5523 = vmatprep.subr.mxu0 0.0
    %5524 = vmatpush1.msra.mxu0 %v5356
    %5525 = vmatprep.subr.mxu0 0.0
    %5526 = vmatpush1.msra.mxu0 %v5357
    %5527 = vmatprep.subr.mxu0 0.0
    %5528 = vmatpush1.msra.mxu0 %v5358
    %5529 = vmatprep.subr.mxu0 0.0
    %5530 = vmatpush1.msra.mxu0 %v5359
    %5531 = vmatprep.subr.mxu0 0.0
    %5532 = vmatpush1.msra.mxu0 %v5360
    %5533 = vmatprep.subr.mxu0 0.0
    %5534 = vmatpush1.msra.mxu0 %v5361
    %5535 = vmatprep.subr.mxu0 0.0
    %5536 = vmatpush1.msra.mxu0 %v5362
    %5537 = vmatprep.subr.mxu0 0.0
    %5538 = vmatpush1.msra.mxu0 %v5363
    %5539 = vmatprep.subr.mxu0 0.0
    %5540 = vmatpush1.msra.mxu0 %v5364
    %5541 = vmatprep.subr.mxu0 0.0
    %5542 = vmatpush1.msra.mxu0 %v5365
    %5543 = vmatprep.mubr.f32.mxu0 %v5472
    %5544 = vmatmul.mubr.f32.gmra.mrb[0].mxu0 %v5471
    %v5545 = vpop.f32.mrb[0].mxu0
    %v5546 = vadd.f32 %v5366, %v5545
    %v5547 = vpop.f32.mrb[0].mxu0
    %5548 = vmatprep.mubr.f32.mxu0 %v5474
    %5549 = vmatmul.mubr.f32.gmra.mrb[0].mxu0 %v5473
    %v5550 = vpop.f32.mrb[0].mxu0
    %v5551 = vadd.f32 %v5366, %v5550
    %v5552 = vpop.f32.mrb[0].mxu0
    %5553 = vmatprep.mubr.f32.mxu0 %v5476
    %5554 = vmatmul.mubr.f32.gmra.mrb[0].mxu0 %v5475
    %v5555 = vpop.f32.mrb[0].mxu0
    %v5556 = vadd.f32 %v5366, %v5555
    %v5557 = vpop.f32.mrb[0].mxu0
    %5558 = vmatprep.mubr.f32.mxu0 %v5478
    %5559 = vmatmul.mubr.f32.gmra.mrb[0].mxu0 %v5477
    %v5560 = vpop.f32.mrb[0].mxu0
    %v5561 = vadd.f32 %v5366, %v5560
    %v5562 = vpop.f32.mrb[0].mxu0
    %5563 = vdwg.mxu0
    %v5564 = vmax.f32 %v5546, 0.0
    %v5565 = vmax.f32 %v5551, 0.0
    %v5566 = vmax.f32 %v5556, 0.0
    %v5567 = vmax.f32 %v5561, 0.0
    %v5569 = vsel %vm2542, %v5564, 0
    %v5572 = vsel %vm2542, %v5565, 0
    %v5575 = vsel %vm2542, %v5566, 0
    %v5578 = vsel %vm2542, %v5567, 0
    %5580 = vmatprep.subr.mxu0 %v5368
    %5581 = vmatpush1.msra.mxu0 %v5367
    %5582 = vmatprep.subr.mxu0 %v5370
    %5583 = vmatpush1.msra.mxu0 %v5369
    %5584 = vmatprep.subr.mxu0 %v5372
    %5585 = vmatpush1.msra.mxu0 %v5371
    %5586 = vmatprep.subr.mxu0 %v5374
    %5587 = vmatpush1.msra.mxu0 %v5373
    %5588 = vmatprep.subr.mxu0 0.0
    %5589 = vmatpush1.msra.mxu0 0.0
    %5590 = vmatprep.subr.mxu0 0.0
    %5591 = vmatpush1.msra.mxu0 0.0
    %5592 = vmatprep.subr.mxu0 0.0
    %5593 = vmatpush1.msra.mxu0 0.0
    %5594 = vmatprep.subr.mxu0 0.0
    %5595 = vmatpush1.msra.mxu0 0.0
    %5596 = vmatprep.subr.mxu0 0.0
    %5597 = vmatpush1.msra.mxu0 0.0
    %5598 = vmatprep.subr.mxu0 0.0
    %5599 = vmatpush1.msra.mxu0 0.0
    %5600 = vmatprep.subr.mxu0 0.0
    %5601 = vmatpush1.msra.mxu0 0.0
    %5602 = vmatprep.subr.mxu0 0.0
    %5603 = vmatpush1.msra.mxu0 0.0
    %5604 = vmatprep.subr.mxu0 0.0
    %5605 = vmatpush1.msra.mxu0 0.0
    %5606 = vmatprep.subr.mxu0 0.0
    %5607 = vmatpush1.msra.mxu0 0.0
    %5608 = vmatprep.subr.mxu0 0.0
    %5609 = vmatpush1.msra.mxu0 0.0
    %5610 = vmatprep.subr.mxu0 0.0
    %5611 = vmatpush1.msra.mxu0 0.0
    %5612 = vmatprep.subr.mxu0 0.0
    %5613 = vmatpush1.msra.mxu0 0.0
    %5614 = vmatprep.subr.mxu0 0.0
    %5615 = vmatpush1.msra.mxu0 0.0
    %5616 = vmatprep.subr.mxu0 0.0
    %5617 = vmatpush1.msra.mxu0 0.0
    %5618 = vmatprep.subr.mxu0 0.0
    %5619 = vmatpush1.msra.mxu0 0.0
    %5620 = vmatprep.subr.mxu0 0.0
    %5621 = vmatpush1.msra.mxu0 0.0
    %5622 = vmatprep.subr.mxu0 0.0
    %5623 = vmatpush1.msra.mxu0 0.0
    %5624 = vmatprep.subr.mxu0 0.0
    %5625 = vmatpush1.msra.mxu0 0.0
    %5626 = vmatprep.subr.mxu0 0.0
    %5627 = vmatpush1.msra.mxu0 0.0
    %5628 = vmatprep.subr.mxu0 0.0
    %5629 = vmatpush1.msra.mxu0 0.0
    %5630 = vmatprep.subr.mxu0 0.0
    %5631 = vmatpush1.msra.mxu0 0.0
    %5632 = vmatprep.subr.mxu0 0.0
    %5633 = vmatpush1.msra.mxu0 0.0
    %5634 = vmatprep.subr.mxu0 0.0
    %5635 = vmatpush1.msra.mxu0 0.0
    %5636 = vmatprep.subr.mxu0 0.0
    %5637 = vmatpush1.msra.mxu0 0.0
    %5638 = vmatprep.subr.mxu0 0.0
    %5639 = vmatpush1.msra.mxu0 0.0
    %5640 = vmatprep.subr.mxu0 0.0
    %5641 = vmatpush1.msra.mxu0 0.0
    %5642 = vmatprep.subr.mxu0 0.0
    %5643 = vmatpush1.msra.mxu0 0.0
    %5644 = vmatprep.mubr.f32.mxu0 0.0
    %5645 = vmatmul.mubr.f32.gmra.mrb[0].mxu0 %v5569
    %v5646 = vpop.f32.mrb[0].mxu0
    %v5647 = vadd.f32 0.0, %v5646
    %v5648 = vpop.f32.mrb[0].mxu0
    %v5649 = vadd.f32 0.0, %v5648
    %5650 = vmatprep.mubr.f32.mxu0 0.0
    %5651 = vmatmul.mubr.f32.gmra.mrb[0].mxu0 %v5572
    %v5652 = vpop.f32.mrb[0].mxu0
    %v5653 = vadd.f32 0.0, %v5652
    %v5654 = vpop.f32.mrb[0].mxu0
    %v5655 = vadd.f32 0.0, %v5654
    %5656 = vmatprep.mubr.f32.mxu0 0.0
    %5657 = vmatmul.mubr.f32.gmra.mrb[0].mxu0 %v5575
    %v5658 = vpop.f32.mrb[0].mxu0
    %v5659 = vadd.f32 0.0, %v5658
    %v5660 = vpop.f32.mrb[0].mxu0
    %v5661 = vadd.f32 0.0, %v5660
    %5662 = vmatprep.mubr.f32.mxu0 0.0
    %5663 = vmatmul.mubr.f32.gmra.mrb[0].mxu0 %v5578
    %v5664 = vpop.f32.mrb[0].mxu0
    %v5665 = vadd.f32 0.0, %v5664
    %v5666 = vpop.f32.mrb[0].mxu0
    %v5667 = vadd.f32 0.0, %v5666
    %5668 = vdwg.mxu0
    %v5669 = vadd.f32 %v5322, %v5647
    %v5670 = vadd.f32 %v5323, %v5649
    %v5671 = vadd.f32 %v5326, %v5653
    %v5672 = vadd.f32 %v5327, %v5655
    %v5673 = vadd.f32 %v5324, %v5659
    %v5674 = vadd.f32 %v5325, %v5661
    %v5675 = vadd.f32 %v5328, %v5665
    %v5676 = vadd.f32 %v5329, %v5667
    %v5678 = vlaneseq
    %v5679 = vshrl.u32 %v5678, 7
    %v5680 = vsub.s32 0, %v5679
    %v5681 = vrot.slane %v5376, %v5680
    %v5682 = vlaneseq
    %v5683 = vshrl.u32 %v5682, 7
    %v5684 = vsub.s32 1, %v5683
    %v5685 = vrot.slane %v5376, %v5684
    %v5688 = vadd.f32 %v5669, %v5681
    %v5689 = vadd.f32 %v5670, %v5685
    %v5690 = vadd.f32 %v5671, %v5681
    %v5691 = vadd.f32 %v5672, %v5685
    %v5692 = vadd.f32 %v5673, %v5681
    %v5693 = vadd.f32 %v5674, %v5685
    %v5694 = vadd.f32 %v5675, %v5681
    %v5695 = vadd.f32 %v5676, %v5685
    %s5696 = scalar_lea.vmem %s406, 864 [#allocation5]
    %v5697 = vld [vmem:[%s5696] ss:$8 sm:$0x3]
    %s5698 = scalar_lea.vmem %s406, 880 [#allocation5]
    %v5699 = vld [vmem:[%s5698] ss:$8 sm:$0x3]
    %v5700 = vld [vmem:[%s406 + $0x380] sm:$0xff]
    %v5701 = vld [vmem:[%s406 + $0x390] sm:$0xff]
    %v5702 = vld [vmem:[%s406 + $0x3a0] sm:$0xff]
    %v5703 = vld [vmem:[%s406 + $0x3b0] sm:$0xff]
    %v5704 = vld [vmem:[%s406 + $0x3c0] sm:$0xff]
    %v5705 = vld [vmem:[%s406 + $0x3d0] sm:$0xff]
    %v5706 = vld [vmem:[%s406 + $0x3e0] sm:$0xff]
    %v5707 = vld [vmem:[%s406 + $0x3f0] sm:$0xff]
    %v5708 = vld [vmem:[%s406 + $0x400] sm:$0xff]
    %v5709 = vld [vmem:[%s406 + $0x410] sm:$0xff]
    %v5710 = vld [vmem:[%s406 + $0x420] sm:$0xff]
    %v5711 = vld [vmem:[%s406 + $0x430] sm:$0xff]
    %v5712 = vld [vmem:[%s406 + $0x440] sm:$0xff]
    %v5713 = vld [vmem:[%s406 + $0x450] sm:$0xff]
    %v5714 = vld [vmem:[%s406 + $0x460] sm:$0xff]
    %v5715 = vld [vmem:[%s406 + $0x470] sm:$0xff]
    %v5716 = vld [vmem:[%s406 + $0x480] sm:$0xff]
    %v5717 = vld [vmem:[%s406 + $0x490] sm:$0xff]
    %v5718 = vld [vmem:[%s406 + $0x4a0] sm:$0xff]
    %v5719 = vld [vmem:[%s406 + $0x4b0] sm:$0xff]
    %v5720 = vld [vmem:[%s406 + $0x4c0] sm:$0xff]
    %v5721 = vld [vmem:[%s406 + $0x4d0] sm:$0xff]
    %v5722 = vld [vmem:[%s406 + $0x4e0] sm:$0xff]
    %v5723 = vld [vmem:[%s406 + $0x4f0] sm:$0xff]
    %v5724 = vld [vmem:[%s406 + $0x500] sm:$0xff]
    %v5725 = vld [vmem:[%s406 + $0x510] sm:$0xff]
    %v5726 = vld [vmem:[%s406 + $0x520] sm:$0xff]
    %v5727 = vld [vmem:[%s406 + $0x530] sm:$0xff]
    %v5728 = vld [vmem:[%s406 + $0x540] sm:$0xff]
    %v5729 = vld [vmem:[%s406 + $0x550] sm:$0xff]
    %v5730 = vld [vmem:[%s406 + $0x560] sm:$0xff]
    %v5731 = vld [vmem:[%s406 + $0x570] sm:$0xff]
    %v5732 = vld [vmem:[%s406 + $0x580] ss:$0 sm:$0xff]
    %v5733 = vld [vmem:[%s406 + $0x590] sm:$0xff]
    %v5734 = vld [vmem:[%s406 + $0x598] sm:$0xff]
    %v5735 = vld [vmem:[%s406 + $0x5a0] sm:$0xff]
    %v5736 = vld [vmem:[%s406 + $0x5a8] sm:$0xff]
    %v5737 = vld [vmem:[%s406 + $0x5b0] sm:$0xff]
    %v5738 = vld [vmem:[%s406 + $0x5b8] sm:$0xff]
    %v5739 = vld [vmem:[%s406 + $0x5c0] sm:$0xff]
    %v5740 = vld [vmem:[%s406 + $0x5c8] sm:$0xff]
    %s5741 = scalar_lea.vmem %s406, 1488 [#allocation5]
    %v5742 = vld [vmem:[%s5741] ss:$8 sm:$0x3]
    %v5743 = vadd.f32 %v5688, %v5689
    %5744 = vadd.xlane.f32.xlu0 %v5743
    %v5745 = vpop.xlane.xlu0 %5744
    %v5746 = vadd.f32 %v5690, %v5691
    %5747 = vadd.xlane.f32.xlu0 %v5746
    %v5748 = vpop.xlane.xlu0 %5747
    %v5749 = vadd.f32 %v5692, %v5693
    %5750 = vadd.xlane.f32.xlu0 %v5749
    %v5751 = vpop.xlane.xlu0 %5750
    %v5752 = vadd.f32 %v5694, %v5695
    %5753 = vadd.xlane.f32.xlu0 %v5752
    %v5754 = vpop.xlane.xlu0 %5753
    %v5755 = vmul.f32 %v5745, %v698
    %v5756 = vmul.f32 %v5748, %v698
    %v5757 = vmul.f32 %v5751, %v698
    %v5758 = vmul.f32 %v5754, %v698
    %v5759 = vsub.f32 %v5688, %v5755
    %v5760 = vsub.f32 %v5689, %v5755
    %v5761 = vsub.f32 %v5690, %v5756
    %v5762 = vsub.f32 %v5691, %v5756
    %v5763 = vsub.f32 %v5692, %v5757
    %v5764 = vsub.f32 %v5693, %v5757
    %v5765 = vsub.f32 %v5694, %v5758
    %v5766 = vsub.f32 %v5695, %v5758
    %v5767 = vmul.f32 %v5759, %v5759
    %v5768 = vmul.f32 %v5760, %v5760
    %v5769 = vmul.f32 %v5761, %v5761
    %v5770 = vmul.f32 %v5762, %v5762
    %v5771 = vmul.f32 %v5763, %v5763
    %v5772 = vmul.f32 %v5764, %v5764
    %v5773 = vmul.f32 %v5765, %v5765
    %v5774 = vmul.f32 %v5766, %v5766
    %v5775 = vadd.f32 %v5767, %v5768
    %5776 = vadd.xlane.f32.xlu0 %v5775
    %v5777 = vpop.xlane.xlu0 %5776
    %v5778 = vadd.f32 %v5769, %v5770
    %5779 = vadd.xlane.f32.xlu0 %v5778
    %v5780 = vpop.xlane.xlu0 %5779
    %v5781 = vadd.f32 %v5771, %v5772
    %5782 = vadd.xlane.f32.xlu0 %v5781
    %v5783 = vpop.xlane.xlu0 %5782
    %v5784 = vadd.f32 %v5773, %v5774
    %5785 = vadd.xlane.f32.xlu0 %v5784
    %v5786 = vpop.xlane.xlu0 %5785
    %v5787 = vmul.f32 %v5777, %v698
    %v5788 = vmul.f32 %v5780, %v698
    %v5789 = vmul.f32 %v5783, %v698
    %v5790 = vmul.f32 %v5786, %v698
    %v5791 = vadd.f32 %v5787, 1e-05
    %v5792 = vadd.f32 %v5788, 1e-05
    %v5793 = vadd.f32 %v5789, 1e-05
    %v5794 = vadd.f32 %v5790, 1e-05
    %v5795 = vrsqrt.pop %v5791
    %v5796 = vrsqrt.pop %v5792
    %v5797 = vrsqrt.pop %v5793
    %v5798 = vrsqrt.pop %v5794
    %v5799 = vmul.f32 %v5759, %v5795
    %v5800 = vmul.f32 %v5760, %v5795
    %v5801 = vmul.f32 %v5761, %v5796
    %v5802 = vmul.f32 %v5762, %v5796
    %v5803 = vmul.f32 %v5763, %v5797
    %v5804 = vmul.f32 %v5764, %v5797
    %v5805 = vmul.f32 %v5765, %v5798
    %v5806 = vmul.f32 %v5766, %v5798
    %v5808 = vlaneseq
    %v5809 = vshrl.u32 %v5808, 7
    %v5810 = vsub.s32 0, %v5809
    %v5811 = vrot.slane %v5697, %v5810
    %v5812 = vlaneseq
    %v5813 = vshrl.u32 %v5812, 7
    %v5814 = vsub.s32 1, %v5813
    %v5815 = vrot.slane %v5697, %v5814
    %v5818 = vmul.f32 %v5799, %v5811
    %v5819 = vmul.f32 %v5800, %v5815
    %v5820 = vmul.f32 %v5801, %v5811
    %v5821 = vmul.f32 %v5802, %v5815
    %v5822 = vmul.f32 %v5803, %v5811
    %v5823 = vmul.f32 %v5804, %v5815
    %v5824 = vmul.f32 %v5805, %v5811
    %v5825 = vmul.f32 %v5806, %v5815
    %v5827 = vlaneseq
    %v5828 = vshrl.u32 %v5827, 7
    %v5829 = vsub.s32 0, %v5828
    %v5830 = vrot.slane %v5699, %v5829
    %v5831 = vlaneseq
    %v5832 = vshrl.u32 %v5831, 7
    %v5833 = vsub.s32 1, %v5832
    %v5834 = vrot.slane %v5699, %v5833
    %v5837 = vadd.f32 %v5818, %v5830
    %v5838 = vadd.f32 %v5819, %v5834
    %v5839 = vadd.f32 %v5820, %v5830
    %v5840 = vadd.f32 %v5821, %v5834
    %v5841 = vadd.f32 %v5822, %v5830
    %v5842 = vadd.f32 %v5823, %v5834
    %v5843 = vadd.f32 %v5824, %v5830
    %v5844 = vadd.f32 %v5825, %v5834
    %5845 = vmatprep.subr.mxu0 0.0
    %5846 = vmatpush1.msra.mxu0 %v5700
    %5847 = vmatprep.subr.mxu0 0.0
    %5848 = vmatpush1.msra.mxu0 %v5701
    %5849 = vmatprep.subr.mxu0 0.0
    %5850 = vmatpush1.msra.mxu0 %v5702
    %5851 = vmatprep.subr.mxu0 0.0
    %5852 = vmatpush1.msra.mxu0 %v5703
    %5853 = vmatprep.subr.mxu0 0.0
    %5854 = vmatpush1.msra.mxu0 %v5704
    %5855 = vmatprep.subr.mxu0 0.0
    %5856 = vmatpush1.msra.mxu0 %v5705
    %5857 = vmatprep.subr.mxu0 0.0
    %5858 = vmatpush1.msra.mxu0 %v5706
    %5859 = vmatprep.subr.mxu0 0.0
    %5860 = vmatpush1.msra.mxu0 %v5707
    %5861 = vmatprep.subr.mxu0 0.0
    %5862 = vmatpush1.msra.mxu0 %v5708
    %5863 = vmatprep.subr.mxu0 0.0
    %5864 = vmatpush1.msra.mxu0 %v5709
    %5865 = vmatprep.subr.mxu0 0.0
    %5866 = vmatpush1.msra.mxu0 %v5710
    %5867 = vmatprep.subr.mxu0 0.0
    %5868 = vmatpush1.msra.mxu0 %v5711
    %5869 = vmatprep.subr.mxu0 0.0
    %5870 = vmatpush1.msra.mxu0 %v5712
    %5871 = vmatprep.subr.mxu0 0.0
    %5872 = vmatpush1.msra.mxu0 %v5713
    %5873 = vmatprep.subr.mxu0 0.0
    %5874 = vmatpush1.msra.mxu0 %v5714
    %5875 = vmatprep.subr.mxu0 0.0
    %5876 = vmatpush1.msra.mxu0 %v5715
    %5877 = vmatprep.subr.mxu0 0.0
    %5878 = vmatpush1.msra.mxu0 %v5716
    %5879 = vmatprep.subr.mxu0 0.0
    %5880 = vmatpush1.msra.mxu0 %v5717
    %5881 = vmatprep.subr.mxu0 0.0
    %5882 = vmatpush1.msra.mxu0 %v5718
    %5883 = vmatprep.subr.mxu0 0.0
    %5884 = vmatpush1.msra.mxu0 %v5719
    %5885 = vmatprep.subr.mxu0 0.0
    %5886 = vmatpush1.msra.mxu0 %v5720
    %5887 = vmatprep.subr.mxu0 0.0
    %5888 = vmatpush1.msra.mxu0 %v5721
    %5889 = vmatprep.subr.mxu0 0.0
    %5890 = vmatpush1.msra.mxu0 %v5722
    %5891 = vmatprep.subr.mxu0 0.0
    %5892 = vmatpush1.msra.mxu0 %v5723
    %5893 = vmatprep.subr.mxu0 0.0
    %5894 = vmatpush1.msra.mxu0 %v5724
    %5895 = vmatprep.subr.mxu0 0.0
    %5896 = vmatpush1.msra.mxu0 %v5725
    %5897 = vmatprep.subr.mxu0 0.0
    %5898 = vmatpush1.msra.mxu0 %v5726
    %5899 = vmatprep.subr.mxu0 0.0
    %5900 = vmatpush1.msra.mxu0 %v5727
    %5901 = vmatprep.subr.mxu0 0.0
    %5902 = vmatpush1.msra.mxu0 %v5728
    %5903 = vmatprep.subr.mxu0 0.0
    %5904 = vmatpush1.msra.mxu0 %v5729
    %5905 = vmatprep.subr.mxu0 0.0
    %5906 = vmatpush1.msra.mxu0 %v5730
    %5907 = vmatprep.subr.mxu0 0.0
    %5908 = vmatpush1.msra.mxu0 %v5731
    %5909 = vmatprep.mubr.f32.mxu0 %v5838
    %5910 = vmatmul.mubr.f32.gmra.mrb[0].mxu0 %v5837
    %v5911 = vpop.f32.mrb[0].mxu0
    %v5912 = vadd.f32 %v5732, %v5911
    %v5913 = vpop.f32.mrb[0].mxu0
    %5914 = vmatprep.mubr.f32.mxu0 %v5840
    %5915 = vmatmul.mubr.f32.gmra.mrb[0].mxu0 %v5839
    %v5916 = vpop.f32.mrb[0].mxu0
    %v5917 = vadd.f32 %v5732, %v5916
    %v5918 = vpop.f32.mrb[0].mxu0
    %5919 = vmatprep.mubr.f32.mxu0 %v5842
    %5920 = vmatmul.mubr.f32.gmra.mrb[0].mxu0 %v5841
    %v5921 = vpop.f32.mrb[0].mxu0
    %v5922 = vadd.f32 %v5732, %v5921
    %v5923 = vpop.f32.mrb[0].mxu0
    %5924 = vmatprep.mubr.f32.mxu0 %v5844
    %5925 = vmatmul.mubr.f32.gmra.mrb[0].mxu0 %v5843
    %v5926 = vpop.f32.mrb[0].mxu0
    %v5927 = vadd.f32 %v5732, %v5926
    %v5928 = vpop.f32.mrb[0].mxu0
    %5929 = vdwg.mxu0
    %v5930 = vmax.f32 %v5912, 0.0
    %v5931 = vmax.f32 %v5917, 0.0
    %v5932 = vmax.f32 %v5922, 0.0
    %v5933 = vmax.f32 %v5927, 0.0
    %v5935 = vsel %vm2542, %v5930, 0
    %v5938 = vsel %vm2542, %v5931, 0
    %v5941 = vsel %vm2542, %v5932, 0
    %v5944 = vsel %vm2542, %v5933, 0
    %5946 = vmatprep.subr.mxu0 %v5734
    %5947 = vmatpush1.msra.mxu0 %v5733
    %5948 = vmatprep.subr.mxu0 %v5736
    %5949 = vmatpush1.msra.mxu0 %v5735
    %5950 = vmatprep.subr.mxu0 %v5738
    %5951 = vmatpush1.msra.mxu0 %v5737
    %5952 = vmatprep.subr.mxu0 %v5740
    %5953 = vmatpush1.msra.mxu0 %v5739
    %5954 = vmatprep.subr.mxu0 0.0
    %5955 = vmatpush1.msra.mxu0 0.0
    %5956 = vmatprep.subr.mxu0 0.0
    %5957 = vmatpush1.msra.mxu0 0.0
    %5958 = vmatprep.subr.mxu0 0.0
    %5959 = vmatpush1.msra.mxu0 0.0
    %5960 = vmatprep.subr.mxu0 0.0
    %5961 = vmatpush1.msra.mxu0 0.0
    %5962 = vmatprep.subr.mxu0 0.0
    %5963 = vmatpush1.msra.mxu0 0.0
    %5964 = vmatprep.subr.mxu0 0.0
    %5965 = vmatpush1.msra.mxu0 0.0
    %5966 = vmatprep.subr.mxu0 0.0
    %5967 = vmatpush1.msra.mxu0 0.0
    %5968 = vmatprep.subr.mxu0 0.0
    %5969 = vmatpush1.msra.mxu0 0.0
    %5970 = vmatprep.subr.mxu0 0.0
    %5971 = vmatpush1.msra.mxu0 0.0
    %5972 = vmatprep.subr.mxu0 0.0
    %5973 = vmatpush1.msra.mxu0 0.0
    %5974 = vmatprep.subr.mxu0 0.0
    %5975 = vmatpush1.msra.mxu0 0.0
    %5976 = vmatprep.subr.mxu0 0.0
    %5977 = vmatpush1.msra.mxu0 0.0
    %5978 = vmatprep.subr.mxu0 0.0
    %5979 = vmatpush1.msra.mxu0 0.0
    %5980 = vmatprep.subr.mxu0 0.0
    %5981 = vmatpush1.msra.mxu0 0.0
    %5982 = vmatprep.subr.mxu0 0.0
    %5983 = vmatpush1.msra.mxu0 0.0
    %5984 = vmatprep.subr.mxu0 0.0
    %5985 = vmatpush1.msra.mxu0 0.0
    %5986 = vmatprep.subr.mxu0 0.0
    %5987 = vmatpush1.msra.mxu0 0.0
    %5988 = vmatprep.subr.mxu0 0.0
    %5989 = vmatpush1.msra.mxu0 0.0
    %5990 = vmatprep.subr.mxu0 0.0
    %5991 = vmatpush1.msra.mxu0 0.0
    %5992 = vmatprep.subr.mxu0 0.0
    %5993 = vmatpush1.msra.mxu0 0.0
    %5994 = vmatprep.subr.mxu0 0.0
    %5995 = vmatpush1.msra.mxu0 0.0
    %5996 = vmatprep.subr.mxu0 0.0
    %5997 = vmatpush1.msra.mxu0 0.0
    %5998 = vmatprep.subr.mxu0 0.0
    %5999 = vmatpush1.msra.mxu0 0.0
    %6000 = vmatprep.subr.mxu0 0.0
    %6001 = vmatpush1.msra.mxu0 0.0
    %6002 = vmatprep.subr.mxu0 0.0
    %6003 = vmatpush1.msra.mxu0 0.0
    %6004 = vmatprep.subr.mxu0 0.0
    %6005 = vmatpush1.msra.mxu0 0.0
    %6006 = vmatprep.subr.mxu0 0.0
    %6007 = vmatpush1.msra.mxu0 0.0
    %6008 = vmatprep.subr.mxu0 0.0
    %6009 = vmatpush1.msra.mxu0 0.0
    %6010 = vmatprep.mubr.f32.mxu0 0.0
    %6011 = vmatmul.mubr.f32.gmra.mrb[0].mxu0 %v5935
    %v6012 = vpop.f32.mrb[0].mxu0
    %v6013 = vadd.f32 0.0, %v6012
    %v6014 = vpop.f32.mrb[0].mxu0
    %v6015 = vadd.f32 0.0, %v6014
    %6016 = vmatprep.mubr.f32.mxu0 0.0
    %6017 = vmatmul.mubr.f32.gmra.mrb[0].mxu0 %v5938
    %v6018 = vpop.f32.mrb[0].mxu0
    %v6019 = vadd.f32 0.0, %v6018
    %v6020 = vpop.f32.mrb[0].mxu0
    %v6021 = vadd.f32 0.0, %v6020
    %6022 = vmatprep.mubr.f32.mxu0 0.0
    %6023 = vmatmul.mubr.f32.gmra.mrb[0].mxu0 %v5941
    %v6024 = vpop.f32.mrb[0].mxu0
    %v6025 = vadd.f32 0.0, %v6024
    %v6026 = vpop.f32.mrb[0].mxu0
    %v6027 = vadd.f32 0.0, %v6026
    %6028 = vmatprep.mubr.f32.mxu0 0.0
    %6029 = vmatmul.mubr.f32.gmra.mrb[0].mxu0 %v5944
    %v6030 = vpop.f32.mrb[0].mxu0
    %v6031 = vadd.f32 0.0, %v6030
    %v6032 = vpop.f32.mrb[0].mxu0
    %v6033 = vadd.f32 0.0, %v6032
    %6034 = vdwg.mxu0
    %v6035 = vadd.f32 %v5688, %v6013
    %v6036 = vadd.f32 %v5689, %v6015
    %v6037 = vadd.f32 %v5690, %v6019
    %v6038 = vadd.f32 %v5691, %v6021
    %v6039 = vadd.f32 %v5692, %v6025
    %v6040 = vadd.f32 %v5693, %v6027
    %v6041 = vadd.f32 %v5694, %v6031
    %v6042 = vadd.f32 %v5695, %v6033
    %v6044 = vlaneseq
    %v6045 = vshrl.u32 %v6044, 7
    %v6046 = vsub.s32 0, %v6045
    %v6047 = vrot.slane %v5742, %v6046
    %v6048 = vlaneseq
    %v6049 = vshrl.u32 %v6048, 7
    %v6050 = vsub.s32 1, %v6049
    %v6051 = vrot.slane %v5742, %v6050
    %v6054 = vadd.f32 %v6035, %v6047
    %v6055 = vadd.f32 %v6036, %v6051
    %v6056 = vadd.f32 %v6037, %v6047
    %v6057 = vadd.f32 %v6038, %v6051
    %v6058 = vadd.f32 %v6039, %v6047
    %v6059 = vadd.f32 %v6040, %v6051
    %v6060 = vadd.f32 %v6041, %v6047
    %v6061 = vadd.f32 %v6042, %v6051
    %v6062 = vmax.f32 %v6054, %v6055
    %6063 = vmax.xlane.f32.xlu0 %v6062
    %v6064 = vpop.xlane.xlu0 %6063
    %v6065 = vmax.f32 %v6056, %v6057
    %6066 = vmax.xlane.f32.xlu0 %v6065
    %v6067 = vpop.xlane.xlu0 %6066
    %v6068 = vmax.f32 %v6058, %v6059
    %6069 = vmax.xlane.f32.xlu0 %v6068
    %v6070 = vpop.xlane.xlu0 %6069
    %v6071 = vmax.f32 %v6060, %v6061
    %6072 = vmax.xlane.f32.xlu0 %v6071
    %v6073 = vpop.xlane.xlu0 %6072
    %v6074 = vsel %vm3049, %v6064, %v6070
    %v6075 = vsel %vm3049, %v6067, %v6073
    %v6076 = vld [vmem:[%s406 + $0x5e0] sm:$0xff]
    %v6077 = vld [vmem:[%s406 + $0x5f0] sm:$0xff]
    %v6078 = vld [vmem:[%s406 + $0x600] sm:$0xff]
    %v6079 = vld [vmem:[%s406 + $0x610] sm:$0xff]
    %v6080 = vld [vmem:[%s406 + $0x620] sm:$0xff]
    %v6081 = vld [vmem:[%s406 + $0x630] sm:$0xff]
    %v6082 = vld [vmem:[%s406 + $0x640] sm:$0xff]
    %v6083 = vld [vmem:[%s406 + $0x650] sm:$0xff]
    %v6084 = vld [vmem:[%s406 + $0x660] sm:$0xff]
    %v6085 = vld [vmem:[%s406 + $0x670] sm:$0xff]
    %v6086 = vld [vmem:[%s406 + $0x680] sm:$0xff]
    %v6087 = vld [vmem:[%s406 + $0x690] sm:$0xff]
    %v6088 = vld [vmem:[%s406 + $0x6a0] sm:$0xff]
    %v6089 = vld [vmem:[%s406 + $0x6b0] sm:$0xff]
    %v6090 = vld [vmem:[%s406 + $0x6c0] sm:$0xff]
    %v6091 = vld [vmem:[%s406 + $0x6d0] sm:$0xff]
    %v6092 = vsel %vm3068, %v6074, 0.0
    %v6093 = vsel %vm3068, %v6075, 0.0
    %v6094 = vadd.f32 %v6092, %v6093
    %v6095 = vrot.slane %v6094, 4
    %v6096 = vadd.f32 %v6094, %v6095
    %v6097 = vrot.slane %v6096, 2
    %v6098 = vadd.f32 %v6096, %v6097
    %v6099 = vrot.slane %v6098, 1
    %v6100 = vadd.f32 %v6098, %v6099
    %v6101 = vmul.f32 %v6100, %v3078
    %v6102 = vsub.f32 %v6074, %v6101
    %v6103 = vsub.f32 %v6075, %v6101
    %v6104 = vmul.f32 %v6102, %v6102
    %v6105 = vmul.f32 %v6103, %v6103
    %v6106 = vsel %vm3068, %v6104, 0.0
    %v6107 = vsel %vm3068, %v6105, 0.0
    %v6108 = vadd.f32 %v6106, %v6107
    %v6109 = vrot.slane %v6108, 4
    %v6110 = vadd.f32 %v6108, %v6109
    %v6111 = vrot.slane %v6110, 2
    %v6112 = vadd.f32 %v6110, %v6111
    %v6113 = vrot.slane %v6112, 1
    %v6114 = vadd.f32 %v6112, %v6113
    %v6115 = vmul.f32 %v6114, %v3078
    %v6116 = vadd.f32 %v6115, 1e-05
    %v6117 = vrsqrt.pop %v6116
    %v6118 = vmul.f32 %v6102, %v6117
    %v6119 = vmul.f32 %v6103, %v6117
    %6121 = vset.pattern.permute.xlu0 0
    %6122 = vperm.xlu0 %6121, %v6076
    %v6123 = vpop.permute.xlu0 %6122
    %6126 = vset.pattern.permute.xlu0 0
    %6127 = vperm.xlu0 %6126, %v6077
    %v6128 = vpop.permute.xlu0 %6127
    %v6130 = vmul.f32 %v6118, %v6123
    %v6131 = vmul.f32 %v6119, %v6128
    %6133 = vset.pattern.permute.xlu0 0
    %6134 = vperm.xlu0 %6133, %v6078
    %v6135 = vpop.permute.xlu0 %6134
    %6138 = vset.pattern.permute.xlu0 0
    %6139 = vperm.xlu0 %6138, %v6079
    %v6140 = vpop.permute.xlu0 %6139
    %v6142 = vadd.f32 %v6130, %v6135
    %v6143 = vadd.f32 %v6131, %v6140
    %6145 = vset.pattern.permute.xlu0 0
    %6146 = vperm.xlu0 %6145, %v6084
    %v6147 = vpop.permute.xlu0 %6146
    %6150 = vset.pattern.permute.xlu0 0
    %6151 = vperm.xlu0 %6150, %v6085
    %v6152 = vpop.permute.xlu0 %6151
    %6155 = vset.pattern.permute.xlu0 0
    %6156 = vperm.xlu0 %6155, %v6086
    %v6157 = vpop.permute.xlu0 %6156
    %6160 = vset.pattern.permute.xlu0 0
    %6161 = vperm.xlu0 %6160, %v6087
    %v6162 = vpop.permute.xlu0 %6161
    %v6165 = vsel %vm1381, %v6080, 0
    %v6168 = vsel %vm1381, %v6081, 0
    %v6171 = vsel %vm1381, %v6082, 0
    %v6174 = vsel %vm1381, %v6083, 0
    %6176 = vmatprep.subr.mxu0 0.0
    %6177 = vmatpush1.msra.mxu0 %v6142
    %6178 = vmatprep.subr.mxu0 0.0
    %6179 = vmatpush1.msra.mxu0 %v6143
    %6180 = vmatprep.subr.mxu0 0.0
    %6181 = vmatpush1.msra.mxu0 0.0
    %6182 = vmatprep.subr.mxu0 0.0
    %6183 = vmatpush1.msra.mxu0 0.0
    %6184 = vmatprep.subr.mxu0 0.0
    %6185 = vmatpush1.msra.mxu0 0.0
    %6186 = vmatprep.subr.mxu0 0.0
    %6187 = vmatpush1.msra.mxu0 0.0
    %6188 = vmatprep.subr.mxu0 0.0
    %6189 = vmatpush1.msra.mxu0 0.0
    %6190 = vmatprep.subr.mxu0 0.0
    %6191 = vmatpush1.msra.mxu0 0.0
    %6192 = vmatprep.subr.mxu0 0.0
    %6193 = vmatpush1.msra.mxu0 0.0
    %6194 = vmatprep.subr.mxu0 0.0
    %6195 = vmatpush1.msra.mxu0 0.0
    %6196 = vmatprep.subr.mxu0 0.0
    %6197 = vmatpush1.msra.mxu0 0.0
    %6198 = vmatprep.subr.mxu0 0.0
    %6199 = vmatpush1.msra.mxu0 0.0
    %6200 = vmatprep.subr.mxu0 0.0
    %6201 = vmatpush1.msra.mxu0 0.0
    %6202 = vmatprep.subr.mxu0 0.0
    %6203 = vmatpush1.msra.mxu0 0.0
    %6204 = vmatprep.subr.mxu0 0.0
    %6205 = vmatpush1.msra.mxu0 0.0
    %6206 = vmatprep.subr.mxu0 0.0
    %6207 = vmatpush1.msra.mxu0 0.0
    %6208 = vmatprep.subr.mxu0 0.0
    %6209 = vmatpush1.msra.mxu0 0.0
    %6210 = vmatprep.subr.mxu0 0.0
    %6211 = vmatpush1.msra.mxu0 0.0
    %6212 = vmatprep.subr.mxu0 0.0
    %6213 = vmatpush1.msra.mxu0 0.0
    %6214 = vmatprep.subr.mxu0 0.0
    %6215 = vmatpush1.msra.mxu0 0.0
    %6216 = vmatprep.subr.mxu0 0.0
    %6217 = vmatpush1.msra.mxu0 0.0
    %6218 = vmatprep.subr.mxu0 0.0
    %6219 = vmatpush1.msra.mxu0 0.0
    %6220 = vmatprep.subr.mxu0 0.0
    %6221 = vmatpush1.msra.mxu0 0.0
    %6222 = vmatprep.subr.mxu0 0.0
    %6223 = vmatpush1.msra.mxu0 0.0
    %6224 = vmatprep.subr.mxu0 0.0
    %6225 = vmatpush1.msra.mxu0 0.0
    %6226 = vmatprep.subr.mxu0 0.0
    %6227 = vmatpush1.msra.mxu0 0.0
    %6228 = vmatprep.subr.mxu0 0.0
    %6229 = vmatpush1.msra.mxu0 0.0
    %6230 = vmatprep.subr.mxu0 0.0
    %6231 = vmatpush1.msra.mxu0 0.0
    %6232 = vmatprep.subr.mxu0 0.0
    %6233 = vmatpush1.msra.mxu0 0.0
    %6234 = vmatprep.subr.mxu0 0.0
    %6235 = vmatpush1.msra.mxu0 0.0
    %6236 = vmatprep.subr.mxu0 0.0
    %6237 = vmatpush1.msra.mxu0 0.0
    %6238 = vmatprep.subr.mxu0 0.0
    %6239 = vmatpush1.msra.mxu0 0.0
    %6240 = vmatprep.mubr.f32.mxu0 0.0
    %6241 = vmatmul.mubr.f32.gmra.mrb[0].mxu0 %v6165
    %v6242 = vpop.f32.mrb[0].mxu0
    %v6243 = vadd.f32 %v6147, %v6242
    %v6244 = vpop.f32.mrb[0].mxu0
    %6245 = vmatprep.mubr.f32.mxu0 0.0
    %6246 = vmatmul.mubr.f32.gmra.mrb[0].mxu0 %v6168
    %v6247 = vpop.f32.mrb[0].mxu0
    %v6248 = vadd.f32 %v6152, %v6247
    %v6249 = vpop.f32.mrb[0].mxu0
    %6250 = vmatprep.mubr.f32.mxu0 0.0
    %6251 = vmatmul.mubr.f32.gmra.mrb[0].mxu0 %v6171
    %v6252 = vpop.f32.mrb[0].mxu0
    %v6253 = vadd.f32 %v6157, %v6252
    %v6254 = vpop.f32.mrb[0].mxu0
    %6255 = vmatprep.mubr.f32.mxu0 0.0
    %6256 = vmatmul.mubr.f32.gmra.mrb[0].mxu0 %v6174
    %v6257 = vpop.f32.mrb[0].mxu0
    %v6258 = vadd.f32 %v6162, %v6257
    %v6259 = vpop.f32.mrb[0].mxu0
    %6260 = vdwg.mxu0
    %v6261 = vmax.f32 %v6243, 0.0
    %v6262 = vmax.f32 %v6248, 0.0
    %v6263 = vmax.f32 %v6253, 0.0
    %v6264 = vmax.f32 %v6258, 0.0
    %v6266 = vsel %vm2542, %v6088, 0
    %v6269 = vsel %vm2542, %v6089, 0
    %6271 = vmatprep.subr.mxu0 0.0
    %6272 = vmatpush1.msra.mxu0 %v6261
    %6273 = vmatprep.subr.mxu0 0.0
    %6274 = vmatpush1.msra.mxu0 %v6262
    %6275 = vmatprep.subr.mxu0 0.0
    %6276 = vmatpush1.msra.mxu0 %v6263
    %6277 = vmatprep.subr.mxu0 0.0
    %6278 = vmatpush1.msra.mxu0 %v6264
    %6279 = vmatprep.subr.mxu0 0.0
    %6280 = vmatpush1.msra.mxu0 0.0
    %6281 = vmatprep.subr.mxu0 0.0
    %6282 = vmatpush1.msra.mxu0 0.0
    %6283 = vmatprep.subr.mxu0 0.0
    %6284 = vmatpush1.msra.mxu0 0.0
    %6285 = vmatprep.subr.mxu0 0.0
    %6286 = vmatpush1.msra.mxu0 0.0
    %6287 = vmatprep.subr.mxu0 0.0
    %6288 = vmatpush1.msra.mxu0 0.0
    %6289 = vmatprep.subr.mxu0 0.0
    %6290 = vmatpush1.msra.mxu0 0.0
    %6291 = vmatprep.subr.mxu0 0.0
    %6292 = vmatpush1.msra.mxu0 0.0
    %6293 = vmatprep.subr.mxu0 0.0
    %6294 = vmatpush1.msra.mxu0 0.0
    %6295 = vmatprep.subr.mxu0 0.0
    %6296 = vmatpush1.msra.mxu0 0.0
    %6297 = vmatprep.subr.mxu0 0.0
    %6298 = vmatpush1.msra.mxu0 0.0
    %6299 = vmatprep.subr.mxu0 0.0
    %6300 = vmatpush1.msra.mxu0 0.0
    %6301 = vmatprep.subr.mxu0 0.0
    %6302 = vmatpush1.msra.mxu0 0.0
    %6303 = vmatprep.subr.mxu0 0.0
    %6304 = vmatpush1.msra.mxu0 0.0
    %6305 = vmatprep.subr.mxu0 0.0
    %6306 = vmatpush1.msra.mxu0 0.0
    %6307 = vmatprep.subr.mxu0 0.0
    %6308 = vmatpush1.msra.mxu0 0.0
    %6309 = vmatprep.subr.mxu0 0.0
    %6310 = vmatpush1.msra.mxu0 0.0
    %6311 = vmatprep.subr.mxu0 0.0
    %6312 = vmatpush1.msra.mxu0 0.0
    %6313 = vmatprep.subr.mxu0 0.0
    %6314 = vmatpush1.msra.mxu0 0.0
    %6315 = vmatprep.subr.mxu0 0.0
    %6316 = vmatpush1.msra.mxu0 0.0
    %6317 = vmatprep.subr.mxu0 0.0
    %6318 = vmatpush1.msra.mxu0 0.0
    %6319 = vmatprep.subr.mxu0 0.0
    %6320 = vmatpush1.msra.mxu0 0.0
    %6321 = vmatprep.subr.mxu0 0.0
    %6322 = vmatpush1.msra.mxu0 0.0
    %6323 = vmatprep.subr.mxu0 0.0
    %6324 = vmatpush1.msra.mxu0 0.0
    %6325 = vmatprep.subr.mxu0 0.0
    %6326 = vmatpush1.msra.mxu0 0.0
    %6327 = vmatprep.subr.mxu0 0.0
    %6328 = vmatpush1.msra.mxu0 0.0
    %6329 = vmatprep.subr.mxu0 0.0
    %6330 = vmatpush1.msra.mxu0 0.0
    %6331 = vmatprep.subr.mxu0 0.0
    %6332 = vmatpush1.msra.mxu0 0.0
    %6333 = vmatprep.subr.mxu0 0.0
    %6334 = vmatpush1.msra.mxu0 0.0
    %6335 = vmatprep.mubr.f32.mxu0 0.0
    %6336 = vmatmul.mubr.f32.gmra.mrb[0].mxu0 %v6266
    %v6337 = vpop.f32.mrb[0].mxu0
    %v6338 = vadd.f32 0.0, %v6337
    %v6339 = vpop.f32.mrb[0].mxu0
    %6340 = vmatprep.mubr.f32.mxu0 0.0
    %6341 = vmatmul.mubr.f32.gmra.mrb[0].mxu0 %v6269
    %v6342 = vpop.f32.mrb[0].mxu0
    %v6343 = vadd.f32 0.0, %v6342
    %v6344 = vpop.f32.mrb[0].mxu0
    %6345 = vdwg.mxu0
    %v6346 = vadd.f32 %v6074, %v6338
    %v6347 = vadd.f32 %v6075, %v6343
    %6349 = vset.pattern.permute.xlu0 0
    %6350 = vperm.xlu0 %6349, %v6090
    %v6351 = vpop.permute.xlu0 %6350
    %6354 = vset.pattern.permute.xlu0 0
    %6355 = vperm.xlu0 %6354, %v6091
    %v6356 = vpop.permute.xlu0 %6355
    %v6358 = vadd.f32 %v6346, %v6351
    %v6359 = vadd.f32 %v6347, %v6356
    %v6360 = vld [vmem:[%s406 + $0x6e0] sm:$0xff]
    %v6361 = vld [vmem:[%s406 + $0x6f0] sm:$0xff]
    %v6362 = vld [vmem:[%s406 + $0x700] sm:$0xff]
    %v6363 = vld [vmem:[%s406 + $0x710] sm:$0xff]
    %v6364 = vld [vmem:[%s406 + $0x720] sm:$0xff]
    %v6365 = vld [vmem:[%s406 + $0x730] sm:$0xff]
    %v6366 = vld [vmem:[%s406 + $0x740] sm:$0xff]
    %v6367 = vld [vmem:[%s406 + $0x750] sm:$0xff]
    %v6368 = vld [vmem:[%s406 + $0x760] sm:$0xff]
    %v6369 = vld [vmem:[%s406 + $0x770] sm:$0xff]
    %v6370 = vld [vmem:[%s406 + $0x780] sm:$0xff]
    %v6371 = vld [vmem:[%s406 + $0x790] sm:$0xff]
    %v6372 = vld [vmem:[%s406 + $0x7a0] sm:$0xff]
    %v6373 = vld [vmem:[%s406 + $0x7b0] sm:$0xff]
    %v6374 = vld [vmem:[%s406 + $0x7c0] sm:$0xff]
    %v6375 = vld [vmem:[%s406 + $0x7d0] sm:$0xff]
    %v6376 = vsel %vm3068, %v6358, 0.0
    %v6377 = vsel %vm3068, %v6359, 0.0
    %v6378 = vadd.f32 %v6376, %v6377
    %v6379 = vrot.slane %v6378, 4
    %v6380 = vadd.f32 %v6378, %v6379
    %v6381 = vrot.slane %v6380, 2
    %v6382 = vadd.f32 %v6380, %v6381
    %v6383 = vrot.slane %v6382, 1
    %v6384 = vadd.f32 %v6382, %v6383
    %v6385 = vmul.f32 %v6384, %v3078
    %v6386 = vsub.f32 %v6358, %v6385
    %v6387 = vsub.f32 %v6359, %v6385
    %v6388 = vmul.f32 %v6386, %v6386
    %v6389 = vmul.f32 %v6387, %v6387
    %v6390 = vsel %vm3068, %v6388, 0.0
    %v6391 = vsel %vm3068, %v6389, 0.0
    %v6392 = vadd.f32 %v6390, %v6391
    %v6393 = vrot.slane %v6392, 4
    %v6394 = vadd.f32 %v6392, %v6393
    %v6395 = vrot.slane %v6394, 2
    %v6396 = vadd.f32 %v6394, %v6395
    %v6397 = vrot.slane %v6396, 1
    %v6398 = vadd.f32 %v6396, %v6397
    %v6399 = vmul.f32 %v6398, %v3078
    %v6400 = vadd.f32 %v6399, 1e-05
    %v6401 = vrsqrt.pop %v6400
    %v6402 = vmul.f32 %v6386, %v6401
    %v6403 = vmul.f32 %v6387, %v6401
    %6405 = vset.pattern.permute.xlu0 0
    %6406 = vperm.xlu0 %6405, %v6360
    %v6407 = vpop.permute.xlu0 %6406
    %6410 = vset.pattern.permute.xlu0 0
    %6411 = vperm.xlu0 %6410, %v6361
    %v6412 = vpop.permute.xlu0 %6411
    %v6414 = vmul.f32 %v6402, %v6407
    %v6415 = vmul.f32 %v6403, %v6412
    %6417 = vset.pattern.permute.xlu0 0
    %6418 = vperm.xlu0 %6417, %v6362
    %v6419 = vpop.permute.xlu0 %6418
    %6422 = vset.pattern.permute.xlu0 0
    %6423 = vperm.xlu0 %6422, %v6363
    %v6424 = vpop.permute.xlu0 %6423
    %v6426 = vadd.f32 %v6414, %v6419
    %v6427 = vadd.f32 %v6415, %v6424
    %6429 = vset.pattern.permute.xlu0 0
    %6430 = vperm.xlu0 %6429, %v6368
    %v6431 = vpop.permute.xlu0 %6430
    %6434 = vset.pattern.permute.xlu0 0
    %6435 = vperm.xlu0 %6434, %v6369
    %v6436 = vpop.permute.xlu0 %6435
    %6439 = vset.pattern.permute.xlu0 0
    %6440 = vperm.xlu0 %6439, %v6370
    %v6441 = vpop.permute.xlu0 %6440
    %6444 = vset.pattern.permute.xlu0 0
    %6445 = vperm.xlu0 %6444, %v6371
    %v6446 = vpop.permute.xlu0 %6445
    %v6449 = vsel %vm1381, %v6364, 0
    %v6452 = vsel %vm1381, %v6365, 0
    %v6455 = vsel %vm1381, %v6366, 0
    %v6458 = vsel %vm1381, %v6367, 0
    %6460 = vmatprep.subr.mxu0 0.0
    %6461 = vmatpush1.msra.mxu0 %v6426
    %6462 = vmatprep.subr.mxu0 0.0
    %6463 = vmatpush1.msra.mxu0 %v6427
    %6464 = vmatprep.subr.mxu0 0.0
    %6465 = vmatpush1.msra.mxu0 0.0
    %6466 = vmatprep.subr.mxu0 0.0
    %6467 = vmatpush1.msra.mxu0 0.0
    %6468 = vmatprep.subr.mxu0 0.0
    %6469 = vmatpush1.msra.mxu0 0.0
    %6470 = vmatprep.subr.mxu0 0.0
    %6471 = vmatpush1.msra.mxu0 0.0
    %6472 = vmatprep.subr.mxu0 0.0
    %6473 = vmatpush1.msra.mxu0 0.0
    %6474 = vmatprep.subr.mxu0 0.0
    %6475 = vmatpush1.msra.mxu0 0.0
    %6476 = vmatprep.subr.mxu0 0.0
    %6477 = vmatpush1.msra.mxu0 0.0
    %6478 = vmatprep.subr.mxu0 0.0
    %6479 = vmatpush1.msra.mxu0 0.0
    %6480 = vmatprep.subr.mxu0 0.0
    %6481 = vmatpush1.msra.mxu0 0.0
    %6482 = vmatprep.subr.mxu0 0.0
    %6483 = vmatpush1.msra.mxu0 0.0
    %6484 = vmatprep.subr.mxu0 0.0
    %6485 = vmatpush1.msra.mxu0 0.0
    %6486 = vmatprep.subr.mxu0 0.0
    %6487 = vmatpush1.msra.mxu0 0.0
    %6488 = vmatprep.subr.mxu0 0.0
    %6489 = vmatpush1.msra.mxu0 0.0
    %6490 = vmatprep.subr.mxu0 0.0
    %6491 = vmatpush1.msra.mxu0 0.0
    %6492 = vmatprep.subr.mxu0 0.0
    %6493 = vmatpush1.msra.mxu0 0.0
    %6494 = vmatprep.subr.mxu0 0.0
    %6495 = vmatpush1.msra.mxu0 0.0
    %6496 = vmatprep.subr.mxu0 0.0
    %6497 = vmatpush1.msra.mxu0 0.0
    %6498 = vmatprep.subr.mxu0 0.0
    %6499 = vmatpush1.msra.mxu0 0.0
    %6500 = vmatprep.subr.mxu0 0.0
    %6501 = vmatpush1.msra.mxu0 0.0
    %6502 = vmatprep.subr.mxu0 0.0
    %6503 = vmatpush1.msra.mxu0 0.0
    %6504 = vmatprep.subr.mxu0 0.0
    %6505 = vmatpush1.msra.mxu0 0.0
    %6506 = vmatprep.subr.mxu0 0.0
    %6507 = vmatpush1.msra.mxu0 0.0
    %6508 = vmatprep.subr.mxu0 0.0
    %6509 = vmatpush1.msra.mxu0 0.0
    %6510 = vmatprep.subr.mxu0 0.0
    %6511 = vmatpush1.msra.mxu0 0.0
    %6512 = vmatprep.subr.mxu0 0.0
    %6513 = vmatpush1.msra.mxu0 0.0
    %6514 = vmatprep.subr.mxu0 0.0
    %6515 = vmatpush1.msra.mxu0 0.0
    %6516 = vmatprep.subr.mxu0 0.0
    %6517 = vmatpush1.msra.mxu0 0.0
    %6518 = vmatprep.subr.mxu0 0.0
    %6519 = vmatpush1.msra.mxu0 0.0
    %6520 = vmatprep.subr.mxu0 0.0
    %6521 = vmatpush1.msra.mxu0 0.0
    %6522 = vmatprep.subr.mxu0 0.0
    %6523 = vmatpush1.msra.mxu0 0.0
    %6524 = vmatprep.mubr.f32.mxu0 0.0
    %6525 = vmatmul.mubr.f32.gmra.mrb[0].mxu0 %v6449
    %v6526 = vpop.f32.mrb[0].mxu0
    %v6527 = vadd.f32 %v6431, %v6526
    %v6528 = vpop.f32.mrb[0].mxu0
    %6529 = vmatprep.mubr.f32.mxu0 0.0
    %6530 = vmatmul.mubr.f32.gmra.mrb[0].mxu0 %v6452
    %v6531 = vpop.f32.mrb[0].mxu0
    %v6532 = vadd.f32 %v6436, %v6531
    %v6533 = vpop.f32.mrb[0].mxu0
    %6534 = vmatprep.mubr.f32.mxu0 0.0
    %6535 = vmatmul.mubr.f32.gmra.mrb[0].mxu0 %v6455
    %v6536 = vpop.f32.mrb[0].mxu0
    %v6537 = vadd.f32 %v6441, %v6536
    %v6538 = vpop.f32.mrb[0].mxu0
    %6539 = vmatprep.mubr.f32.mxu0 0.0
    %6540 = vmatmul.mubr.f32.gmra.mrb[0].mxu0 %v6458
    %v6541 = vpop.f32.mrb[0].mxu0
    %v6542 = vadd.f32 %v6446, %v6541
    %v6543 = vpop.f32.mrb[0].mxu0
    %6544 = vdwg.mxu0
    %v6545 = vmax.f32 %v6527, 0.0
    %v6546 = vmax.f32 %v6532, 0.0
    %v6547 = vmax.f32 %v6537, 0.0
    %v6548 = vmax.f32 %v6542, 0.0
    %v6550 = vsel %vm2542, %v6372, 0
    %v6553 = vsel %vm2542, %v6373, 0
    %6555 = vmatprep.subr.mxu0 0.0
    %6556 = vmatpush1.msra.mxu0 %v6545
    %6557 = vmatprep.subr.mxu0 0.0
    %6558 = vmatpush1.msra.mxu0 %v6546
    %6559 = vmatprep.subr.mxu0 0.0
    %6560 = vmatpush1.msra.mxu0 %v6547
    %6561 = vmatprep.subr.mxu0 0.0
    %6562 = vmatpush1.msra.mxu0 %v6548
    %6563 = vmatprep.subr.mxu0 0.0
    %6564 = vmatpush1.msra.mxu0 0.0
    %6565 = vmatprep.subr.mxu0 0.0
    %6566 = vmatpush1.msra.mxu0 0.0
    %6567 = vmatprep.subr.mxu0 0.0
    %6568 = vmatpush1.msra.mxu0 0.0
    %6569 = vmatprep.subr.mxu0 0.0
    %6570 = vmatpush1.msra.mxu0 0.0
    %6571 = vmatprep.subr.mxu0 0.0
    %6572 = vmatpush1.msra.mxu0 0.0
    %6573 = vmatprep.subr.mxu0 0.0
    %6574 = vmatpush1.msra.mxu0 0.0
    %6575 = vmatprep.subr.mxu0 0.0
    %6576 = vmatpush1.msra.mxu0 0.0
    %6577 = vmatprep.subr.mxu0 0.0
    %6578 = vmatpush1.msra.mxu0 0.0
    %6579 = vmatprep.subr.mxu0 0.0
    %6580 = vmatpush1.msra.mxu0 0.0
    %6581 = vmatprep.subr.mxu0 0.0
    %6582 = vmatpush1.msra.mxu0 0.0
    %6583 = vmatprep.subr.mxu0 0.0
    %6584 = vmatpush1.msra.mxu0 0.0
    %6585 = vmatprep.subr.mxu0 0.0
    %6586 = vmatpush1.msra.mxu0 0.0
    %6587 = vmatprep.subr.mxu0 0.0
    %6588 = vmatpush1.msra.mxu0 0.0
    %6589 = vmatprep.subr.mxu0 0.0
    %6590 = vmatpush1.msra.mxu0 0.0
    %6591 = vmatprep.subr.mxu0 0.0
    %6592 = vmatpush1.msra.mxu0 0.0
    %6593 = vmatprep.subr.mxu0 0.0
    %6594 = vmatpush1.msra.mxu0 0.0
    %6595 = vmatprep.subr.mxu0 0.0
    %6596 = vmatpush1.msra.mxu0 0.0
    %6597 = vmatprep.subr.mxu0 0.0
    %6598 = vmatpush1.msra.mxu0 0.0
    %6599 = vmatprep.subr.mxu0 0.0
    %6600 = vmatpush1.msra.mxu0 0.0
    %6601 = vmatprep.subr.mxu0 0.0
    %6602 = vmatpush1.msra.mxu0 0.0
    %6603 = vmatprep.subr.mxu0 0.0
    %6604 = vmatpush1.msra.mxu0 0.0
    %6605 = vmatprep.subr.mxu0 0.0
    %6606 = vmatpush1.msra.mxu0 0.0
    %6607 = vmatprep.subr.mxu0 0.0
    %6608 = vmatpush1.msra.mxu0 0.0
    %6609 = vmatprep.subr.mxu0 0.0
    %6610 = vmatpush1.msra.mxu0 0.0
    %6611 = vmatprep.subr.mxu0 0.0
    %6612 = vmatpush1.msra.mxu0 0.0
    %6613 = vmatprep.subr.mxu0 0.0
    %6614 = vmatpush1.msra.mxu0 0.0
    %6615 = vmatprep.subr.mxu0 0.0
    %6616 = vmatpush1.msra.mxu0 0.0
    %6617 = vmatprep.subr.mxu0 0.0
    %6618 = vmatpush1.msra.mxu0 0.0
    %6619 = vmatprep.mubr.f32.mxu0 0.0
    %6620 = vmatmul.mubr.f32.gmra.mrb[0].mxu0 %v6550
    %v6621 = vpop.f32.mrb[0].mxu0
    %v6622 = vadd.f32 0.0, %v6621
    %v6623 = vpop.f32.mrb[0].mxu0
    %6624 = vmatprep.mubr.f32.mxu0 0.0
    %6625 = vmatmul.mubr.f32.gmra.mrb[0].mxu0 %v6553
    %v6626 = vpop.f32.mrb[0].mxu0
    %v6627 = vadd.f32 0.0, %v6626
    %v6628 = vpop.f32.mrb[0].mxu0
    %6629 = vdwg.mxu0
    %v6630 = vadd.f32 %v6358, %v6622
    %v6631 = vadd.f32 %v6359, %v6627
    %6633 = vset.pattern.permute.xlu0 0
    %6634 = vperm.xlu0 %6633, %v6374
    %v6635 = vpop.permute.xlu0 %6634
    %6638 = vset.pattern.permute.xlu0 0
    %6639 = vperm.xlu0 %6638, %v6375
    %v6640 = vpop.permute.xlu0 %6639
    %v6642 = vadd.f32 %v6630, %v6635
    %v6643 = vadd.f32 %v6631, %v6640
    %v6644 = vld [vmem:[%s406 + $0x7e0] ss:$0 sm:$0xff]
    %v6645 = vld [vmem:[%s406 + $0x7f0] ss:$0 sm:$0xff]
    %6647 = vset.pattern.permute.xlu0 0
    %6648 = vperm.xlu0 %6647, %v6645
    %v6649 = vpop.permute.xlu0 %6648
    %v6652 = vsel %vm1381, %v6644, 0
    %6654 = vmatprep.subr.mxu0 0.0
    %6655 = vmatpush1.msra.mxu0 %v6642
    %6656 = vmatprep.subr.mxu0 0.0
    %6657 = vmatpush1.msra.mxu0 %v6643
    %6658 = vmatprep.subr.mxu0 0.0
    %6659 = vmatpush1.msra.mxu0 0.0
    %6660 = vmatprep.subr.mxu0 0.0
    %6661 = vmatpush1.msra.mxu0 0.0
    %6662 = vmatprep.subr.mxu0 0.0
    %6663 = vmatpush1.msra.mxu0 0.0
    %6664 = vmatprep.subr.mxu0 0.0
    %6665 = vmatpush1.msra.mxu0 0.0
    %6666 = vmatprep.subr.mxu0 0.0
    %6667 = vmatpush1.msra.mxu0 0.0
    %6668 = vmatprep.subr.mxu0 0.0
    %6669 = vmatpush1.msra.mxu0 0.0
    %6670 = vmatprep.subr.mxu0 0.0
    %6671 = vmatpush1.msra.mxu0 0.0
    %6672 = vmatprep.subr.mxu0 0.0
    %6673 = vmatpush1.msra.mxu0 0.0
    %6674 = vmatprep.subr.mxu0 0.0
    %6675 = vmatpush1.msra.mxu0 0.0
    %6676 = vmatprep.subr.mxu0 0.0
    %6677 = vmatpush1.msra.mxu0 0.0
    %6678 = vmatprep.subr.mxu0 0.0
    %6679 = vmatpush1.msra.mxu0 0.0
    %6680 = vmatprep.subr.mxu0 0.0
    %6681 = vmatpush1.msra.mxu0 0.0
    %6682 = vmatprep.subr.mxu0 0.0
    %6683 = vmatpush1.msra.mxu0 0.0
    %6684 = vmatprep.subr.mxu0 0.0
    %6685 = vmatpush1.msra.mxu0 0.0
    %6686 = vmatprep.subr.mxu0 0.0
    %6687 = vmatpush1.msra.mxu0 0.0
    %6688 = vmatprep.subr.mxu0 0.0
    %6689 = vmatpush1.msra.mxu0 0.0
    %6690 = vmatprep.subr.mxu0 0.0
    %6691 = vmatpush1.msra.mxu0 0.0
    %6692 = vmatprep.subr.mxu0 0.0
    %6693 = vmatpush1.msra.mxu0 0.0
    %6694 = vmatprep.subr.mxu0 0.0
    %6695 = vmatpush1.msra.mxu0 0.0
    %6696 = vmatprep.subr.mxu0 0.0
    %6697 = vmatpush1.msra.mxu0 0.0
    %6698 = vmatprep.subr.mxu0 0.0
    %6699 = vmatpush1.msra.mxu0 0.0
    %6700 = vmatprep.subr.mxu0 0.0
    %6701 = vmatpush1.msra.mxu0 0.0
    %6702 = vmatprep.subr.mxu0 0.0
    %6703 = vmatpush1.msra.mxu0 0.0
    %6704 = vmatprep.subr.mxu0 0.0
    %6705 = vmatpush1.msra.mxu0 0.0
    %6706 = vmatprep.subr.mxu0 0.0
    %6707 = vmatpush1.msra.mxu0 0.0
    %6708 = vmatprep.subr.mxu0 0.0
    %6709 = vmatpush1.msra.mxu0 0.0
    %6710 = vmatprep.subr.mxu0 0.0
    %6711 = vmatpush1.msra.mxu0 0.0
    %6712 = vmatprep.subr.mxu0 0.0
    %6713 = vmatpush1.msra.mxu0 0.0
    %6714 = vmatprep.subr.mxu0 0.0
    %6715 = vmatpush1.msra.mxu0 0.0
    %6716 = vmatprep.subr.mxu0 0.0
    %6717 = vmatpush1.msra.mxu0 0.0
    %6718 = vmatprep.mubr.f32.mxu0 0.0
    %6719 = vmatmul.mubr.f32.gmra.mrb[0].mxu0 %v6652
    %v6720 = vpop.f32.mrb[0].mxu0
    %v6721 = vadd.f32 %v6649, %v6720
    %v6722 = vpop.f32.mrb[0].mxu0
    %6723 = vdwg.mxu0
    %s6724 = scalar_lea.vmem %s3, 1
    %6725 = vst.msk [vmem:[%s6724] sm:$0x1] %vm3702, %v6721
    // Predicated region
    $region22: #{forward.1} parent=1 // pred_check
      _
    $region23: #{forward.1} parent=1 // pred_check_branch
      %6727 = sbr.rel (0) target = $region25
    $region24: #{forward.1} parent=1 // pred_region
      _
    $region25: #{forward.1} parent=1 // pred_fallthru
      _
    // Predicated region
    $region26: #{forward.1} parent=1 // pred_check
      _
    $region27: #{forward.1} parent=1 // pred_check_branch
      %6729 = sbr.rel (0) target = $region29
    $region28: #{forward.1} parent=1 // pred_region
      _
    $region29: #{forward.1} parent=1 // pred_fallthru
      _
    %6730 = vsyncpa [#allocation4], 1
    %6731 = vsyncpa [#allocation6], 1

</llo_original>
